<compile_context>
chip_gen: v7x
topology: tpu7x:2x2x1
jax: 0.10.0
libtpu: 0.0.40
codegen_flags: <defaults>
</compile_context>

<pallas_src>
import jax
import jax.numpy as jnp
from jax import lax
from jax.experimental import pallas as pl
from jax.experimental.pallas import tpu as pltpu

BN_EPS = 1e-5
CP = 128        # lane-dense channel width for activations / accumulators
WPAD_L = 8      # left spatial halo (sublane-aligned; only column 7 must be 0)
WPAD_R = 8      # right spatial halo (only its first column must be 0)


def double_conv_kernel(x_ref, w1_ref, g1_ref, b1_ref, w2_ref, g2_ref, b2_ref,
                       o_ref, xpad_ref, wbuf_ref):
    """Single grid point; everything VMEM-resident (small shapes).

    x_ref   : (N, H, W, Cin)          unpadded NHWC input
    w1_ref  : (3, 3, Cin,  Cout)      conv1 weights, tiny & unpadded
    w2_ref  : (3, 3, Cout, Cout)      conv2 weights, tiny & unpadded
    g*/b*   : (1, CP)                 BN gamma/beta, zero-padded to CP lanes
    o_ref   : (N, H, W, CP)           lane-dense output (real channels first)
    xpad_ref: (N, H+2, 8+W+8, CP)     shared zero-halo scratch, interior at
                                      rows [1:1+H], cols [8:8+W] (aligned)
    wbuf_ref: (9*CP, CP)              per-tap weight blocks, packed in-kernel
    """
    N, H, W, Cin = x_ref.shape
    Cout = w1_ref.shape[3]
    M = N * H * W

    # ---- stage 0: zero the halo / channel-pad scratch and the weight scratch
    # ONCE. Channels >= Cin/Cout and the 1-pixel spatial halo stay exactly 0.
    xpad_ref[...] = jnp.zeros(xpad_ref.shape, xpad_ref.dtype)
    wbuf_ref[...] = jnp.zeros(wbuf_ref.shape, wbuf_ref.dtype)

    # Place the input at the sublane-aligned interior (W offset 8).
    xpad_ref[:, 1:1 + H, WPAD_L:WPAD_L + W, :Cin] = x_ref[...]

    def pack_weights(w_ref, c_in):
        # Rows [t*CP, t*CP + c_in), cols [0, Cout) of tap t = dy*3+dx hold the
        # real weights; everything else stays 0 so padded output lanes are 0.
        for dy in range(3):
            for dx in range(3):
                t = dy * 3 + dx
                wbuf_ref[t * CP:t * CP + c_in, :Cout] = w_ref[dy, dx, :, :]

    def conv_bn_relu(gamma, beta):
        # 3x3 conv = 9 accumulated (M, CP) x (CP, CP) MXU matmuls read straight
        # from the shifted halo views. The reshape below is layout-preserving
        # (W % 8 == 0), so no im2col slab and no relayout copy is materialized.
        acc = None
        for dy in range(3):
            for dx in range(3):
                c0 = WPAD_L + dx - 1          # 7 / 8 / 9 (dx==1 fully aligned)
                lhs = xpad_ref[:, dy:dy + H, c0:c0 + W, :].reshape(M, CP)
                t = dy * 3 + dx
                w_t = wbuf_ref[t * CP:(t + 1) * CP, :]
                part = jnp.dot(lhs, w_t, preferred_element_type=jnp.float32)
                acc = part if acc is None else acc + part
        # Training-mode BatchNorm2d (biased variance over N*H*W), two-pass
        # centered variance, folded into one scale/shift + ReLU pass.
        mean = jnp.mean(acc, axis=0, keepdims=True)             # (1, CP)
        d = acc - mean
        var = jnp.mean(d * d, axis=0, keepdims=True)            # (1, CP)
        scale = gamma * lax.rsqrt(var + BN_EPS)                 # (1, CP)
        shift = beta - mean * scale                             # (1, CP), pad lanes 0
        return jnp.maximum(acc * scale + shift, 0.0)

    # ---- conv1 + BN1 + ReLU -------------------------------------------------
    pack_weights(w1_ref, Cin)
    y = conv_bn_relu(g1_ref[...], b1_ref[...])

    # INVARIANT GUARD: padded lanes of y are exactly 0 (zero wbuf columns,
    # padded beta == 0, padded mean == 0), so this full-width, sublane-aligned
    # interior store keeps the zero-halo / zero-lane invariant of xpad valid
    # for conv2. Adding a conv bias or nonzero padded beta would break this.
    xpad_ref[:, 1:1 + H, WPAD_L:WPAD_L + W, :] = y.reshape(N, H, W, CP)

    # ---- conv2 + BN2 + ReLU -------------------------------------------------
    if Cin > Cout:
        # w1 rows [Cout, Cin) per tap would otherwise survive under w2.
        wbuf_ref[...] = jnp.zeros(wbuf_ref.shape, wbuf_ref.dtype)
    pack_weights(w2_ref, Cout)
    z = conv_bn_relu(g2_ref[...], b2_ref[...])

    # Lane-dense (128-wide) output store; wrapper slices the real channels.
    o_ref[...] = z.reshape(N, H, W, CP)


def double_conv(x_nchw, w1, g1, b1, w2, g2, b2):
    """x_nchw: (N, Cin, H, W) f32. w1: (3,3,Cin,Cout), w2: (3,3,Cout,Cout) HWIO."""
    N, Cin, H, W = x_nchw.shape
    Cout = w1.shape[-1]
    assert Cin <= CP and Cout <= CP
    assert W % 8 == 0, "W must be a multiple of 8 (aligned sublane layout)"

    # NCHW -> NHWC so channels sit on the 128-lane axis. No activation or
    # weight zero-padding happens in the wrapper anymore.
    x = jnp.transpose(x_nchw, (0, 2, 3, 1))

    # Only the tiny BN affine vectors are padded here (512 B each). Padded
    # lanes use gamma=0, beta=0 (safe: padded mean/var/acc are all 0).
    g1p = jnp.zeros((1, CP), jnp.float32).at[0, :Cout].set(g1)
    b1p = jnp.zeros((1, CP), jnp.float32).at[0, :Cout].set(b1)
    g2p = jnp.zeros((1, CP), jnp.float32).at[0, :Cout].set(g2)
    b2p = jnp.zeros((1, CP), jnp.float32).at[0, :Cout].set(b2)

    vmem = pl.BlockSpec(memory_space=pltpu.MemorySpace.VMEM)
    out_nhwc = pl.pallas_call(
        double_conv_kernel,
        out_shape=jax.ShapeDtypeStruct((N, H, W, CP), jnp.float32),
        in_specs=[vmem] * 7,
        out_specs=vmem,
        scratch_shapes=[
            pltpu.VMEM((N, H + 2, WPAD_L + W + WPAD_R, CP), jnp.float32),
            pltpu.VMEM((9 * CP, CP), jnp.float32),
        ],
        compiler_params=pltpu.CompilerParams(
            vmem_limit_bytes=12 * 1024 * 1024),
    )(x, w1, g1p, b1p, w2, g2p, b2p)

    # Slice off the padded channels (exactly 0) and return NCHW.
    return jnp.transpose(out_nhwc[..., :Cout], (0, 3, 1, 2))


def double_conv_reference(x_nchw, w1, g1, b1, w2, g2, b2):
    """Pure-JAX reference (training-mode BatchNorm semantics)."""
    x = jnp.transpose(x_nchw, (0, 2, 3, 1))

    def conv(v, w):
        return lax.conv_general_dilated(
            v, w, window_strides=(1, 1), padding=((1, 1), (1, 1)),
            dimension_numbers=('NHWC', 'HWIO', 'NHWC'))

    def bn_relu(v, g, b):
        m = jnp.mean(v, axis=(0, 1, 2), keepdims=True)
        var = jnp.mean((v - m) ** 2, axis=(0, 1, 2), keepdims=True)
        return jnp.maximum((v - m) * lax.rsqrt(var + BN_EPS) * g + b, 0.0)

    y = bn_relu(conv(x, w1), g1, b1)
    z = bn_relu(conv(y, w2), g2, b2)
    return jnp.transpose(z, (0, 3, 1, 2))


if __name__ == "__main__":
    # Small, deterministic problem: DoubleConv(in_channels=4, out_channels=8)
    N, Cin, Cout, H, W = 2, 4, 8, 16, 16

    key = jax.random.PRNGKey(0)
    kx, kw1, kw2 = jax.random.split(key, 3)

    x = jax.random.normal(kx, (N, Cin, H, W), dtype=jnp.float32)

    # Conv weights in HWIO layout (3,3,Cin,Cout) — equivalent to PyTorch's
    # (Cout,Cin,3,3) transposed to (kH,kW,Cin,Cout). Kaiming-ish scale.
    w1 = jax.random.normal(kw1, (3, 3, Cin, Cout), jnp.float32) * (2.0 / (9 * Cin)) ** 0.5
    w2 = jax.random.normal(kw2, (3, 3, Cout, Cout), jnp.float32) * (2.0 / (9 * Cout)) ** 0.5

    # BatchNorm affine params (deterministic, slightly non-trivial).
    g1 = 1.0 + 0.05 * jnp.arange(Cout, dtype=jnp.float32)
    b1 = 0.01 * jnp.arange(Cout, dtype=jnp.float32)
    g2 = 1.0 - 0.03 * jnp.arange(Cout, dtype=jnp.float32)
    b2 = -0.02 * jnp.arange(Cout, dtype=jnp.float32)

    out = jax.jit(double_conv)(x, w1, g1, b1, w2, g2, b2)
    out = jax.block_until_ready(out)

    ref = double_conv_reference(x, w1, g1, b1, w2, g2, b2)
    assert out.shape == (N, Cout, H, W)
    assert jnp.allclose(out, ref, atol=2e-4, rtol=2e-4), "mismatch vs reference"

    print("KERNEL_OK")
</pallas_src>

<mosaic_0001>
module attributes {stable_mosaic.version = 11 : i64} {
  func.func @double_conv_kernel(%arg0: memref<2x16x16x4xf32, #tpu.memory_space<vmem>>, %arg1: memref<3x3x4x8xf32, #tpu.memory_space<vmem>>, %arg2: memref<1x128xf32, #tpu.memory_space<vmem>>, %arg3: memref<1x128xf32, #tpu.memory_space<vmem>>, %arg4: memref<3x3x8x8xf32, #tpu.memory_space<vmem>>, %arg5: memref<1x128xf32, #tpu.memory_space<vmem>>, %arg6: memref<1x128xf32, #tpu.memory_space<vmem>>, %arg7: memref<2x16x16x128xf32, #tpu.memory_space<vmem>>, %arg8: memref<2x18x32x128xf32, #tpu.memory_space<vmem>>, %arg9: memref<1152x128xf32, #tpu.memory_space<vmem>>) attributes {dimension_semantics = [], scalar_prefetch = 0 : i64, scratch_operands = 2 : i64, tpu.core_type = #tpu.core_type<tc>} {
    %cst = arith.constant 0.000000e+00 : f32
    %0 = vector.broadcast %cst : f32 to vector<2x18x32x128xf32>
    %c0 = arith.constant 0 : index
    %c0_0 = arith.constant 0 : index
    %c0_1 = arith.constant 0 : index
    %c0_2 = arith.constant 0 : index
    %1 = vector.load %arg8[%c0, %c0_0, %c0_1, %c0_2] : memref<2x18x32x128xf32, #tpu.memory_space<vmem>>, vector<2x18x32x128xf32>
    tpu.vector_store %arg8[%c0, %c0_0, %c0_1, %c0_2], %0 {strides = array<i32>} : memref<2x18x32x128xf32, #tpu.memory_space<vmem>>, vector<2x18x32x128xf32>,
    %cst_3 = arith.constant 0.000000e+00 : f32
    %2 = vector.broadcast %cst_3 : f32 to vector<1152x128xf32>
    %c0_4 = arith.constant 0 : index
    %c0_5 = arith.constant 0 : index
    %3 = vector.load %arg9[%c0_4, %c0_5] : memref<1152x128xf32, #tpu.memory_space<vmem>>, vector<1152x128xf32>
    tpu.vector_store %arg9[%c0_4, %c0_5], %2 {strides = array<i32>} : memref<1152x128xf32, #tpu.memory_space<vmem>>, vector<1152x128xf32>,
    %c0_6 = arith.constant 0 : index
    %c0_7 = arith.constant 0 : index
    %c0_8 = arith.constant 0 : index
    %c0_9 = arith.constant 0 : index
    %4 = vector.load %arg0[%c0_6, %c0_7, %c0_8, %c0_9] : memref<2x16x16x4xf32, #tpu.memory_space<vmem>>, vector<2x16x16x4xf32>
    %c0_10 = arith.constant 0 : index
    %c1 = arith.constant 1 : index
    %c8 = arith.constant 8 : index
    %c0_11 = arith.constant 0 : index
    %5 = vector.load %arg8[%c0_10, %c1, %c8, %c0_11] : memref<2x18x32x128xf32, #tpu.memory_space<vmem>>, vector<2x16x16x4xf32>
    tpu.vector_store %arg8[%c0_10, %c1, %c8, %c0_11], %4 {strides = array<i32>} : memref<2x18x32x128xf32, #tpu.memory_space<vmem>>, vector<2x16x16x4xf32>,
    %c0_12 = arith.constant 0 : index
    %c0_13 = arith.constant 0 : index
    %c0_14 = arith.constant 0 : index
    %c0_15 = arith.constant 0 : index
    %6 = vector.load %arg1[%c0_12, %c0_13, %c0_14, %c0_15] : memref<3x3x4x8xf32, #tpu.memory_space<vmem>>, vector<1x1x4x8xf32>
    %7 = vector.shape_cast %6 : vector<1x1x4x8xf32> to vector<4x8xf32>
    %c0_16 = arith.constant 0 : index
    %c0_17 = arith.constant 0 : index
    %8 = vector.load %arg9[%c0_16, %c0_17] : memref<1152x128xf32, #tpu.memory_space<vmem>>, vector<4x8xf32>
    tpu.vector_store %arg9[%c0_16, %c0_17], %7 {strides = array<i32>} : memref<1152x128xf32, #tpu.memory_space<vmem>>, vector<4x8xf32>,
    %c0_18 = arith.constant 0 : index
    %c1_19 = arith.constant 1 : index
    %c0_20 = arith.constant 0 : index
    %c0_21 = arith.constant 0 : index
    %9 = vector.load %arg1[%c0_18, %c1_19, %c0_20, %c0_21] : memref<3x3x4x8xf32, #tpu.memory_space<vmem>>, vector<1x1x4x8xf32>
    %10 = vector.shape_cast %9 : vector<1x1x4x8xf32> to vector<4x8xf32>
    %c128 = arith.constant 128 : index
    %c0_22 = arith.constant 0 : index
    %11 = vector.load %arg9[%c128, %c0_22] : memref<1152x128xf32, #tpu.memory_space<vmem>>, vector<4x8xf32>
    tpu.vector_store %arg9[%c128, %c0_22], %10 {strides = array<i32>} : memref<1152x128xf32, #tpu.memory_space<vmem>>, vector<4x8xf32>,
    %c0_23 = arith.constant 0 : index
    %c2 = arith.constant 2 : index
    %c0_24 = arith.constant 0 : index
    %c0_25 = arith.constant 0 : index
    %12 = vector.load %arg1[%c0_23, %c2, %c0_24, %c0_25] : memref<3x3x4x8xf32, #tpu.memory_space<vmem>>, vector<1x1x4x8xf32>
    %13 = vector.shape_cast %12 : vector<1x1x4x8xf32> to vector<4x8xf32>
    %c256 = arith.constant 256 : index
    %c0_26 = arith.constant 0 : index
    %14 = vector.load %arg9[%c256, %c0_26] : memref<1152x128xf32, #tpu.memory_space<vmem>>, vector<4x8xf32>
    tpu.vector_store %arg9[%c256, %c0_26], %13 {strides = array<i32>} : memref<1152x128xf32, #tpu.memory_space<vmem>>, vector<4x8xf32>,
    %c1_27 = arith.constant 1 : index
    %c0_28 = arith.constant 0 : index
    %c0_29 = arith.constant 0 : index
    %c0_30 = arith.constant 0 : index
    %15 = vector.load %arg1[%c1_27, %c0_28, %c0_29, %c0_30] : memref<3x3x4x8xf32, #tpu.memory_space<vmem>>, vector<1x1x4x8xf32>
    %16 = vector.shape_cast %15 : vector<1x1x4x8xf32> to vector<4x8xf32>
    %c384 = arith.constant 384 : index
    %c0_31 = arith.constant 0 : index
    %17 = vector.load %arg9[%c384, %c0_31] : memref<1152x128xf32, #tpu.memory_space<vmem>>, vector<4x8xf32>
    tpu.vector_store %arg9[%c384, %c0_31], %16 {strides = array<i32>} : memref<1152x128xf32, #tpu.memory_space<vmem>>, vector<4x8xf32>,
    %c1_32 = arith.constant 1 : index
    %c1_33 = arith.constant 1 : index
    %c0_34 = arith.constant 0 : index
    %c0_35 = arith.constant 0 : index
    %18 = vector.load %arg1[%c1_32, %c1_33, %c0_34, %c0_35] : memref<3x3x4x8xf32, #tpu.memory_space<vmem>>, vector<1x1x4x8xf32>
    %19 = vector.shape_cast %18 : vector<1x1x4x8xf32> to vector<4x8xf32>
    %c512 = arith.constant 512 : index
    %c0_36 = arith.constant 0 : index
    %20 = vector.load %arg9[%c512, %c0_36] : memref<1152x128xf32, #tpu.memory_space<vmem>>, vector<4x8xf32>
    tpu.vector_store %arg9[%c512, %c0_36], %19 {strides = array<i32>} : memref<1152x128xf32, #tpu.memory_space<vmem>>, vector<4x8xf32>,
    %c1_37 = arith.constant 1 : index
    %c2_38 = arith.constant 2 : index
    %c0_39 = arith.constant 0 : index
    %c0_40 = arith.constant 0 : index
    %21 = vector.load %arg1[%c1_37, %c2_38, %c0_39, %c0_40] : memref<3x3x4x8xf32, #tpu.memory_space<vmem>>, vector<1x1x4x8xf32>
    %22 = vector.shape_cast %21 : vector<1x1x4x8xf32> to vector<4x8xf32>
    %c640 = arith.constant 640 : index
    %c0_41 = arith.constant 0 : index
    %23 = vector.load %arg9[%c640, %c0_41] : memref<1152x128xf32, #tpu.memory_space<vmem>>, vector<4x8xf32>
    tpu.vector_store %arg9[%c640, %c0_41], %22 {strides = array<i32>} : memref<1152x128xf32, #tpu.memory_space<vmem>>, vector<4x8xf32>,
    %c2_42 = arith.constant 2 : index
    %c0_43 = arith.constant 0 : index
    %c0_44 = arith.constant 0 : index
    %c0_45 = arith.constant 0 : index
    %24 = vector.load %arg1[%c2_42, %c0_43, %c0_44, %c0_45] : memref<3x3x4x8xf32, #tpu.memory_space<vmem>>, vector<1x1x4x8xf32>
    %25 = vector.shape_cast %24 : vector<1x1x4x8xf32> to vector<4x8xf32>
    %c768 = arith.constant 768 : index
    %c0_46 = arith.constant 0 : index
    %26 = vector.load %arg9[%c768, %c0_46] : memref<1152x128xf32, #tpu.memory_space<vmem>>, vector<4x8xf32>
    tpu.vector_store %arg9[%c768, %c0_46], %25 {strides = array<i32>} : memref<1152x128xf32, #tpu.memory_space<vmem>>, vector<4x8xf32>,
    %c2_47 = arith.constant 2 : index
    %c1_48 = arith.constant 1 : index
    %c0_49 = arith.constant 0 : index
    %c0_50 = arith.constant 0 : index
    %27 = vector.load %arg1[%c2_47, %c1_48, %c0_49, %c0_50] : memref<3x3x4x8xf32, #tpu.memory_space<vmem>>, vector<1x1x4x8xf32>
    %28 = vector.shape_cast %27 : vector<1x1x4x8xf32> to vector<4x8xf32>
    %c896 = arith.constant 896 : index
    %c0_51 = arith.constant 0 : index
    %29 = vector.load %arg9[%c896, %c0_51] : memref<1152x128xf32, #tpu.memory_space<vmem>>, vector<4x8xf32>
    tpu.vector_store %arg9[%c896, %c0_51], %28 {strides = array<i32>} : memref<1152x128xf32, #tpu.memory_space<vmem>>, vector<4x8xf32>,
    %c2_52 = arith.constant 2 : index
    %c2_53 = arith.constant 2 : index
    %c0_54 = arith.constant 0 : index
    %c0_55 = arith.constant 0 : index
    %30 = vector.load %arg1[%c2_52, %c2_53, %c0_54, %c0_55] : memref<3x3x4x8xf32, #tpu.memory_space<vmem>>, vector<1x1x4x8xf32>
    %31 = vector.shape_cast %30 : vector<1x1x4x8xf32> to vector<4x8xf32>
    %c1024 = arith.constant 1024 : index
    %c0_56 = arith.constant 0 : index
    %32 = vector.load %arg9[%c1024, %c0_56] : memref<1152x128xf32, #tpu.memory_space<vmem>>, vector<4x8xf32>
    tpu.vector_store %arg9[%c1024, %c0_56], %31 {strides = array<i32>} : memref<1152x128xf32, #tpu.memory_space<vmem>>, vector<4x8xf32>,
    %c0_57 = arith.constant 0 : index
    %c0_58 = arith.constant 0 : index
    %33 = vector.load %arg2[%c0_57, %c0_58] : memref<1x128xf32, #tpu.memory_space<vmem>>, vector<1x128xf32>
    %c0_59 = arith.constant 0 : index
    %c0_60 = arith.constant 0 : index
    %34 = vector.load %arg3[%c0_59, %c0_60] : memref<1x128xf32, #tpu.memory_space<vmem>>, vector<1x128xf32>
    %c0_61 = arith.constant 0 : index
    %c0_62 = arith.constant 0 : index
    %c7 = arith.constant 7 : index
    %c0_63 = arith.constant 0 : index
    %35 = vector.load %arg8[%c0_61, %c0_62, %c7, %c0_63] : memref<2x18x32x128xf32, #tpu.memory_space<vmem>>, vector<2x16x16x128xf32>
    %36 = vector.shape_cast %35 : vector<2x16x16x128xf32> to vector<512x128xf32>
    %c0_64 = arith.constant 0 : index
    %c0_65 = arith.constant 0 : index
    %37 = vector.load %arg9[%c0_64, %c0_65] : memref<1152x128xf32, #tpu.memory_space<vmem>>, vector<128x128xf32>
    %cst_66 = arith.constant dense<0.000000e+00> : vector<512x128xf32>
    %38 = tpu.matmul %36, %37, %cst_66 {dimension_numbers = #tpu.dot_dimension_numbers<[1], [0], [0], [1], [0, 0, 1, 1], [], []>} : vector<512x128xf32>, vector<128x128xf32>, vector<512x128xf32> -> vector<512x128xf32>
    %c0_67 = arith.constant 0 : index
    %c0_68 = arith.constant 0 : index
    %c8_69 = arith.constant 8 : index
    %c0_70 = arith.constant 0 : index
    %39 = vector.load %arg8[%c0_67, %c0_68, %c8_69, %c0_70] : memref<2x18x32x128xf32, #tpu.memory_space<vmem>>, vector<2x16x16x128xf32>
    %40 = vector.shape_cast %39 : vector<2x16x16x128xf32> to vector<512x128xf32>
    %c128_71 = arith.constant 128 : index
    %c0_72 = arith.constant 0 : index
    %41 = vector.load %arg9[%c128_71, %c0_72] : memref<1152x128xf32, #tpu.memory_space<vmem>>, vector<128x128xf32>
    %cst_73 = arith.constant dense<0.000000e+00> : vector<512x128xf32>
    %42 = tpu.matmul %40, %41, %cst_73 {dimension_numbers = #tpu.dot_dimension_numbers<[1], [0], [0], [1], [0, 0, 1, 1], [], []>} : vector<512x128xf32>, vector<128x128xf32>, vector<512x128xf32> -> vector<512x128xf32>
    %43 = arith.addf %38, %42 : vector<512x128xf32>
    %c0_74 = arith.constant 0 : index
    %c0_75 = arith.constant 0 : index
    %c9 = arith.constant 9 : index
    %c0_76 = arith.constant 0 : index
    %44 = vector.load %arg8[%c0_74, %c0_75, %c9, %c0_76] : memref<2x18x32x128xf32, #tpu.memory_space<vmem>>, vector<2x16x16x128xf32>
    %45 = vector.shape_cast %44 : vector<2x16x16x128xf32> to vector<512x128xf32>
    %c256_77 = arith.constant 256 : index
    %c0_78 = arith.constant 0 : index
    %46 = vector.load %arg9[%c256_77, %c0_78] : memref<1152x128xf32, #tpu.memory_space<vmem>>, vector<128x128xf32>
    %cst_79 = arith.constant dense<0.000000e+00> : vector<512x128xf32>
    %47 = tpu.matmul %45, %46, %cst_79 {dimension_numbers = #tpu.dot_dimension_numbers<[1], [0], [0], [1], [0, 0, 1, 1], [], []>} : vector<512x128xf32>, vector<128x128xf32>, vector<512x128xf32> -> vector<512x128xf32>
    %48 = arith.addf %43, %47 : vector<512x128xf32>
    %c0_80 = arith.constant 0 : index
    %c1_81 = arith.constant 1 : index
    %c7_82 = arith.constant 7 : index
    %c0_83 = arith.constant 0 : index
    %49 = vector.load %arg8[%c0_80, %c1_81, %c7_82, %c0_83] : memref<2x18x32x128xf32, #tpu.memory_space<vmem>>, vector<2x16x16x128xf32>
    %50 = vector.shape_cast %49 : vector<2x16x16x128xf32> to vector<512x128xf32>
    %c384_84 = arith.constant 384 : index
    %c0_85 = arith.constant 0 : index
    %51 = vector.load %arg9[%c384_84, %c0_85] : memref<1152x128xf32, #tpu.memory_space<vmem>>, vector<128x128xf32>
    %cst_86 = arith.constant dense<0.000000e+00> : vector<512x128xf32>
    %52 = tpu.matmul %50, %51, %cst_86 {dimension_numbers = #tpu.dot_dimension_numbers<[1], [0], [0], [1], [0, 0, 1, 1], [], []>} : vector<512x128xf32>, vector<128x128xf32>, vector<512x128xf32> -> vector<512x128xf32>
    %53 = arith.addf %48, %52 : vector<512x128xf32>
    %c0_87 = arith.constant 0 : index
    %c1_88 = arith.constant 1 : index
    %c8_89 = arith.constant 8 : index
    %c0_90 = arith.constant 0 : index
    %54 = vector.load %arg8[%c0_87, %c1_88, %c8_89, %c0_90] : memref<2x18x32x128xf32, #tpu.memory_space<vmem>>, vector<2x16x16x128xf32>
    %55 = vector.shape_cast %54 : vector<2x16x16x128xf32> to vector<512x128xf32>
    %c512_91 = arith.constant 512 : index
    %c0_92 = arith.constant 0 : index
    %56 = vector.load %arg9[%c512_91, %c0_92] : memref<1152x128xf32, #tpu.memory_space<vmem>>, vector<128x128xf32>
    %cst_93 = arith.constant dense<0.000000e+00> : vector<512x128xf32>
    %57 = tpu.matmul %55, %56, %cst_93 {dimension_numbers = #tpu.dot_dimension_numbers<[1], [0], [0], [1], [0, 0, 1, 1], [], []>} : vector<512x128xf32>, vector<128x128xf32>, vector<512x128xf32> -> vector<512x128xf32>
    %58 = arith.addf %53, %57 : vector<512x128xf32>
    %c0_94 = arith.constant 0 : index
    %c1_95 = arith.constant 1 : index
    %c9_96 = arith.constant 9 : index
    %c0_97 = arith.constant 0 : index
    %59 = vector.load %arg8[%c0_94, %c1_95, %c9_96, %c0_97] : memref<2x18x32x128xf32, #tpu.memory_space<vmem>>, vector<2x16x16x128xf32>
    %60 = vector.shape_cast %59 : vector<2x16x16x128xf32> to vector<512x128xf32>
    %c640_98 = arith.constant 640 : index
    %c0_99 = arith.constant 0 : index
    %61 = vector.load %arg9[%c640_98, %c0_99] : memref<1152x128xf32, #tpu.memory_space<vmem>>, vector<128x128xf32>
    %cst_100 = arith.constant dense<0.000000e+00> : vector<512x128xf32>
    %62 = tpu.matmul %60, %61, %cst_100 {dimension_numbers = #tpu.dot_dimension_numbers<[1], [0], [0], [1], [0, 0, 1, 1], [], []>} : vector<512x128xf32>, vector<128x128xf32>, vector<512x128xf32> -> vector<512x128xf32>
    %63 = arith.addf %58, %62 : vector<512x128xf32>
    %c0_101 = arith.constant 0 : index
    %c2_102 = arith.constant 2 : index
    %c7_103 = arith.constant 7 : index
    %c0_104 = arith.constant 0 : index
    %64 = vector.load %arg8[%c0_101, %c2_102, %c7_103, %c0_104] : memref<2x18x32x128xf32, #tpu.memory_space<vmem>>, vector<2x16x16x128xf32>
    %65 = vector.shape_cast %64 : vector<2x16x16x128xf32> to vector<512x128xf32>
    %c768_105 = arith.constant 768 : index
    %c0_106 = arith.constant 0 : index
    %66 = vector.load %arg9[%c768_105, %c0_106] : memref<1152x128xf32, #tpu.memory_space<vmem>>, vector<128x128xf32>
    %cst_107 = arith.constant dense<0.000000e+00> : vector<512x128xf32>
    %67 = tpu.matmul %65, %66, %cst_107 {dimension_numbers = #tpu.dot_dimension_numbers<[1], [0], [0], [1], [0, 0, 1, 1], [], []>} : vector<512x128xf32>, vector<128x128xf32>, vector<512x128xf32> -> vector<512x128xf32>
    %68 = arith.addf %63, %67 : vector<512x128xf32>
    %c0_108 = arith.constant 0 : index
    %c2_109 = arith.constant 2 : index
    %c8_110 = arith.constant 8 : index
    %c0_111 = arith.constant 0 : index
    %69 = vector.load %arg8[%c0_108, %c2_109, %c8_110, %c0_111] : memref<2x18x32x128xf32, #tpu.memory_space<vmem>>, vector<2x16x16x128xf32>
    %70 = vector.shape_cast %69 : vector<2x16x16x128xf32> to vector<512x128xf32>
    %c896_112 = arith.constant 896 : index
    %c0_113 = arith.constant 0 : index
    %71 = vector.load %arg9[%c896_112, %c0_113] : memref<1152x128xf32, #tpu.memory_space<vmem>>, vector<128x128xf32>
    %cst_114 = arith.constant dense<0.000000e+00> : vector<512x128xf32>
    %72 = tpu.matmul %70, %71, %cst_114 {dimension_numbers = #tpu.dot_dimension_numbers<[1], [0], [0], [1], [0, 0, 1, 1], [], []>} : vector<512x128xf32>, vector<128x128xf32>, vector<512x128xf32> -> vector<512x128xf32>
    %73 = arith.addf %68, %72 : vector<512x128xf32>
    %c0_115 = arith.constant 0 : index
    %c2_116 = arith.constant 2 : index
    %c9_117 = arith.constant 9 : index
    %c0_118 = arith.constant 0 : index
    %74 = vector.load %arg8[%c0_115, %c2_116, %c9_117, %c0_118] : memref<2x18x32x128xf32, #tpu.memory_space<vmem>>, vector<2x16x16x128xf32>
    %75 = vector.shape_cast %74 : vector<2x16x16x128xf32> to vector<512x128xf32>
    %c1024_119 = arith.constant 1024 : index
    %c0_120 = arith.constant 0 : index
    %76 = vector.load %arg9[%c1024_119, %c0_120] : memref<1152x128xf32, #tpu.memory_space<vmem>>, vector<128x128xf32>
    %cst_121 = arith.constant dense<0.000000e+00> : vector<512x128xf32>
    %77 = tpu.matmul %75, %76, %cst_121 {dimension_numbers = #tpu.dot_dimension_numbers<[1], [0], [0], [1], [0, 0, 1, 1], [], []>} : vector<512x128xf32>, vector<128x128xf32>, vector<512x128xf32> -> vector<512x128xf32>
    %78 = arith.addf %73, %77 : vector<512x128xf32>
    %cst_122 = arith.constant dense<0.000000e+00> : vector<128xf32>
    %79 = vector.multi_reduction <add>, %78, %cst_122 [0] : vector<512x128xf32> to vector<128xf32>
    %80 = vector.shape_cast %79 : vector<128xf32> to vector<1x128xf32>
    %cst_123 = arith.constant 5.120000e+02 : f32
    %81 = vector.broadcast %cst_123 : f32 to vector<1x128xf32>
    %82 = arith.divf %80, %81 : vector<1x128xf32>
    %83 = vector.broadcast %82 : vector<1x128xf32> to vector<512x128xf32>
    %84 = arith.subf %78, %83 : vector<512x128xf32>
    %85 = arith.mulf %84, %84 : vector<512x128xf32>
    %cst_124 = arith.constant dense<0.000000e+00> : vector<128xf32>
    %86 = vector.multi_reduction <add>, %85, %cst_124 [0] : vector<512x128xf32> to vector<128xf32>
    %87 = vector.shape_cast %86 : vector<128xf32> to vector<1x128xf32>
    %cst_125 = arith.constant 5.120000e+02 : f32
    %88 = vector.broadcast %cst_125 : f32 to vector<1x128xf32>
    %89 = arith.divf %87, %88 : vector<1x128xf32>
    %cst_126 = arith.constant 9.99999974E-6 : f32
    %90 = vector.broadcast %cst_126 : f32 to vector<1x128xf32>
    %91 = arith.addf %89, %90 : vector<1x128xf32>
    %92 = math.rsqrt %91 : vector<1x128xf32>
    %93 = arith.mulf %33, %92 : vector<1x128xf32>
    %94 = arith.mulf %82, %93 : vector<1x128xf32>
    %95 = arith.subf %34, %94 : vector<1x128xf32>
    %96 = vector.broadcast %93 : vector<1x128xf32> to vector<512x128xf32>
    %97 = arith.mulf %78, %96 : vector<512x128xf32>
    %98 = vector.broadcast %95 : vector<1x128xf32> to vector<512x128xf32>
    %99 = arith.addf %97, %98 : vector<512x128xf32>
    %cst_127 = arith.constant 0.000000e+00 : f32
    %100 = vector.broadcast %cst_127 : f32 to vector<512x128xf32>
    %101 = arith.maximumf %99, %100 : vector<512x128xf32>
    %102 = vector.shape_cast %101 : vector<512x128xf32> to vector<2x16x16x128xf32>
    %c0_128 = arith.constant 0 : index
    %c1_129 = arith.constant 1 : index
    %c8_130 = arith.constant 8 : index
    %c0_131 = arith.constant 0 : index
    %103 = vector.load %arg8[%c0_128, %c1_129, %c8_130, %c0_131] : memref<2x18x32x128xf32, #tpu.memory_space<vmem>>, vector<2x16x16x128xf32>
    tpu.vector_store %arg8[%c0_128, %c1_129, %c8_130, %c0_131], %102 {strides = array<i32>} : memref<2x18x32x128xf32, #tpu.memory_space<vmem>>, vector<2x16x16x128xf32>,
    %c0_132 = arith.constant 0 : index
    %c0_133 = arith.constant 0 : index
    %c0_134 = arith.constant 0 : index
    %c0_135 = arith.constant 0 : index
    %104 = vector.load %arg4[%c0_132, %c0_133, %c0_134, %c0_135] : memref<3x3x8x8xf32, #tpu.memory_space<vmem>>, vector<1x1x8x8xf32>
    %105 = vector.shape_cast %104 : vector<1x1x8x8xf32> to vector<8x8xf32>
    %c0_136 = arith.constant 0 : index
    %c0_137 = arith.constant 0 : index
    %106 = vector.load %arg9[%c0_136, %c0_137] : memref<1152x128xf32, #tpu.memory_space<vmem>>, vector<8x8xf32>
    tpu.vector_store %arg9[%c0_136, %c0_137], %105 {strides = array<i32>} : memref<1152x128xf32, #tpu.memory_space<vmem>>, vector<8x8xf32>,
    %c0_138 = arith.constant 0 : index
    %c1_139 = arith.constant 1 : index
    %c0_140 = arith.constant 0 : index
    %c0_141 = arith.constant 0 : index
    %107 = vector.load %arg4[%c0_138, %c1_139, %c0_140, %c0_141] : memref<3x3x8x8xf32, #tpu.memory_space<vmem>>, vector<1x1x8x8xf32>
    %108 = vector.shape_cast %107 : vector<1x1x8x8xf32> to vector<8x8xf32>
    %c128_142 = arith.constant 128 : index
    %c0_143 = arith.constant 0 : index
    %109 = vector.load %arg9[%c128_142, %c0_143] : memref<1152x128xf32, #tpu.memory_space<vmem>>, vector<8x8xf32>
    tpu.vector_store %arg9[%c128_142, %c0_143], %108 {strides = array<i32>} : memref<1152x128xf32, #tpu.memory_space<vmem>>, vector<8x8xf32>,
    %c0_144 = arith.constant 0 : index
    %c2_145 = arith.constant 2 : index
    %c0_146 = arith.constant 0 : index
    %c0_147 = arith.constant 0 : index
    %110 = vector.load %arg4[%c0_144, %c2_145, %c0_146, %c0_147] : memref<3x3x8x8xf32, #tpu.memory_space<vmem>>, vector<1x1x8x8xf32>
    %111 = vector.shape_cast %110 : vector<1x1x8x8xf32> to vector<8x8xf32>
    %c256_148 = arith.constant 256 : index
    %c0_149 = arith.constant 0 : index
    %112 = vector.load %arg9[%c256_148, %c0_149] : memref<1152x128xf32, #tpu.memory_space<vmem>>, vector<8x8xf32>
    tpu.vector_store %arg9[%c256_148, %c0_149], %111 {strides = array<i32>} : memref<1152x128xf32, #tpu.memory_space<vmem>>, vector<8x8xf32>,
    %c1_150 = arith.constant 1 : index
    %c0_151 = arith.constant 0 : index
    %c0_152 = arith.constant 0 : index
    %c0_153 = arith.constant 0 : index
    %113 = vector.load %arg4[%c1_150, %c0_151, %c0_152, %c0_153] : memref<3x3x8x8xf32, #tpu.memory_space<vmem>>, vector<1x1x8x8xf32>
    %114 = vector.shape_cast %113 : vector<1x1x8x8xf32> to vector<8x8xf32>
    %c384_154 = arith.constant 384 : index
    %c0_155 = arith.constant 0 : index
    %115 = vector.load %arg9[%c384_154, %c0_155] : memref<1152x128xf32, #tpu.memory_space<vmem>>, vector<8x8xf32>
    tpu.vector_store %arg9[%c384_154, %c0_155], %114 {strides = array<i32>} : memref<1152x128xf32, #tpu.memory_space<vmem>>, vector<8x8xf32>,
    %c1_156 = arith.constant 1 : index
    %c1_157 = arith.constant 1 : index
    %c0_158 = arith.constant 0 : index
    %c0_159 = arith.constant 0 : index
    %116 = vector.load %arg4[%c1_156, %c1_157, %c0_158, %c0_159] : memref<3x3x8x8xf32, #tpu.memory_space<vmem>>, vector<1x1x8x8xf32>
    %117 = vector.shape_cast %116 : vector<1x1x8x8xf32> to vector<8x8xf32>
    %c512_160 = arith.constant 512 : index
    %c0_161 = arith.constant 0 : index
    %118 = vector.load %arg9[%c512_160, %c0_161] : memref<1152x128xf32, #tpu.memory_space<vmem>>, vector<8x8xf32>
    tpu.vector_store %arg9[%c512_160, %c0_161], %117 {strides = array<i32>} : memref<1152x128xf32, #tpu.memory_space<vmem>>, vector<8x8xf32>,
    %c1_162 = arith.constant 1 : index
    %c2_163 = arith.constant 2 : index
    %c0_164 = arith.constant 0 : index
    %c0_165 = arith.constant 0 : index
    %119 = vector.load %arg4[%c1_162, %c2_163, %c0_164, %c0_165] : memref<3x3x8x8xf32, #tpu.memory_space<vmem>>, vector<1x1x8x8xf32>
    %120 = vector.shape_cast %119 : vector<1x1x8x8xf32> to vector<8x8xf32>
    %c640_166 = arith.constant 640 : index
    %c0_167 = arith.constant 0 : index
    %121 = vector.load %arg9[%c640_166, %c0_167] : memref<1152x128xf32, #tpu.memory_space<vmem>>, vector<8x8xf32>
    tpu.vector_store %arg9[%c640_166, %c0_167], %120 {strides = array<i32>} : memref<1152x128xf32, #tpu.memory_space<vmem>>, vector<8x8xf32>,
    %c2_168 = arith.constant 2 : index
    %c0_169 = arith.constant 0 : index
    %c0_170 = arith.constant 0 : index
    %c0_171 = arith.constant 0 : index
    %122 = vector.load %arg4[%c2_168, %c0_169, %c0_170, %c0_171] : memref<3x3x8x8xf32, #tpu.memory_space<vmem>>, vector<1x1x8x8xf32>
    %123 = vector.shape_cast %122 : vector<1x1x8x8xf32> to vector<8x8xf32>
    %c768_172 = arith.constant 768 : index
    %c0_173 = arith.constant 0 : index
    %124 = vector.load %arg9[%c768_172, %c0_173] : memref<1152x128xf32, #tpu.memory_space<vmem>>, vector<8x8xf32>
    tpu.vector_store %arg9[%c768_172, %c0_173], %123 {strides = array<i32>} : memref<1152x128xf32, #tpu.memory_space<vmem>>, vector<8x8xf32>,
    %c2_174 = arith.constant 2 : index
    %c1_175 = arith.constant 1 : index
    %c0_176 = arith.constant 0 : index
    %c0_177 = arith.constant 0 : index
    %125 = vector.load %arg4[%c2_174, %c1_175, %c0_176, %c0_177] : memref<3x3x8x8xf32, #tpu.memory_space<vmem>>, vector<1x1x8x8xf32>
    %126 = vector.shape_cast %125 : vector<1x1x8x8xf32> to vector<8x8xf32>
    %c896_178 = arith.constant 896 : index
    %c0_179 = arith.constant 0 : index
    %127 = vector.load %arg9[%c896_178, %c0_179] : memref<1152x128xf32, #tpu.memory_space<vmem>>, vector<8x8xf32>
    tpu.vector_store %arg9[%c896_178, %c0_179], %126 {strides = array<i32>} : memref<1152x128xf32, #tpu.memory_space<vmem>>, vector<8x8xf32>,
    %c2_180 = arith.constant 2 : index
    %c2_181 = arith.constant 2 : index
    %c0_182 = arith.constant 0 : index
    %c0_183 = arith.constant 0 : index
    %128 = vector.load %arg4[%c2_180, %c2_181, %c0_182, %c0_183] : memref<3x3x8x8xf32, #tpu.memory_space<vmem>>, vector<1x1x8x8xf32>
    %129 = vector.shape_cast %128 : vector<1x1x8x8xf32> to vector<8x8xf32>
    %c1024_184 = arith.constant 1024 : index
    %c0_185 = arith.constant 0 : index
    %130 = vector.load %arg9[%c1024_184, %c0_185] : memref<1152x128xf32, #tpu.memory_space<vmem>>, vector<8x8xf32>
    tpu.vector_store %arg9[%c1024_184, %c0_185], %129 {strides = array<i32>} : memref<1152x128xf32, #tpu.memory_space<vmem>>, vector<8x8xf32>,
    %c0_186 = arith.constant 0 : index
    %c0_187 = arith.constant 0 : index
    %131 = vector.load %arg5[%c0_186, %c0_187] : memref<1x128xf32, #tpu.memory_space<vmem>>, vector<1x128xf32>
    %c0_188 = arith.constant 0 : index
    %c0_189 = arith.constant 0 : index
    %132 = vector.load %arg6[%c0_188, %c0_189] : memref<1x128xf32, #tpu.memory_space<vmem>>, vector<1x128xf32>
    %c0_190 = arith.constant 0 : index
    %c0_191 = arith.constant 0 : index
    %c7_192 = arith.constant 7 : index
    %c0_193 = arith.constant 0 : index
    %133 = vector.load %arg8[%c0_190, %c0_191, %c7_192, %c0_193] : memref<2x18x32x128xf32, #tpu.memory_space<vmem>>, vector<2x16x16x128xf32>
    %134 = vector.shape_cast %133 : vector<2x16x16x128xf32> to vector<512x128xf32>
    %c0_194 = arith.constant 0 : index
    %c0_195 = arith.constant 0 : index
    %135 = vector.load %arg9[%c0_194, %c0_195] : memref<1152x128xf32, #tpu.memory_space<vmem>>, vector<128x128xf32>
    %cst_196 = arith.constant dense<0.000000e+00> : vector<512x128xf32>
    %136 = tpu.matmul %134, %135, %cst_196 {dimension_numbers = #tpu.dot_dimension_numbers<[1], [0], [0], [1], [0, 0, 1, 1], [], []>} : vector<512x128xf32>, vector<128x128xf32>, vector<512x128xf32> -> vector<512x128xf32>
    %c0_197 = arith.constant 0 : index
    %c0_198 = arith.constant 0 : index
    %c8_199 = arith.constant 8 : index
    %c0_200 = arith.constant 0 : index
    %137 = vector.load %arg8[%c0_197, %c0_198, %c8_199, %c0_200] : memref<2x18x32x128xf32, #tpu.memory_space<vmem>>, vector<2x16x16x128xf32>
    %138 = vector.shape_cast %137 : vector<2x16x16x128xf32> to vector<512x128xf32>
    %c128_201 = arith.constant 128 : index
    %c0_202 = arith.constant 0 : index
    %139 = vector.load %arg9[%c128_201, %c0_202] : memref<1152x128xf32, #tpu.memory_space<vmem>>, vector<128x128xf32>
    %cst_203 = arith.constant dense<0.000000e+00> : vector<512x128xf32>
    %140 = tpu.matmul %138, %139, %cst_203 {dimension_numbers = #tpu.dot_dimension_numbers<[1], [0], [0], [1], [0, 0, 1, 1], [], []>} : vector<512x128xf32>, vector<128x128xf32>, vector<512x128xf32> -> vector<512x128xf32>
    %141 = arith.addf %136, %140 : vector<512x128xf32>
    %c0_204 = arith.constant 0 : index
    %c0_205 = arith.constant 0 : index
    %c9_206 = arith.constant 9 : index
    %c0_207 = arith.constant 0 : index
    %142 = vector.load %arg8[%c0_204, %c0_205, %c9_206, %c0_207] : memref<2x18x32x128xf32, #tpu.memory_space<vmem>>, vector<2x16x16x128xf32>
    %143 = vector.shape_cast %142 : vector<2x16x16x128xf32> to vector<512x128xf32>
    %c256_208 = arith.constant 256 : index
    %c0_209 = arith.constant 0 : index
    %144 = vector.load %arg9[%c256_208, %c0_209] : memref<1152x128xf32, #tpu.memory_space<vmem>>, vector<128x128xf32>
    %cst_210 = arith.constant dense<0.000000e+00> : vector<512x128xf32>
    %145 = tpu.matmul %143, %144, %cst_210 {dimension_numbers = #tpu.dot_dimension_numbers<[1], [0], [0], [1], [0, 0, 1, 1], [], []>} : vector<512x128xf32>, vector<128x128xf32>, vector<512x128xf32> -> vector<512x128xf32>
    %146 = arith.addf %141, %145 : vector<512x128xf32>
    %c0_211 = arith.constant 0 : index
    %c1_212 = arith.constant 1 : index
    %c7_213 = arith.constant 7 : index
    %c0_214 = arith.constant 0 : index
    %147 = vector.load %arg8[%c0_211, %c1_212, %c7_213, %c0_214] : memref<2x18x32x128xf32, #tpu.memory_space<vmem>>, vector<2x16x16x128xf32>
    %148 = vector.shape_cast %147 : vector<2x16x16x128xf32> to vector<512x128xf32>
    %c384_215 = arith.constant 384 : index
    %c0_216 = arith.constant 0 : index
    %149 = vector.load %arg9[%c384_215, %c0_216] : memref<1152x128xf32, #tpu.memory_space<vmem>>, vector<128x128xf32>
    %cst_217 = arith.constant dense<0.000000e+00> : vector<512x128xf32>
    %150 = tpu.matmul %148, %149, %cst_217 {dimension_numbers = #tpu.dot_dimension_numbers<[1], [0], [0], [1], [0, 0, 1, 1], [], []>} : vector<512x128xf32>, vector<128x128xf32>, vector<512x128xf32> -> vector<512x128xf32>
    %151 = arith.addf %146, %150 : vector<512x128xf32>
    %c0_218 = arith.constant 0 : index
    %c1_219 = arith.constant 1 : index
    %c8_220 = arith.constant 8 : index
    %c0_221 = arith.constant 0 : index
    %152 = vector.load %arg8[%c0_218, %c1_219, %c8_220, %c0_221] : memref<2x18x32x128xf32, #tpu.memory_space<vmem>>, vector<2x16x16x128xf32>
    %153 = vector.shape_cast %152 : vector<2x16x16x128xf32> to vector<512x128xf32>
    %c512_222 = arith.constant 512 : index
    %c0_223 = arith.constant 0 : index
    %154 = vector.load %arg9[%c512_222, %c0_223] : memref<1152x128xf32, #tpu.memory_space<vmem>>, vector<128x128xf32>
    %cst_224 = arith.constant dense<0.000000e+00> : vector<512x128xf32>
    %155 = tpu.matmul %153, %154, %cst_224 {dimension_numbers = #tpu.dot_dimension_numbers<[1], [0], [0], [1], [0, 0, 1, 1], [], []>} : vector<512x128xf32>, vector<128x128xf32>, vector<512x128xf32> -> vector<512x128xf32>
    %156 = arith.addf %151, %155 : vector<512x128xf32>
    %c0_225 = arith.constant 0 : index
    %c1_226 = arith.constant 1 : index
    %c9_227 = arith.constant 9 : index
    %c0_228 = arith.constant 0 : index
    %157 = vector.load %arg8[%c0_225, %c1_226, %c9_227, %c0_228] : memref<2x18x32x128xf32, #tpu.memory_space<vmem>>, vector<2x16x16x128xf32>
    %158 = vector.shape_cast %157 : vector<2x16x16x128xf32> to vector<512x128xf32>
    %c640_229 = arith.constant 640 : index
    %c0_230 = arith.constant 0 : index
    %159 = vector.load %arg9[%c640_229, %c0_230] : memref<1152x128xf32, #tpu.memory_space<vmem>>, vector<128x128xf32>
    %cst_231 = arith.constant dense<0.000000e+00> : vector<512x128xf32>
    %160 = tpu.matmul %158, %159, %cst_231 {dimension_numbers = #tpu.dot_dimension_numbers<[1], [0], [0], [1], [0, 0, 1, 1], [], []>} : vector<512x128xf32>, vector<128x128xf32>, vector<512x128xf32> -> vector<512x128xf32>
    %161 = arith.addf %156, %160 : vector<512x128xf32>
    %c0_232 = arith.constant 0 : index
    %c2_233 = arith.constant 2 : index
    %c7_234 = arith.constant 7 : index
    %c0_235 = arith.constant 0 : index
    %162 = vector.load %arg8[%c0_232, %c2_233, %c7_234, %c0_235] : memref<2x18x32x128xf32, #tpu.memory_space<vmem>>, vector<2x16x16x128xf32>
    %163 = vector.shape_cast %162 : vector<2x16x16x128xf32> to vector<512x128xf32>
    %c768_236 = arith.constant 768 : index
    %c0_237 = arith.constant 0 : index
    %164 = vector.load %arg9[%c768_236, %c0_237] : memref<1152x128xf32, #tpu.memory_space<vmem>>, vector<128x128xf32>
    %cst_238 = arith.constant dense<0.000000e+00> : vector<512x128xf32>
    %165 = tpu.matmul %163, %164, %cst_238 {dimension_numbers = #tpu.dot_dimension_numbers<[1], [0], [0], [1], [0, 0, 1, 1], [], []>} : vector<512x128xf32>, vector<128x128xf32>, vector<512x128xf32> -> vector<512x128xf32>
    %166 = arith.addf %161, %165 : vector<512x128xf32>
    %c0_239 = arith.constant 0 : index
    %c2_240 = arith.constant 2 : index
    %c8_241 = arith.constant 8 : index
    %c0_242 = arith.constant 0 : index
    %167 = vector.load %arg8[%c0_239, %c2_240, %c8_241, %c0_242] : memref<2x18x32x128xf32, #tpu.memory_space<vmem>>, vector<2x16x16x128xf32>
    %168 = vector.shape_cast %167 : vector<2x16x16x128xf32> to vector<512x128xf32>
    %c896_243 = arith.constant 896 : index
    %c0_244 = arith.constant 0 : index
    %169 = vector.load %arg9[%c896_243, %c0_244] : memref<1152x128xf32, #tpu.memory_space<vmem>>, vector<128x128xf32>
    %cst_245 = arith.constant dense<0.000000e+00> : vector<512x128xf32>
    %170 = tpu.matmul %168, %169, %cst_245 {dimension_numbers = #tpu.dot_dimension_numbers<[1], [0], [0], [1], [0, 0, 1, 1], [], []>} : vector<512x128xf32>, vector<128x128xf32>, vector<512x128xf32> -> vector<512x128xf32>
    %171 = arith.addf %166, %170 : vector<512x128xf32>
    %c0_246 = arith.constant 0 : index
    %c2_247 = arith.constant 2 : index
    %c9_248 = arith.constant 9 : index
    %c0_249 = arith.constant 0 : index
    %172 = vector.load %arg8[%c0_246, %c2_247, %c9_248, %c0_249] : memref<2x18x32x128xf32, #tpu.memory_space<vmem>>, vector<2x16x16x128xf32>
    %173 = vector.shape_cast %172 : vector<2x16x16x128xf32> to vector<512x128xf32>
    %c1024_250 = arith.constant 1024 : index
    %c0_251 = arith.constant 0 : index
    %174 = vector.load %arg9[%c1024_250, %c0_251] : memref<1152x128xf32, #tpu.memory_space<vmem>>, vector<128x128xf32>
    %cst_252 = arith.constant dense<0.000000e+00> : vector<512x128xf32>
    %175 = tpu.matmul %173, %174, %cst_252 {dimension_numbers = #tpu.dot_dimension_numbers<[1], [0], [0], [1], [0, 0, 1, 1], [], []>} : vector<512x128xf32>, vector<128x128xf32>, vector<512x128xf32> -> vector<512x128xf32>
    %176 = arith.addf %171, %175 : vector<512x128xf32>
    %cst_253 = arith.constant dense<0.000000e+00> : vector<128xf32>
    %177 = vector.multi_reduction <add>, %176, %cst_253 [0] : vector<512x128xf32> to vector<128xf32>
    %178 = vector.shape_cast %177 : vector<128xf32> to vector<1x128xf32>
    %cst_254 = arith.constant 5.120000e+02 : f32
    %179 = vector.broadcast %cst_254 : f32 to vector<1x128xf32>
    %180 = arith.divf %178, %179 : vector<1x128xf32>
    %181 = vector.broadcast %180 : vector<1x128xf32> to vector<512x128xf32>
    %182 = arith.subf %176, %181 : vector<512x128xf32>
    %183 = arith.mulf %182, %182 : vector<512x128xf32>
    %cst_255 = arith.constant dense<0.000000e+00> : vector<128xf32>
    %184 = vector.multi_reduction <add>, %183, %cst_255 [0] : vector<512x128xf32> to vector<128xf32>
    %185 = vector.shape_cast %184 : vector<128xf32> to vector<1x128xf32>
    %cst_256 = arith.constant 5.120000e+02 : f32
    %186 = vector.broadcast %cst_256 : f32 to vector<1x128xf32>
    %187 = arith.divf %185, %186 : vector<1x128xf32>
    %cst_257 = arith.constant 9.99999974E-6 : f32
    %188 = vector.broadcast %cst_257 : f32 to vector<1x128xf32>
    %189 = arith.addf %187, %188 : vector<1x128xf32>
    %190 = math.rsqrt %189 : vector<1x128xf32>
    %191 = arith.mulf %131, %190 : vector<1x128xf32>
    %192 = arith.mulf %180, %191 : vector<1x128xf32>
    %193 = arith.subf %132, %192 : vector<1x128xf32>
    %194 = vector.broadcast %191 : vector<1x128xf32> to vector<512x128xf32>
    %195 = arith.mulf %176, %194 : vector<512x128xf32>
    %196 = vector.broadcast %193 : vector<1x128xf32> to vector<512x128xf32>
    %197 = arith.addf %195, %196 : vector<512x128xf32>
    %cst_258 = arith.constant 0.000000e+00 : f32
    %198 = vector.broadcast %cst_258 : f32 to vector<512x128xf32>
    %199 = arith.maximumf %197, %198 : vector<512x128xf32>
    %200 = vector.shape_cast %199 : vector<512x128xf32> to vector<2x16x16x128xf32>
    %c0_259 = arith.constant 0 : index
    %c0_260 = arith.constant 0 : index
    %c0_261 = arith.constant 0 : index
    %c0_262 = arith.constant 0 : index
    %201 = vector.load %arg7[%c0_259, %c0_260, %c0_261, %c0_262] : memref<2x16x16x128xf32, #tpu.memory_space<vmem>>, vector<2x16x16x128xf32>
    tpu.vector_store %arg7[%c0_259, %c0_260, %c0_261, %c0_262], %200 {strides = array<i32>} : memref<2x16x16x128xf32, #tpu.memory_space<vmem>>, vector<2x16x16x128xf32>,
    return
  }
}

</mosaic_0001>

<llo_original>
// kernel: double_conv.1
$region0: #{double_conv.1}
  #allocation0 [shape = 'u32[]', space=smem, size = 0x4, offset = 0x4, fixed_abs, tag = 'smem constant byte address 0x4 - core index']
  #allocation1 [shape = 'u32[144,128]{1,0:T(1,128)}', space=vmem, size = 0x12000, scoped, tag = 'internal scratch']
  #allocation2 [shape = 'f32[2,18,32,128]{3,2,1,0:T(8,128)}', space=vmem, size = 0x90000, scoped, tag = 'scratch operand']
  #allocation3 [shape = 'f32[1152,128]{1,0:T(8,128)}', space=vmem, size = 0x90000, scoped, tag = 'scratch operand']
  %s0 = inlined_call_operand.vmem [shape: f32[2,16,16,4], index: 0, kind: input, shape index: {}]
  %s1 = inlined_call_operand.vmem [shape: f32[3,3,4,8], index: 1, kind: input, shape index: {}]
  %s2 = inlined_call_operand.vmem [shape: f32[1,128], index: 2, kind: input, shape index: {}]
  %s3 = inlined_call_operand.vmem [shape: f32[1,128], index: 3, kind: input, shape index: {}]
  %s4 = inlined_call_operand.vmem [shape: f32[3,3,8,8], index: 4, kind: input, shape index: {}]
  %s5 = inlined_call_operand.vmem [shape: f32[1,128], index: 5, kind: input, shape index: {}]
  %s6 = inlined_call_operand.vmem [shape: f32[1,128], index: 6, kind: input, shape index: {}]
  %s7 = inlined_call_operand.vmem [shape: f32[2,16,16,128], index: 7, kind: output, shape index: {}]
  %s8 = sld [smem:[#allocation0]]
  $region38: #{double_conv.1} parent=0
    _
  %s10 = ssub.s32 1, %s8
  %s11 = scalar_select 0, %s10, %s8
  // Predicated region
  $region2: #{double_conv.1} parent=0 // pred_check
    _
  $region3: #{double_conv.1} parent=0 // pred_check_branch
    %13 = sbr.rel (0) target = $region5
  $region4: #{double_conv.1} parent=0 // pred_region
    _
  $region5: #{double_conv.1} parent=0 // pred_fallthru
    _
  // Predicated region
  $region6: #{double_conv.1} parent=0 // pred_check
    _
  $region7: #{double_conv.1} parent=0 // pred_check_branch
    %15 = sbr.rel (0) target = $region9
  $region8: #{double_conv.1} parent=0 // pred_region
    _
  $region9: #{double_conv.1} parent=0 // pred_fallthru
    _
  // Predicated region
  $region10: #{double_conv.1} parent=0 // pred_check
    _
  $region11: #{double_conv.1} parent=0 // pred_check_branch
    %17 = sbr.rel (0) target = $region13
  $region12: #{double_conv.1} parent=0 // pred_region
    _
  $region13: #{double_conv.1} parent=0 // pred_fallthru
    _
  // Predicated region
  $region14: #{double_conv.1} parent=0 // pred_check
    _
  $region15: #{double_conv.1} parent=0 // pred_check_branch
    %19 = sbr.rel (0) target = $region17
  $region16: #{double_conv.1} parent=0 // pred_region
    _
  $region17: #{double_conv.1} parent=0 // pred_fallthru
    _
  // Predicated region
  $region18: #{double_conv.1} parent=0 // pred_check
    _
  $region19: #{double_conv.1} parent=0 // pred_check_branch
    %21 = sbr.rel (0) target = $region21
  $region20: #{double_conv.1} parent=0 // pred_region
    _
  $region21: #{double_conv.1} parent=0 // pred_fallthru
    _
  // Predicated region
  $region22: #{double_conv.1} parent=0 // pred_check
    _
  $region23: #{double_conv.1} parent=0 // pred_check_branch
    %23 = sbr.rel (0) target = $region25
  $region24: #{double_conv.1} parent=0 // pred_region
    _
  $region25: #{double_conv.1} parent=0 // pred_fallthru
    _
  // Predicated region
  $region26: #{double_conv.1} parent=0 // pred_check
    _
  $region27: #{double_conv.1} parent=0 // pred_check_branch
    %25 = sbr.rel (0) target = $region29
  $region28: #{double_conv.1} parent=0 // pred_region
    _
  $region29: #{double_conv.1} parent=0 // pred_fallthru
    _
  %26 = vst [vmem:[#allocation2] sm:$0xff] 0.0
  %27 = vst [vmem:[#allocation2 + $0x8] sm:$0xff] 0.0
  %28 = vst [vmem:[#allocation2 + $0x10] sm:$0xff] 0.0
  %29 = vst [vmem:[#allocation2 + $0x18] sm:$0xff] 0.0
  %30 = vst [vmem:[#allocation2 + $0x20] sm:$0xff] 0.0
  %31 = vst [vmem:[#allocation2 + $0x28] sm:$0xff] 0.0
  %32 = vst [vmem:[#allocation2 + $0x30] sm:$0xff] 0.0
  %33 = vst [vmem:[#allocation2 + $0x38] sm:$0xff] 0.0
  %34 = vst [vmem:[#allocation2 + $0x40] sm:$0xff] 0.0
  %35 = vst [vmem:[#allocation2 + $0x48] sm:$0xff] 0.0
  %36 = vst [vmem:[#allocation2 + $0x50] sm:$0xff] 0.0
  %37 = vst [vmem:[#allocation2 + $0x58] sm:$0xff] 0.0
  %38 = vst [vmem:[#allocation2 + $0x60] sm:$0xff] 0.0
  %39 = vst [vmem:[#allocation2 + $0x68] sm:$0xff] 0.0
  %40 = vst [vmem:[#allocation2 + $0x70] sm:$0xff] 0.0
  %41 = vst [vmem:[#allocation2 + $0x78] sm:$0xff] 0.0
  %42 = vst [vmem:[#allocation2 + $0x80] sm:$0xff] 0.0
  %43 = vst [vmem:[#allocation2 + $0x88] sm:$0xff] 0.0
  %44 = vst [vmem:[#allocation2 + $0x90] sm:$0xff] 0.0
  %45 = vst [vmem:[#allocation2 + $0x98] sm:$0xff] 0.0
  %46 = vst [vmem:[#allocation2 + $0xa0] sm:$0xff] 0.0
  %47 = vst [vmem:[#allocation2 + $0xa8] sm:$0xff] 0.0
  %48 = vst [vmem:[#allocation2 + $0xb0] sm:$0xff] 0.0
  %49 = vst [vmem:[#allocation2 + $0xb8] sm:$0xff] 0.0
  %50 = vst [vmem:[#allocation2 + $0xc0] sm:$0xff] 0.0
  %51 = vst [vmem:[#allocation2 + $0xc8] sm:$0xff] 0.0
  %52 = vst [vmem:[#allocation2 + $0xd0] sm:$0xff] 0.0
  %53 = vst [vmem:[#allocation2 + $0xd8] sm:$0xff] 0.0
  %54 = vst [vmem:[#allocation2 + $0xe0] sm:$0xff] 0.0
  %55 = vst [vmem:[#allocation2 + $0xe8] sm:$0xff] 0.0
  %56 = vst [vmem:[#allocation2 + $0xf0] sm:$0xff] 0.0
  %57 = vst [vmem:[#allocation2 + $0xf8] sm:$0xff] 0.0
  %58 = vst [vmem:[#allocation2 + $0x100] sm:$0xff] 0.0
  %59 = vst [vmem:[#allocation2 + $0x108] sm:$0xff] 0.0
  %60 = vst [vmem:[#allocation2 + $0x110] sm:$0xff] 0.0
  %61 = vst [vmem:[#allocation2 + $0x118] sm:$0xff] 0.0
  %62 = vst [vmem:[#allocation2 + $0x120] sm:$0xff] 0.0
  %63 = vst [vmem:[#allocation2 + $0x128] sm:$0xff] 0.0
  %64 = vst [vmem:[#allocation2 + $0x130] sm:$0xff] 0.0
  %65 = vst [vmem:[#allocation2 + $0x138] sm:$0xff] 0.0
  %66 = vst [vmem:[#allocation2 + $0x140] sm:$0xff] 0.0
  %67 = vst [vmem:[#allocation2 + $0x148] sm:$0xff] 0.0
  %68 = vst [vmem:[#allocation2 + $0x150] sm:$0xff] 0.0
  %69 = vst [vmem:[#allocation2 + $0x158] sm:$0xff] 0.0
  %70 = vst [vmem:[#allocation2 + $0x160] sm:$0xff] 0.0
  %71 = vst [vmem:[#allocation2 + $0x168] sm:$0xff] 0.0
  %72 = vst [vmem:[#allocation2 + $0x170] sm:$0xff] 0.0
  %73 = vst [vmem:[#allocation2 + $0x178] sm:$0xff] 0.0
  %74 = vst [vmem:[#allocation2 + $0x180] sm:$0xff] 0.0
  %75 = vst [vmem:[#allocation2 + $0x188] sm:$0xff] 0.0
  %76 = vst [vmem:[#allocation2 + $0x190] sm:$0xff] 0.0
  %77 = vst [vmem:[#allocation2 + $0x198] sm:$0xff] 0.0
  %78 = vst [vmem:[#allocation2 + $0x1a0] sm:$0xff] 0.0
  %79 = vst [vmem:[#allocation2 + $0x1a8] sm:$0xff] 0.0
  %80 = vst [vmem:[#allocation2 + $0x1b0] sm:$0xff] 0.0
  %81 = vst [vmem:[#allocation2 + $0x1b8] sm:$0xff] 0.0
  %82 = vst [vmem:[#allocation2 + $0x1c0] sm:$0xff] 0.0
  %83 = vst [vmem:[#allocation2 + $0x1c8] sm:$0xff] 0.0
  %84 = vst [vmem:[#allocation2 + $0x1d0] sm:$0xff] 0.0
  %85 = vst [vmem:[#allocation2 + $0x1d8] sm:$0xff] 0.0
  %86 = vst [vmem:[#allocation2 + $0x1e0] sm:$0xff] 0.0
  %87 = vst [vmem:[#allocation2 + $0x1e8] sm:$0xff] 0.0
  %88 = vst [vmem:[#allocation2 + $0x1f0] sm:$0xff] 0.0
  %89 = vst [vmem:[#allocation2 + $0x1f8] sm:$0xff] 0.0
  %90 = vst [vmem:[#allocation2 + $0x200] sm:$0xff] 0.0
  %91 = vst [vmem:[#allocation2 + $0x208] sm:$0xff] 0.0
  %92 = vst [vmem:[#allocation2 + $0x210] sm:$0xff] 0.0
  %93 = vst [vmem:[#allocation2 + $0x218] sm:$0xff] 0.0
  %94 = vst [vmem:[#allocation2 + $0x220] sm:$0xff] 0.0
  %95 = vst [vmem:[#allocation2 + $0x228] sm:$0xff] 0.0
  %96 = vst [vmem:[#allocation2 + $0x230] sm:$0xff] 0.0
  %97 = vst [vmem:[#allocation2 + $0x238] sm:$0xff] 0.0
  %98 = vst [vmem:[#allocation2 + $0x240] sm:$0xff] 0.0
  %99 = vst [vmem:[#allocation2 + $0x248] sm:$0xff] 0.0
  %100 = vst [vmem:[#allocation2 + $0x250] sm:$0xff] 0.0
  %101 = vst [vmem:[#allocation2 + $0x258] sm:$0xff] 0.0
  %102 = vst [vmem:[#allocation2 + $0x260] sm:$0xff] 0.0
  %103 = vst [vmem:[#allocation2 + $0x268] sm:$0xff] 0.0
  %104 = vst [vmem:[#allocation2 + $0x270] sm:$0xff] 0.0
  %105 = vst [vmem:[#allocation2 + $0x278] sm:$0xff] 0.0
  %106 = vst [vmem:[#allocation2 + $0x280] sm:$0xff] 0.0
  %107 = vst [vmem:[#allocation2 + $0x288] sm:$0xff] 0.0
  %108 = vst [vmem:[#allocation2 + $0x290] sm:$0xff] 0.0
  %109 = vst [vmem:[#allocation2 + $0x298] sm:$0xff] 0.0
  %110 = vst [vmem:[#allocation2 + $0x2a0] sm:$0xff] 0.0
  %111 = vst [vmem:[#allocation2 + $0x2a8] sm:$0xff] 0.0
  %112 = vst [vmem:[#allocation2 + $0x2b0] sm:$0xff] 0.0
  %113 = vst [vmem:[#allocation2 + $0x2b8] sm:$0xff] 0.0
  %114 = vst [vmem:[#allocation2 + $0x2c0] sm:$0xff] 0.0
  %115 = vst [vmem:[#allocation2 + $0x2c8] sm:$0xff] 0.0
  %116 = vst [vmem:[#allocation2 + $0x2d0] sm:$0xff] 0.0
  %117 = vst [vmem:[#allocation2 + $0x2d8] sm:$0xff] 0.0
  %118 = vst [vmem:[#allocation2 + $0x2e0] sm:$0xff] 0.0
  %119 = vst [vmem:[#allocation2 + $0x2e8] sm:$0xff] 0.0
  %120 = vst [vmem:[#allocation2 + $0x2f0] sm:$0xff] 0.0
  %121 = vst [vmem:[#allocation2 + $0x2f8] sm:$0xff] 0.0
  %122 = vst [vmem:[#allocation2 + $0x300] sm:$0xff] 0.0
  %123 = vst [vmem:[#allocation2 + $0x308] sm:$0xff] 0.0
  %124 = vst [vmem:[#allocation2 + $0x310] sm:$0xff] 0.0
  %125 = vst [vmem:[#allocation2 + $0x318] sm:$0xff] 0.0
  %126 = vst [vmem:[#allocation2 + $0x320] sm:$0xff] 0.0
  %127 = vst [vmem:[#allocation2 + $0x328] sm:$0xff] 0.0
  %128 = vst [vmem:[#allocation2 + $0x330] sm:$0xff] 0.0
  %129 = vst [vmem:[#allocation2 + $0x338] sm:$0xff] 0.0
  %130 = vst [vmem:[#allocation2 + $0x340] sm:$0xff] 0.0
  %131 = vst [vmem:[#allocation2 + $0x348] sm:$0xff] 0.0
  %132 = vst [vmem:[#allocation2 + $0x350] sm:$0xff] 0.0
  %133 = vst [vmem:[#allocation2 + $0x358] sm:$0xff] 0.0
  %134 = vst [vmem:[#allocation2 + $0x360] sm:$0xff] 0.0
  %135 = vst [vmem:[#allocation2 + $0x368] sm:$0xff] 0.0
  %136 = vst [vmem:[#allocation2 + $0x370] sm:$0xff] 0.0
  %137 = vst [vmem:[#allocation2 + $0x378] sm:$0xff] 0.0
  %138 = vst [vmem:[#allocation2 + $0x380] sm:$0xff] 0.0
  %139 = vst [vmem:[#allocation2 + $0x388] sm:$0xff] 0.0
  %140 = vst [vmem:[#allocation2 + $0x390] sm:$0xff] 0.0
  %141 = vst [vmem:[#allocation2 + $0x398] sm:$0xff] 0.0
  %142 = vst [vmem:[#allocation2 + $0x3a0] sm:$0xff] 0.0
  %143 = vst [vmem:[#allocation2 + $0x3a8] sm:$0xff] 0.0
  %144 = vst [vmem:[#allocation2 + $0x3b0] sm:$0xff] 0.0
  %145 = vst [vmem:[#allocation2 + $0x3b8] sm:$0xff] 0.0
  %146 = vst [vmem:[#allocation2 + $0x3c0] sm:$0xff] 0.0
  %147 = vst [vmem:[#allocation2 + $0x3c8] sm:$0xff] 0.0
  %148 = vst [vmem:[#allocation2 + $0x3d0] sm:$0xff] 0.0
  %149 = vst [vmem:[#allocation2 + $0x3d8] sm:$0xff] 0.0
  %150 = vst [vmem:[#allocation2 + $0x3e0] sm:$0xff] 0.0
  %151 = vst [vmem:[#allocation2 + $0x3e8] sm:$0xff] 0.0
  %152 = vst [vmem:[#allocation2 + $0x3f0] sm:$0xff] 0.0
  %153 = vst [vmem:[#allocation2 + $0x3f8] sm:$0xff] 0.0
  %154 = vst [vmem:[#allocation2 + $0x400] sm:$0xff] 0.0
  %155 = vst [vmem:[#allocation2 + $0x408] sm:$0xff] 0.0
  %156 = vst [vmem:[#allocation2 + $0x410] sm:$0xff] 0.0
  %157 = vst [vmem:[#allocation2 + $0x418] sm:$0xff] 0.0
  %158 = vst [vmem:[#allocation2 + $0x420] sm:$0xff] 0.0
  %159 = vst [vmem:[#allocation2 + $0x428] sm:$0xff] 0.0
  %160 = vst [vmem:[#allocation2 + $0x430] sm:$0xff] 0.0
  %161 = vst [vmem:[#allocation2 + $0x438] sm:$0xff] 0.0
  %162 = vst [vmem:[#allocation2 + $0x440] sm:$0xff] 0.0
  %163 = vst [vmem:[#allocation2 + $0x448] sm:$0xff] 0.0
  %164 = vst [vmem:[#allocation2 + $0x450] sm:$0xff] 0.0
  %165 = vst [vmem:[#allocation2 + $0x458] sm:$0xff] 0.0
  %166 = vst [vmem:[#allocation2 + $0x460] sm:$0xff] 0.0
  %167 = vst [vmem:[#allocation2 + $0x468] sm:$0xff] 0.0
  %168 = vst [vmem:[#allocation2 + $0x470] sm:$0xff] 0.0
  %169 = vst [vmem:[#allocation2 + $0x478] sm:$0xff] 0.0
  %170 = vst [vmem:[#allocation3] sm:$0xff] 0.0
  %171 = vst [vmem:[#allocation3 + $0x8] sm:$0xff] 0.0
  %172 = vst [vmem:[#allocation3 + $0x10] sm:$0xff] 0.0
  %173 = vst [vmem:[#allocation3 + $0x18] sm:$0xff] 0.0
  %174 = vst [vmem:[#allocation3 + $0x20] sm:$0xff] 0.0
  %175 = vst [vmem:[#allocation3 + $0x28] sm:$0xff] 0.0
  %176 = vst [vmem:[#allocation3 + $0x30] sm:$0xff] 0.0
  %177 = vst [vmem:[#allocation3 + $0x38] sm:$0xff] 0.0
  %178 = vst [vmem:[#allocation3 + $0x40] sm:$0xff] 0.0
  %179 = vst [vmem:[#allocation3 + $0x48] sm:$0xff] 0.0
  %180 = vst [vmem:[#allocation3 + $0x50] sm:$0xff] 0.0
  %181 = vst [vmem:[#allocation3 + $0x58] sm:$0xff] 0.0
  %182 = vst [vmem:[#allocation3 + $0x60] sm:$0xff] 0.0
  %183 = vst [vmem:[#allocation3 + $0x68] sm:$0xff] 0.0
  %184 = vst [vmem:[#allocation3 + $0x70] sm:$0xff] 0.0
  %185 = vst [vmem:[#allocation3 + $0x78] sm:$0xff] 0.0
  %186 = vst [vmem:[#allocation3 + $0x80] sm:$0xff] 0.0
  %187 = vst [vmem:[#allocation3 + $0x88] sm:$0xff] 0.0
  %188 = vst [vmem:[#allocation3 + $0x90] sm:$0xff] 0.0
  %189 = vst [vmem:[#allocation3 + $0x98] sm:$0xff] 0.0
  %190 = vst [vmem:[#allocation3 + $0xa0] sm:$0xff] 0.0
  %191 = vst [vmem:[#allocation3 + $0xa8] sm:$0xff] 0.0
  %192 = vst [vmem:[#allocation3 + $0xb0] sm:$0xff] 0.0
  %193 = vst [vmem:[#allocation3 + $0xb8] sm:$0xff] 0.0
  %194 = vst [vmem:[#allocation3 + $0xc0] sm:$0xff] 0.0
  %195 = vst [vmem:[#allocation3 + $0xc8] sm:$0xff] 0.0
  %196 = vst [vmem:[#allocation3 + $0xd0] sm:$0xff] 0.0
  %197 = vst [vmem:[#allocation3 + $0xd8] sm:$0xff] 0.0
  %198 = vst [vmem:[#allocation3 + $0xe0] sm:$0xff] 0.0
  %199 = vst [vmem:[#allocation3 + $0xe8] sm:$0xff] 0.0
  %200 = vst [vmem:[#allocation3 + $0xf0] sm:$0xff] 0.0
  %201 = vst [vmem:[#allocation3 + $0xf8] sm:$0xff] 0.0
  %202 = vst [vmem:[#allocation3 + $0x100] sm:$0xff] 0.0
  %203 = vst [vmem:[#allocation3 + $0x108] sm:$0xff] 0.0
  %204 = vst [vmem:[#allocation3 + $0x110] sm:$0xff] 0.0
  %205 = vst [vmem:[#allocation3 + $0x118] sm:$0xff] 0.0
  %206 = vst [vmem:[#allocation3 + $0x120] sm:$0xff] 0.0
  %207 = vst [vmem:[#allocation3 + $0x128] sm:$0xff] 0.0
  %208 = vst [vmem:[#allocation3 + $0x130] sm:$0xff] 0.0
  %209 = vst [vmem:[#allocation3 + $0x138] sm:$0xff] 0.0
  %210 = vst [vmem:[#allocation3 + $0x140] sm:$0xff] 0.0
  %211 = vst [vmem:[#allocation3 + $0x148] sm:$0xff] 0.0
  %212 = vst [vmem:[#allocation3 + $0x150] sm:$0xff] 0.0
  %213 = vst [vmem:[#allocation3 + $0x158] sm:$0xff] 0.0
  %214 = vst [vmem:[#allocation3 + $0x160] sm:$0xff] 0.0
  %215 = vst [vmem:[#allocation3 + $0x168] sm:$0xff] 0.0
  %216 = vst [vmem:[#allocation3 + $0x170] sm:$0xff] 0.0
  %217 = vst [vmem:[#allocation3 + $0x178] sm:$0xff] 0.0
  %218 = vst [vmem:[#allocation3 + $0x180] sm:$0xff] 0.0
  %219 = vst [vmem:[#allocation3 + $0x188] sm:$0xff] 0.0
  %220 = vst [vmem:[#allocation3 + $0x190] sm:$0xff] 0.0
  %221 = vst [vmem:[#allocation3 + $0x198] sm:$0xff] 0.0
  %222 = vst [vmem:[#allocation3 + $0x1a0] sm:$0xff] 0.0
  %223 = vst [vmem:[#allocation3 + $0x1a8] sm:$0xff] 0.0
  %224 = vst [vmem:[#allocation3 + $0x1b0] sm:$0xff] 0.0
  %225 = vst [vmem:[#allocation3 + $0x1b8] sm:$0xff] 0.0
  %226 = vst [vmem:[#allocation3 + $0x1c0] sm:$0xff] 0.0
  %227 = vst [vmem:[#allocation3 + $0x1c8] sm:$0xff] 0.0
  %228 = vst [vmem:[#allocation3 + $0x1d0] sm:$0xff] 0.0
  %229 = vst [vmem:[#allocation3 + $0x1d8] sm:$0xff] 0.0
  %230 = vst [vmem:[#allocation3 + $0x1e0] sm:$0xff] 0.0
  %231 = vst [vmem:[#allocation3 + $0x1e8] sm:$0xff] 0.0
  %232 = vst [vmem:[#allocation3 + $0x1f0] sm:$0xff] 0.0
  %233 = vst [vmem:[#allocation3 + $0x1f8] sm:$0xff] 0.0
  %234 = vst [vmem:[#allocation3 + $0x200] sm:$0xff] 0.0
  %235 = vst [vmem:[#allocation3 + $0x208] sm:$0xff] 0.0
  %236 = vst [vmem:[#allocation3 + $0x210] sm:$0xff] 0.0
  %237 = vst [vmem:[#allocation3 + $0x218] sm:$0xff] 0.0
  %238 = vst [vmem:[#allocation3 + $0x220] sm:$0xff] 0.0
  %239 = vst [vmem:[#allocation3 + $0x228] sm:$0xff] 0.0
  %240 = vst [vmem:[#allocation3 + $0x230] sm:$0xff] 0.0
  %241 = vst [vmem:[#allocation3 + $0x238] sm:$0xff] 0.0
  %242 = vst [vmem:[#allocation3 + $0x240] sm:$0xff] 0.0
  %243 = vst [vmem:[#allocation3 + $0x248] sm:$0xff] 0.0
  %244 = vst [vmem:[#allocation3 + $0x250] sm:$0xff] 0.0
  %245 = vst [vmem:[#allocation3 + $0x258] sm:$0xff] 0.0
  %246 = vst [vmem:[#allocation3 + $0x260] sm:$0xff] 0.0
  %247 = vst [vmem:[#allocation3 + $0x268] sm:$0xff] 0.0
  %248 = vst [vmem:[#allocation3 + $0x270] sm:$0xff] 0.0
  %249 = vst [vmem:[#allocation3 + $0x278] sm:$0xff] 0.0
  %250 = vst [vmem:[#allocation3 + $0x280] sm:$0xff] 0.0
  %251 = vst [vmem:[#allocation3 + $0x288] sm:$0xff] 0.0
  %252 = vst [vmem:[#allocation3 + $0x290] sm:$0xff] 0.0
  %253 = vst [vmem:[#allocation3 + $0x298] sm:$0xff] 0.0
  %254 = vst [vmem:[#allocation3 + $0x2a0] sm:$0xff] 0.0
  %255 = vst [vmem:[#allocation3 + $0x2a8] sm:$0xff] 0.0
  %256 = vst [vmem:[#allocation3 + $0x2b0] sm:$0xff] 0.0
  %257 = vst [vmem:[#allocation3 + $0x2b8] sm:$0xff] 0.0
  %258 = vst [vmem:[#allocation3 + $0x2c0] sm:$0xff] 0.0
  %259 = vst [vmem:[#allocation3 + $0x2c8] sm:$0xff] 0.0
  %260 = vst [vmem:[#allocation3 + $0x2d0] sm:$0xff] 0.0
  %261 = vst [vmem:[#allocation3 + $0x2d8] sm:$0xff] 0.0
  %262 = vst [vmem:[#allocation3 + $0x2e0] sm:$0xff] 0.0
  %263 = vst [vmem:[#allocation3 + $0x2e8] sm:$0xff] 0.0
  %264 = vst [vmem:[#allocation3 + $0x2f0] sm:$0xff] 0.0
  %265 = vst [vmem:[#allocation3 + $0x2f8] sm:$0xff] 0.0
  %266 = vst [vmem:[#allocation3 + $0x300] sm:$0xff] 0.0
  %267 = vst [vmem:[#allocation3 + $0x308] sm:$0xff] 0.0
  %268 = vst [vmem:[#allocation3 + $0x310] sm:$0xff] 0.0
  %269 = vst [vmem:[#allocation3 + $0x318] sm:$0xff] 0.0
  %270 = vst [vmem:[#allocation3 + $0x320] sm:$0xff] 0.0
  %271 = vst [vmem:[#allocation3 + $0x328] sm:$0xff] 0.0
  %272 = vst [vmem:[#allocation3 + $0x330] sm:$0xff] 0.0
  %273 = vst [vmem:[#allocation3 + $0x338] sm:$0xff] 0.0
  %274 = vst [vmem:[#allocation3 + $0x340] sm:$0xff] 0.0
  %275 = vst [vmem:[#allocation3 + $0x348] sm:$0xff] 0.0
  %276 = vst [vmem:[#allocation3 + $0x350] sm:$0xff] 0.0
  %277 = vst [vmem:[#allocation3 + $0x358] sm:$0xff] 0.0
  %278 = vst [vmem:[#allocation3 + $0x360] sm:$0xff] 0.0
  %279 = vst [vmem:[#allocation3 + $0x368] sm:$0xff] 0.0
  %280 = vst [vmem:[#allocation3 + $0x370] sm:$0xff] 0.0
  %281 = vst [vmem:[#allocation3 + $0x378] sm:$0xff] 0.0
  %282 = vst [vmem:[#allocation3 + $0x380] sm:$0xff] 0.0
  %283 = vst [vmem:[#allocation3 + $0x388] sm:$0xff] 0.0
  %284 = vst [vmem:[#allocation3 + $0x390] sm:$0xff] 0.0
  %285 = vst [vmem:[#allocation3 + $0x398] sm:$0xff] 0.0
  %286 = vst [vmem:[#allocation3 + $0x3a0] sm:$0xff] 0.0
  %287 = vst [vmem:[#allocation3 + $0x3a8] sm:$0xff] 0.0
  %288 = vst [vmem:[#allocation3 + $0x3b0] sm:$0xff] 0.0
  %289 = vst [vmem:[#allocation3 + $0x3b8] sm:$0xff] 0.0
  %290 = vst [vmem:[#allocation3 + $0x3c0] sm:$0xff] 0.0
  %291 = vst [vmem:[#allocation3 + $0x3c8] sm:$0xff] 0.0
  %292 = vst [vmem:[#allocation3 + $0x3d0] sm:$0xff] 0.0
  %293 = vst [vmem:[#allocation3 + $0x3d8] sm:$0xff] 0.0
  %294 = vst [vmem:[#allocation3 + $0x3e0] sm:$0xff] 0.0
  %295 = vst [vmem:[#allocation3 + $0x3e8] sm:$0xff] 0.0
  %296 = vst [vmem:[#allocation3 + $0x3f0] sm:$0xff] 0.0
  %297 = vst [vmem:[#allocation3 + $0x3f8] sm:$0xff] 0.0
  %298 = vst [vmem:[#allocation3 + $0x400] sm:$0xff] 0.0
  %299 = vst [vmem:[#allocation3 + $0x408] sm:$0xff] 0.0
  %300 = vst [vmem:[#allocation3 + $0x410] sm:$0xff] 0.0
  %301 = vst [vmem:[#allocation3 + $0x418] sm:$0xff] 0.0
  %302 = vst [vmem:[#allocation3 + $0x420] sm:$0xff] 0.0
  %303 = vst [vmem:[#allocation3 + $0x428] sm:$0xff] 0.0
  %304 = vst [vmem:[#allocation3 + $0x430] sm:$0xff] 0.0
  %305 = vst [vmem:[#allocation3 + $0x438] sm:$0xff] 0.0
  %306 = vst [vmem:[#allocation3 + $0x440] sm:$0xff] 0.0
  %307 = vst [vmem:[#allocation3 + $0x448] sm:$0xff] 0.0
  %308 = vst [vmem:[#allocation3 + $0x450] sm:$0xff] 0.0
  %309 = vst [vmem:[#allocation3 + $0x458] sm:$0xff] 0.0
  %310 = vst [vmem:[#allocation3 + $0x460] sm:$0xff] 0.0
  %311 = vst [vmem:[#allocation3 + $0x468] sm:$0xff] 0.0
  %312 = vst [vmem:[#allocation3 + $0x470] sm:$0xff] 0.0
  %313 = vst [vmem:[#allocation3 + $0x478] sm:$0xff] 0.0
  %v314 = vld [vmem:[%s0] sm:$0xff]
  %v315 = vld [vmem:[%s0 + $0x8] sm:$0xff]
  %v316 = vld [vmem:[%s0 + $0x10] sm:$0xff]
  %v317 = vld [vmem:[%s0 + $0x18] sm:$0xff]
  %v318 = vld [vmem:[%s0 + $0x20] sm:$0xff]
  %v319 = vld [vmem:[%s0 + $0x28] sm:$0xff]
  %v320 = vld [vmem:[%s0 + $0x30] sm:$0xff]
  %v321 = vld [vmem:[%s0 + $0x38] sm:$0xff]
  %v322 = vld [vmem:[%s0 + $0x40] sm:$0xff]
  %v323 = vld [vmem:[%s0 + $0x48] sm:$0xff]
  %v324 = vld [vmem:[%s0 + $0x50] sm:$0xff]
  %v325 = vld [vmem:[%s0 + $0x58] sm:$0xff]
  %v326 = vld [vmem:[%s0 + $0x60] sm:$0xff]
  %v327 = vld [vmem:[%s0 + $0x68] sm:$0xff]
  %v328 = vld [vmem:[%s0 + $0x70] sm:$0xff]
  %v329 = vld [vmem:[%s0 + $0x78] sm:$0xff]
  %v330 = vld [vmem:[%s0 + $0x80] sm:$0xff]
  %v331 = vld [vmem:[%s0 + $0x88] sm:$0xff]
  %v332 = vld [vmem:[%s0 + $0x90] sm:$0xff]
  %v333 = vld [vmem:[%s0 + $0x98] sm:$0xff]
  %v334 = vld [vmem:[%s0 + $0xa0] sm:$0xff]
  %v335 = vld [vmem:[%s0 + $0xa8] sm:$0xff]
  %v336 = vld [vmem:[%s0 + $0xb0] sm:$0xff]
  %v337 = vld [vmem:[%s0 + $0xb8] sm:$0xff]
  %v338 = vld [vmem:[%s0 + $0xc0] sm:$0xff]
  %v339 = vld [vmem:[%s0 + $0xc8] sm:$0xff]
  %v340 = vld [vmem:[%s0 + $0xd0] sm:$0xff]
  %v341 = vld [vmem:[%s0 + $0xd8] sm:$0xff]
  %v342 = vld [vmem:[%s0 + $0xe0] sm:$0xff]
  %v343 = vld [vmem:[%s0 + $0xe8] sm:$0xff]
  %v344 = vld [vmem:[%s0 + $0xf0] sm:$0xff]
  %v345 = vld [vmem:[%s0 + $0xf8] sm:$0xff]
  %v346 = vld [vmem:[%s0 + $0x100] sm:$0xff]
  %v347 = vld [vmem:[%s0 + $0x108] sm:$0xff]
  %v348 = vld [vmem:[%s0 + $0x110] sm:$0xff]
  %v349 = vld [vmem:[%s0 + $0x118] sm:$0xff]
  %v350 = vld [vmem:[%s0 + $0x120] sm:$0xff]
  %v351 = vld [vmem:[%s0 + $0x128] sm:$0xff]
  %v352 = vld [vmem:[%s0 + $0x130] sm:$0xff]
  %v353 = vld [vmem:[%s0 + $0x138] sm:$0xff]
  %v354 = vld [vmem:[%s0 + $0x140] sm:$0xff]
  %v355 = vld [vmem:[%s0 + $0x148] sm:$0xff]
  %v356 = vld [vmem:[%s0 + $0x150] sm:$0xff]
  %v357 = vld [vmem:[%s0 + $0x158] sm:$0xff]
  %v358 = vld [vmem:[%s0 + $0x160] sm:$0xff]
  %v359 = vld [vmem:[%s0 + $0x168] sm:$0xff]
  %v360 = vld [vmem:[%s0 + $0x170] sm:$0xff]
  %v361 = vld [vmem:[%s0 + $0x178] sm:$0xff]
  %v362 = vld [vmem:[%s0 + $0x180] sm:$0xff]
  %v363 = vld [vmem:[%s0 + $0x188] sm:$0xff]
  %v364 = vld [vmem:[%s0 + $0x190] sm:$0xff]
  %v365 = vld [vmem:[%s0 + $0x198] sm:$0xff]
  %v366 = vld [vmem:[%s0 + $0x1a0] sm:$0xff]
  %v367 = vld [vmem:[%s0 + $0x1a8] sm:$0xff]
  %v368 = vld [vmem:[%s0 + $0x1b0] sm:$0xff]
  %v369 = vld [vmem:[%s0 + $0x1b8] sm:$0xff]
  %v370 = vld [vmem:[%s0 + $0x1c0] sm:$0xff]
  %v371 = vld [vmem:[%s0 + $0x1c8] sm:$0xff]
  %v372 = vld [vmem:[%s0 + $0x1d0] sm:$0xff]
  %v373 = vld [vmem:[%s0 + $0x1d8] sm:$0xff]
  %v374 = vld [vmem:[%s0 + $0x1e0] sm:$0xff]
  %v375 = vld [vmem:[%s0 + $0x1e8] sm:$0xff]
  %v376 = vld [vmem:[%s0 + $0x1f0] sm:$0xff]
  %v377 = vld [vmem:[%s0 + $0x1f8] sm:$0xff]
  %s378 = scalar_lea.vmem [#allocation2], 32
  %vm379 = vcmask 31744
  %380 = vst.msk [vmem:[%s378 + $0x8] sm:$0xff] %vm379, %v314
  %381 = vst.msk [vmem:[%s378 + $0x10] sm:$0xff] %vm379, %v315
  %382 = vst.msk [vmem:[%s378 + $0x28] sm:$0xff] %vm379, %v316
  %383 = vst.msk [vmem:[%s378 + $0x30] sm:$0xff] %vm379, %v317
  %384 = vst.msk [vmem:[%s378 + $0x48] sm:$0xff] %vm379, %v318
  %385 = vst.msk [vmem:[%s378 + $0x50] sm:$0xff] %vm379, %v319
  %386 = vst.msk [vmem:[%s378 + $0x68] sm:$0xff] %vm379, %v320
  %387 = vst.msk [vmem:[%s378 + $0x70] sm:$0xff] %vm379, %v321
  %388 = vst.msk [vmem:[%s378 + $0x88] sm:$0xff] %vm379, %v322
  %389 = vst.msk [vmem:[%s378 + $0x90] sm:$0xff] %vm379, %v323
  %390 = vst.msk [vmem:[%s378 + $0xa8] sm:$0xff] %vm379, %v324
  %391 = vst.msk [vmem:[%s378 + $0xb0] sm:$0xff] %vm379, %v325
  %392 = vst.msk [vmem:[%s378 + $0xc8] sm:$0xff] %vm379, %v326
  %393 = vst.msk [vmem:[%s378 + $0xd0] sm:$0xff] %vm379, %v327
  %394 = vst.msk [vmem:[%s378 + $0xe8] sm:$0xff] %vm379, %v328
  %395 = vst.msk [vmem:[%s378 + $0xf0] sm:$0xff] %vm379, %v329
  %396 = vst.msk [vmem:[%s378 + $0x108] sm:$0xff] %vm379, %v330
  %397 = vst.msk [vmem:[%s378 + $0x110] sm:$0xff] %vm379, %v331
  %398 = vst.msk [vmem:[%s378 + $0x128] sm:$0xff] %vm379, %v332
  %399 = vst.msk [vmem:[%s378 + $0x130] sm:$0xff] %vm379, %v333
  %400 = vst.msk [vmem:[%s378 + $0x148] sm:$0xff] %vm379, %v334
  %401 = vst.msk [vmem:[%s378 + $0x150] sm:$0xff] %vm379, %v335
  %402 = vst.msk [vmem:[%s378 + $0x168] sm:$0xff] %vm379, %v336
  %403 = vst.msk [vmem:[%s378 + $0x170] sm:$0xff] %vm379, %v337
  %404 = vst.msk [vmem:[%s378 + $0x188] sm:$0xff] %vm379, %v338
  %405 = vst.msk [vmem:[%s378 + $0x190] sm:$0xff] %vm379, %v339
  %406 = vst.msk [vmem:[%s378 + $0x1a8] sm:$0xff] %vm379, %v340
  %407 = vst.msk [vmem:[%s378 + $0x1b0] sm:$0xff] %vm379, %v341
  %408 = vst.msk [vmem:[%s378 + $0x1c8] sm:$0xff] %vm379, %v342
  %409 = vst.msk [vmem:[%s378 + $0x1d0] sm:$0xff] %vm379, %v343
  %410 = vst.msk [vmem:[%s378 + $0x1e8] sm:$0xff] %vm379, %v344
  %411 = vst.msk [vmem:[%s378 + $0x1f0] sm:$0xff] %vm379, %v345
  %412 = vst.msk [vmem:[%s378 + $0x248] sm:$0xff] %vm379, %v346
  %413 = vst.msk [vmem:[%s378 + $0x250] sm:$0xff] %vm379, %v347
  %414 = vst.msk [vmem:[%s378 + $0x268] sm:$0xff] %vm379, %v348
  %415 = vst.msk [vmem:[%s378 + $0x270] sm:$0xff] %vm379, %v349
  %416 = vst.msk [vmem:[%s378 + $0x288] sm:$0xff] %vm379, %v350
  %417 = vst.msk [vmem:[%s378 + $0x290] sm:$0xff] %vm379, %v351
  %418 = vst.msk [vmem:[%s378 + $0x2a8] sm:$0xff] %vm379, %v352
  %419 = vst.msk [vmem:[%s378 + $0x2b0] sm:$0xff] %vm379, %v353
  %420 = vst.msk [vmem:[%s378 + $0x2c8] sm:$0xff] %vm379, %v354
  %421 = vst.msk [vmem:[%s378 + $0x2d0] sm:$0xff] %vm379, %v355
  %422 = vst.msk [vmem:[%s378 + $0x2e8] sm:$0xff] %vm379, %v356
  %423 = vst.msk [vmem:[%s378 + $0x2f0] sm:$0xff] %vm379, %v357
  %424 = vst.msk [vmem:[%s378 + $0x308] sm:$0xff] %vm379, %v358
  %425 = vst.msk [vmem:[%s378 + $0x310] sm:$0xff] %vm379, %v359
  %426 = vst.msk [vmem:[%s378 + $0x328] sm:$0xff] %vm379, %v360
  %427 = vst.msk [vmem:[%s378 + $0x330] sm:$0xff] %vm379, %v361
  %428 = vst.msk [vmem:[%s378 + $0x348] sm:$0xff] %vm379, %v362
  %429 = vst.msk [vmem:[%s378 + $0x350] sm:$0xff] %vm379, %v363
  %430 = vst.msk [vmem:[%s378 + $0x368] sm:$0xff] %vm379, %v364
  %431 = vst.msk [vmem:[%s378 + $0x370] sm:$0xff] %vm379, %v365
  %432 = vst.msk [vmem:[%s378 + $0x388] sm:$0xff] %vm379, %v366
  %433 = vst.msk [vmem:[%s378 + $0x390] sm:$0xff] %vm379, %v367
  %434 = vst.msk [vmem:[%s378 + $0x3a8] sm:$0xff] %vm379, %v368
  %435 = vst.msk [vmem:[%s378 + $0x3b0] sm:$0xff] %vm379, %v369
  %436 = vst.msk [vmem:[%s378 + $0x3c8] sm:$0xff] %vm379, %v370
  %437 = vst.msk [vmem:[%s378 + $0x3d0] sm:$0xff] %vm379, %v371
  %438 = vst.msk [vmem:[%s378 + $0x3e8] sm:$0xff] %vm379, %v372
  %439 = vst.msk [vmem:[%s378 + $0x3f0] sm:$0xff] %vm379, %v373
  %440 = vst.msk [vmem:[%s378 + $0x408] sm:$0xff] %vm379, %v374
  %441 = vst.msk [vmem:[%s378 + $0x410] sm:$0xff] %vm379, %v375
  %442 = vst.msk [vmem:[%s378 + $0x428] sm:$0xff] %vm379, %v376
  %443 = vst.msk [vmem:[%s378 + $0x430] sm:$0xff] %vm379, %v377
  %v444 = vld [vmem:[%s1] sm:$0xf]
  %vm445 = vcmask 60416
  %446 = vst.msk [vmem:[#allocation3] sm:$0xf] %vm445, %v444
  %s447 = scalar_lea.vmem %s1, 4
  %v448 = vld [vmem:[%s447] sm:$0xf]
  %449 = vst.msk [vmem:[#allocation3 + $0x80] sm:$0xf] %vm445, %v448
  %s450 = scalar_lea.vmem %s1, 8
  %v451 = vld [vmem:[%s450] sm:$0xf]
  %452 = vst.msk [vmem:[#allocation3 + $0x100] sm:$0xf] %vm445, %v451
  %s453 = scalar_lea.vmem %s1, 12
  %v454 = vld [vmem:[%s453] sm:$0xf]
  %455 = vst.msk [vmem:[#allocation3 + $0x180] sm:$0xf] %vm445, %v454
  %s456 = scalar_lea.vmem %s1, 16
  %v457 = vld [vmem:[%s456] sm:$0xf]
  %458 = vst.msk [vmem:[#allocation3 + $0x200] sm:$0xf] %vm445, %v457
  %s459 = scalar_lea.vmem %s1, 20
  %v460 = vld [vmem:[%s459] sm:$0xf]
  %461 = vst.msk [vmem:[#allocation3 + $0x280] sm:$0xf] %vm445, %v460
  %s462 = scalar_lea.vmem %s1, 24
  %v463 = vld [vmem:[%s462] sm:$0xf]
  %464 = vst.msk [vmem:[#allocation3 + $0x300] sm:$0xf] %vm445, %v463
  %s465 = scalar_lea.vmem %s1, 28
  %v466 = vld [vmem:[%s465] sm:$0xf]
  %467 = vst.msk [vmem:[#allocation3 + $0x380] sm:$0xf] %vm445, %v466
  %s468 = scalar_lea.vmem %s1, 32
  %v469 = vld [vmem:[%s468] sm:$0xf]
  %470 = vst.msk [vmem:[#allocation3 + $0x400] sm:$0xf] %vm445, %v469
  %v471 = vld [vmem:[%s2] sm:$0x1]
  %v472 = vld [vmem:[%s3] sm:$0x1]
  %v473 = vld [vmem:[#allocation2 + $0x7] sm:$0xff]
  %v474 = vld [vmem:[#allocation2 + $0xf] sm:$0xff]
  %v475 = vld [vmem:[#allocation2 + $0x27] sm:$0xff]
  %v476 = vld [vmem:[#allocation2 + $0x2f] sm:$0xff]
  %v477 = vld [vmem:[#allocation2 + $0x47] sm:$0xff]
  %v478 = vld [vmem:[#allocation2 + $0x4f] sm:$0xff]
  %v479 = vld [vmem:[#allocation2 + $0x67] sm:$0xff]
  %v480 = vld [vmem:[#allocation2 + $0x6f] sm:$0xff]
  %v481 = vld [vmem:[#allocation2 + $0x87] sm:$0xff]
  %v482 = vld [vmem:[#allocation2 + $0x8f] sm:$0xff]
  %v483 = vld [vmem:[#allocation2 + $0xa7] sm:$0xff]
  %v484 = vld [vmem:[#allocation2 + $0xaf] sm:$0xff]
  %v485 = vld [vmem:[#allocation2 + $0xc7] sm:$0xff]
  %v486 = vld [vmem:[#allocation2 + $0xcf] sm:$0xff]
  %v487 = vld [vmem:[#allocation2 + $0xe7] sm:$0xff]
  %v488 = vld [vmem:[#allocation2 + $0xef] sm:$0xff]
  %v489 = vld [vmem:[#allocation2 + $0x107] sm:$0xff]
  %v490 = vld [vmem:[#allocation2 + $0x10f] sm:$0xff]
  %v491 = vld [vmem:[#allocation2 + $0x127] sm:$0xff]
  %v492 = vld [vmem:[#allocation2 + $0x12f] sm:$0xff]
  %v493 = vld [vmem:[#allocation2 + $0x147] sm:$0xff]
  %v494 = vld [vmem:[#allocation2 + $0x14f] sm:$0xff]
  %v495 = vld [vmem:[#allocation2 + $0x167] sm:$0xff]
  %v496 = vld [vmem:[#allocation2 + $0x16f] sm:$0xff]
  %v497 = vld [vmem:[#allocation2 + $0x187] sm:$0xff]
  %v498 = vld [vmem:[#allocation2 + $0x18f] sm:$0xff]
  %v499 = vld [vmem:[#allocation2 + $0x1a7] sm:$0xff]
  %v500 = vld [vmem:[#allocation2 + $0x1af] sm:$0xff]
  %v501 = vld [vmem:[#allocation2 + $0x1c7] sm:$0xff]
  %v502 = vld [vmem:[#allocation2 + $0x1cf] sm:$0xff]
  %v503 = vld [vmem:[#allocation2 + $0x1e7] sm:$0xff]
  %v504 = vld [vmem:[#allocation2 + $0x1ef] sm:$0xff]
  %v505 = vld [vmem:[#allocation2 + $0x247] sm:$0xff]
  %v506 = vld [vmem:[#allocation2 + $0x24f] sm:$0xff]
  %v507 = vld [vmem:[#allocation2 + $0x267] sm:$0xff]
  %v508 = vld [vmem:[#allocation2 + $0x26f] sm:$0xff]
  %v509 = vld [vmem:[#allocation2 + $0x287] sm:$0xff]
  %v510 = vld [vmem:[#allocation2 + $0x28f] sm:$0xff]
  %v511 = vld [vmem:[#allocation2 + $0x2a7] sm:$0xff]
  %v512 = vld [vmem:[#allocation2 + $0x2af] sm:$0xff]
  %v513 = vld [vmem:[#allocation2 + $0x2c7] sm:$0xff]
  %v514 = vld [vmem:[#allocation2 + $0x2cf] sm:$0xff]
  %v515 = vld [vmem:[#allocation2 + $0x2e7] sm:$0xff]
  %v516 = vld [vmem:[#allocation2 + $0x2ef] sm:$0xff]
  %v517 = vld [vmem:[#allocation2 + $0x307] sm:$0xff]
  %v518 = vld [vmem:[#allocation2 + $0x30f] sm:$0xff]
  %v519 = vld [vmem:[#allocation2 + $0x327] sm:$0xff]
  %v520 = vld [vmem:[#allocation2 + $0x32f] sm:$0xff]
  %v521 = vld [vmem:[#allocation2 + $0x347] sm:$0xff]
  %v522 = vld [vmem:[#allocation2 + $0x34f] sm:$0xff]
  %v523 = vld [vmem:[#allocation2 + $0x367] sm:$0xff]
  %v524 = vld [vmem:[#allocation2 + $0x36f] sm:$0xff]
  %v525 = vld [vmem:[#allocation2 + $0x387] sm:$0xff]
  %v526 = vld [vmem:[#allocation2 + $0x38f] sm:$0xff]
  %v527 = vld [vmem:[#allocation2 + $0x3a7] sm:$0xff]
  %v528 = vld [vmem:[#allocation2 + $0x3af] sm:$0xff]
  %v529 = vld [vmem:[#allocation2 + $0x3c7] sm:$0xff]
  %v530 = vld [vmem:[#allocation2 + $0x3cf] sm:$0xff]
  %v531 = vld [vmem:[#allocation2 + $0x3e7] sm:$0xff]
  %v532 = vld [vmem:[#allocation2 + $0x3ef] sm:$0xff]
  %v533 = vld [vmem:[#allocation2 + $0x407] sm:$0xff]
  %v534 = vld [vmem:[#allocation2 + $0x40f] sm:$0xff]
  %v535 = vld [vmem:[#allocation2 + $0x427] sm:$0xff]
  %v536 = vld [vmem:[#allocation2 + $0x42f] sm:$0xff]
  %v537 = vld [vmem:[#allocation3] sm:$0xff]
  %v538 = vld [vmem:[#allocation3 + $0x8] sm:$0xff]
  %v539 = vld [vmem:[#allocation3 + $0x10] sm:$0xff]
  %v540 = vld [vmem:[#allocation3 + $0x18] sm:$0xff]
  %v541 = vld [vmem:[#allocation3 + $0x20] sm:$0xff]
  %v542 = vld [vmem:[#allocation3 + $0x28] sm:$0xff]
  %v543 = vld [vmem:[#allocation3 + $0x30] sm:$0xff]
  %v544 = vld [vmem:[#allocation3 + $0x38] sm:$0xff]
  %v545 = vld [vmem:[#allocation3 + $0x40] sm:$0xff]
  %v546 = vld [vmem:[#allocation3 + $0x48] sm:$0xff]
  %v547 = vld [vmem:[#allocation3 + $0x50] sm:$0xff]
  %v548 = vld [vmem:[#allocation3 + $0x58] sm:$0xff]
  %v549 = vld [vmem:[#allocation3 + $0x60] sm:$0xff]
  %v550 = vld [vmem:[#allocation3 + $0x68] sm:$0xff]
  %v551 = vld [vmem:[#allocation3 + $0x70] sm:$0xff]
  %v552 = vld [vmem:[#allocation3 + $0x78] sm:$0xff]
  %v553 = vld [vmem:[#allocation2 + $0x8] sm:$0xff]
  %v554 = vld [vmem:[#allocation2 + $0x10] sm:$0xff]
  %v555 = vld [vmem:[#allocation2 + $0x28] sm:$0xff]
  %v556 = vld [vmem:[#allocation2 + $0x30] sm:$0xff]
  %v557 = vld [vmem:[#allocation2 + $0x48] sm:$0xff]
  %v558 = vld [vmem:[#allocation2 + $0x50] sm:$0xff]
  %v559 = vld [vmem:[#allocation2 + $0x68] sm:$0xff]
  %v560 = vld [vmem:[#allocation2 + $0x70] sm:$0xff]
  %v561 = vld [vmem:[#allocation2 + $0x88] sm:$0xff]
  %v562 = vld [vmem:[#allocation2 + $0x90] sm:$0xff]
  %v563 = vld [vmem:[#allocation2 + $0xa8] sm:$0xff]
  %v564 = vld [vmem:[#allocation2 + $0xb0] sm:$0xff]
  %v565 = vld [vmem:[#allocation2 + $0xc8] sm:$0xff]
  %v566 = vld [vmem:[#allocation2 + $0xd0] sm:$0xff]
  %v567 = vld [vmem:[#allocation2 + $0xe8] sm:$0xff]
  %v568 = vld [vmem:[#allocation2 + $0xf0] sm:$0xff]
  %v569 = vld [vmem:[#allocation2 + $0x108] sm:$0xff]
  %v570 = vld [vmem:[#allocation2 + $0x110] sm:$0xff]
  %v571 = vld [vmem:[#allocation2 + $0x128] sm:$0xff]
  %v572 = vld [vmem:[#allocation2 + $0x130] sm:$0xff]
  %v573 = vld [vmem:[#allocation2 + $0x148] sm:$0xff]
  %v574 = vld [vmem:[#allocation2 + $0x150] sm:$0xff]
  %v575 = vld [vmem:[#allocation2 + $0x168] sm:$0xff]
  %v576 = vld [vmem:[#allocation2 + $0x170] sm:$0xff]
  %v577 = vld [vmem:[#allocation2 + $0x188] sm:$0xff]
  %v578 = vld [vmem:[#allocation2 + $0x190] sm:$0xff]
  %v579 = vld [vmem:[#allocation2 + $0x1a8] sm:$0xff]
  %v580 = vld [vmem:[#allocation2 + $0x1b0] sm:$0xff]
  %v581 = vld [vmem:[#allocation2 + $0x1c8] sm:$0xff]
  %v582 = vld [vmem:[#allocation2 + $0x1d0] sm:$0xff]
  %v583 = vld [vmem:[#allocation2 + $0x1e8] sm:$0xff]
  %v584 = vld [vmem:[#allocation2 + $0x1f0] sm:$0xff]
  %v585 = vld [vmem:[#allocation2 + $0x248] sm:$0xff]
  %v586 = vld [vmem:[#allocation2 + $0x250] sm:$0xff]
  %v587 = vld [vmem:[#allocation2 + $0x268] sm:$0xff]
  %v588 = vld [vmem:[#allocation2 + $0x270] sm:$0xff]
  %v589 = vld [vmem:[#allocation2 + $0x288] sm:$0xff]
  %v590 = vld [vmem:[#allocation2 + $0x290] sm:$0xff]
  %v591 = vld [vmem:[#allocation2 + $0x2a8] sm:$0xff]
  %v592 = vld [vmem:[#allocation2 + $0x2b0] sm:$0xff]
  %v593 = vld [vmem:[#allocation2 + $0x2c8] sm:$0xff]
  %v594 = vld [vmem:[#allocation2 + $0x2d0] sm:$0xff]
  %v595 = vld [vmem:[#allocation2 + $0x2e8] sm:$0xff]
  %v596 = vld [vmem:[#allocation2 + $0x2f0] sm:$0xff]
  %v597 = vld [vmem:[#allocation2 + $0x308] sm:$0xff]
  %v598 = vld [vmem:[#allocation2 + $0x310] sm:$0xff]
  %v599 = vld [vmem:[#allocation2 + $0x328] sm:$0xff]
  %v600 = vld [vmem:[#allocation2 + $0x330] sm:$0xff]
  %v601 = vld [vmem:[#allocation2 + $0x348] sm:$0xff]
  %v602 = vld [vmem:[#allocation2 + $0x350] sm:$0xff]
  %v603 = vld [vmem:[#allocation2 + $0x368] sm:$0xff]
  %v604 = vld [vmem:[#allocation2 + $0x370] sm:$0xff]
  %v605 = vld [vmem:[#allocation2 + $0x388] sm:$0xff]
  %v606 = vld [vmem:[#allocation2 + $0x390] sm:$0xff]
  %v607 = vld [vmem:[#allocation2 + $0x3a8] sm:$0xff]
  %v608 = vld [vmem:[#allocation2 + $0x3b0] sm:$0xff]
  %v609 = vld [vmem:[#allocation2 + $0x3c8] sm:$0xff]
  %v610 = vld [vmem:[#allocation2 + $0x3d0] sm:$0xff]
  %v611 = vld [vmem:[#allocation2 + $0x3e8] sm:$0xff]
  %v612 = vld [vmem:[#allocation2 + $0x3f0] sm:$0xff]
  %v613 = vld [vmem:[#allocation2 + $0x408] sm:$0xff]
  %v614 = vld [vmem:[#allocation2 + $0x410] sm:$0xff]
  %v615 = vld [vmem:[#allocation2 + $0x428] sm:$0xff]
  %v616 = vld [vmem:[#allocation2 + $0x430] sm:$0xff]
  %v617 = vld [vmem:[#allocation3 + $0x80] sm:$0xff]
  %v618 = vld [vmem:[#allocation3 + $0x88] sm:$0xff]
  %v619 = vld [vmem:[#allocation3 + $0x90] sm:$0xff]
  %v620 = vld [vmem:[#allocation3 + $0x98] sm:$0xff]
  %v621 = vld [vmem:[#allocation3 + $0xa0] sm:$0xff]
  %v622 = vld [vmem:[#allocation3 + $0xa8] sm:$0xff]
  %v623 = vld [vmem:[#allocation3 + $0xb0] sm:$0xff]
  %v624 = vld [vmem:[#allocation3 + $0xb8] sm:$0xff]
  %v625 = vld [vmem:[#allocation3 + $0xc0] sm:$0xff]
  %v626 = vld [vmem:[#allocation3 + $0xc8] sm:$0xff]
  %v627 = vld [vmem:[#allocation3 + $0xd0] sm:$0xff]
  %v628 = vld [vmem:[#allocation3 + $0xd8] sm:$0xff]
  %v629 = vld [vmem:[#allocation3 + $0xe0] sm:$0xff]
  %v630 = vld [vmem:[#allocation3 + $0xe8] sm:$0xff]
  %v631 = vld [vmem:[#allocation3 + $0xf0] sm:$0xff]
  %v632 = vld [vmem:[#allocation3 + $0xf8] sm:$0xff]
  %633 = vmatprep.subr.mxu0 0.0
  %634 = vmatpush1.msra.mxu0 %v617
  %635 = vmatprep.subr.mxu0 0.0
  %636 = vmatpush1.msra.mxu0 %v618
  %637 = vmatprep.subr.mxu0 0.0
  %638 = vmatpush1.msra.mxu0 %v619
  %639 = vmatprep.subr.mxu0 0.0
  %640 = vmatpush1.msra.mxu0 %v620
  %641 = vmatprep.subr.mxu0 0.0
  %642 = vmatpush1.msra.mxu0 %v621
  %643 = vmatprep.subr.mxu0 0.0
  %644 = vmatpush1.msra.mxu0 %v622
  %645 = vmatprep.subr.mxu0 0.0
  %646 = vmatpush1.msra.mxu0 %v623
  %647 = vmatprep.subr.mxu0 0.0
  %648 = vmatpush1.msra.mxu0 %v624
  %649 = vmatprep.subr.mxu0 0.0
  %650 = vmatpush1.msra.mxu0 %v625
  %651 = vmatprep.subr.mxu0 0.0
  %652 = vmatpush1.msra.mxu0 %v626
  %653 = vmatprep.subr.mxu0 0.0
  %654 = vmatpush1.msra.mxu0 %v627
  %655 = vmatprep.subr.mxu0 0.0
  %656 = vmatpush1.msra.mxu0 %v628
  %657 = vmatprep.subr.mxu0 0.0
  %658 = vmatpush1.msra.mxu0 %v629
  %659 = vmatprep.subr.mxu0 0.0
  %660 = vmatpush1.msra.mxu0 %v630
  %661 = vmatprep.subr.mxu0 0.0
  %662 = vmatpush1.msra.mxu0 %v631
  %663 = vmatprep.subr.mxu0 0.0
  %664 = vmatpush1.msra.mxu0 %v632
  %665 = vmatprep.subr.mxu0 0.0
  %666 = vmatpush1.msra.mxu0 0.0
  %667 = vmatprep.subr.mxu0 0.0
  %668 = vmatpush1.msra.mxu0 0.0
  %669 = vmatprep.subr.mxu0 0.0
  %670 = vmatpush1.msra.mxu0 0.0
  %671 = vmatprep.subr.mxu0 0.0
  %672 = vmatpush1.msra.mxu0 0.0
  %673 = vmatprep.subr.mxu0 0.0
  %674 = vmatpush1.msra.mxu0 0.0
  %675 = vmatprep.subr.mxu0 0.0
  %676 = vmatpush1.msra.mxu0 0.0
  %677 = vmatprep.subr.mxu0 0.0
  %678 = vmatpush1.msra.mxu0 0.0
  %679 = vmatprep.subr.mxu0 0.0
  %680 = vmatpush1.msra.mxu0 0.0
  %681 = vmatprep.subr.mxu0 0.0
  %682 = vmatpush1.msra.mxu0 0.0
  %683 = vmatprep.subr.mxu0 0.0
  %684 = vmatpush1.msra.mxu0 0.0
  %685 = vmatprep.subr.mxu0 0.0
  %686 = vmatpush1.msra.mxu0 0.0
  %687 = vmatprep.subr.mxu0 0.0
  %688 = vmatpush1.msra.mxu0 0.0
  %689 = vmatprep.subr.mxu0 0.0
  %690 = vmatpush1.msra.mxu0 0.0
  %691 = vmatprep.subr.mxu0 0.0
  %692 = vmatpush1.msra.mxu0 0.0
  %693 = vmatprep.subr.mxu0 0.0
  %694 = vmatpush1.msra.mxu0 0.0
  %695 = vmatprep.subr.mxu0 0.0
  %696 = vmatpush1.msra.mxu0 0.0
  %697 = vmatprep.mubr.f32.mxu0 0.0
  %698 = vmatmul.mubr.f32.gmra.mrb[0].mxu0 %v553
  %v699 = vpop.f32.mrb[0].mxu0
  %v700 = vadd.f32 0.0, %v699
  %v701 = vpop.f32.mrb[0].mxu0
  %702 = vmatprep.mubr.f32.mxu0 0.0
  %703 = vmatmul.mubr.f32.gmra.mrb[0].mxu0 %v554
  %v704 = vpop.f32.mrb[0].mxu0
  %v705 = vadd.f32 0.0, %v704
  %v706 = vpop.f32.mrb[0].mxu0
  %707 = vmatprep.mubr.f32.mxu0 0.0
  %708 = vmatmul.mubr.f32.gmra.mrb[0].mxu0 %v555
  %v709 = vpop.f32.mrb[0].mxu0
  %v710 = vadd.f32 0.0, %v709
  %v711 = vpop.f32.mrb[0].mxu0
  %712 = vmatprep.mubr.f32.mxu0 0.0
  %713 = vmatmul.mubr.f32.gmra.mrb[0].mxu0 %v556
  %v714 = vpop.f32.mrb[0].mxu0
  %v715 = vadd.f32 0.0, %v714
  %v716 = vpop.f32.mrb[0].mxu0
  %717 = vmatprep.mubr.f32.mxu0 0.0
  %718 = vmatmul.mubr.f32.gmra.mrb[0].mxu0 %v557
  %v719 = vpop.f32.mrb[0].mxu0
  %v720 = vadd.f32 0.0, %v719
  %v721 = vpop.f32.mrb[0].mxu0
  %722 = vmatprep.mubr.f32.mxu0 0.0
  %723 = vmatmul.mubr.f32.gmra.mrb[0].mxu0 %v558
  %v724 = vpop.f32.mrb[0].mxu0
  %v725 = vadd.f32 0.0, %v724
  %v726 = vpop.f32.mrb[0].mxu0
  %727 = vmatprep.mubr.f32.mxu0 0.0
  %728 = vmatmul.mubr.f32.gmra.mrb[0].mxu0 %v559
  %v729 = vpop.f32.mrb[0].mxu0
  %v730 = vadd.f32 0.0, %v729
  %v731 = vpop.f32.mrb[0].mxu0
  %732 = vmatprep.mubr.f32.mxu0 0.0
  %733 = vmatmul.mubr.f32.gmra.mrb[0].mxu0 %v560
  %v734 = vpop.f32.mrb[0].mxu0
  %v735 = vadd.f32 0.0, %v734
  %v736 = vpop.f32.mrb[0].mxu0
  %737 = vmatprep.mubr.f32.mxu0 0.0
  %738 = vmatmul.mubr.f32.gmra.mrb[0].mxu0 %v561
  %v739 = vpop.f32.mrb[0].mxu0
  %v740 = vadd.f32 0.0, %v739
  %v741 = vpop.f32.mrb[0].mxu0
  %742 = vmatprep.mubr.f32.mxu0 0.0
  %743 = vmatmul.mubr.f32.gmra.mrb[0].mxu0 %v562
  %v744 = vpop.f32.mrb[0].mxu0
  %v745 = vadd.f32 0.0, %v744
  %v746 = vpop.f32.mrb[0].mxu0
  %747 = vmatprep.mubr.f32.mxu0 0.0
  %748 = vmatmul.mubr.f32.gmra.mrb[0].mxu0 %v563
  %v749 = vpop.f32.mrb[0].mxu0
  %v750 = vadd.f32 0.0, %v749
  %v751 = vpop.f32.mrb[0].mxu0
  %752 = vmatprep.mubr.f32.mxu0 0.0
  %753 = vmatmul.mubr.f32.gmra.mrb[0].mxu0 %v564
  %v754 = vpop.f32.mrb[0].mxu0
  %v755 = vadd.f32 0.0, %v754
  %v756 = vpop.f32.mrb[0].mxu0
  %757 = vmatprep.mubr.f32.mxu0 0.0
  %758 = vmatmul.mubr.f32.gmra.mrb[0].mxu0 %v565
  %v759 = vpop.f32.mrb[0].mxu0
  %v760 = vadd.f32 0.0, %v759
  %v761 = vpop.f32.mrb[0].mxu0
  %762 = vmatprep.mubr.f32.mxu0 0.0
  %763 = vmatmul.mubr.f32.gmra.mrb[0].mxu0 %v566
  %v764 = vpop.f32.mrb[0].mxu0
  %v765 = vadd.f32 0.0, %v764
  %v766 = vpop.f32.mrb[0].mxu0
  %767 = vmatprep.mubr.f32.mxu0 0.0
  %768 = vmatmul.mubr.f32.gmra.mrb[0].mxu0 %v567
  %v769 = vpop.f32.mrb[0].mxu0
  %v770 = vadd.f32 0.0, %v769
  %v771 = vpop.f32.mrb[0].mxu0
  %772 = vmatprep.mubr.f32.mxu0 0.0
  %773 = vmatmul.mubr.f32.gmra.mrb[0].mxu0 %v568
  %v774 = vpop.f32.mrb[0].mxu0
  %v775 = vadd.f32 0.0, %v774
  %v776 = vpop.f32.mrb[0].mxu0
  %777 = vmatprep.mubr.f32.mxu0 0.0
  %778 = vmatmul.mubr.f32.gmra.mrb[0].mxu0 %v569
  %v779 = vpop.f32.mrb[0].mxu0
  %v780 = vadd.f32 0.0, %v779
  %v781 = vpop.f32.mrb[0].mxu0
  %782 = vmatprep.mubr.f32.mxu0 0.0
  %783 = vmatmul.mubr.f32.gmra.mrb[0].mxu0 %v570
  %v784 = vpop.f32.mrb[0].mxu0
  %v785 = vadd.f32 0.0, %v784
  %v786 = vpop.f32.mrb[0].mxu0
  %787 = vmatprep.mubr.f32.mxu0 0.0
  %788 = vmatmul.mubr.f32.gmra.mrb[0].mxu0 %v571
  %v789 = vpop.f32.mrb[0].mxu0
  %v790 = vadd.f32 0.0, %v789
  %v791 = vpop.f32.mrb[0].mxu0
  %792 = vmatprep.mubr.f32.mxu0 0.0
  %793 = vmatmul.mubr.f32.gmra.mrb[0].mxu0 %v572
  %v794 = vpop.f32.mrb[0].mxu0
  %v795 = vadd.f32 0.0, %v794
  %v796 = vpop.f32.mrb[0].mxu0
  %797 = vmatprep.mubr.f32.mxu0 0.0
  %798 = vmatmul.mubr.f32.gmra.mrb[0].mxu0 %v573
  %v799 = vpop.f32.mrb[0].mxu0
  %v800 = vadd.f32 0.0, %v799
  %v801 = vpop.f32.mrb[0].mxu0
  %802 = vmatprep.mubr.f32.mxu0 0.0
  %803 = vmatmul.mubr.f32.gmra.mrb[0].mxu0 %v574
  %v804 = vpop.f32.mrb[0].mxu0
  %v805 = vadd.f32 0.0, %v804
  %v806 = vpop.f32.mrb[0].mxu0
  %807 = vmatprep.mubr.f32.mxu0 0.0
  %808 = vmatmul.mubr.f32.gmra.mrb[0].mxu0 %v575
  %v809 = vpop.f32.mrb[0].mxu0
  %v810 = vadd.f32 0.0, %v809
  %v811 = vpop.f32.mrb[0].mxu0
  %812 = vmatprep.mubr.f32.mxu0 0.0
  %813 = vmatmul.mubr.f32.gmra.mrb[0].mxu0 %v576
  %v814 = vpop.f32.mrb[0].mxu0
  %v815 = vadd.f32 0.0, %v814
  %v816 = vpop.f32.mrb[0].mxu0
  %817 = vmatprep.mubr.f32.mxu0 0.0
  %818 = vmatmul.mubr.f32.gmra.mrb[0].mxu0 %v577
  %v819 = vpop.f32.mrb[0].mxu0
  %v820 = vadd.f32 0.0, %v819
  %v821 = vpop.f32.mrb[0].mxu0
  %822 = vmatprep.mubr.f32.mxu0 0.0
  %823 = vmatmul.mubr.f32.gmra.mrb[0].mxu0 %v578
  %v824 = vpop.f32.mrb[0].mxu0
  %v825 = vadd.f32 0.0, %v824
  %v826 = vpop.f32.mrb[0].mxu0
  %827 = vmatprep.mubr.f32.mxu0 0.0
  %828 = vmatmul.mubr.f32.gmra.mrb[0].mxu0 %v579
  %v829 = vpop.f32.mrb[0].mxu0
  %v830 = vadd.f32 0.0, %v829
  %v831 = vpop.f32.mrb[0].mxu0
  %832 = vmatprep.mubr.f32.mxu0 0.0
  %833 = vmatmul.mubr.f32.gmra.mrb[0].mxu0 %v580
  %v834 = vpop.f32.mrb[0].mxu0
  %v835 = vadd.f32 0.0, %v834
  %v836 = vpop.f32.mrb[0].mxu0
  %837 = vmatprep.mubr.f32.mxu0 0.0
  %838 = vmatmul.mubr.f32.gmra.mrb[0].mxu0 %v581
  %v839 = vpop.f32.mrb[0].mxu0
  %v840 = vadd.f32 0.0, %v839
  %v841 = vpop.f32.mrb[0].mxu0
  %842 = vmatprep.mubr.f32.mxu0 0.0
  %843 = vmatmul.mubr.f32.gmra.mrb[0].mxu0 %v582
  %v844 = vpop.f32.mrb[0].mxu0
  %v845 = vadd.f32 0.0, %v844
  %v846 = vpop.f32.mrb[0].mxu0
  %847 = vmatprep.mubr.f32.mxu0 0.0
  %848 = vmatmul.mubr.f32.gmra.mrb[0].mxu0 %v583
  %v849 = vpop.f32.mrb[0].mxu0
  %v850 = vadd.f32 0.0, %v849
  %v851 = vpop.f32.mrb[0].mxu0
  %852 = vmatprep.mubr.f32.mxu0 0.0
  %853 = vmatmul.mubr.f32.gmra.mrb[0].mxu0 %v584
  %v854 = vpop.f32.mrb[0].mxu0
  %v855 = vadd.f32 0.0, %v854
  %v856 = vpop.f32.mrb[0].mxu0
  %857 = vmatprep.mubr.f32.mxu0 0.0
  %858 = vmatmul.mubr.f32.gmra.mrb[0].mxu0 %v585
  %v859 = vpop.f32.mrb[0].mxu0
  %v860 = vadd.f32 0.0, %v859
  %v861 = vpop.f32.mrb[0].mxu0
  %862 = vmatprep.mubr.f32.mxu0 0.0
  %863 = vmatmul.mubr.f32.gmra.mrb[0].mxu0 %v586
  %v864 = vpop.f32.mrb[0].mxu0
  %v865 = vadd.f32 0.0, %v864
  %v866 = vpop.f32.mrb[0].mxu0
  %867 = vmatprep.mubr.f32.mxu0 0.0
  %868 = vmatmul.mubr.f32.gmra.mrb[0].mxu0 %v587
  %v869 = vpop.f32.mrb[0].mxu0
  %v870 = vadd.f32 0.0, %v869
  %v871 = vpop.f32.mrb[0].mxu0
  %872 = vmatprep.mubr.f32.mxu0 0.0
  %873 = vmatmul.mubr.f32.gmra.mrb[0].mxu0 %v588
  %v874 = vpop.f32.mrb[0].mxu0
  %v875 = vadd.f32 0.0, %v874
  %v876 = vpop.f32.mrb[0].mxu0
  %877 = vmatprep.mubr.f32.mxu0 0.0
  %878 = vmatmul.mubr.f32.gmra.mrb[0].mxu0 %v589
  %v879 = vpop.f32.mrb[0].mxu0
  %v880 = vadd.f32 0.0, %v879
  %v881 = vpop.f32.mrb[0].mxu0
  %882 = vmatprep.mubr.f32.mxu0 0.0
  %883 = vmatmul.mubr.f32.gmra.mrb[0].mxu0 %v590
  %v884 = vpop.f32.mrb[0].mxu0
  %v885 = vadd.f32 0.0, %v884
  %v886 = vpop.f32.mrb[0].mxu0
  %887 = vmatprep.mubr.f32.mxu0 0.0
  %888 = vmatmul.mubr.f32.gmra.mrb[0].mxu0 %v591
  %v889 = vpop.f32.mrb[0].mxu0
  %v890 = vadd.f32 0.0, %v889
  %v891 = vpop.f32.mrb[0].mxu0
  %892 = vmatprep.mubr.f32.mxu0 0.0
  %893 = vmatmul.mubr.f32.gmra.mrb[0].mxu0 %v592
  %v894 = vpop.f32.mrb[0].mxu0
  %v895 = vadd.f32 0.0, %v894
  %v896 = vpop.f32.mrb[0].mxu0
  %897 = vmatprep.mubr.f32.mxu0 0.0
  %898 = vmatmul.mubr.f32.gmra.mrb[0].mxu0 %v593
  %v899 = vpop.f32.mrb[0].mxu0
  %v900 = vadd.f32 0.0, %v899
  %v901 = vpop.f32.mrb[0].mxu0
  %902 = vmatprep.mubr.f32.mxu0 0.0
  %903 = vmatmul.mubr.f32.gmra.mrb[0].mxu0 %v594
  %v904 = vpop.f32.mrb[0].mxu0
  %v905 = vadd.f32 0.0, %v904
  %v906 = vpop.f32.mrb[0].mxu0
  %907 = vmatprep.mubr.f32.mxu0 0.0
  %908 = vmatmul.mubr.f32.gmra.mrb[0].mxu0 %v595
  %v909 = vpop.f32.mrb[0].mxu0
  %v910 = vadd.f32 0.0, %v909
  %v911 = vpop.f32.mrb[0].mxu0
  %912 = vmatprep.mubr.f32.mxu0 0.0
  %913 = vmatmul.mubr.f32.gmra.mrb[0].mxu0 %v596
  %v914 = vpop.f32.mrb[0].mxu0
  %v915 = vadd.f32 0.0, %v914
  %v916 = vpop.f32.mrb[0].mxu0
  %917 = vmatprep.mubr.f32.mxu0 0.0
  %918 = vmatmul.mubr.f32.gmra.mrb[0].mxu0 %v597
  %v919 = vpop.f32.mrb[0].mxu0
  %v920 = vadd.f32 0.0, %v919
  %v921 = vpop.f32.mrb[0].mxu0
  %922 = vmatprep.mubr.f32.mxu0 0.0
  %923 = vmatmul.mubr.f32.gmra.mrb[0].mxu0 %v598
  %v924 = vpop.f32.mrb[0].mxu0
  %v925 = vadd.f32 0.0, %v924
  %v926 = vpop.f32.mrb[0].mxu0
  %927 = vmatprep.mubr.f32.mxu0 0.0
  %928 = vmatmul.mubr.f32.gmra.mrb[0].mxu0 %v599
  %v929 = vpop.f32.mrb[0].mxu0
  %v930 = vadd.f32 0.0, %v929
  %v931 = vpop.f32.mrb[0].mxu0
  %932 = vmatprep.mubr.f32.mxu0 0.0
  %933 = vmatmul.mubr.f32.gmra.mrb[0].mxu0 %v600
  %v934 = vpop.f32.mrb[0].mxu0
  %v935 = vadd.f32 0.0, %v934
  %v936 = vpop.f32.mrb[0].mxu0
  %937 = vmatprep.mubr.f32.mxu0 0.0
  %938 = vmatmul.mubr.f32.gmra.mrb[0].mxu0 %v601
  %v939 = vpop.f32.mrb[0].mxu0
  %v940 = vadd.f32 0.0, %v939
  %v941 = vpop.f32.mrb[0].mxu0
  %942 = vmatprep.mubr.f32.mxu0 0.0
  %943 = vmatmul.mubr.f32.gmra.mrb[0].mxu0 %v602
  %v944 = vpop.f32.mrb[0].mxu0
  %v945 = vadd.f32 0.0, %v944
  %v946 = vpop.f32.mrb[0].mxu0
  %947 = vmatprep.mubr.f32.mxu0 0.0
  %948 = vmatmul.mubr.f32.gmra.mrb[0].mxu0 %v603
  %v949 = vpop.f32.mrb[0].mxu0
  %v950 = vadd.f32 0.0, %v949
  %v951 = vpop.f32.mrb[0].mxu0
  %952 = vmatprep.mubr.f32.mxu0 0.0
  %953 = vmatmul.mubr.f32.gmra.mrb[0].mxu0 %v604
  %v954 = vpop.f32.mrb[0].mxu0
  %v955 = vadd.f32 0.0, %v954
  %v956 = vpop.f32.mrb[0].mxu0
  %957 = vmatprep.mubr.f32.mxu0 0.0
  %958 = vmatmul.mubr.f32.gmra.mrb[0].mxu0 %v605
  %v959 = vpop.f32.mrb[0].mxu0
  %v960 = vadd.f32 0.0, %v959
  %v961 = vpop.f32.mrb[0].mxu0
  %962 = vmatprep.mubr.f32.mxu0 0.0
  %963 = vmatmul.mubr.f32.gmra.mrb[0].mxu0 %v606
  %v964 = vpop.f32.mrb[0].mxu0
  %v965 = vadd.f32 0.0, %v964
  %v966 = vpop.f32.mrb[0].mxu0
  %967 = vmatprep.mubr.f32.mxu0 0.0
  %968 = vmatmul.mubr.f32.gmra.mrb[0].mxu0 %v607
  %v969 = vpop.f32.mrb[0].mxu0
  %v970 = vadd.f32 0.0, %v969
  %v971 = vpop.f32.mrb[0].mxu0
  %972 = vmatprep.mubr.f32.mxu0 0.0
  %973 = vmatmul.mubr.f32.gmra.mrb[0].mxu0 %v608
  %v974 = vpop.f32.mrb[0].mxu0
  %v975 = vadd.f32 0.0, %v974
  %v976 = vpop.f32.mrb[0].mxu0
  %977 = vmatprep.mubr.f32.mxu0 0.0
  %978 = vmatmul.mubr.f32.gmra.mrb[0].mxu0 %v609
  %v979 = vpop.f32.mrb[0].mxu0
  %v980 = vadd.f32 0.0, %v979
  %v981 = vpop.f32.mrb[0].mxu0
  %982 = vmatprep.mubr.f32.mxu0 0.0
  %983 = vmatmul.mubr.f32.gmra.mrb[0].mxu0 %v610
  %v984 = vpop.f32.mrb[0].mxu0
  %v985 = vadd.f32 0.0, %v984
  %v986 = vpop.f32.mrb[0].mxu0
  %987 = vmatprep.mubr.f32.mxu0 0.0
  %988 = vmatmul.mubr.f32.gmra.mrb[0].mxu0 %v611
  %v989 = vpop.f32.mrb[0].mxu0
  %v990 = vadd.f32 0.0, %v989
  %v991 = vpop.f32.mrb[0].mxu0
  %992 = vmatprep.mubr.f32.mxu0 0.0
  %993 = vmatmul.mubr.f32.gmra.mrb[0].mxu0 %v612
  %v994 = vpop.f32.mrb[0].mxu0
  %v995 = vadd.f32 0.0, %v994
  %v996 = vpop.f32.mrb[0].mxu0
  %997 = vmatprep.mubr.f32.mxu0 0.0
  %998 = vmatmul.mubr.f32.gmra.mrb[0].mxu0 %v613
  %v999 = vpop.f32.mrb[0].mxu0
  %v1000 = vadd.f32 0.0, %v999
  %v1001 = vpop.f32.mrb[0].mxu0
  %1002 = vmatprep.mubr.f32.mxu0 0.0
  %1003 = vmatmul.mubr.f32.gmra.mrb[0].mxu0 %v614
  %v1004 = vpop.f32.mrb[0].mxu0
  %v1005 = vadd.f32 0.0, %v1004
  %v1006 = vpop.f32.mrb[0].mxu0
  %1007 = vmatprep.mubr.f32.mxu0 0.0
  %1008 = vmatmul.mubr.f32.gmra.mrb[0].mxu0 %v615
  %v1009 = vpop.f32.mrb[0].mxu0
  %v1010 = vadd.f32 0.0, %v1009
  %v1011 = vpop.f32.mrb[0].mxu0
  %1012 = vmatprep.mubr.f32.mxu0 0.0
  %1013 = vmatmul.mubr.f32.gmra.mrb[0].mxu0 %v616
  %v1014 = vpop.f32.mrb[0].mxu0
  %v1015 = vadd.f32 0.0, %v1014
  %v1016 = vpop.f32.mrb[0].mxu0
  %1017 = vdwg.mxu0
  %1018 = vmatprep.subr.mxu0 0.0
  %1019 = vmatpush1.msra.mxu0 %v537
  %1020 = vmatprep.subr.mxu0 0.0
  %1021 = vmatpush1.msra.mxu0 %v538
  %1022 = vmatprep.subr.mxu0 0.0
  %1023 = vmatpush1.msra.mxu0 %v539
  %1024 = vmatprep.subr.mxu0 0.0
  %1025 = vmatpush1.msra.mxu0 %v540
  %1026 = vmatprep.subr.mxu0 0.0
  %1027 = vmatpush1.msra.mxu0 %v541
  %1028 = vmatprep.subr.mxu0 0.0
  %1029 = vmatpush1.msra.mxu0 %v542
  %1030 = vmatprep.subr.mxu0 0.0
  %1031 = vmatpush1.msra.mxu0 %v543
  %1032 = vmatprep.subr.mxu0 0.0
  %1033 = vmatpush1.msra.mxu0 %v544
  %1034 = vmatprep.subr.mxu0 0.0
  %1035 = vmatpush1.msra.mxu0 %v545
  %1036 = vmatprep.subr.mxu0 0.0
  %1037 = vmatpush1.msra.mxu0 %v546
  %1038 = vmatprep.subr.mxu0 0.0
  %1039 = vmatpush1.msra.mxu0 %v547
  %1040 = vmatprep.subr.mxu0 0.0
  %1041 = vmatpush1.msra.mxu0 %v548
  %1042 = vmatprep.subr.mxu0 0.0
  %1043 = vmatpush1.msra.mxu0 %v549
  %1044 = vmatprep.subr.mxu0 0.0
  %1045 = vmatpush1.msra.mxu0 %v550
  %1046 = vmatprep.subr.mxu0 0.0
  %1047 = vmatpush1.msra.mxu0 %v551
  %1048 = vmatprep.subr.mxu0 0.0
  %1049 = vmatpush1.msra.mxu0 %v552
  %1050 = vmatprep.subr.mxu0 0.0
  %1051 = vmatpush1.msra.mxu0 0.0
  %1052 = vmatprep.subr.mxu0 0.0
  %1053 = vmatpush1.msra.mxu0 0.0
  %1054 = vmatprep.subr.mxu0 0.0
  %1055 = vmatpush1.msra.mxu0 0.0
  %1056 = vmatprep.subr.mxu0 0.0
  %1057 = vmatpush1.msra.mxu0 0.0
  %1058 = vmatprep.subr.mxu0 0.0
  %1059 = vmatpush1.msra.mxu0 0.0
  %1060 = vmatprep.subr.mxu0 0.0
  %1061 = vmatpush1.msra.mxu0 0.0
  %1062 = vmatprep.subr.mxu0 0.0
  %1063 = vmatpush1.msra.mxu0 0.0
  %1064 = vmatprep.subr.mxu0 0.0
  %1065 = vmatpush1.msra.mxu0 0.0
  %1066 = vmatprep.subr.mxu0 0.0
  %1067 = vmatpush1.msra.mxu0 0.0
  %1068 = vmatprep.subr.mxu0 0.0
  %1069 = vmatpush1.msra.mxu0 0.0
  %1070 = vmatprep.subr.mxu0 0.0
  %1071 = vmatpush1.msra.mxu0 0.0
  %1072 = vmatprep.subr.mxu0 0.0
  %1073 = vmatpush1.msra.mxu0 0.0
  %1074 = vmatprep.subr.mxu0 0.0
  %1075 = vmatpush1.msra.mxu0 0.0
  %1076 = vmatprep.subr.mxu0 0.0
  %1077 = vmatpush1.msra.mxu0 0.0
  %1078 = vmatprep.subr.mxu0 0.0
  %1079 = vmatpush1.msra.mxu0 0.0
  %1080 = vmatprep.subr.mxu0 0.0
  %1081 = vmatpush1.msra.mxu0 0.0
  %1082 = vmatprep.mubr.f32.mxu0 0.0
  %1083 = vmatmul.mubr.f32.gmra.mrb[0].mxu0 %v473
  %v1084 = vpop.f32.mrb[0].mxu0
  %v1085 = vadd.f32 %v700, %v1084
  %v1086 = vpop.f32.mrb[0].mxu0
  %1087 = vmatprep.mubr.f32.mxu0 0.0
  %1088 = vmatmul.mubr.f32.gmra.mrb[0].mxu0 %v474
  %v1089 = vpop.f32.mrb[0].mxu0
  %v1090 = vadd.f32 %v705, %v1089
  %v1091 = vpop.f32.mrb[0].mxu0
  %1092 = vmatprep.mubr.f32.mxu0 0.0
  %1093 = vmatmul.mubr.f32.gmra.mrb[0].mxu0 %v475
  %v1094 = vpop.f32.mrb[0].mxu0
  %v1095 = vadd.f32 %v710, %v1094
  %v1096 = vpop.f32.mrb[0].mxu0
  %1097 = vmatprep.mubr.f32.mxu0 0.0
  %1098 = vmatmul.mubr.f32.gmra.mrb[0].mxu0 %v476
  %v1099 = vpop.f32.mrb[0].mxu0
  %v1100 = vadd.f32 %v715, %v1099
  %v1101 = vpop.f32.mrb[0].mxu0
  %1102 = vmatprep.mubr.f32.mxu0 0.0
  %1103 = vmatmul.mubr.f32.gmra.mrb[0].mxu0 %v477
  %v1104 = vpop.f32.mrb[0].mxu0
  %v1105 = vadd.f32 %v720, %v1104
  %v1106 = vpop.f32.mrb[0].mxu0
  %1107 = vmatprep.mubr.f32.mxu0 0.0
  %1108 = vmatmul.mubr.f32.gmra.mrb[0].mxu0 %v478
  %v1109 = vpop.f32.mrb[0].mxu0
  %v1110 = vadd.f32 %v725, %v1109
  %v1111 = vpop.f32.mrb[0].mxu0
  %1112 = vmatprep.mubr.f32.mxu0 0.0
  %1113 = vmatmul.mubr.f32.gmra.mrb[0].mxu0 %v479
  %v1114 = vpop.f32.mrb[0].mxu0
  %v1115 = vadd.f32 %v730, %v1114
  %v1116 = vpop.f32.mrb[0].mxu0
  %1117 = vmatprep.mubr.f32.mxu0 0.0
  %1118 = vmatmul.mubr.f32.gmra.mrb[0].mxu0 %v480
  %v1119 = vpop.f32.mrb[0].mxu0
  %v1120 = vadd.f32 %v735, %v1119
  %v1121 = vpop.f32.mrb[0].mxu0
  %1122 = vmatprep.mubr.f32.mxu0 0.0
  %1123 = vmatmul.mubr.f32.gmra.mrb[0].mxu0 %v481
  %v1124 = vpop.f32.mrb[0].mxu0
  %v1125 = vadd.f32 %v740, %v1124
  %v1126 = vpop.f32.mrb[0].mxu0
  %1127 = vmatprep.mubr.f32.mxu0 0.0
  %1128 = vmatmul.mubr.f32.gmra.mrb[0].mxu0 %v482
  %v1129 = vpop.f32.mrb[0].mxu0
  %v1130 = vadd.f32 %v745, %v1129
  %v1131 = vpop.f32.mrb[0].mxu0
  %1132 = vmatprep.mubr.f32.mxu0 0.0
  %1133 = vmatmul.mubr.f32.gmra.mrb[0].mxu0 %v483
  %v1134 = vpop.f32.mrb[0].mxu0
  %v1135 = vadd.f32 %v750, %v1134
  %v1136 = vpop.f32.mrb[0].mxu0
  %1137 = vmatprep.mubr.f32.mxu0 0.0
  %1138 = vmatmul.mubr.f32.gmra.mrb[0].mxu0 %v484
  %v1139 = vpop.f32.mrb[0].mxu0
  %v1140 = vadd.f32 %v755, %v1139
  %v1141 = vpop.f32.mrb[0].mxu0
  %1142 = vmatprep.mubr.f32.mxu0 0.0
  %1143 = vmatmul.mubr.f32.gmra.mrb[0].mxu0 %v485
  %v1144 = vpop.f32.mrb[0].mxu0
  %v1145 = vadd.f32 %v760, %v1144
  %v1146 = vpop.f32.mrb[0].mxu0
  %1147 = vmatprep.mubr.f32.mxu0 0.0
  %1148 = vmatmul.mubr.f32.gmra.mrb[0].mxu0 %v486
  %v1149 = vpop.f32.mrb[0].mxu0
  %v1150 = vadd.f32 %v765, %v1149
  %v1151 = vpop.f32.mrb[0].mxu0
  %1152 = vmatprep.mubr.f32.mxu0 0.0
  %1153 = vmatmul.mubr.f32.gmra.mrb[0].mxu0 %v487
  %v1154 = vpop.f32.mrb[0].mxu0
  %v1155 = vadd.f32 %v770, %v1154
  %v1156 = vpop.f32.mrb[0].mxu0
  %1157 = vmatprep.mubr.f32.mxu0 0.0
  %1158 = vmatmul.mubr.f32.gmra.mrb[0].mxu0 %v488
  %v1159 = vpop.f32.mrb[0].mxu0
  %v1160 = vadd.f32 %v775, %v1159
  %v1161 = vpop.f32.mrb[0].mxu0
  %1162 = vmatprep.mubr.f32.mxu0 0.0
  %1163 = vmatmul.mubr.f32.gmra.mrb[0].mxu0 %v489
  %v1164 = vpop.f32.mrb[0].mxu0
  %v1165 = vadd.f32 %v780, %v1164
  %v1166 = vpop.f32.mrb[0].mxu0
  %1167 = vmatprep.mubr.f32.mxu0 0.0
  %1168 = vmatmul.mubr.f32.gmra.mrb[0].mxu0 %v490
  %v1169 = vpop.f32.mrb[0].mxu0
  %v1170 = vadd.f32 %v785, %v1169
  %v1171 = vpop.f32.mrb[0].mxu0
  %1172 = vmatprep.mubr.f32.mxu0 0.0
  %1173 = vmatmul.mubr.f32.gmra.mrb[0].mxu0 %v491
  %v1174 = vpop.f32.mrb[0].mxu0
  %v1175 = vadd.f32 %v790, %v1174
  %v1176 = vpop.f32.mrb[0].mxu0
  %1177 = vmatprep.mubr.f32.mxu0 0.0
  %1178 = vmatmul.mubr.f32.gmra.mrb[0].mxu0 %v492
  %v1179 = vpop.f32.mrb[0].mxu0
  %v1180 = vadd.f32 %v795, %v1179
  %v1181 = vpop.f32.mrb[0].mxu0
  %1182 = vmatprep.mubr.f32.mxu0 0.0
  %1183 = vmatmul.mubr.f32.gmra.mrb[0].mxu0 %v493
  %v1184 = vpop.f32.mrb[0].mxu0
  %v1185 = vadd.f32 %v800, %v1184
  %v1186 = vpop.f32.mrb[0].mxu0
  %1187 = vmatprep.mubr.f32.mxu0 0.0
  %1188 = vmatmul.mubr.f32.gmra.mrb[0].mxu0 %v494
  %v1189 = vpop.f32.mrb[0].mxu0
  %v1190 = vadd.f32 %v805, %v1189
  %v1191 = vpop.f32.mrb[0].mxu0
  %1192 = vmatprep.mubr.f32.mxu0 0.0
  %1193 = vmatmul.mubr.f32.gmra.mrb[0].mxu0 %v495
  %v1194 = vpop.f32.mrb[0].mxu0
  %v1195 = vadd.f32 %v810, %v1194
  %v1196 = vpop.f32.mrb[0].mxu0
  %1197 = vmatprep.mubr.f32.mxu0 0.0
  %1198 = vmatmul.mubr.f32.gmra.mrb[0].mxu0 %v496
  %v1199 = vpop.f32.mrb[0].mxu0
  %v1200 = vadd.f32 %v815, %v1199
  %v1201 = vpop.f32.mrb[0].mxu0
  %1202 = vmatprep.mubr.f32.mxu0 0.0
  %1203 = vmatmul.mubr.f32.gmra.mrb[0].mxu0 %v497
  %v1204 = vpop.f32.mrb[0].mxu0
  %v1205 = vadd.f32 %v820, %v1204
  %v1206 = vpop.f32.mrb[0].mxu0
  %1207 = vmatprep.mubr.f32.mxu0 0.0
  %1208 = vmatmul.mubr.f32.gmra.mrb[0].mxu0 %v498
  %v1209 = vpop.f32.mrb[0].mxu0
  %v1210 = vadd.f32 %v825, %v1209
  %v1211 = vpop.f32.mrb[0].mxu0
  %1212 = vmatprep.mubr.f32.mxu0 0.0
  %1213 = vmatmul.mubr.f32.gmra.mrb[0].mxu0 %v499
  %v1214 = vpop.f32.mrb[0].mxu0
  %v1215 = vadd.f32 %v830, %v1214
  %v1216 = vpop.f32.mrb[0].mxu0
  %1217 = vmatprep.mubr.f32.mxu0 0.0
  %1218 = vmatmul.mubr.f32.gmra.mrb[0].mxu0 %v500
  %v1219 = vpop.f32.mrb[0].mxu0
  %v1220 = vadd.f32 %v835, %v1219
  %v1221 = vpop.f32.mrb[0].mxu0
  %1222 = vmatprep.mubr.f32.mxu0 0.0
  %1223 = vmatmul.mubr.f32.gmra.mrb[0].mxu0 %v501
  %v1224 = vpop.f32.mrb[0].mxu0
  %v1225 = vadd.f32 %v840, %v1224
  %v1226 = vpop.f32.mrb[0].mxu0
  %1227 = vmatprep.mubr.f32.mxu0 0.0
  %1228 = vmatmul.mubr.f32.gmra.mrb[0].mxu0 %v502
  %v1229 = vpop.f32.mrb[0].mxu0
  %v1230 = vadd.f32 %v845, %v1229
  %v1231 = vpop.f32.mrb[0].mxu0
  %1232 = vmatprep.mubr.f32.mxu0 0.0
  %1233 = vmatmul.mubr.f32.gmra.mrb[0].mxu0 %v503
  %v1234 = vpop.f32.mrb[0].mxu0
  %v1235 = vadd.f32 %v850, %v1234
  %v1236 = vpop.f32.mrb[0].mxu0
  %1237 = vmatprep.mubr.f32.mxu0 0.0
  %1238 = vmatmul.mubr.f32.gmra.mrb[0].mxu0 %v504
  %v1239 = vpop.f32.mrb[0].mxu0
  %v1240 = vadd.f32 %v855, %v1239
  %v1241 = vpop.f32.mrb[0].mxu0
  %1242 = vmatprep.mubr.f32.mxu0 0.0
  %1243 = vmatmul.mubr.f32.gmra.mrb[0].mxu0 %v505
  %v1244 = vpop.f32.mrb[0].mxu0
  %v1245 = vadd.f32 %v860, %v1244
  %v1246 = vpop.f32.mrb[0].mxu0
  %1247 = vmatprep.mubr.f32.mxu0 0.0
  %1248 = vmatmul.mubr.f32.gmra.mrb[0].mxu0 %v506
  %v1249 = vpop.f32.mrb[0].mxu0
  %v1250 = vadd.f32 %v865, %v1249
  %v1251 = vpop.f32.mrb[0].mxu0
  %1252 = vmatprep.mubr.f32.mxu0 0.0
  %1253 = vmatmul.mubr.f32.gmra.mrb[0].mxu0 %v507
  %v1254 = vpop.f32.mrb[0].mxu0
  %v1255 = vadd.f32 %v870, %v1254
  %v1256 = vpop.f32.mrb[0].mxu0
  %1257 = vmatprep.mubr.f32.mxu0 0.0
  %1258 = vmatmul.mubr.f32.gmra.mrb[0].mxu0 %v508
  %v1259 = vpop.f32.mrb[0].mxu0
  %v1260 = vadd.f32 %v875, %v1259
  %v1261 = vpop.f32.mrb[0].mxu0
  %1262 = vmatprep.mubr.f32.mxu0 0.0
  %1263 = vmatmul.mubr.f32.gmra.mrb[0].mxu0 %v509
  %v1264 = vpop.f32.mrb[0].mxu0
  %v1265 = vadd.f32 %v880, %v1264
  %v1266 = vpop.f32.mrb[0].mxu0
  %1267 = vmatprep.mubr.f32.mxu0 0.0
  %1268 = vmatmul.mubr.f32.gmra.mrb[0].mxu0 %v510
  %v1269 = vpop.f32.mrb[0].mxu0
  %v1270 = vadd.f32 %v885, %v1269
  %v1271 = vpop.f32.mrb[0].mxu0
  %1272 = vmatprep.mubr.f32.mxu0 0.0
  %1273 = vmatmul.mubr.f32.gmra.mrb[0].mxu0 %v511
  %v1274 = vpop.f32.mrb[0].mxu0
  %v1275 = vadd.f32 %v890, %v1274
  %v1276 = vpop.f32.mrb[0].mxu0
  %1277 = vmatprep.mubr.f32.mxu0 0.0
  %1278 = vmatmul.mubr.f32.gmra.mrb[0].mxu0 %v512
  %v1279 = vpop.f32.mrb[0].mxu0
  %v1280 = vadd.f32 %v895, %v1279
  %v1281 = vpop.f32.mrb[0].mxu0
  %1282 = vmatprep.mubr.f32.mxu0 0.0
  %1283 = vmatmul.mubr.f32.gmra.mrb[0].mxu0 %v513
  %v1284 = vpop.f32.mrb[0].mxu0
  %v1285 = vadd.f32 %v900, %v1284
  %v1286 = vpop.f32.mrb[0].mxu0
  %1287 = vmatprep.mubr.f32.mxu0 0.0
  %1288 = vmatmul.mubr.f32.gmra.mrb[0].mxu0 %v514
  %v1289 = vpop.f32.mrb[0].mxu0
  %v1290 = vadd.f32 %v905, %v1289
  %v1291 = vpop.f32.mrb[0].mxu0
  %1292 = vmatprep.mubr.f32.mxu0 0.0
  %1293 = vmatmul.mubr.f32.gmra.mrb[0].mxu0 %v515
  %v1294 = vpop.f32.mrb[0].mxu0
  %v1295 = vadd.f32 %v910, %v1294
  %v1296 = vpop.f32.mrb[0].mxu0
  %1297 = vmatprep.mubr.f32.mxu0 0.0
  %1298 = vmatmul.mubr.f32.gmra.mrb[0].mxu0 %v516
  %v1299 = vpop.f32.mrb[0].mxu0
  %v1300 = vadd.f32 %v915, %v1299
  %v1301 = vpop.f32.mrb[0].mxu0
  %1302 = vmatprep.mubr.f32.mxu0 0.0
  %1303 = vmatmul.mubr.f32.gmra.mrb[0].mxu0 %v517
  %v1304 = vpop.f32.mrb[0].mxu0
  %v1305 = vadd.f32 %v920, %v1304
  %v1306 = vpop.f32.mrb[0].mxu0
  %1307 = vmatprep.mubr.f32.mxu0 0.0
  %1308 = vmatmul.mubr.f32.gmra.mrb[0].mxu0 %v518
  %v1309 = vpop.f32.mrb[0].mxu0
  %v1310 = vadd.f32 %v925, %v1309
  %v1311 = vpop.f32.mrb[0].mxu0
  %1312 = vmatprep.mubr.f32.mxu0 0.0
  %1313 = vmatmul.mubr.f32.gmra.mrb[0].mxu0 %v519
  %v1314 = vpop.f32.mrb[0].mxu0
  %v1315 = vadd.f32 %v930, %v1314
  %v1316 = vpop.f32.mrb[0].mxu0
  %1317 = vmatprep.mubr.f32.mxu0 0.0
  %1318 = vmatmul.mubr.f32.gmra.mrb[0].mxu0 %v520
  %v1319 = vpop.f32.mrb[0].mxu0
  %v1320 = vadd.f32 %v935, %v1319
  %v1321 = vpop.f32.mrb[0].mxu0
  %1322 = vmatprep.mubr.f32.mxu0 0.0
  %1323 = vmatmul.mubr.f32.gmra.mrb[0].mxu0 %v521
  %v1324 = vpop.f32.mrb[0].mxu0
  %v1325 = vadd.f32 %v940, %v1324
  %v1326 = vpop.f32.mrb[0].mxu0
  %1327 = vmatprep.mubr.f32.mxu0 0.0
  %1328 = vmatmul.mubr.f32.gmra.mrb[0].mxu0 %v522
  %v1329 = vpop.f32.mrb[0].mxu0
  %v1330 = vadd.f32 %v945, %v1329
  %v1331 = vpop.f32.mrb[0].mxu0
  %1332 = vmatprep.mubr.f32.mxu0 0.0
  %1333 = vmatmul.mubr.f32.gmra.mrb[0].mxu0 %v523
  %v1334 = vpop.f32.mrb[0].mxu0
  %v1335 = vadd.f32 %v950, %v1334
  %v1336 = vpop.f32.mrb[0].mxu0
  %1337 = vmatprep.mubr.f32.mxu0 0.0
  %1338 = vmatmul.mubr.f32.gmra.mrb[0].mxu0 %v524
  %v1339 = vpop.f32.mrb[0].mxu0
  %v1340 = vadd.f32 %v955, %v1339
  %v1341 = vpop.f32.mrb[0].mxu0
  %1342 = vmatprep.mubr.f32.mxu0 0.0
  %1343 = vmatmul.mubr.f32.gmra.mrb[0].mxu0 %v525
  %v1344 = vpop.f32.mrb[0].mxu0
  %v1345 = vadd.f32 %v960, %v1344
  %v1346 = vpop.f32.mrb[0].mxu0
  %1347 = vmatprep.mubr.f32.mxu0 0.0
  %1348 = vmatmul.mubr.f32.gmra.mrb[0].mxu0 %v526
  %v1349 = vpop.f32.mrb[0].mxu0
  %v1350 = vadd.f32 %v965, %v1349
  %v1351 = vpop.f32.mrb[0].mxu0
  %1352 = vmatprep.mubr.f32.mxu0 0.0
  %1353 = vmatmul.mubr.f32.gmra.mrb[0].mxu0 %v527
  %v1354 = vpop.f32.mrb[0].mxu0
  %v1355 = vadd.f32 %v970, %v1354
  %v1356 = vpop.f32.mrb[0].mxu0
  %1357 = vmatprep.mubr.f32.mxu0 0.0
  %1358 = vmatmul.mubr.f32.gmra.mrb[0].mxu0 %v528
  %v1359 = vpop.f32.mrb[0].mxu0
  %v1360 = vadd.f32 %v975, %v1359
  %v1361 = vpop.f32.mrb[0].mxu0
  %1362 = vmatprep.mubr.f32.mxu0 0.0
  %1363 = vmatmul.mubr.f32.gmra.mrb[0].mxu0 %v529
  %v1364 = vpop.f32.mrb[0].mxu0
  %v1365 = vadd.f32 %v980, %v1364
  %v1366 = vpop.f32.mrb[0].mxu0
  %1367 = vmatprep.mubr.f32.mxu0 0.0
  %1368 = vmatmul.mubr.f32.gmra.mrb[0].mxu0 %v530
  %v1369 = vpop.f32.mrb[0].mxu0
  %v1370 = vadd.f32 %v985, %v1369
  %v1371 = vpop.f32.mrb[0].mxu0
  %1372 = vmatprep.mubr.f32.mxu0 0.0
  %1373 = vmatmul.mubr.f32.gmra.mrb[0].mxu0 %v531
  %v1374 = vpop.f32.mrb[0].mxu0
  %v1375 = vadd.f32 %v990, %v1374
  %v1376 = vpop.f32.mrb[0].mxu0
  %1377 = vmatprep.mubr.f32.mxu0 0.0
  %1378 = vmatmul.mubr.f32.gmra.mrb[0].mxu0 %v532
  %v1379 = vpop.f32.mrb[0].mxu0
  %v1380 = vadd.f32 %v995, %v1379
  %v1381 = vpop.f32.mrb[0].mxu0
  %1382 = vmatprep.mubr.f32.mxu0 0.0
  %1383 = vmatmul.mubr.f32.gmra.mrb[0].mxu0 %v533
  %v1384 = vpop.f32.mrb[0].mxu0
  %v1385 = vadd.f32 %v1000, %v1384
  %v1386 = vpop.f32.mrb[0].mxu0
  %1387 = vmatprep.mubr.f32.mxu0 0.0
  %1388 = vmatmul.mubr.f32.gmra.mrb[0].mxu0 %v534
  %v1389 = vpop.f32.mrb[0].mxu0
  %v1390 = vadd.f32 %v1005, %v1389
  %v1391 = vpop.f32.mrb[0].mxu0
  %1392 = vmatprep.mubr.f32.mxu0 0.0
  %1393 = vmatmul.mubr.f32.gmra.mrb[0].mxu0 %v535
  %v1394 = vpop.f32.mrb[0].mxu0
  %v1395 = vadd.f32 %v1010, %v1394
  %v1396 = vpop.f32.mrb[0].mxu0
  %1397 = vmatprep.mubr.f32.mxu0 0.0
  %1398 = vmatmul.mubr.f32.gmra.mrb[0].mxu0 %v536
  %v1399 = vpop.f32.mrb[0].mxu0
  %v1400 = vadd.f32 %v1015, %v1399
  %v1401 = vpop.f32.mrb[0].mxu0
  %1402 = vdwg.mxu0
  %v1403 = vld [vmem:[#allocation2 + $0x9] sm:$0xff]
  %v1404 = vld [vmem:[#allocation2 + $0x11] sm:$0xff]
  %v1405 = vld [vmem:[#allocation2 + $0x29] sm:$0xff]
  %v1406 = vld [vmem:[#allocation2 + $0x31] sm:$0xff]
  %v1407 = vld [vmem:[#allocation2 + $0x49] sm:$0xff]
  %v1408 = vld [vmem:[#allocation2 + $0x51] sm:$0xff]
  %v1409 = vld [vmem:[#allocation2 + $0x69] sm:$0xff]
  %v1410 = vld [vmem:[#allocation2 + $0x71] sm:$0xff]
  %v1411 = vld [vmem:[#allocation2 + $0x89] sm:$0xff]
  %v1412 = vld [vmem:[#allocation2 + $0x91] sm:$0xff]
  %v1413 = vld [vmem:[#allocation2 + $0xa9] sm:$0xff]
  %v1414 = vld [vmem:[#allocation2 + $0xb1] sm:$0xff]
  %v1415 = vld [vmem:[#allocation2 + $0xc9] sm:$0xff]
  %v1416 = vld [vmem:[#allocation2 + $0xd1] sm:$0xff]
  %v1417 = vld [vmem:[#allocation2 + $0xe9] sm:$0xff]
  %v1418 = vld [vmem:[#allocation2 + $0xf1] sm:$0xff]
  %v1419 = vld [vmem:[#allocation2 + $0x109] sm:$0xff]
  %v1420 = vld [vmem:[#allocation2 + $0x111] sm:$0xff]
  %v1421 = vld [vmem:[#allocation2 + $0x129] sm:$0xff]
  %v1422 = vld [vmem:[#allocation2 + $0x131] sm:$0xff]
  %v1423 = vld [vmem:[#allocation2 + $0x149] sm:$0xff]
  %v1424 = vld [vmem:[#allocation2 + $0x151] sm:$0xff]
  %v1425 = vld [vmem:[#allocation2 + $0x169] sm:$0xff]
  %v1426 = vld [vmem:[#allocation2 + $0x171] sm:$0xff]
  %v1427 = vld [vmem:[#allocation2 + $0x189] sm:$0xff]
  %v1428 = vld [vmem:[#allocation2 + $0x191] sm:$0xff]
  %v1429 = vld [vmem:[#allocation2 + $0x1a9] sm:$0xff]
  %v1430 = vld [vmem:[#allocation2 + $0x1b1] sm:$0xff]
  %v1431 = vld [vmem:[#allocation2 + $0x1c9] sm:$0xff]
  %v1432 = vld [vmem:[#allocation2 + $0x1d1] sm:$0xff]
  %v1433 = vld [vmem:[#allocation2 + $0x1e9] sm:$0xff]
  %v1434 = vld [vmem:[#allocation2 + $0x1f1] sm:$0xff]
  %v1435 = vld [vmem:[#allocation2 + $0x249] sm:$0xff]
  %v1436 = vld [vmem:[#allocation2 + $0x251] sm:$0xff]
  %v1437 = vld [vmem:[#allocation2 + $0x269] sm:$0xff]
  %v1438 = vld [vmem:[#allocation2 + $0x271] sm:$0xff]
  %v1439 = vld [vmem:[#allocation2 + $0x289] sm:$0xff]
  %v1440 = vld [vmem:[#allocation2 + $0x291] sm:$0xff]
  %v1441 = vld [vmem:[#allocation2 + $0x2a9] sm:$0xff]
  %v1442 = vld [vmem:[#allocation2 + $0x2b1] sm:$0xff]
  %v1443 = vld [vmem:[#allocation2 + $0x2c9] sm:$0xff]
  %v1444 = vld [vmem:[#allocation2 + $0x2d1] sm:$0xff]
  %v1445 = vld [vmem:[#allocation2 + $0x2e9] sm:$0xff]
  %v1446 = vld [vmem:[#allocation2 + $0x2f1] sm:$0xff]
  %v1447 = vld [vmem:[#allocation2 + $0x309] sm:$0xff]
  %v1448 = vld [vmem:[#allocation2 + $0x311] sm:$0xff]
  %v1449 = vld [vmem:[#allocation2 + $0x329] sm:$0xff]
  %v1450 = vld [vmem:[#allocation2 + $0x331] sm:$0xff]
  %v1451 = vld [vmem:[#allocation2 + $0x349] sm:$0xff]
  %v1452 = vld [vmem:[#allocation2 + $0x351] sm:$0xff]
  %v1453 = vld [vmem:[#allocation2 + $0x369] sm:$0xff]
  %v1454 = vld [vmem:[#allocation2 + $0x371] sm:$0xff]
  %v1455 = vld [vmem:[#allocation2 + $0x389] sm:$0xff]
  %v1456 = vld [vmem:[#allocation2 + $0x391] sm:$0xff]
  %v1457 = vld [vmem:[#allocation2 + $0x3a9] sm:$0xff]
  %v1458 = vld [vmem:[#allocation2 + $0x3b1] sm:$0xff]
  %v1459 = vld [vmem:[#allocation2 + $0x3c9] sm:$0xff]
  %v1460 = vld [vmem:[#allocation2 + $0x3d1] sm:$0xff]
  %v1461 = vld [vmem:[#allocation2 + $0x3e9] sm:$0xff]
  %v1462 = vld [vmem:[#allocation2 + $0x3f1] sm:$0xff]
  %v1463 = vld [vmem:[#allocation2 + $0x409] sm:$0xff]
  %v1464 = vld [vmem:[#allocation2 + $0x411] sm:$0xff]
  %v1465 = vld [vmem:[#allocation2 + $0x429] sm:$0xff]
  %v1466 = vld [vmem:[#allocation2 + $0x431] sm:$0xff]
  %v1467 = vld [vmem:[#allocation3 + $0x100] sm:$0xff]
  %v1468 = vld [vmem:[#allocation3 + $0x108] sm:$0xff]
  %v1469 = vld [vmem:[#allocation3 + $0x110] sm:$0xff]
  %v1470 = vld [vmem:[#allocation3 + $0x118] sm:$0xff]
  %v1471 = vld [vmem:[#allocation3 + $0x120] sm:$0xff]
  %v1472 = vld [vmem:[#allocation3 + $0x128] sm:$0xff]
  %v1473 = vld [vmem:[#allocation3 + $0x130] sm:$0xff]
  %v1474 = vld [vmem:[#allocation3 + $0x138] sm:$0xff]
  %v1475 = vld [vmem:[#allocation3 + $0x140] sm:$0xff]
  %v1476 = vld [vmem:[#allocation3 + $0x148] sm:$0xff]
  %v1477 = vld [vmem:[#allocation3 + $0x150] sm:$0xff]
  %v1478 = vld [vmem:[#allocation3 + $0x158] sm:$0xff]
  %v1479 = vld [vmem:[#allocation3 + $0x160] sm:$0xff]
  %v1480 = vld [vmem:[#allocation3 + $0x168] sm:$0xff]
  %v1481 = vld [vmem:[#allocation3 + $0x170] sm:$0xff]
  %v1482 = vld [vmem:[#allocation3 + $0x178] sm:$0xff]
  %1483 = vmatprep.subr.mxu0 0.0
  %1484 = vmatpush1.msra.mxu0 %v1467
  %1485 = vmatprep.subr.mxu0 0.0
  %1486 = vmatpush1.msra.mxu0 %v1468
  %1487 = vmatprep.subr.mxu0 0.0
  %1488 = vmatpush1.msra.mxu0 %v1469
  %1489 = vmatprep.subr.mxu0 0.0
  %1490 = vmatpush1.msra.mxu0 %v1470
  %1491 = vmatprep.subr.mxu0 0.0
  %1492 = vmatpush1.msra.mxu0 %v1471
  %1493 = vmatprep.subr.mxu0 0.0
  %1494 = vmatpush1.msra.mxu0 %v1472
  %1495 = vmatprep.subr.mxu0 0.0
  %1496 = vmatpush1.msra.mxu0 %v1473
  %1497 = vmatprep.subr.mxu0 0.0
  %1498 = vmatpush1.msra.mxu0 %v1474
  %1499 = vmatprep.subr.mxu0 0.0
  %1500 = vmatpush1.msra.mxu0 %v1475
  %1501 = vmatprep.subr.mxu0 0.0
  %1502 = vmatpush1.msra.mxu0 %v1476
  %1503 = vmatprep.subr.mxu0 0.0
  %1504 = vmatpush1.msra.mxu0 %v1477
  %1505 = vmatprep.subr.mxu0 0.0
  %1506 = vmatpush1.msra.mxu0 %v1478
  %1507 = vmatprep.subr.mxu0 0.0
  %1508 = vmatpush1.msra.mxu0 %v1479
  %1509 = vmatprep.subr.mxu0 0.0
  %1510 = vmatpush1.msra.mxu0 %v1480
  %1511 = vmatprep.subr.mxu0 0.0
  %1512 = vmatpush1.msra.mxu0 %v1481
  %1513 = vmatprep.subr.mxu0 0.0
  %1514 = vmatpush1.msra.mxu0 %v1482
  %1515 = vmatprep.subr.mxu0 0.0
  %1516 = vmatpush1.msra.mxu0 0.0
  %1517 = vmatprep.subr.mxu0 0.0
  %1518 = vmatpush1.msra.mxu0 0.0
  %1519 = vmatprep.subr.mxu0 0.0
  %1520 = vmatpush1.msra.mxu0 0.0
  %1521 = vmatprep.subr.mxu0 0.0
  %1522 = vmatpush1.msra.mxu0 0.0
  %1523 = vmatprep.subr.mxu0 0.0
  %1524 = vmatpush1.msra.mxu0 0.0
  %1525 = vmatprep.subr.mxu0 0.0
  %1526 = vmatpush1.msra.mxu0 0.0
  %1527 = vmatprep.subr.mxu0 0.0
  %1528 = vmatpush1.msra.mxu0 0.0
  %1529 = vmatprep.subr.mxu0 0.0
  %1530 = vmatpush1.msra.mxu0 0.0
  %1531 = vmatprep.subr.mxu0 0.0
  %1532 = vmatpush1.msra.mxu0 0.0
  %1533 = vmatprep.subr.mxu0 0.0
  %1534 = vmatpush1.msra.mxu0 0.0
  %1535 = vmatprep.subr.mxu0 0.0
  %1536 = vmatpush1.msra.mxu0 0.0
  %1537 = vmatprep.subr.mxu0 0.0
  %1538 = vmatpush1.msra.mxu0 0.0
  %1539 = vmatprep.subr.mxu0 0.0
  %1540 = vmatpush1.msra.mxu0 0.0
  %1541 = vmatprep.subr.mxu0 0.0
  %1542 = vmatpush1.msra.mxu0 0.0
  %1543 = vmatprep.subr.mxu0 0.0
  %1544 = vmatpush1.msra.mxu0 0.0
  %1545 = vmatprep.subr.mxu0 0.0
  %1546 = vmatpush1.msra.mxu0 0.0
  %1547 = vmatprep.mubr.f32.mxu0 0.0
  %1548 = vmatmul.mubr.f32.gmra.mrb[0].mxu0 %v1403
  %v1549 = vpop.f32.mrb[0].mxu0
  %v1550 = vadd.f32 0.0, %v1549
  %v1551 = vpop.f32.mrb[0].mxu0
  %1552 = vmatprep.mubr.f32.mxu0 0.0
  %1553 = vmatmul.mubr.f32.gmra.mrb[0].mxu0 %v1404
  %v1554 = vpop.f32.mrb[0].mxu0
  %v1555 = vadd.f32 0.0, %v1554
  %v1556 = vpop.f32.mrb[0].mxu0
  %1557 = vmatprep.mubr.f32.mxu0 0.0
  %1558 = vmatmul.mubr.f32.gmra.mrb[0].mxu0 %v1405
  %v1559 = vpop.f32.mrb[0].mxu0
  %v1560 = vadd.f32 0.0, %v1559
  %v1561 = vpop.f32.mrb[0].mxu0
  %1562 = vmatprep.mubr.f32.mxu0 0.0
  %1563 = vmatmul.mubr.f32.gmra.mrb[0].mxu0 %v1406
  %v1564 = vpop.f32.mrb[0].mxu0
  %v1565 = vadd.f32 0.0, %v1564
  %v1566 = vpop.f32.mrb[0].mxu0
  %1567 = vmatprep.mubr.f32.mxu0 0.0
  %1568 = vmatmul.mubr.f32.gmra.mrb[0].mxu0 %v1407
  %v1569 = vpop.f32.mrb[0].mxu0
  %v1570 = vadd.f32 0.0, %v1569
  %v1571 = vpop.f32.mrb[0].mxu0
  %1572 = vmatprep.mubr.f32.mxu0 0.0
  %1573 = vmatmul.mubr.f32.gmra.mrb[0].mxu0 %v1408
  %v1574 = vpop.f32.mrb[0].mxu0
  %v1575 = vadd.f32 0.0, %v1574
  %v1576 = vpop.f32.mrb[0].mxu0
  %1577 = vmatprep.mubr.f32.mxu0 0.0
  %1578 = vmatmul.mubr.f32.gmra.mrb[0].mxu0 %v1409
  %v1579 = vpop.f32.mrb[0].mxu0
  %v1580 = vadd.f32 0.0, %v1579
  %v1581 = vpop.f32.mrb[0].mxu0
  %1582 = vmatprep.mubr.f32.mxu0 0.0
  %1583 = vmatmul.mubr.f32.gmra.mrb[0].mxu0 %v1410
  %v1584 = vpop.f32.mrb[0].mxu0
  %v1585 = vadd.f32 0.0, %v1584
  %v1586 = vpop.f32.mrb[0].mxu0
  %1587 = vmatprep.mubr.f32.mxu0 0.0
  %1588 = vmatmul.mubr.f32.gmra.mrb[0].mxu0 %v1411
  %v1589 = vpop.f32.mrb[0].mxu0
  %v1590 = vadd.f32 0.0, %v1589
  %v1591 = vpop.f32.mrb[0].mxu0
  %1592 = vmatprep.mubr.f32.mxu0 0.0
  %1593 = vmatmul.mubr.f32.gmra.mrb[0].mxu0 %v1412
  %v1594 = vpop.f32.mrb[0].mxu0
  %v1595 = vadd.f32 0.0, %v1594
  %v1596 = vpop.f32.mrb[0].mxu0
  %1597 = vmatprep.mubr.f32.mxu0 0.0
  %1598 = vmatmul.mubr.f32.gmra.mrb[0].mxu0 %v1413
  %v1599 = vpop.f32.mrb[0].mxu0
  %v1600 = vadd.f32 0.0, %v1599
  %v1601 = vpop.f32.mrb[0].mxu0
  %1602 = vmatprep.mubr.f32.mxu0 0.0
  %1603 = vmatmul.mubr.f32.gmra.mrb[0].mxu0 %v1414
  %v1604 = vpop.f32.mrb[0].mxu0
  %v1605 = vadd.f32 0.0, %v1604
  %v1606 = vpop.f32.mrb[0].mxu0
  %1607 = vmatprep.mubr.f32.mxu0 0.0
  %1608 = vmatmul.mubr.f32.gmra.mrb[0].mxu0 %v1415
  %v1609 = vpop.f32.mrb[0].mxu0
  %v1610 = vadd.f32 0.0, %v1609
  %v1611 = vpop.f32.mrb[0].mxu0
  %1612 = vmatprep.mubr.f32.mxu0 0.0
  %1613 = vmatmul.mubr.f32.gmra.mrb[0].mxu0 %v1416
  %v1614 = vpop.f32.mrb[0].mxu0
  %v1615 = vadd.f32 0.0, %v1614
  %v1616 = vpop.f32.mrb[0].mxu0
  %1617 = vmatprep.mubr.f32.mxu0 0.0
  %1618 = vmatmul.mubr.f32.gmra.mrb[0].mxu0 %v1417
  %v1619 = vpop.f32.mrb[0].mxu0
  %v1620 = vadd.f32 0.0, %v1619
  %v1621 = vpop.f32.mrb[0].mxu0
  %1622 = vmatprep.mubr.f32.mxu0 0.0
  %1623 = vmatmul.mubr.f32.gmra.mrb[0].mxu0 %v1418
  %v1624 = vpop.f32.mrb[0].mxu0
  %v1625 = vadd.f32 0.0, %v1624
  %v1626 = vpop.f32.mrb[0].mxu0
  %1627 = vmatprep.mubr.f32.mxu0 0.0
  %1628 = vmatmul.mubr.f32.gmra.mrb[0].mxu0 %v1419
  %v1629 = vpop.f32.mrb[0].mxu0
  %v1630 = vadd.f32 0.0, %v1629
  %v1631 = vpop.f32.mrb[0].mxu0
  %1632 = vmatprep.mubr.f32.mxu0 0.0
  %1633 = vmatmul.mubr.f32.gmra.mrb[0].mxu0 %v1420
  %v1634 = vpop.f32.mrb[0].mxu0
  %v1635 = vadd.f32 0.0, %v1634
  %v1636 = vpop.f32.mrb[0].mxu0
  %1637 = vmatprep.mubr.f32.mxu0 0.0
  %1638 = vmatmul.mubr.f32.gmra.mrb[0].mxu0 %v1421
  %v1639 = vpop.f32.mrb[0].mxu0
  %v1640 = vadd.f32 0.0, %v1639
  %v1641 = vpop.f32.mrb[0].mxu0
  %1642 = vmatprep.mubr.f32.mxu0 0.0
  %1643 = vmatmul.mubr.f32.gmra.mrb[0].mxu0 %v1422
  %v1644 = vpop.f32.mrb[0].mxu0
  %v1645 = vadd.f32 0.0, %v1644
  %v1646 = vpop.f32.mrb[0].mxu0
  %1647 = vmatprep.mubr.f32.mxu0 0.0
  %1648 = vmatmul.mubr.f32.gmra.mrb[0].mxu0 %v1423
  %v1649 = vpop.f32.mrb[0].mxu0
  %v1650 = vadd.f32 0.0, %v1649
  %v1651 = vpop.f32.mrb[0].mxu0
  %1652 = vmatprep.mubr.f32.mxu0 0.0
  %1653 = vmatmul.mubr.f32.gmra.mrb[0].mxu0 %v1424
  %v1654 = vpop.f32.mrb[0].mxu0
  %v1655 = vadd.f32 0.0, %v1654
  %v1656 = vpop.f32.mrb[0].mxu0
  %1657 = vmatprep.mubr.f32.mxu0 0.0
  %1658 = vmatmul.mubr.f32.gmra.mrb[0].mxu0 %v1425
  %v1659 = vpop.f32.mrb[0].mxu0
  %v1660 = vadd.f32 0.0, %v1659
  %v1661 = vpop.f32.mrb[0].mxu0
  %1662 = vmatprep.mubr.f32.mxu0 0.0
  %1663 = vmatmul.mubr.f32.gmra.mrb[0].mxu0 %v1426
  %v1664 = vpop.f32.mrb[0].mxu0
  %v1665 = vadd.f32 0.0, %v1664
  %v1666 = vpop.f32.mrb[0].mxu0
  %1667 = vmatprep.mubr.f32.mxu0 0.0
  %1668 = vmatmul.mubr.f32.gmra.mrb[0].mxu0 %v1427
  %v1669 = vpop.f32.mrb[0].mxu0
  %v1670 = vadd.f32 0.0, %v1669
  %v1671 = vpop.f32.mrb[0].mxu0
  %1672 = vmatprep.mubr.f32.mxu0 0.0
  %1673 = vmatmul.mubr.f32.gmra.mrb[0].mxu0 %v1428
  %v1674 = vpop.f32.mrb[0].mxu0
  %v1675 = vadd.f32 0.0, %v1674
  %v1676 = vpop.f32.mrb[0].mxu0
  %1677 = vmatprep.mubr.f32.mxu0 0.0
  %1678 = vmatmul.mubr.f32.gmra.mrb[0].mxu0 %v1429
  %v1679 = vpop.f32.mrb[0].mxu0
  %v1680 = vadd.f32 0.0, %v1679
  %v1681 = vpop.f32.mrb[0].mxu0
  %1682 = vmatprep.mubr.f32.mxu0 0.0
  %1683 = vmatmul.mubr.f32.gmra.mrb[0].mxu0 %v1430
  %v1684 = vpop.f32.mrb[0].mxu0
  %v1685 = vadd.f32 0.0, %v1684
  %v1686 = vpop.f32.mrb[0].mxu0
  %1687 = vmatprep.mubr.f32.mxu0 0.0
  %1688 = vmatmul.mubr.f32.gmra.mrb[0].mxu0 %v1431
  %v1689 = vpop.f32.mrb[0].mxu0
  %v1690 = vadd.f32 0.0, %v1689
  %v1691 = vpop.f32.mrb[0].mxu0
  %1692 = vmatprep.mubr.f32.mxu0 0.0
  %1693 = vmatmul.mubr.f32.gmra.mrb[0].mxu0 %v1432
  %v1694 = vpop.f32.mrb[0].mxu0
  %v1695 = vadd.f32 0.0, %v1694
  %v1696 = vpop.f32.mrb[0].mxu0
  %1697 = vmatprep.mubr.f32.mxu0 0.0
  %1698 = vmatmul.mubr.f32.gmra.mrb[0].mxu0 %v1433
  %v1699 = vpop.f32.mrb[0].mxu0
  %v1700 = vadd.f32 0.0, %v1699
  %v1701 = vpop.f32.mrb[0].mxu0
  %1702 = vmatprep.mubr.f32.mxu0 0.0
  %1703 = vmatmul.mubr.f32.gmra.mrb[0].mxu0 %v1434
  %v1704 = vpop.f32.mrb[0].mxu0
  %v1705 = vadd.f32 0.0, %v1704
  %v1706 = vpop.f32.mrb[0].mxu0
  %1707 = vmatprep.mubr.f32.mxu0 0.0
  %1708 = vmatmul.mubr.f32.gmra.mrb[0].mxu0 %v1435
  %v1709 = vpop.f32.mrb[0].mxu0
  %v1710 = vadd.f32 0.0, %v1709
  %v1711 = vpop.f32.mrb[0].mxu0
  %1712 = vmatprep.mubr.f32.mxu0 0.0
  %1713 = vmatmul.mubr.f32.gmra.mrb[0].mxu0 %v1436
  %v1714 = vpop.f32.mrb[0].mxu0
  %v1715 = vadd.f32 0.0, %v1714
  %v1716 = vpop.f32.mrb[0].mxu0
  %1717 = vmatprep.mubr.f32.mxu0 0.0
  %1718 = vmatmul.mubr.f32.gmra.mrb[0].mxu0 %v1437
  %v1719 = vpop.f32.mrb[0].mxu0
  %v1720 = vadd.f32 0.0, %v1719
  %v1721 = vpop.f32.mrb[0].mxu0
  %1722 = vmatprep.mubr.f32.mxu0 0.0
  %1723 = vmatmul.mubr.f32.gmra.mrb[0].mxu0 %v1438
  %v1724 = vpop.f32.mrb[0].mxu0
  %v1725 = vadd.f32 0.0, %v1724
  %v1726 = vpop.f32.mrb[0].mxu0
  %1727 = vmatprep.mubr.f32.mxu0 0.0
  %1728 = vmatmul.mubr.f32.gmra.mrb[0].mxu0 %v1439
  %v1729 = vpop.f32.mrb[0].mxu0
  %v1730 = vadd.f32 0.0, %v1729
  %v1731 = vpop.f32.mrb[0].mxu0
  %1732 = vmatprep.mubr.f32.mxu0 0.0
  %1733 = vmatmul.mubr.f32.gmra.mrb[0].mxu0 %v1440
  %v1734 = vpop.f32.mrb[0].mxu0
  %v1735 = vadd.f32 0.0, %v1734
  %v1736 = vpop.f32.mrb[0].mxu0
  %1737 = vmatprep.mubr.f32.mxu0 0.0
  %1738 = vmatmul.mubr.f32.gmra.mrb[0].mxu0 %v1441
  %v1739 = vpop.f32.mrb[0].mxu0
  %v1740 = vadd.f32 0.0, %v1739
  %v1741 = vpop.f32.mrb[0].mxu0
  %1742 = vmatprep.mubr.f32.mxu0 0.0
  %1743 = vmatmul.mubr.f32.gmra.mrb[0].mxu0 %v1442
  %v1744 = vpop.f32.mrb[0].mxu0
  %v1745 = vadd.f32 0.0, %v1744
  %v1746 = vpop.f32.mrb[0].mxu0
  %1747 = vmatprep.mubr.f32.mxu0 0.0
  %1748 = vmatmul.mubr.f32.gmra.mrb[0].mxu0 %v1443
  %v1749 = vpop.f32.mrb[0].mxu0
  %v1750 = vadd.f32 0.0, %v1749
  %v1751 = vpop.f32.mrb[0].mxu0
  %1752 = vmatprep.mubr.f32.mxu0 0.0
  %1753 = vmatmul.mubr.f32.gmra.mrb[0].mxu0 %v1444
  %v1754 = vpop.f32.mrb[0].mxu0
  %v1755 = vadd.f32 0.0, %v1754
  %v1756 = vpop.f32.mrb[0].mxu0
  %1757 = vmatprep.mubr.f32.mxu0 0.0
  %1758 = vmatmul.mubr.f32.gmra.mrb[0].mxu0 %v1445
  %v1759 = vpop.f32.mrb[0].mxu0
  %v1760 = vadd.f32 0.0, %v1759
  %v1761 = vpop.f32.mrb[0].mxu0
  %1762 = vmatprep.mubr.f32.mxu0 0.0
  %1763 = vmatmul.mubr.f32.gmra.mrb[0].mxu0 %v1446
  %v1764 = vpop.f32.mrb[0].mxu0
  %v1765 = vadd.f32 0.0, %v1764
  %v1766 = vpop.f32.mrb[0].mxu0
  %1767 = vmatprep.mubr.f32.mxu0 0.0
  %1768 = vmatmul.mubr.f32.gmra.mrb[0].mxu0 %v1447
  %v1769 = vpop.f32.mrb[0].mxu0
  %v1770 = vadd.f32 0.0, %v1769
  %v1771 = vpop.f32.mrb[0].mxu0
  %1772 = vmatprep.mubr.f32.mxu0 0.0
  %1773 = vmatmul.mubr.f32.gmra.mrb[0].mxu0 %v1448
  %v1774 = vpop.f32.mrb[0].mxu0
  %v1775 = vadd.f32 0.0, %v1774
  %v1776 = vpop.f32.mrb[0].mxu0
  %1777 = vmatprep.mubr.f32.mxu0 0.0
  %1778 = vmatmul.mubr.f32.gmra.mrb[0].mxu0 %v1449
  %v1779 = vpop.f32.mrb[0].mxu0
  %v1780 = vadd.f32 0.0, %v1779
  %v1781 = vpop.f32.mrb[0].mxu0
  %1782 = vmatprep.mubr.f32.mxu0 0.0
  %1783 = vmatmul.mubr.f32.gmra.mrb[0].mxu0 %v1450
  %v1784 = vpop.f32.mrb[0].mxu0
  %v1785 = vadd.f32 0.0, %v1784
  %v1786 = vpop.f32.mrb[0].mxu0
  %1787 = vmatprep.mubr.f32.mxu0 0.0
  %1788 = vmatmul.mubr.f32.gmra.mrb[0].mxu0 %v1451
  %v1789 = vpop.f32.mrb[0].mxu0
  %v1790 = vadd.f32 0.0, %v1789
  %v1791 = vpop.f32.mrb[0].mxu0
  %1792 = vmatprep.mubr.f32.mxu0 0.0
  %1793 = vmatmul.mubr.f32.gmra.mrb[0].mxu0 %v1452
  %v1794 = vpop.f32.mrb[0].mxu0
  %v1795 = vadd.f32 0.0, %v1794
  %v1796 = vpop.f32.mrb[0].mxu0
  %1797 = vmatprep.mubr.f32.mxu0 0.0
  %1798 = vmatmul.mubr.f32.gmra.mrb[0].mxu0 %v1453
  %v1799 = vpop.f32.mrb[0].mxu0
  %v1800 = vadd.f32 0.0, %v1799
  %v1801 = vpop.f32.mrb[0].mxu0
  %1802 = vmatprep.mubr.f32.mxu0 0.0
  %1803 = vmatmul.mubr.f32.gmra.mrb[0].mxu0 %v1454
  %v1804 = vpop.f32.mrb[0].mxu0
  %v1805 = vadd.f32 0.0, %v1804
  %v1806 = vpop.f32.mrb[0].mxu0
  %1807 = vmatprep.mubr.f32.mxu0 0.0
  %1808 = vmatmul.mubr.f32.gmra.mrb[0].mxu0 %v1455
  %v1809 = vpop.f32.mrb[0].mxu0
  %v1810 = vadd.f32 0.0, %v1809
  %v1811 = vpop.f32.mrb[0].mxu0
  %1812 = vmatprep.mubr.f32.mxu0 0.0
  %1813 = vmatmul.mubr.f32.gmra.mrb[0].mxu0 %v1456
  %v1814 = vpop.f32.mrb[0].mxu0
  %v1815 = vadd.f32 0.0, %v1814
  %v1816 = vpop.f32.mrb[0].mxu0
  %1817 = vmatprep.mubr.f32.mxu0 0.0
  %1818 = vmatmul.mubr.f32.gmra.mrb[0].mxu0 %v1457
  %v1819 = vpop.f32.mrb[0].mxu0
  %v1820 = vadd.f32 0.0, %v1819
  %v1821 = vpop.f32.mrb[0].mxu0
  %1822 = vmatprep.mubr.f32.mxu0 0.0
  %1823 = vmatmul.mubr.f32.gmra.mrb[0].mxu0 %v1458
  %v1824 = vpop.f32.mrb[0].mxu0
  %v1825 = vadd.f32 0.0, %v1824
  %v1826 = vpop.f32.mrb[0].mxu0
  %1827 = vmatprep.mubr.f32.mxu0 0.0
  %1828 = vmatmul.mubr.f32.gmra.mrb[0].mxu0 %v1459
  %v1829 = vpop.f32.mrb[0].mxu0
  %v1830 = vadd.f32 0.0, %v1829
  %v1831 = vpop.f32.mrb[0].mxu0
  %1832 = vmatprep.mubr.f32.mxu0 0.0
  %1833 = vmatmul.mubr.f32.gmra.mrb[0].mxu0 %v1460
  %v1834 = vpop.f32.mrb[0].mxu0
  %v1835 = vadd.f32 0.0, %v1834
  %v1836 = vpop.f32.mrb[0].mxu0
  %1837 = vmatprep.mubr.f32.mxu0 0.0
  %1838 = vmatmul.mubr.f32.gmra.mrb[0].mxu0 %v1461
  %v1839 = vpop.f32.mrb[0].mxu0
  %v1840 = vadd.f32 0.0, %v1839
  %v1841 = vpop.f32.mrb[0].mxu0
  %1842 = vmatprep.mubr.f32.mxu0 0.0
  %1843 = vmatmul.mubr.f32.gmra.mrb[0].mxu0 %v1462
  %v1844 = vpop.f32.mrb[0].mxu0
  %v1845 = vadd.f32 0.0, %v1844
  %v1846 = vpop.f32.mrb[0].mxu0
  %1847 = vmatprep.mubr.f32.mxu0 0.0
  %1848 = vmatmul.mubr.f32.gmra.mrb[0].mxu0 %v1463
  %v1849 = vpop.f32.mrb[0].mxu0
  %v1850 = vadd.f32 0.0, %v1849
  %v1851 = vpop.f32.mrb[0].mxu0
  %1852 = vmatprep.mubr.f32.mxu0 0.0
  %1853 = vmatmul.mubr.f32.gmra.mrb[0].mxu0 %v1464
  %v1854 = vpop.f32.mrb[0].mxu0
  %v1855 = vadd.f32 0.0, %v1854
  %v1856 = vpop.f32.mrb[0].mxu0
  %1857 = vmatprep.mubr.f32.mxu0 0.0
  %1858 = vmatmul.mubr.f32.gmra.mrb[0].mxu0 %v1465
  %v1859 = vpop.f32.mrb[0].mxu0
  %v1860 = vadd.f32 0.0, %v1859
  %v1861 = vpop.f32.mrb[0].mxu0
  %1862 = vmatprep.mubr.f32.mxu0 0.0
  %1863 = vmatmul.mubr.f32.gmra.mrb[0].mxu0 %v1466
  %v1864 = vpop.f32.mrb[0].mxu0
  %v1865 = vadd.f32 0.0, %v1864
  %v1866 = vpop.f32.mrb[0].mxu0
  %1867 = vdwg.mxu0
  %v1868 = vadd.f32 %v1085, %v1550
  %v1869 = vadd.f32 %v1090, %v1555
  %v1870 = vadd.f32 %v1095, %v1560
  %v1871 = vadd.f32 %v1100, %v1565
  %v1872 = vadd.f32 %v1105, %v1570
  %v1873 = vadd.f32 %v1110, %v1575
  %v1874 = vadd.f32 %v1115, %v1580
  %v1875 = vadd.f32 %v1120, %v1585
  %v1876 = vadd.f32 %v1125, %v1590
  %v1877 = vadd.f32 %v1130, %v1595
  %v1878 = vadd.f32 %v1135, %v1600
  %v1879 = vadd.f32 %v1140, %v1605
  %v1880 = vadd.f32 %v1145, %v1610
  %v1881 = vadd.f32 %v1150, %v1615
  %v1882 = vadd.f32 %v1155, %v1620
  %v1883 = vadd.f32 %v1160, %v1625
  %v1884 = vadd.f32 %v1165, %v1630
  %v1885 = vadd.f32 %v1170, %v1635
  %v1886 = vadd.f32 %v1175, %v1640
  %v1887 = vadd.f32 %v1180, %v1645
  %v1888 = vadd.f32 %v1185, %v1650
  %v1889 = vadd.f32 %v1190, %v1655
  %v1890 = vadd.f32 %v1195, %v1660
  %v1891 = vadd.f32 %v1200, %v1665
  %v1892 = vadd.f32 %v1205, %v1670
  %v1893 = vadd.f32 %v1210, %v1675
  %v1894 = vadd.f32 %v1215, %v1680
  %v1895 = vadd.f32 %v1220, %v1685
  %v1896 = vadd.f32 %v1225, %v1690
  %v1897 = vadd.f32 %v1230, %v1695
  %v1898 = vadd.f32 %v1235, %v1700
  %v1899 = vadd.f32 %v1240, %v1705
  %v1900 = vadd.f32 %v1245, %v1710
  %v1901 = vadd.f32 %v1250, %v1715
  %v1902 = vadd.f32 %v1255, %v1720
  %v1903 = vadd.f32 %v1260, %v1725
  %v1904 = vadd.f32 %v1265, %v1730
  %v1905 = vadd.f32 %v1270, %v1735
  %v1906 = vadd.f32 %v1275, %v1740
  %v1907 = vadd.f32 %v1280, %v1745
  %v1908 = vadd.f32 %v1285, %v1750
  %v1909 = vadd.f32 %v1290, %v1755
  %v1910 = vadd.f32 %v1295, %v1760
  %v1911 = vadd.f32 %v1300, %v1765
  %v1912 = vadd.f32 %v1305, %v1770
  %v1913 = vadd.f32 %v1310, %v1775
  %v1914 = vadd.f32 %v1315, %v1780
  %v1915 = vadd.f32 %v1320, %v1785
  %v1916 = vadd.f32 %v1325, %v1790
  %v1917 = vadd.f32 %v1330, %v1795
  %v1918 = vadd.f32 %v1335, %v1800
  %v1919 = vadd.f32 %v1340, %v1805
  %v1920 = vadd.f32 %v1345, %v1810
  %v1921 = vadd.f32 %v1350, %v1815
  %v1922 = vadd.f32 %v1355, %v1820
  %v1923 = vadd.f32 %v1360, %v1825
  %v1924 = vadd.f32 %v1365, %v1830
  %v1925 = vadd.f32 %v1370, %v1835
  %v1926 = vadd.f32 %v1375, %v1840
  %v1927 = vadd.f32 %v1380, %v1845
  %v1928 = vadd.f32 %v1385, %v1850
  %v1929 = vadd.f32 %v1390, %v1855
  %v1930 = vadd.f32 %v1395, %v1860
  %v1931 = vadd.f32 %v1400, %v1865
  %v1932 = vld [vmem:[%s378 + $0x7] sm:$0xff]
  %v1933 = vld [vmem:[%s378 + $0xf] sm:$0xff]
  %v1934 = vld [vmem:[%s378 + $0x27] sm:$0xff]
  %v1935 = vld [vmem:[%s378 + $0x2f] sm:$0xff]
  %v1936 = vld [vmem:[%s378 + $0x47] sm:$0xff]
  %v1937 = vld [vmem:[%s378 + $0x4f] sm:$0xff]
  %v1938 = vld [vmem:[%s378 + $0x67] sm:$0xff]
  %v1939 = vld [vmem:[%s378 + $0x6f] sm:$0xff]
  %v1940 = vld [vmem:[%s378 + $0x87] sm:$0xff]
  %v1941 = vld [vmem:[%s378 + $0x8f] sm:$0xff]
  %v1942 = vld [vmem:[%s378 + $0xa7] sm:$0xff]
  %v1943 = vld [vmem:[%s378 + $0xaf] sm:$0xff]
  %v1944 = vld [vmem:[%s378 + $0xc7] sm:$0xff]
  %v1945 = vld [vmem:[%s378 + $0xcf] sm:$0xff]
  %v1946 = vld [vmem:[%s378 + $0xe7] sm:$0xff]
  %v1947 = vld [vmem:[%s378 + $0xef] sm:$0xff]
  %v1948 = vld [vmem:[%s378 + $0x107] sm:$0xff]
  %v1949 = vld [vmem:[%s378 + $0x10f] sm:$0xff]
  %v1950 = vld [vmem:[%s378 + $0x127] sm:$0xff]
  %v1951 = vld [vmem:[%s378 + $0x12f] sm:$0xff]
  %v1952 = vld [vmem:[%s378 + $0x147] sm:$0xff]
  %v1953 = vld [vmem:[%s378 + $0x14f] sm:$0xff]
  %v1954 = vld [vmem:[%s378 + $0x167] sm:$0xff]
  %v1955 = vld [vmem:[%s378 + $0x16f] sm:$0xff]
  %v1956 = vld [vmem:[%s378 + $0x187] sm:$0xff]
  %v1957 = vld [vmem:[%s378 + $0x18f] sm:$0xff]
  %v1958 = vld [vmem:[%s378 + $0x1a7] sm:$0xff]
  %v1959 = vld [vmem:[%s378 + $0x1af] sm:$0xff]
  %v1960 = vld [vmem:[%s378 + $0x1c7] sm:$0xff]
  %v1961 = vld [vmem:[%s378 + $0x1cf] sm:$0xff]
  %v1962 = vld [vmem:[%s378 + $0x1e7] sm:$0xff]
  %v1963 = vld [vmem:[%s378 + $0x1ef] sm:$0xff]
  %v1964 = vld [vmem:[%s378 + $0x247] sm:$0xff]
  %v1965 = vld [vmem:[%s378 + $0x24f] sm:$0xff]
  %v1966 = vld [vmem:[%s378 + $0x267] sm:$0xff]
  %v1967 = vld [vmem:[%s378 + $0x26f] sm:$0xff]
  %v1968 = vld [vmem:[%s378 + $0x287] sm:$0xff]
  %v1969 = vld [vmem:[%s378 + $0x28f] sm:$0xff]
  %v1970 = vld [vmem:[%s378 + $0x2a7] sm:$0xff]
  %v1971 = vld [vmem:[%s378 + $0x2af] sm:$0xff]
  %v1972 = vld [vmem:[%s378 + $0x2c7] sm:$0xff]
  %v1973 = vld [vmem:[%s378 + $0x2cf] sm:$0xff]
  %v1974 = vld [vmem:[%s378 + $0x2e7] sm:$0xff]
  %v1975 = vld [vmem:[%s378 + $0x2ef] sm:$0xff]
  %v1976 = vld [vmem:[%s378 + $0x307] sm:$0xff]
  %v1977 = vld [vmem:[%s378 + $0x30f] sm:$0xff]
  %v1978 = vld [vmem:[%s378 + $0x327] sm:$0xff]
  %v1979 = vld [vmem:[%s378 + $0x32f] sm:$0xff]
  %v1980 = vld [vmem:[%s378 + $0x347] sm:$0xff]
  %v1981 = vld [vmem:[%s378 + $0x34f] sm:$0xff]
  %v1982 = vld [vmem:[%s378 + $0x367] sm:$0xff]
  %v1983 = vld [vmem:[%s378 + $0x36f] sm:$0xff]
  %v1984 = vld [vmem:[%s378 + $0x387] sm:$0xff]
  %v1985 = vld [vmem:[%s378 + $0x38f] sm:$0xff]
  %v1986 = vld [vmem:[%s378 + $0x3a7] sm:$0xff]
  %v1987 = vld [vmem:[%s378 + $0x3af] sm:$0xff]
  %v1988 = vld [vmem:[%s378 + $0x3c7] sm:$0xff]
  %v1989 = vld [vmem:[%s378 + $0x3cf] sm:$0xff]
  %v1990 = vld [vmem:[%s378 + $0x3e7] sm:$0xff]
  %v1991 = vld [vmem:[%s378 + $0x3ef] sm:$0xff]
  %v1992 = vld [vmem:[%s378 + $0x407] sm:$0xff]
  %v1993 = vld [vmem:[%s378 + $0x40f] sm:$0xff]
  %v1994 = vld [vmem:[%s378 + $0x427] sm:$0xff]
  %v1995 = vld [vmem:[%s378 + $0x42f] sm:$0xff]
  %v1996 = vld [vmem:[#allocation3 + $0x180] sm:$0xff]
  %v1997 = vld [vmem:[#allocation3 + $0x188] sm:$0xff]
  %v1998 = vld [vmem:[#allocation3 + $0x190] sm:$0xff]
  %v1999 = vld [vmem:[#allocation3 + $0x198] sm:$0xff]
  %v2000 = vld [vmem:[#allocation3 + $0x1a0] sm:$0xff]
  %v2001 = vld [vmem:[#allocation3 + $0x1a8] sm:$0xff]
  %v2002 = vld [vmem:[#allocation3 + $0x1b0] sm:$0xff]
  %v2003 = vld [vmem:[#allocation3 + $0x1b8] sm:$0xff]
  %v2004 = vld [vmem:[#allocation3 + $0x1c0] sm:$0xff]
  %v2005 = vld [vmem:[#allocation3 + $0x1c8] sm:$0xff]
  %v2006 = vld [vmem:[#allocation3 + $0x1d0] sm:$0xff]
  %v2007 = vld [vmem:[#allocation3 + $0x1d8] sm:$0xff]
  %v2008 = vld [vmem:[#allocation3 + $0x1e0] sm:$0xff]
  %v2009 = vld [vmem:[#allocation3 + $0x1e8] sm:$0xff]
  %v2010 = vld [vmem:[#allocation3 + $0x1f0] sm:$0xff]
  %v2011 = vld [vmem:[#allocation3 + $0x1f8] sm:$0xff]
  %2012 = vmatprep.subr.mxu0 0.0
  %2013 = vmatpush1.msra.mxu0 %v1996
  %2014 = vmatprep.subr.mxu0 0.0
  %2015 = vmatpush1.msra.mxu0 %v1997
  %2016 = vmatprep.subr.mxu0 0.0
  %2017 = vmatpush1.msra.mxu0 %v1998
  %2018 = vmatprep.subr.mxu0 0.0
  %2019 = vmatpush1.msra.mxu0 %v1999
  %2020 = vmatprep.subr.mxu0 0.0
  %2021 = vmatpush1.msra.mxu0 %v2000
  %2022 = vmatprep.subr.mxu0 0.0
  %2023 = vmatpush1.msra.mxu0 %v2001
  %2024 = vmatprep.subr.mxu0 0.0
  %2025 = vmatpush1.msra.mxu0 %v2002
  %2026 = vmatprep.subr.mxu0 0.0
  %2027 = vmatpush1.msra.mxu0 %v2003
  %2028 = vmatprep.subr.mxu0 0.0
  %2029 = vmatpush1.msra.mxu0 %v2004
  %2030 = vmatprep.subr.mxu0 0.0
  %2031 = vmatpush1.msra.mxu0 %v2005
  %2032 = vmatprep.subr.mxu0 0.0
  %2033 = vmatpush1.msra.mxu0 %v2006
  %2034 = vmatprep.subr.mxu0 0.0
  %2035 = vmatpush1.msra.mxu0 %v2007
  %2036 = vmatprep.subr.mxu0 0.0
  %2037 = vmatpush1.msra.mxu0 %v2008
  %2038 = vmatprep.subr.mxu0 0.0
  %2039 = vmatpush1.msra.mxu0 %v2009
  %2040 = vmatprep.subr.mxu0 0.0
  %2041 = vmatpush1.msra.mxu0 %v2010
  %2042 = vmatprep.subr.mxu0 0.0
  %2043 = vmatpush1.msra.mxu0 %v2011
  %2044 = vmatprep.subr.mxu0 0.0
  %2045 = vmatpush1.msra.mxu0 0.0
  %2046 = vmatprep.subr.mxu0 0.0
  %2047 = vmatpush1.msra.mxu0 0.0
  %2048 = vmatprep.subr.mxu0 0.0
  %2049 = vmatpush1.msra.mxu0 0.0
  %2050 = vmatprep.subr.mxu0 0.0
  %2051 = vmatpush1.msra.mxu0 0.0
  %2052 = vmatprep.subr.mxu0 0.0
  %2053 = vmatpush1.msra.mxu0 0.0
  %2054 = vmatprep.subr.mxu0 0.0
  %2055 = vmatpush1.msra.mxu0 0.0
  %2056 = vmatprep.subr.mxu0 0.0
  %2057 = vmatpush1.msra.mxu0 0.0
  %2058 = vmatprep.subr.mxu0 0.0
  %2059 = vmatpush1.msra.mxu0 0.0
  %2060 = vmatprep.subr.mxu0 0.0
  %2061 = vmatpush1.msra.mxu0 0.0
  %2062 = vmatprep.subr.mxu0 0.0
  %2063 = vmatpush1.msra.mxu0 0.0
  %2064 = vmatprep.subr.mxu0 0.0
  %2065 = vmatpush1.msra.mxu0 0.0
  %2066 = vmatprep.subr.mxu0 0.0
  %2067 = vmatpush1.msra.mxu0 0.0
  %2068 = vmatprep.subr.mxu0 0.0
  %2069 = vmatpush1.msra.mxu0 0.0
  %2070 = vmatprep.subr.mxu0 0.0
  %2071 = vmatpush1.msra.mxu0 0.0
  %2072 = vmatprep.subr.mxu0 0.0
  %2073 = vmatpush1.msra.mxu0 0.0
  %2074 = vmatprep.subr.mxu0 0.0
  %2075 = vmatpush1.msra.mxu0 0.0
  %2076 = vmatprep.mubr.f32.mxu0 0.0
  %2077 = vmatmul.mubr.f32.gmra.mrb[0].mxu0 %v1932
  %v2078 = vpop.f32.mrb[0].mxu0
  %v2079 = vadd.f32 0.0, %v2078
  %v2080 = vpop.f32.mrb[0].mxu0
  %2081 = vmatprep.mubr.f32.mxu0 0.0
  %2082 = vmatmul.mubr.f32.gmra.mrb[0].mxu0 %v1933
  %v2083 = vpop.f32.mrb[0].mxu0
  %v2084 = vadd.f32 0.0, %v2083
  %v2085 = vpop.f32.mrb[0].mxu0
  %2086 = vmatprep.mubr.f32.mxu0 0.0
  %2087 = vmatmul.mubr.f32.gmra.mrb[0].mxu0 %v1934
  %v2088 = vpop.f32.mrb[0].mxu0
  %v2089 = vadd.f32 0.0, %v2088
  %v2090 = vpop.f32.mrb[0].mxu0
  %2091 = vmatprep.mubr.f32.mxu0 0.0
  %2092 = vmatmul.mubr.f32.gmra.mrb[0].mxu0 %v1935
  %v2093 = vpop.f32.mrb[0].mxu0
  %v2094 = vadd.f32 0.0, %v2093
  %v2095 = vpop.f32.mrb[0].mxu0
  %2096 = vmatprep.mubr.f32.mxu0 0.0
  %2097 = vmatmul.mubr.f32.gmra.mrb[0].mxu0 %v1936
  %v2098 = vpop.f32.mrb[0].mxu0
  %v2099 = vadd.f32 0.0, %v2098
  %v2100 = vpop.f32.mrb[0].mxu0
  %2101 = vmatprep.mubr.f32.mxu0 0.0
  %2102 = vmatmul.mubr.f32.gmra.mrb[0].mxu0 %v1937
  %v2103 = vpop.f32.mrb[0].mxu0
  %v2104 = vadd.f32 0.0, %v2103
  %v2105 = vpop.f32.mrb[0].mxu0
  %2106 = vmatprep.mubr.f32.mxu0 0.0
  %2107 = vmatmul.mubr.f32.gmra.mrb[0].mxu0 %v1938
  %v2108 = vpop.f32.mrb[0].mxu0
  %v2109 = vadd.f32 0.0, %v2108
  %v2110 = vpop.f32.mrb[0].mxu0
  %2111 = vmatprep.mubr.f32.mxu0 0.0
  %2112 = vmatmul.mubr.f32.gmra.mrb[0].mxu0 %v1939
  %v2113 = vpop.f32.mrb[0].mxu0
  %v2114 = vadd.f32 0.0, %v2113
  %v2115 = vpop.f32.mrb[0].mxu0
  %2116 = vmatprep.mubr.f32.mxu0 0.0
  %2117 = vmatmul.mubr.f32.gmra.mrb[0].mxu0 %v1940
  %v2118 = vpop.f32.mrb[0].mxu0
  %v2119 = vadd.f32 0.0, %v2118
  %v2120 = vpop.f32.mrb[0].mxu0
  %2121 = vmatprep.mubr.f32.mxu0 0.0
  %2122 = vmatmul.mubr.f32.gmra.mrb[0].mxu0 %v1941
  %v2123 = vpop.f32.mrb[0].mxu0
  %v2124 = vadd.f32 0.0, %v2123
  %v2125 = vpop.f32.mrb[0].mxu0
  %2126 = vmatprep.mubr.f32.mxu0 0.0
  %2127 = vmatmul.mubr.f32.gmra.mrb[0].mxu0 %v1942
  %v2128 = vpop.f32.mrb[0].mxu0
  %v2129 = vadd.f32 0.0, %v2128
  %v2130 = vpop.f32.mrb[0].mxu0
  %2131 = vmatprep.mubr.f32.mxu0 0.0
  %2132 = vmatmul.mubr.f32.gmra.mrb[0].mxu0 %v1943
  %v2133 = vpop.f32.mrb[0].mxu0
  %v2134 = vadd.f32 0.0, %v2133
  %v2135 = vpop.f32.mrb[0].mxu0
  %2136 = vmatprep.mubr.f32.mxu0 0.0
  %2137 = vmatmul.mubr.f32.gmra.mrb[0].mxu0 %v1944
  %v2138 = vpop.f32.mrb[0].mxu0
  %v2139 = vadd.f32 0.0, %v2138
  %v2140 = vpop.f32.mrb[0].mxu0
  %2141 = vmatprep.mubr.f32.mxu0 0.0
  %2142 = vmatmul.mubr.f32.gmra.mrb[0].mxu0 %v1945
  %v2143 = vpop.f32.mrb[0].mxu0
  %v2144 = vadd.f32 0.0, %v2143
  %v2145 = vpop.f32.mrb[0].mxu0
  %2146 = vmatprep.mubr.f32.mxu0 0.0
  %2147 = vmatmul.mubr.f32.gmra.mrb[0].mxu0 %v1946
  %v2148 = vpop.f32.mrb[0].mxu0
  %v2149 = vadd.f32 0.0, %v2148
  %v2150 = vpop.f32.mrb[0].mxu0
  %2151 = vmatprep.mubr.f32.mxu0 0.0
  %2152 = vmatmul.mubr.f32.gmra.mrb[0].mxu0 %v1947
  %v2153 = vpop.f32.mrb[0].mxu0
  %v2154 = vadd.f32 0.0, %v2153
  %v2155 = vpop.f32.mrb[0].mxu0
  %2156 = vmatprep.mubr.f32.mxu0 0.0
  %2157 = vmatmul.mubr.f32.gmra.mrb[0].mxu0 %v1948
  %v2158 = vpop.f32.mrb[0].mxu0
  %v2159 = vadd.f32 0.0, %v2158
  %v2160 = vpop.f32.mrb[0].mxu0
  %2161 = vmatprep.mubr.f32.mxu0 0.0
  %2162 = vmatmul.mubr.f32.gmra.mrb[0].mxu0 %v1949
  %v2163 = vpop.f32.mrb[0].mxu0
  %v2164 = vadd.f32 0.0, %v2163
  %v2165 = vpop.f32.mrb[0].mxu0
  %2166 = vmatprep.mubr.f32.mxu0 0.0
  %2167 = vmatmul.mubr.f32.gmra.mrb[0].mxu0 %v1950
  %v2168 = vpop.f32.mrb[0].mxu0
  %v2169 = vadd.f32 0.0, %v2168
  %v2170 = vpop.f32.mrb[0].mxu0
  %2171 = vmatprep.mubr.f32.mxu0 0.0
  %2172 = vmatmul.mubr.f32.gmra.mrb[0].mxu0 %v1951
  %v2173 = vpop.f32.mrb[0].mxu0
  %v2174 = vadd.f32 0.0, %v2173
  %v2175 = vpop.f32.mrb[0].mxu0
  %2176 = vmatprep.mubr.f32.mxu0 0.0
  %2177 = vmatmul.mubr.f32.gmra.mrb[0].mxu0 %v1952
  %v2178 = vpop.f32.mrb[0].mxu0
  %v2179 = vadd.f32 0.0, %v2178
  %v2180 = vpop.f32.mrb[0].mxu0
  %2181 = vmatprep.mubr.f32.mxu0 0.0
  %2182 = vmatmul.mubr.f32.gmra.mrb[0].mxu0 %v1953
  %v2183 = vpop.f32.mrb[0].mxu0
  %v2184 = vadd.f32 0.0, %v2183
  %v2185 = vpop.f32.mrb[0].mxu0
  %2186 = vmatprep.mubr.f32.mxu0 0.0
  %2187 = vmatmul.mubr.f32.gmra.mrb[0].mxu0 %v1954
  %v2188 = vpop.f32.mrb[0].mxu0
  %v2189 = vadd.f32 0.0, %v2188
  %v2190 = vpop.f32.mrb[0].mxu0
  %2191 = vmatprep.mubr.f32.mxu0 0.0
  %2192 = vmatmul.mubr.f32.gmra.mrb[0].mxu0 %v1955
  %v2193 = vpop.f32.mrb[0].mxu0
  %v2194 = vadd.f32 0.0, %v2193
  %v2195 = vpop.f32.mrb[0].mxu0
  %2196 = vmatprep.mubr.f32.mxu0 0.0
  %2197 = vmatmul.mubr.f32.gmra.mrb[0].mxu0 %v1956
  %v2198 = vpop.f32.mrb[0].mxu0
  %v2199 = vadd.f32 0.0, %v2198
  %v2200 = vpop.f32.mrb[0].mxu0
  %2201 = vmatprep.mubr.f32.mxu0 0.0
  %2202 = vmatmul.mubr.f32.gmra.mrb[0].mxu0 %v1957
  %v2203 = vpop.f32.mrb[0].mxu0
  %v2204 = vadd.f32 0.0, %v2203
  %v2205 = vpop.f32.mrb[0].mxu0
  %2206 = vmatprep.mubr.f32.mxu0 0.0
  %2207 = vmatmul.mubr.f32.gmra.mrb[0].mxu0 %v1958
  %v2208 = vpop.f32.mrb[0].mxu0
  %v2209 = vadd.f32 0.0, %v2208
  %v2210 = vpop.f32.mrb[0].mxu0
  %2211 = vmatprep.mubr.f32.mxu0 0.0
  %2212 = vmatmul.mubr.f32.gmra.mrb[0].mxu0 %v1959
  %v2213 = vpop.f32.mrb[0].mxu0
  %v2214 = vadd.f32 0.0, %v2213
  %v2215 = vpop.f32.mrb[0].mxu0
  %2216 = vmatprep.mubr.f32.mxu0 0.0
  %2217 = vmatmul.mubr.f32.gmra.mrb[0].mxu0 %v1960
  %v2218 = vpop.f32.mrb[0].mxu0
  %v2219 = vadd.f32 0.0, %v2218
  %v2220 = vpop.f32.mrb[0].mxu0
  %2221 = vmatprep.mubr.f32.mxu0 0.0
  %2222 = vmatmul.mubr.f32.gmra.mrb[0].mxu0 %v1961
  %v2223 = vpop.f32.mrb[0].mxu0
  %v2224 = vadd.f32 0.0, %v2223
  %v2225 = vpop.f32.mrb[0].mxu0
  %2226 = vmatprep.mubr.f32.mxu0 0.0
  %2227 = vmatmul.mubr.f32.gmra.mrb[0].mxu0 %v1962
  %v2228 = vpop.f32.mrb[0].mxu0
  %v2229 = vadd.f32 0.0, %v2228
  %v2230 = vpop.f32.mrb[0].mxu0
  %2231 = vmatprep.mubr.f32.mxu0 0.0
  %2232 = vmatmul.mubr.f32.gmra.mrb[0].mxu0 %v1963
  %v2233 = vpop.f32.mrb[0].mxu0
  %v2234 = vadd.f32 0.0, %v2233
  %v2235 = vpop.f32.mrb[0].mxu0
  %2236 = vmatprep.mubr.f32.mxu0 0.0
  %2237 = vmatmul.mubr.f32.gmra.mrb[0].mxu0 %v1964
  %v2238 = vpop.f32.mrb[0].mxu0
  %v2239 = vadd.f32 0.0, %v2238
  %v2240 = vpop.f32.mrb[0].mxu0
  %2241 = vmatprep.mubr.f32.mxu0 0.0
  %2242 = vmatmul.mubr.f32.gmra.mrb[0].mxu0 %v1965
  %v2243 = vpop.f32.mrb[0].mxu0
  %v2244 = vadd.f32 0.0, %v2243
  %v2245 = vpop.f32.mrb[0].mxu0
  %2246 = vmatprep.mubr.f32.mxu0 0.0
  %2247 = vmatmul.mubr.f32.gmra.mrb[0].mxu0 %v1966
  %v2248 = vpop.f32.mrb[0].mxu0
  %v2249 = vadd.f32 0.0, %v2248
  %v2250 = vpop.f32.mrb[0].mxu0
  %2251 = vmatprep.mubr.f32.mxu0 0.0
  %2252 = vmatmul.mubr.f32.gmra.mrb[0].mxu0 %v1967
  %v2253 = vpop.f32.mrb[0].mxu0
  %v2254 = vadd.f32 0.0, %v2253
  %v2255 = vpop.f32.mrb[0].mxu0
  %2256 = vmatprep.mubr.f32.mxu0 0.0
  %2257 = vmatmul.mubr.f32.gmra.mrb[0].mxu0 %v1968
  %v2258 = vpop.f32.mrb[0].mxu0
  %v2259 = vadd.f32 0.0, %v2258
  %v2260 = vpop.f32.mrb[0].mxu0
  %2261 = vmatprep.mubr.f32.mxu0 0.0
  %2262 = vmatmul.mubr.f32.gmra.mrb[0].mxu0 %v1969
  %v2263 = vpop.f32.mrb[0].mxu0
  %v2264 = vadd.f32 0.0, %v2263
  %v2265 = vpop.f32.mrb[0].mxu0
  %2266 = vmatprep.mubr.f32.mxu0 0.0
  %2267 = vmatmul.mubr.f32.gmra.mrb[0].mxu0 %v1970
  %v2268 = vpop.f32.mrb[0].mxu0
  %v2269 = vadd.f32 0.0, %v2268
  %v2270 = vpop.f32.mrb[0].mxu0
  %2271 = vmatprep.mubr.f32.mxu0 0.0
  %2272 = vmatmul.mubr.f32.gmra.mrb[0].mxu0 %v1971
  %v2273 = vpop.f32.mrb[0].mxu0
  %v2274 = vadd.f32 0.0, %v2273
  %v2275 = vpop.f32.mrb[0].mxu0
  %2276 = vmatprep.mubr.f32.mxu0 0.0
  %2277 = vmatmul.mubr.f32.gmra.mrb[0].mxu0 %v1972
  %v2278 = vpop.f32.mrb[0].mxu0
  %v2279 = vadd.f32 0.0, %v2278
  %v2280 = vpop.f32.mrb[0].mxu0
  %2281 = vmatprep.mubr.f32.mxu0 0.0
  %2282 = vmatmul.mubr.f32.gmra.mrb[0].mxu0 %v1973
  %v2283 = vpop.f32.mrb[0].mxu0
  %v2284 = vadd.f32 0.0, %v2283
  %v2285 = vpop.f32.mrb[0].mxu0
  %2286 = vmatprep.mubr.f32.mxu0 0.0
  %2287 = vmatmul.mubr.f32.gmra.mrb[0].mxu0 %v1974
  %v2288 = vpop.f32.mrb[0].mxu0
  %v2289 = vadd.f32 0.0, %v2288
  %v2290 = vpop.f32.mrb[0].mxu0
  %2291 = vmatprep.mubr.f32.mxu0 0.0
  %2292 = vmatmul.mubr.f32.gmra.mrb[0].mxu0 %v1975
  %v2293 = vpop.f32.mrb[0].mxu0
  %v2294 = vadd.f32 0.0, %v2293
  %v2295 = vpop.f32.mrb[0].mxu0
  %2296 = vmatprep.mubr.f32.mxu0 0.0
  %2297 = vmatmul.mubr.f32.gmra.mrb[0].mxu0 %v1976
  %v2298 = vpop.f32.mrb[0].mxu0
  %v2299 = vadd.f32 0.0, %v2298
  %v2300 = vpop.f32.mrb[0].mxu0
  %2301 = vmatprep.mubr.f32.mxu0 0.0
  %2302 = vmatmul.mubr.f32.gmra.mrb[0].mxu0 %v1977
  %v2303 = vpop.f32.mrb[0].mxu0
  %v2304 = vadd.f32 0.0, %v2303
  %v2305 = vpop.f32.mrb[0].mxu0
  %2306 = vmatprep.mubr.f32.mxu0 0.0
  %2307 = vmatmul.mubr.f32.gmra.mrb[0].mxu0 %v1978
  %v2308 = vpop.f32.mrb[0].mxu0
  %v2309 = vadd.f32 0.0, %v2308
  %v2310 = vpop.f32.mrb[0].mxu0
  %2311 = vmatprep.mubr.f32.mxu0 0.0
  %2312 = vmatmul.mubr.f32.gmra.mrb[0].mxu0 %v1979
  %v2313 = vpop.f32.mrb[0].mxu0
  %v2314 = vadd.f32 0.0, %v2313
  %v2315 = vpop.f32.mrb[0].mxu0
  %2316 = vmatprep.mubr.f32.mxu0 0.0
  %2317 = vmatmul.mubr.f32.gmra.mrb[0].mxu0 %v1980
  %v2318 = vpop.f32.mrb[0].mxu0
  %v2319 = vadd.f32 0.0, %v2318
  %v2320 = vpop.f32.mrb[0].mxu0
  %2321 = vmatprep.mubr.f32.mxu0 0.0
  %2322 = vmatmul.mubr.f32.gmra.mrb[0].mxu0 %v1981
  %v2323 = vpop.f32.mrb[0].mxu0
  %v2324 = vadd.f32 0.0, %v2323
  %v2325 = vpop.f32.mrb[0].mxu0
  %2326 = vmatprep.mubr.f32.mxu0 0.0
  %2327 = vmatmul.mubr.f32.gmra.mrb[0].mxu0 %v1982
  %v2328 = vpop.f32.mrb[0].mxu0
  %v2329 = vadd.f32 0.0, %v2328
  %v2330 = vpop.f32.mrb[0].mxu0
  %2331 = vmatprep.mubr.f32.mxu0 0.0
  %2332 = vmatmul.mubr.f32.gmra.mrb[0].mxu0 %v1983
  %v2333 = vpop.f32.mrb[0].mxu0
  %v2334 = vadd.f32 0.0, %v2333
  %v2335 = vpop.f32.mrb[0].mxu0
  %2336 = vmatprep.mubr.f32.mxu0 0.0
  %2337 = vmatmul.mubr.f32.gmra.mrb[0].mxu0 %v1984
  %v2338 = vpop.f32.mrb[0].mxu0
  %v2339 = vadd.f32 0.0, %v2338
  %v2340 = vpop.f32.mrb[0].mxu0
  %2341 = vmatprep.mubr.f32.mxu0 0.0
  %2342 = vmatmul.mubr.f32.gmra.mrb[0].mxu0 %v1985
  %v2343 = vpop.f32.mrb[0].mxu0
  %v2344 = vadd.f32 0.0, %v2343
  %v2345 = vpop.f32.mrb[0].mxu0
  %2346 = vmatprep.mubr.f32.mxu0 0.0
  %2347 = vmatmul.mubr.f32.gmra.mrb[0].mxu0 %v1986
  %v2348 = vpop.f32.mrb[0].mxu0
  %v2349 = vadd.f32 0.0, %v2348
  %v2350 = vpop.f32.mrb[0].mxu0
  %2351 = vmatprep.mubr.f32.mxu0 0.0
  %2352 = vmatmul.mubr.f32.gmra.mrb[0].mxu0 %v1987
  %v2353 = vpop.f32.mrb[0].mxu0
  %v2354 = vadd.f32 0.0, %v2353
  %v2355 = vpop.f32.mrb[0].mxu0
  %2356 = vmatprep.mubr.f32.mxu0 0.0
  %2357 = vmatmul.mubr.f32.gmra.mrb[0].mxu0 %v1988
  %v2358 = vpop.f32.mrb[0].mxu0
  %v2359 = vadd.f32 0.0, %v2358
  %v2360 = vpop.f32.mrb[0].mxu0
  %2361 = vmatprep.mubr.f32.mxu0 0.0
  %2362 = vmatmul.mubr.f32.gmra.mrb[0].mxu0 %v1989
  %v2363 = vpop.f32.mrb[0].mxu0
  %v2364 = vadd.f32 0.0, %v2363
  %v2365 = vpop.f32.mrb[0].mxu0
  %2366 = vmatprep.mubr.f32.mxu0 0.0
  %2367 = vmatmul.mubr.f32.gmra.mrb[0].mxu0 %v1990
  %v2368 = vpop.f32.mrb[0].mxu0
  %v2369 = vadd.f32 0.0, %v2368
  %v2370 = vpop.f32.mrb[0].mxu0
  %2371 = vmatprep.mubr.f32.mxu0 0.0
  %2372 = vmatmul.mubr.f32.gmra.mrb[0].mxu0 %v1991
  %v2373 = vpop.f32.mrb[0].mxu0
  %v2374 = vadd.f32 0.0, %v2373
  %v2375 = vpop.f32.mrb[0].mxu0
  %2376 = vmatprep.mubr.f32.mxu0 0.0
  %2377 = vmatmul.mubr.f32.gmra.mrb[0].mxu0 %v1992
  %v2378 = vpop.f32.mrb[0].mxu0
  %v2379 = vadd.f32 0.0, %v2378
  %v2380 = vpop.f32.mrb[0].mxu0
  %2381 = vmatprep.mubr.f32.mxu0 0.0
  %2382 = vmatmul.mubr.f32.gmra.mrb[0].mxu0 %v1993
  %v2383 = vpop.f32.mrb[0].mxu0
  %v2384 = vadd.f32 0.0, %v2383
  %v2385 = vpop.f32.mrb[0].mxu0
  %2386 = vmatprep.mubr.f32.mxu0 0.0
  %2387 = vmatmul.mubr.f32.gmra.mrb[0].mxu0 %v1994
  %v2388 = vpop.f32.mrb[0].mxu0
  %v2389 = vadd.f32 0.0, %v2388
  %v2390 = vpop.f32.mrb[0].mxu0
  %2391 = vmatprep.mubr.f32.mxu0 0.0
  %2392 = vmatmul.mubr.f32.gmra.mrb[0].mxu0 %v1995
  %v2393 = vpop.f32.mrb[0].mxu0
  %v2394 = vadd.f32 0.0, %v2393
  %v2395 = vpop.f32.mrb[0].mxu0
  %2396 = vdwg.mxu0
  %v2397 = vadd.f32 %v1868, %v2079
  %v2398 = vadd.f32 %v1869, %v2084
  %v2399 = vadd.f32 %v1870, %v2089
  %v2400 = vadd.f32 %v1871, %v2094
  %v2401 = vadd.f32 %v1872, %v2099
  %v2402 = vadd.f32 %v1873, %v2104
  %v2403 = vadd.f32 %v1874, %v2109
  %v2404 = vadd.f32 %v1875, %v2114
  %v2405 = vadd.f32 %v1876, %v2119
  %v2406 = vadd.f32 %v1877, %v2124
  %v2407 = vadd.f32 %v1878, %v2129
  %v2408 = vadd.f32 %v1879, %v2134
  %v2409 = vadd.f32 %v1880, %v2139
  %v2410 = vadd.f32 %v1881, %v2144
  %v2411 = vadd.f32 %v1882, %v2149
  %v2412 = vadd.f32 %v1883, %v2154
  %v2413 = vadd.f32 %v1884, %v2159
  %v2414 = vadd.f32 %v1885, %v2164
  %v2415 = vadd.f32 %v1886, %v2169
  %v2416 = vadd.f32 %v1887, %v2174
  %v2417 = vadd.f32 %v1888, %v2179
  %v2418 = vadd.f32 %v1889, %v2184
  %v2419 = vadd.f32 %v1890, %v2189
  %v2420 = vadd.f32 %v1891, %v2194
  %v2421 = vadd.f32 %v1892, %v2199
  %v2422 = vadd.f32 %v1893, %v2204
  %v2423 = vadd.f32 %v1894, %v2209
  %v2424 = vadd.f32 %v1895, %v2214
  %v2425 = vadd.f32 %v1896, %v2219
  %v2426 = vadd.f32 %v1897, %v2224
  %v2427 = vadd.f32 %v1898, %v2229
  %v2428 = vadd.f32 %v1899, %v2234
  %v2429 = vadd.f32 %v1900, %v2239
  %v2430 = vadd.f32 %v1901, %v2244
  %v2431 = vadd.f32 %v1902, %v2249
  %v2432 = vadd.f32 %v1903, %v2254
  %v2433 = vadd.f32 %v1904, %v2259
  %v2434 = vadd.f32 %v1905, %v2264
  %v2435 = vadd.f32 %v1906, %v2269
  %v2436 = vadd.f32 %v1907, %v2274
  %v2437 = vadd.f32 %v1908, %v2279
  %v2438 = vadd.f32 %v1909, %v2284
  %v2439 = vadd.f32 %v1910, %v2289
  %v2440 = vadd.f32 %v1911, %v2294
  %v2441 = vadd.f32 %v1912, %v2299
  %v2442 = vadd.f32 %v1913, %v2304
  %v2443 = vadd.f32 %v1914, %v2309
  %v2444 = vadd.f32 %v1915, %v2314
  %v2445 = vadd.f32 %v1916, %v2319
  %v2446 = vadd.f32 %v1917, %v2324
  %v2447 = vadd.f32 %v1918, %v2329
  %v2448 = vadd.f32 %v1919, %v2334
  %v2449 = vadd.f32 %v1920, %v2339
  %v2450 = vadd.f32 %v1921, %v2344
  %v2451 = vadd.f32 %v1922, %v2349
  %v2452 = vadd.f32 %v1923, %v2354
  %v2453 = vadd.f32 %v1924, %v2359
  %v2454 = vadd.f32 %v1925, %v2364
  %v2455 = vadd.f32 %v1926, %v2369
  %v2456 = vadd.f32 %v1927, %v2374
  %v2457 = vadd.f32 %v1928, %v2379
  %v2458 = vadd.f32 %v1929, %v2384
  %v2459 = vadd.f32 %v1930, %v2389
  %v2460 = vadd.f32 %v1931, %v2394
  %v2461 = vld [vmem:[%s378 + $0x8] sm:$0xff]
  %v2462 = vld [vmem:[%s378 + $0x10] sm:$0xff]
  %v2463 = vld [vmem:[%s378 + $0x28] sm:$0xff]
  %v2464 = vld [vmem:[%s378 + $0x30] sm:$0xff]
  %v2465 = vld [vmem:[%s378 + $0x48] sm:$0xff]
  %v2466 = vld [vmem:[%s378 + $0x50] sm:$0xff]
  %v2467 = vld [vmem:[%s378 + $0x68] sm:$0xff]
  %v2468 = vld [vmem:[%s378 + $0x70] sm:$0xff]
  %v2469 = vld [vmem:[%s378 + $0x88] sm:$0xff]
  %v2470 = vld [vmem:[%s378 + $0x90] sm:$0xff]
  %v2471 = vld [vmem:[%s378 + $0xa8] sm:$0xff]
  %v2472 = vld [vmem:[%s378 + $0xb0] sm:$0xff]
  %v2473 = vld [vmem:[%s378 + $0xc8] sm:$0xff]
  %v2474 = vld [vmem:[%s378 + $0xd0] sm:$0xff]
  %v2475 = vld [vmem:[%s378 + $0xe8] sm:$0xff]
  %v2476 = vld [vmem:[%s378 + $0xf0] sm:$0xff]
  %v2477 = vld [vmem:[%s378 + $0x108] sm:$0xff]
  %v2478 = vld [vmem:[%s378 + $0x110] sm:$0xff]
  %v2479 = vld [vmem:[%s378 + $0x128] sm:$0xff]
  %v2480 = vld [vmem:[%s378 + $0x130] sm:$0xff]
  %v2481 = vld [vmem:[%s378 + $0x148] sm:$0xff]
  %v2482 = vld [vmem:[%s378 + $0x150] sm:$0xff]
  %v2483 = vld [vmem:[%s378 + $0x168] sm:$0xff]
  %v2484 = vld [vmem:[%s378 + $0x170] sm:$0xff]
  %v2485 = vld [vmem:[%s378 + $0x188] sm:$0xff]
  %v2486 = vld [vmem:[%s378 + $0x190] sm:$0xff]
  %v2487 = vld [vmem:[%s378 + $0x1a8] sm:$0xff]
  %v2488 = vld [vmem:[%s378 + $0x1b0] sm:$0xff]
  %v2489 = vld [vmem:[%s378 + $0x1c8] sm:$0xff]
  %v2490 = vld [vmem:[%s378 + $0x1d0] sm:$0xff]
  %v2491 = vld [vmem:[%s378 + $0x1e8] sm:$0xff]
  %v2492 = vld [vmem:[%s378 + $0x1f0] sm:$0xff]
  %v2493 = vld [vmem:[%s378 + $0x248] sm:$0xff]
  %v2494 = vld [vmem:[%s378 + $0x250] sm:$0xff]
  %v2495 = vld [vmem:[%s378 + $0x268] sm:$0xff]
  %v2496 = vld [vmem:[%s378 + $0x270] sm:$0xff]
  %v2497 = vld [vmem:[%s378 + $0x288] sm:$0xff]
  %v2498 = vld [vmem:[%s378 + $0x290] sm:$0xff]
  %v2499 = vld [vmem:[%s378 + $0x2a8] sm:$0xff]
  %v2500 = vld [vmem:[%s378 + $0x2b0] sm:$0xff]
  %v2501 = vld [vmem:[%s378 + $0x2c8] sm:$0xff]
  %v2502 = vld [vmem:[%s378 + $0x2d0] sm:$0xff]
  %v2503 = vld [vmem:[%s378 + $0x2e8] sm:$0xff]
  %v2504 = vld [vmem:[%s378 + $0x2f0] sm:$0xff]
  %v2505 = vld [vmem:[%s378 + $0x308] sm:$0xff]
  %v2506 = vld [vmem:[%s378 + $0x310] sm:$0xff]
  %v2507 = vld [vmem:[%s378 + $0x328] sm:$0xff]
  %v2508 = vld [vmem:[%s378 + $0x330] sm:$0xff]
  %v2509 = vld [vmem:[%s378 + $0x348] sm:$0xff]
  %v2510 = vld [vmem:[%s378 + $0x350] sm:$0xff]
  %v2511 = vld [vmem:[%s378 + $0x368] sm:$0xff]
  %v2512 = vld [vmem:[%s378 + $0x370] sm:$0xff]
  %v2513 = vld [vmem:[%s378 + $0x388] sm:$0xff]
  %v2514 = vld [vmem:[%s378 + $0x390] sm:$0xff]
  %v2515 = vld [vmem:[%s378 + $0x3a8] sm:$0xff]
  %v2516 = vld [vmem:[%s378 + $0x3b0] sm:$0xff]
  %v2517 = vld [vmem:[%s378 + $0x3c8] sm:$0xff]
  %v2518 = vld [vmem:[%s378 + $0x3d0] sm:$0xff]
  %v2519 = vld [vmem:[%s378 + $0x3e8] sm:$0xff]
  %v2520 = vld [vmem:[%s378 + $0x3f0] sm:$0xff]
  %v2521 = vld [vmem:[%s378 + $0x408] sm:$0xff]
  %v2522 = vld [vmem:[%s378 + $0x410] sm:$0xff]
  %v2523 = vld [vmem:[%s378 + $0x428] sm:$0xff]
  %v2524 = vld [vmem:[%s378 + $0x430] sm:$0xff]
  %v2525 = vld [vmem:[#allocation3 + $0x200] sm:$0xff]
  %v2526 = vld [vmem:[#allocation3 + $0x208] sm:$0xff]
  %v2527 = vld [vmem:[#allocation3 + $0x210] sm:$0xff]
  %v2528 = vld [vmem:[#allocation3 + $0x218] sm:$0xff]
  %v2529 = vld [vmem:[#allocation3 + $0x220] sm:$0xff]
  %v2530 = vld [vmem:[#allocation3 + $0x228] sm:$0xff]
  %v2531 = vld [vmem:[#allocation3 + $0x230] sm:$0xff]
  %v2532 = vld [vmem:[#allocation3 + $0x238] sm:$0xff]
  %v2533 = vld [vmem:[#allocation3 + $0x240] sm:$0xff]
  %v2534 = vld [vmem:[#allocation3 + $0x248] sm:$0xff]
  %v2535 = vld [vmem:[#allocation3 + $0x250] sm:$0xff]
  %v2536 = vld [vmem:[#allocation3 + $0x258] sm:$0xff]
  %v2537 = vld [vmem:[#allocation3 + $0x260] sm:$0xff]
  %v2538 = vld [vmem:[#allocation3 + $0x268] sm:$0xff]
  %v2539 = vld [vmem:[#allocation3 + $0x270] sm:$0xff]
  %v2540 = vld [vmem:[#allocation3 + $0x278] sm:$0xff]
  %2541 = vmatprep.subr.mxu0 0.0
  %2542 = vmatpush1.msra.mxu0 %v2525
  %2543 = vmatprep.subr.mxu0 0.0
  %2544 = vmatpush1.msra.mxu0 %v2526
  %2545 = vmatprep.subr.mxu0 0.0
  %2546 = vmatpush1.msra.mxu0 %v2527
  %2547 = vmatprep.subr.mxu0 0.0
  %2548 = vmatpush1.msra.mxu0 %v2528
  %2549 = vmatprep.subr.mxu0 0.0
  %2550 = vmatpush1.msra.mxu0 %v2529
  %2551 = vmatprep.subr.mxu0 0.0
  %2552 = vmatpush1.msra.mxu0 %v2530
  %2553 = vmatprep.subr.mxu0 0.0
  %2554 = vmatpush1.msra.mxu0 %v2531
  %2555 = vmatprep.subr.mxu0 0.0
  %2556 = vmatpush1.msra.mxu0 %v2532
  %2557 = vmatprep.subr.mxu0 0.0
  %2558 = vmatpush1.msra.mxu0 %v2533
  %2559 = vmatprep.subr.mxu0 0.0
  %2560 = vmatpush1.msra.mxu0 %v2534
  %2561 = vmatprep.subr.mxu0 0.0
  %2562 = vmatpush1.msra.mxu0 %v2535
  %2563 = vmatprep.subr.mxu0 0.0
  %2564 = vmatpush1.msra.mxu0 %v2536
  %2565 = vmatprep.subr.mxu0 0.0
  %2566 = vmatpush1.msra.mxu0 %v2537
  %2567 = vmatprep.subr.mxu0 0.0
  %2568 = vmatpush1.msra.mxu0 %v2538
  %2569 = vmatprep.subr.mxu0 0.0
  %2570 = vmatpush1.msra.mxu0 %v2539
  %2571 = vmatprep.subr.mxu0 0.0
  %2572 = vmatpush1.msra.mxu0 %v2540
  %2573 = vmatprep.subr.mxu0 0.0
  %2574 = vmatpush1.msra.mxu0 0.0
  %2575 = vmatprep.subr.mxu0 0.0
  %2576 = vmatpush1.msra.mxu0 0.0
  %2577 = vmatprep.subr.mxu0 0.0
  %2578 = vmatpush1.msra.mxu0 0.0
  %2579 = vmatprep.subr.mxu0 0.0
  %2580 = vmatpush1.msra.mxu0 0.0
  %2581 = vmatprep.subr.mxu0 0.0
  %2582 = vmatpush1.msra.mxu0 0.0
  %2583 = vmatprep.subr.mxu0 0.0
  %2584 = vmatpush1.msra.mxu0 0.0
  %2585 = vmatprep.subr.mxu0 0.0
  %2586 = vmatpush1.msra.mxu0 0.0
  %2587 = vmatprep.subr.mxu0 0.0
  %2588 = vmatpush1.msra.mxu0 0.0
  %2589 = vmatprep.subr.mxu0 0.0
  %2590 = vmatpush1.msra.mxu0 0.0
  %2591 = vmatprep.subr.mxu0 0.0
  %2592 = vmatpush1.msra.mxu0 0.0
  %2593 = vmatprep.subr.mxu0 0.0
  %2594 = vmatpush1.msra.mxu0 0.0
  %2595 = vmatprep.subr.mxu0 0.0
  %2596 = vmatpush1.msra.mxu0 0.0
  %2597 = vmatprep.subr.mxu0 0.0
  %2598 = vmatpush1.msra.mxu0 0.0
  %2599 = vmatprep.subr.mxu0 0.0
  %2600 = vmatpush1.msra.mxu0 0.0
  %2601 = vmatprep.subr.mxu0 0.0
  %2602 = vmatpush1.msra.mxu0 0.0
  %2603 = vmatprep.subr.mxu0 0.0
  %2604 = vmatpush1.msra.mxu0 0.0
  %2605 = vmatprep.mubr.f32.mxu0 0.0
  %2606 = vmatmul.mubr.f32.gmra.mrb[0].mxu0 %v2461
  %v2607 = vpop.f32.mrb[0].mxu0
  %v2608 = vadd.f32 0.0, %v2607
  %v2609 = vpop.f32.mrb[0].mxu0
  %2610 = vmatprep.mubr.f32.mxu0 0.0
  %2611 = vmatmul.mubr.f32.gmra.mrb[0].mxu0 %v2462
  %v2612 = vpop.f32.mrb[0].mxu0
  %v2613 = vadd.f32 0.0, %v2612
  %v2614 = vpop.f32.mrb[0].mxu0
  %2615 = vmatprep.mubr.f32.mxu0 0.0
  %2616 = vmatmul.mubr.f32.gmra.mrb[0].mxu0 %v2463
  %v2617 = vpop.f32.mrb[0].mxu0
  %v2618 = vadd.f32 0.0, %v2617
  %v2619 = vpop.f32.mrb[0].mxu0
  %2620 = vmatprep.mubr.f32.mxu0 0.0
  %2621 = vmatmul.mubr.f32.gmra.mrb[0].mxu0 %v2464
  %v2622 = vpop.f32.mrb[0].mxu0
  %v2623 = vadd.f32 0.0, %v2622
  %v2624 = vpop.f32.mrb[0].mxu0
  %2625 = vmatprep.mubr.f32.mxu0 0.0
  %2626 = vmatmul.mubr.f32.gmra.mrb[0].mxu0 %v2465
  %v2627 = vpop.f32.mrb[0].mxu0
  %v2628 = vadd.f32 0.0, %v2627
  %v2629 = vpop.f32.mrb[0].mxu0
  %2630 = vmatprep.mubr.f32.mxu0 0.0
  %2631 = vmatmul.mubr.f32.gmra.mrb[0].mxu0 %v2466
  %v2632 = vpop.f32.mrb[0].mxu0
  %v2633 = vadd.f32 0.0, %v2632
  %v2634 = vpop.f32.mrb[0].mxu0
  %2635 = vmatprep.mubr.f32.mxu0 0.0
  %2636 = vmatmul.mubr.f32.gmra.mrb[0].mxu0 %v2467
  %v2637 = vpop.f32.mrb[0].mxu0
  %v2638 = vadd.f32 0.0, %v2637
  %v2639 = vpop.f32.mrb[0].mxu0
  %2640 = vmatprep.mubr.f32.mxu0 0.0
  %2641 = vmatmul.mubr.f32.gmra.mrb[0].mxu0 %v2468
  %v2642 = vpop.f32.mrb[0].mxu0
  %v2643 = vadd.f32 0.0, %v2642
  %v2644 = vpop.f32.mrb[0].mxu0
  %2645 = vmatprep.mubr.f32.mxu0 0.0
  %2646 = vmatmul.mubr.f32.gmra.mrb[0].mxu0 %v2469
  %v2647 = vpop.f32.mrb[0].mxu0
  %v2648 = vadd.f32 0.0, %v2647
  %v2649 = vpop.f32.mrb[0].mxu0
  %2650 = vmatprep.mubr.f32.mxu0 0.0
  %2651 = vmatmul.mubr.f32.gmra.mrb[0].mxu0 %v2470
  %v2652 = vpop.f32.mrb[0].mxu0
  %v2653 = vadd.f32 0.0, %v2652
  %v2654 = vpop.f32.mrb[0].mxu0
  %2655 = vmatprep.mubr.f32.mxu0 0.0
  %2656 = vmatmul.mubr.f32.gmra.mrb[0].mxu0 %v2471
  %v2657 = vpop.f32.mrb[0].mxu0
  %v2658 = vadd.f32 0.0, %v2657
  %v2659 = vpop.f32.mrb[0].mxu0
  %2660 = vmatprep.mubr.f32.mxu0 0.0
  %2661 = vmatmul.mubr.f32.gmra.mrb[0].mxu0 %v2472
  %v2662 = vpop.f32.mrb[0].mxu0
  %v2663 = vadd.f32 0.0, %v2662
  %v2664 = vpop.f32.mrb[0].mxu0
  %2665 = vmatprep.mubr.f32.mxu0 0.0
  %2666 = vmatmul.mubr.f32.gmra.mrb[0].mxu0 %v2473
  %v2667 = vpop.f32.mrb[0].mxu0
  %v2668 = vadd.f32 0.0, %v2667
  %v2669 = vpop.f32.mrb[0].mxu0
  %2670 = vmatprep.mubr.f32.mxu0 0.0
  %2671 = vmatmul.mubr.f32.gmra.mrb[0].mxu0 %v2474
  %v2672 = vpop.f32.mrb[0].mxu0
  %v2673 = vadd.f32 0.0, %v2672
  %v2674 = vpop.f32.mrb[0].mxu0
  %2675 = vmatprep.mubr.f32.mxu0 0.0
  %2676 = vmatmul.mubr.f32.gmra.mrb[0].mxu0 %v2475
  %v2677 = vpop.f32.mrb[0].mxu0
  %v2678 = vadd.f32 0.0, %v2677
  %v2679 = vpop.f32.mrb[0].mxu0
  %2680 = vmatprep.mubr.f32.mxu0 0.0
  %2681 = vmatmul.mubr.f32.gmra.mrb[0].mxu0 %v2476
  %v2682 = vpop.f32.mrb[0].mxu0
  %v2683 = vadd.f32 0.0, %v2682
  %v2684 = vpop.f32.mrb[0].mxu0
  %2685 = vmatprep.mubr.f32.mxu0 0.0
  %2686 = vmatmul.mubr.f32.gmra.mrb[0].mxu0 %v2477
  %v2687 = vpop.f32.mrb[0].mxu0
  %v2688 = vadd.f32 0.0, %v2687
  %v2689 = vpop.f32.mrb[0].mxu0
  %2690 = vmatprep.mubr.f32.mxu0 0.0
  %2691 = vmatmul.mubr.f32.gmra.mrb[0].mxu0 %v2478
  %v2692 = vpop.f32.mrb[0].mxu0
  %v2693 = vadd.f32 0.0, %v2692
  %v2694 = vpop.f32.mrb[0].mxu0
  %2695 = vmatprep.mubr.f32.mxu0 0.0
  %2696 = vmatmul.mubr.f32.gmra.mrb[0].mxu0 %v2479
  %v2697 = vpop.f32.mrb[0].mxu0
  %v2698 = vadd.f32 0.0, %v2697
  %v2699 = vpop.f32.mrb[0].mxu0
  %2700 = vmatprep.mubr.f32.mxu0 0.0
  %2701 = vmatmul.mubr.f32.gmra.mrb[0].mxu0 %v2480
  %v2702 = vpop.f32.mrb[0].mxu0
  %v2703 = vadd.f32 0.0, %v2702
  %v2704 = vpop.f32.mrb[0].mxu0
  %2705 = vmatprep.mubr.f32.mxu0 0.0
  %2706 = vmatmul.mubr.f32.gmra.mrb[0].mxu0 %v2481
  %v2707 = vpop.f32.mrb[0].mxu0
  %v2708 = vadd.f32 0.0, %v2707
  %v2709 = vpop.f32.mrb[0].mxu0
  %2710 = vmatprep.mubr.f32.mxu0 0.0
  %2711 = vmatmul.mubr.f32.gmra.mrb[0].mxu0 %v2482
  %v2712 = vpop.f32.mrb[0].mxu0
  %v2713 = vadd.f32 0.0, %v2712
  %v2714 = vpop.f32.mrb[0].mxu0
  %2715 = vmatprep.mubr.f32.mxu0 0.0
  %2716 = vmatmul.mubr.f32.gmra.mrb[0].mxu0 %v2483
  %v2717 = vpop.f32.mrb[0].mxu0
  %v2718 = vadd.f32 0.0, %v2717
  %v2719 = vpop.f32.mrb[0].mxu0
  %2720 = vmatprep.mubr.f32.mxu0 0.0
  %2721 = vmatmul.mubr.f32.gmra.mrb[0].mxu0 %v2484
  %v2722 = vpop.f32.mrb[0].mxu0
  %v2723 = vadd.f32 0.0, %v2722
  %v2724 = vpop.f32.mrb[0].mxu0
  %2725 = vmatprep.mubr.f32.mxu0 0.0
  %2726 = vmatmul.mubr.f32.gmra.mrb[0].mxu0 %v2485
  %v2727 = vpop.f32.mrb[0].mxu0
  %v2728 = vadd.f32 0.0, %v2727
  %v2729 = vpop.f32.mrb[0].mxu0
  %2730 = vmatprep.mubr.f32.mxu0 0.0
  %2731 = vmatmul.mubr.f32.gmra.mrb[0].mxu0 %v2486
  %v2732 = vpop.f32.mrb[0].mxu0
  %v2733 = vadd.f32 0.0, %v2732
  %v2734 = vpop.f32.mrb[0].mxu0
  %2735 = vmatprep.mubr.f32.mxu0 0.0
  %2736 = vmatmul.mubr.f32.gmra.mrb[0].mxu0 %v2487
  %v2737 = vpop.f32.mrb[0].mxu0
  %v2738 = vadd.f32 0.0, %v2737
  %v2739 = vpop.f32.mrb[0].mxu0
  %2740 = vmatprep.mubr.f32.mxu0 0.0
  %2741 = vmatmul.mubr.f32.gmra.mrb[0].mxu0 %v2488
  %v2742 = vpop.f32.mrb[0].mxu0
  %v2743 = vadd.f32 0.0, %v2742
  %v2744 = vpop.f32.mrb[0].mxu0
  %2745 = vmatprep.mubr.f32.mxu0 0.0
  %2746 = vmatmul.mubr.f32.gmra.mrb[0].mxu0 %v2489
  %v2747 = vpop.f32.mrb[0].mxu0
  %v2748 = vadd.f32 0.0, %v2747
  %v2749 = vpop.f32.mrb[0].mxu0
  %2750 = vmatprep.mubr.f32.mxu0 0.0
  %2751 = vmatmul.mubr.f32.gmra.mrb[0].mxu0 %v2490
  %v2752 = vpop.f32.mrb[0].mxu0
  %v2753 = vadd.f32 0.0, %v2752
  %v2754 = vpop.f32.mrb[0].mxu0
  %2755 = vmatprep.mubr.f32.mxu0 0.0
  %2756 = vmatmul.mubr.f32.gmra.mrb[0].mxu0 %v2491
  %v2757 = vpop.f32.mrb[0].mxu0
  %v2758 = vadd.f32 0.0, %v2757
  %v2759 = vpop.f32.mrb[0].mxu0
  %2760 = vmatprep.mubr.f32.mxu0 0.0
  %2761 = vmatmul.mubr.f32.gmra.mrb[0].mxu0 %v2492
  %v2762 = vpop.f32.mrb[0].mxu0
  %v2763 = vadd.f32 0.0, %v2762
  %v2764 = vpop.f32.mrb[0].mxu0
  %2765 = vmatprep.mubr.f32.mxu0 0.0
  %2766 = vmatmul.mubr.f32.gmra.mrb[0].mxu0 %v2493
  %v2767 = vpop.f32.mrb[0].mxu0
  %v2768 = vadd.f32 0.0, %v2767
  %v2769 = vpop.f32.mrb[0].mxu0
  %2770 = vmatprep.mubr.f32.mxu0 0.0
  %2771 = vmatmul.mubr.f32.gmra.mrb[0].mxu0 %v2494
  %v2772 = vpop.f32.mrb[0].mxu0
  %v2773 = vadd.f32 0.0, %v2772
  %v2774 = vpop.f32.mrb[0].mxu0
  %2775 = vmatprep.mubr.f32.mxu0 0.0
  %2776 = vmatmul.mubr.f32.gmra.mrb[0].mxu0 %v2495
  %v2777 = vpop.f32.mrb[0].mxu0
  %v2778 = vadd.f32 0.0, %v2777
  %v2779 = vpop.f32.mrb[0].mxu0
  %2780 = vmatprep.mubr.f32.mxu0 0.0
  %2781 = vmatmul.mubr.f32.gmra.mrb[0].mxu0 %v2496
  %v2782 = vpop.f32.mrb[0].mxu0
  %v2783 = vadd.f32 0.0, %v2782
  %v2784 = vpop.f32.mrb[0].mxu0
  %2785 = vmatprep.mubr.f32.mxu0 0.0
  %2786 = vmatmul.mubr.f32.gmra.mrb[0].mxu0 %v2497
  %v2787 = vpop.f32.mrb[0].mxu0
  %v2788 = vadd.f32 0.0, %v2787
  %v2789 = vpop.f32.mrb[0].mxu0
  %2790 = vmatprep.mubr.f32.mxu0 0.0
  %2791 = vmatmul.mubr.f32.gmra.mrb[0].mxu0 %v2498
  %v2792 = vpop.f32.mrb[0].mxu0
  %v2793 = vadd.f32 0.0, %v2792
  %v2794 = vpop.f32.mrb[0].mxu0
  %2795 = vmatprep.mubr.f32.mxu0 0.0
  %2796 = vmatmul.mubr.f32.gmra.mrb[0].mxu0 %v2499
  %v2797 = vpop.f32.mrb[0].mxu0
  %v2798 = vadd.f32 0.0, %v2797
  %v2799 = vpop.f32.mrb[0].mxu0
  %2800 = vmatprep.mubr.f32.mxu0 0.0
  %2801 = vmatmul.mubr.f32.gmra.mrb[0].mxu0 %v2500
  %v2802 = vpop.f32.mrb[0].mxu0
  %v2803 = vadd.f32 0.0, %v2802
  %v2804 = vpop.f32.mrb[0].mxu0
  %2805 = vmatprep.mubr.f32.mxu0 0.0
  %2806 = vmatmul.mubr.f32.gmra.mrb[0].mxu0 %v2501
  %v2807 = vpop.f32.mrb[0].mxu0
  %v2808 = vadd.f32 0.0, %v2807
  %v2809 = vpop.f32.mrb[0].mxu0
  %2810 = vmatprep.mubr.f32.mxu0 0.0
  %2811 = vmatmul.mubr.f32.gmra.mrb[0].mxu0 %v2502
  %v2812 = vpop.f32.mrb[0].mxu0
  %v2813 = vadd.f32 0.0, %v2812
  %v2814 = vpop.f32.mrb[0].mxu0
  %2815 = vmatprep.mubr.f32.mxu0 0.0
  %2816 = vmatmul.mubr.f32.gmra.mrb[0].mxu0 %v2503
  %v2817 = vpop.f32.mrb[0].mxu0
  %v2818 = vadd.f32 0.0, %v2817
  %v2819 = vpop.f32.mrb[0].mxu0
  %2820 = vmatprep.mubr.f32.mxu0 0.0
  %2821 = vmatmul.mubr.f32.gmra.mrb[0].mxu0 %v2504
  %v2822 = vpop.f32.mrb[0].mxu0
  %v2823 = vadd.f32 0.0, %v2822
  %v2824 = vpop.f32.mrb[0].mxu0
  %2825 = vmatprep.mubr.f32.mxu0 0.0
  %2826 = vmatmul.mubr.f32.gmra.mrb[0].mxu0 %v2505
  %v2827 = vpop.f32.mrb[0].mxu0
  %v2828 = vadd.f32 0.0, %v2827
  %v2829 = vpop.f32.mrb[0].mxu0
  %2830 = vmatprep.mubr.f32.mxu0 0.0
  %2831 = vmatmul.mubr.f32.gmra.mrb[0].mxu0 %v2506
  %v2832 = vpop.f32.mrb[0].mxu0
  %v2833 = vadd.f32 0.0, %v2832
  %v2834 = vpop.f32.mrb[0].mxu0
  %2835 = vmatprep.mubr.f32.mxu0 0.0
  %2836 = vmatmul.mubr.f32.gmra.mrb[0].mxu0 %v2507
  %v2837 = vpop.f32.mrb[0].mxu0
  %v2838 = vadd.f32 0.0, %v2837
  %v2839 = vpop.f32.mrb[0].mxu0
  %2840 = vmatprep.mubr.f32.mxu0 0.0
  %2841 = vmatmul.mubr.f32.gmra.mrb[0].mxu0 %v2508
  %v2842 = vpop.f32.mrb[0].mxu0
  %v2843 = vadd.f32 0.0, %v2842
  %v2844 = vpop.f32.mrb[0].mxu0
  %2845 = vmatprep.mubr.f32.mxu0 0.0
  %2846 = vmatmul.mubr.f32.gmra.mrb[0].mxu0 %v2509
  %v2847 = vpop.f32.mrb[0].mxu0
  %v2848 = vadd.f32 0.0, %v2847
  %v2849 = vpop.f32.mrb[0].mxu0
  %2850 = vmatprep.mubr.f32.mxu0 0.0
  %2851 = vmatmul.mubr.f32.gmra.mrb[0].mxu0 %v2510
  %v2852 = vpop.f32.mrb[0].mxu0
  %v2853 = vadd.f32 0.0, %v2852
  %v2854 = vpop.f32.mrb[0].mxu0
  %2855 = vmatprep.mubr.f32.mxu0 0.0
  %2856 = vmatmul.mubr.f32.gmra.mrb[0].mxu0 %v2511
  %v2857 = vpop.f32.mrb[0].mxu0
  %v2858 = vadd.f32 0.0, %v2857
  %v2859 = vpop.f32.mrb[0].mxu0
  %2860 = vmatprep.mubr.f32.mxu0 0.0
  %2861 = vmatmul.mubr.f32.gmra.mrb[0].mxu0 %v2512
  %v2862 = vpop.f32.mrb[0].mxu0
  %v2863 = vadd.f32 0.0, %v2862
  %v2864 = vpop.f32.mrb[0].mxu0
  %2865 = vmatprep.mubr.f32.mxu0 0.0
  %2866 = vmatmul.mubr.f32.gmra.mrb[0].mxu0 %v2513
  %v2867 = vpop.f32.mrb[0].mxu0
  %v2868 = vadd.f32 0.0, %v2867
  %v2869 = vpop.f32.mrb[0].mxu0
  %2870 = vmatprep.mubr.f32.mxu0 0.0
  %2871 = vmatmul.mubr.f32.gmra.mrb[0].mxu0 %v2514
  %v2872 = vpop.f32.mrb[0].mxu0
  %v2873 = vadd.f32 0.0, %v2872
  %v2874 = vpop.f32.mrb[0].mxu0
  %2875 = vmatprep.mubr.f32.mxu0 0.0
  %2876 = vmatmul.mubr.f32.gmra.mrb[0].mxu0 %v2515
  %v2877 = vpop.f32.mrb[0].mxu0
  %v2878 = vadd.f32 0.0, %v2877
  %v2879 = vpop.f32.mrb[0].mxu0
  %2880 = vmatprep.mubr.f32.mxu0 0.0
  %2881 = vmatmul.mubr.f32.gmra.mrb[0].mxu0 %v2516
  %v2882 = vpop.f32.mrb[0].mxu0
  %v2883 = vadd.f32 0.0, %v2882
  %v2884 = vpop.f32.mrb[0].mxu0
  %2885 = vmatprep.mubr.f32.mxu0 0.0
  %2886 = vmatmul.mubr.f32.gmra.mrb[0].mxu0 %v2517
  %v2887 = vpop.f32.mrb[0].mxu0
  %v2888 = vadd.f32 0.0, %v2887
  %v2889 = vpop.f32.mrb[0].mxu0
  %2890 = vmatprep.mubr.f32.mxu0 0.0
  %2891 = vmatmul.mubr.f32.gmra.mrb[0].mxu0 %v2518
  %v2892 = vpop.f32.mrb[0].mxu0
  %v2893 = vadd.f32 0.0, %v2892
  %v2894 = vpop.f32.mrb[0].mxu0
  %2895 = vmatprep.mubr.f32.mxu0 0.0
  %2896 = vmatmul.mubr.f32.gmra.mrb[0].mxu0 %v2519
  %v2897 = vpop.f32.mrb[0].mxu0
  %v2898 = vadd.f32 0.0, %v2897
  %v2899 = vpop.f32.mrb[0].mxu0
  %2900 = vmatprep.mubr.f32.mxu0 0.0
  %2901 = vmatmul.mubr.f32.gmra.mrb[0].mxu0 %v2520
  %v2902 = vpop.f32.mrb[0].mxu0
  %v2903 = vadd.f32 0.0, %v2902
  %v2904 = vpop.f32.mrb[0].mxu0
  %2905 = vmatprep.mubr.f32.mxu0 0.0
  %2906 = vmatmul.mubr.f32.gmra.mrb[0].mxu0 %v2521
  %v2907 = vpop.f32.mrb[0].mxu0
  %v2908 = vadd.f32 0.0, %v2907
  %v2909 = vpop.f32.mrb[0].mxu0
  %2910 = vmatprep.mubr.f32.mxu0 0.0
  %2911 = vmatmul.mubr.f32.gmra.mrb[0].mxu0 %v2522
  %v2912 = vpop.f32.mrb[0].mxu0
  %v2913 = vadd.f32 0.0, %v2912
  %v2914 = vpop.f32.mrb[0].mxu0
  %2915 = vmatprep.mubr.f32.mxu0 0.0
  %2916 = vmatmul.mubr.f32.gmra.mrb[0].mxu0 %v2523
  %v2917 = vpop.f32.mrb[0].mxu0
  %v2918 = vadd.f32 0.0, %v2917
  %v2919 = vpop.f32.mrb[0].mxu0
  %2920 = vmatprep.mubr.f32.mxu0 0.0
  %2921 = vmatmul.mubr.f32.gmra.mrb[0].mxu0 %v2524
  %v2922 = vpop.f32.mrb[0].mxu0
  %v2923 = vadd.f32 0.0, %v2922
  %v2924 = vpop.f32.mrb[0].mxu0
  %2925 = vdwg.mxu0
  %v2926 = vadd.f32 %v2397, %v2608
  %v2927 = vadd.f32 %v2398, %v2613
  %v2928 = vadd.f32 %v2399, %v2618
  %v2929 = vadd.f32 %v2400, %v2623
  %v2930 = vadd.f32 %v2401, %v2628
  %v2931 = vadd.f32 %v2402, %v2633
  %v2932 = vadd.f32 %v2403, %v2638
  %v2933 = vadd.f32 %v2404, %v2643
  %v2934 = vadd.f32 %v2405, %v2648
  %v2935 = vadd.f32 %v2406, %v2653
  %v2936 = vadd.f32 %v2407, %v2658
  %v2937 = vadd.f32 %v2408, %v2663
  %v2938 = vadd.f32 %v2409, %v2668
  %v2939 = vadd.f32 %v2410, %v2673
  %v2940 = vadd.f32 %v2411, %v2678
  %v2941 = vadd.f32 %v2412, %v2683
  %v2942 = vadd.f32 %v2413, %v2688
  %v2943 = vadd.f32 %v2414, %v2693
  %v2944 = vadd.f32 %v2415, %v2698
  %v2945 = vadd.f32 %v2416, %v2703
  %v2946 = vadd.f32 %v2417, %v2708
  %v2947 = vadd.f32 %v2418, %v2713
  %v2948 = vadd.f32 %v2419, %v2718
  %v2949 = vadd.f32 %v2420, %v2723
  %v2950 = vadd.f32 %v2421, %v2728
  %v2951 = vadd.f32 %v2422, %v2733
  %v2952 = vadd.f32 %v2423, %v2738
  %v2953 = vadd.f32 %v2424, %v2743
  %v2954 = vadd.f32 %v2425, %v2748
  %v2955 = vadd.f32 %v2426, %v2753
  %v2956 = vadd.f32 %v2427, %v2758
  %v2957 = vadd.f32 %v2428, %v2763
  %v2958 = vadd.f32 %v2429, %v2768
  %v2959 = vadd.f32 %v2430, %v2773
  %v2960 = vadd.f32 %v2431, %v2778
  %v2961 = vadd.f32 %v2432, %v2783
  %v2962 = vadd.f32 %v2433, %v2788
  %v2963 = vadd.f32 %v2434, %v2793
  %v2964 = vadd.f32 %v2435, %v2798
  %v2965 = vadd.f32 %v2436, %v2803
  %v2966 = vadd.f32 %v2437, %v2808
  %v2967 = vadd.f32 %v2438, %v2813
  %v2968 = vadd.f32 %v2439, %v2818
  %v2969 = vadd.f32 %v2440, %v2823
  %v2970 = vadd.f32 %v2441, %v2828
  %v2971 = vadd.f32 %v2442, %v2833
  %v2972 = vadd.f32 %v2443, %v2838
  %v2973 = vadd.f32 %v2444, %v2843
  %v2974 = vadd.f32 %v2445, %v2848
  %v2975 = vadd.f32 %v2446, %v2853
  %v2976 = vadd.f32 %v2447, %v2858
  %v2977 = vadd.f32 %v2448, %v2863
  %v2978 = vadd.f32 %v2449, %v2868
  %v2979 = vadd.f32 %v2450, %v2873
  %v2980 = vadd.f32 %v2451, %v2878
  %v2981 = vadd.f32 %v2452, %v2883
  %v2982 = vadd.f32 %v2453, %v2888
  %v2983 = vadd.f32 %v2454, %v2893
  %v2984 = vadd.f32 %v2455, %v2898
  %v2985 = vadd.f32 %v2456, %v2903
  %v2986 = vadd.f32 %v2457, %v2908
  %v2987 = vadd.f32 %v2458, %v2913
  %v2988 = vadd.f32 %v2459, %v2918
  %v2989 = vadd.f32 %v2460, %v2923
  %v2990 = vld [vmem:[%s378 + $0x9] sm:$0xff]
  %v2991 = vld [vmem:[%s378 + $0x11] sm:$0xff]
  %v2992 = vld [vmem:[%s378 + $0x29] sm:$0xff]
  %v2993 = vld [vmem:[%s378 + $0x31] sm:$0xff]
  %v2994 = vld [vmem:[%s378 + $0x49] sm:$0xff]
  %v2995 = vld [vmem:[%s378 + $0x51] sm:$0xff]
  %v2996 = vld [vmem:[%s378 + $0x69] sm:$0xff]
  %v2997 = vld [vmem:[%s378 + $0x71] sm:$0xff]
  %v2998 = vld [vmem:[%s378 + $0x89] sm:$0xff]
  %v2999 = vld [vmem:[%s378 + $0x91] sm:$0xff]
  %v3000 = vld [vmem:[%s378 + $0xa9] sm:$0xff]
  %v3001 = vld [vmem:[%s378 + $0xb1] sm:$0xff]
  %v3002 = vld [vmem:[%s378 + $0xc9] sm:$0xff]
  %v3003 = vld [vmem:[%s378 + $0xd1] sm:$0xff]
  %v3004 = vld [vmem:[%s378 + $0xe9] sm:$0xff]
  %v3005 = vld [vmem:[%s378 + $0xf1] sm:$0xff]
  %v3006 = vld [vmem:[%s378 + $0x109] sm:$0xff]
  %v3007 = vld [vmem:[%s378 + $0x111] sm:$0xff]
  %v3008 = vld [vmem:[%s378 + $0x129] sm:$0xff]
  %v3009 = vld [vmem:[%s378 + $0x131] sm:$0xff]
  %v3010 = vld [vmem:[%s378 + $0x149] sm:$0xff]
  %v3011 = vld [vmem:[%s378 + $0x151] sm:$0xff]
  %v3012 = vld [vmem:[%s378 + $0x169] sm:$0xff]
  %v3013 = vld [vmem:[%s378 + $0x171] sm:$0xff]
  %v3014 = vld [vmem:[%s378 + $0x189] sm:$0xff]
  %v3015 = vld [vmem:[%s378 + $0x191] sm:$0xff]
  %v3016 = vld [vmem:[%s378 + $0x1a9] sm:$0xff]
  %v3017 = vld [vmem:[%s378 + $0x1b1] sm:$0xff]
  %v3018 = vld [vmem:[%s378 + $0x1c9] sm:$0xff]
  %v3019 = vld [vmem:[%s378 + $0x1d1] sm:$0xff]
  %v3020 = vld [vmem:[%s378 + $0x1e9] sm:$0xff]
  %v3021 = vld [vmem:[%s378 + $0x1f1] sm:$0xff]
  %v3022 = vld [vmem:[%s378 + $0x249] sm:$0xff]
  %v3023 = vld [vmem:[%s378 + $0x251] sm:$0xff]
  %v3024 = vld [vmem:[%s378 + $0x269] sm:$0xff]
  %v3025 = vld [vmem:[%s378 + $0x271] sm:$0xff]
  %v3026 = vld [vmem:[%s378 + $0x289] sm:$0xff]
  %v3027 = vld [vmem:[%s378 + $0x291] sm:$0xff]
  %v3028 = vld [vmem:[%s378 + $0x2a9] sm:$0xff]
  %v3029 = vld [vmem:[%s378 + $0x2b1] sm:$0xff]
  %v3030 = vld [vmem:[%s378 + $0x2c9] sm:$0xff]
  %v3031 = vld [vmem:[%s378 + $0x2d1] sm:$0xff]
  %v3032 = vld [vmem:[%s378 + $0x2e9] sm:$0xff]
  %v3033 = vld [vmem:[%s378 + $0x2f1] sm:$0xff]
  %v3034 = vld [vmem:[%s378 + $0x309] sm:$0xff]
  %v3035 = vld [vmem:[%s378 + $0x311] sm:$0xff]
  %v3036 = vld [vmem:[%s378 + $0x329] sm:$0xff]
  %v3037 = vld [vmem:[%s378 + $0x331] sm:$0xff]
  %v3038 = vld [vmem:[%s378 + $0x349] sm:$0xff]
  %v3039 = vld [vmem:[%s378 + $0x351] sm:$0xff]
  %v3040 = vld [vmem:[%s378 + $0x369] sm:$0xff]
  %v3041 = vld [vmem:[%s378 + $0x371] sm:$0xff]
  %v3042 = vld [vmem:[%s378 + $0x389] sm:$0xff]
  %v3043 = vld [vmem:[%s378 + $0x391] sm:$0xff]
  %v3044 = vld [vmem:[%s378 + $0x3a9] sm:$0xff]
  %v3045 = vld [vmem:[%s378 + $0x3b1] sm:$0xff]
  %v3046 = vld [vmem:[%s378 + $0x3c9] sm:$0xff]
  %v3047 = vld [vmem:[%s378 + $0x3d1] sm:$0xff]
  %v3048 = vld [vmem:[%s378 + $0x3e9] sm:$0xff]
  %v3049 = vld [vmem:[%s378 + $0x3f1] sm:$0xff]
  %v3050 = vld [vmem:[%s378 + $0x409] sm:$0xff]
  %v3051 = vld [vmem:[%s378 + $0x411] sm:$0xff]
  %v3052 = vld [vmem:[%s378 + $0x429] sm:$0xff]
  %v3053 = vld [vmem:[%s378 + $0x431] sm:$0xff]
  %v3054 = vld [vmem:[#allocation3 + $0x280] sm:$0xff]
  %v3055 = vld [vmem:[#allocation3 + $0x288] sm:$0xff]
  %v3056 = vld [vmem:[#allocation3 + $0x290] sm:$0xff]
  %v3057 = vld [vmem:[#allocation3 + $0x298] sm:$0xff]
  %v3058 = vld [vmem:[#allocation3 + $0x2a0] sm:$0xff]
  %v3059 = vld [vmem:[#allocation3 + $0x2a8] sm:$0xff]
  %v3060 = vld [vmem:[#allocation3 + $0x2b0] sm:$0xff]
  %v3061 = vld [vmem:[#allocation3 + $0x2b8] sm:$0xff]
  %v3062 = vld [vmem:[#allocation3 + $0x2c0] sm:$0xff]
  %v3063 = vld [vmem:[#allocation3 + $0x2c8] sm:$0xff]
  %v3064 = vld [vmem:[#allocation3 + $0x2d0] sm:$0xff]
  %v3065 = vld [vmem:[#allocation3 + $0x2d8] sm:$0xff]
  %v3066 = vld [vmem:[#allocation3 + $0x2e0] sm:$0xff]
  %v3067 = vld [vmem:[#allocation3 + $0x2e8] sm:$0xff]
  %v3068 = vld [vmem:[#allocation3 + $0x2f0] sm:$0xff]
  %v3069 = vld [vmem:[#allocation3 + $0x2f8] sm:$0xff]
  %3070 = vmatprep.subr.mxu0 0.0
  %3071 = vmatpush1.msra.mxu0 %v3054
  %3072 = vmatprep.subr.mxu0 0.0
  %3073 = vmatpush1.msra.mxu0 %v3055
  %3074 = vmatprep.subr.mxu0 0.0
  %3075 = vmatpush1.msra.mxu0 %v3056
  %3076 = vmatprep.subr.mxu0 0.0
  %3077 = vmatpush1.msra.mxu0 %v3057
  %3078 = vmatprep.subr.mxu0 0.0
  %3079 = vmatpush1.msra.mxu0 %v3058
  %3080 = vmatprep.subr.mxu0 0.0
  %3081 = vmatpush1.msra.mxu0 %v3059
  %3082 = vmatprep.subr.mxu0 0.0
  %3083 = vmatpush1.msra.mxu0 %v3060
  %3084 = vmatprep.subr.mxu0 0.0
  %3085 = vmatpush1.msra.mxu0 %v3061
  %3086 = vmatprep.subr.mxu0 0.0
  %3087 = vmatpush1.msra.mxu0 %v3062
  %3088 = vmatprep.subr.mxu0 0.0
  %3089 = vmatpush1.msra.mxu0 %v3063
  %3090 = vmatprep.subr.mxu0 0.0
  %3091 = vmatpush1.msra.mxu0 %v3064
  %3092 = vmatprep.subr.mxu0 0.0
  %3093 = vmatpush1.msra.mxu0 %v3065
  %3094 = vmatprep.subr.mxu0 0.0
  %3095 = vmatpush1.msra.mxu0 %v3066
  %3096 = vmatprep.subr.mxu0 0.0
  %3097 = vmatpush1.msra.mxu0 %v3067
  %3098 = vmatprep.subr.mxu0 0.0
  %3099 = vmatpush1.msra.mxu0 %v3068
  %3100 = vmatprep.subr.mxu0 0.0
  %3101 = vmatpush1.msra.mxu0 %v3069
  %3102 = vmatprep.subr.mxu0 0.0
  %3103 = vmatpush1.msra.mxu0 0.0
  %3104 = vmatprep.subr.mxu0 0.0
  %3105 = vmatpush1.msra.mxu0 0.0
  %3106 = vmatprep.subr.mxu0 0.0
  %3107 = vmatpush1.msra.mxu0 0.0
  %3108 = vmatprep.subr.mxu0 0.0
  %3109 = vmatpush1.msra.mxu0 0.0
  %3110 = vmatprep.subr.mxu0 0.0
  %3111 = vmatpush1.msra.mxu0 0.0
  %3112 = vmatprep.subr.mxu0 0.0
  %3113 = vmatpush1.msra.mxu0 0.0
  %3114 = vmatprep.subr.mxu0 0.0
  %3115 = vmatpush1.msra.mxu0 0.0
  %3116 = vmatprep.subr.mxu0 0.0
  %3117 = vmatpush1.msra.mxu0 0.0
  %3118 = vmatprep.subr.mxu0 0.0
  %3119 = vmatpush1.msra.mxu0 0.0
  %3120 = vmatprep.subr.mxu0 0.0
  %3121 = vmatpush1.msra.mxu0 0.0
  %3122 = vmatprep.subr.mxu0 0.0
  %3123 = vmatpush1.msra.mxu0 0.0
  %3124 = vmatprep.subr.mxu0 0.0
  %3125 = vmatpush1.msra.mxu0 0.0
  %3126 = vmatprep.subr.mxu0 0.0
  %3127 = vmatpush1.msra.mxu0 0.0
  %3128 = vmatprep.subr.mxu0 0.0
  %3129 = vmatpush1.msra.mxu0 0.0
  %3130 = vmatprep.subr.mxu0 0.0
  %3131 = vmatpush1.msra.mxu0 0.0
  %3132 = vmatprep.subr.mxu0 0.0
  %3133 = vmatpush1.msra.mxu0 0.0
  %3134 = vmatprep.mubr.f32.mxu0 0.0
  %3135 = vmatmul.mubr.f32.gmra.mrb[0].mxu0 %v2990
  %v3136 = vpop.f32.mrb[0].mxu0
  %v3137 = vadd.f32 0.0, %v3136
  %v3138 = vpop.f32.mrb[0].mxu0
  %3139 = vmatprep.mubr.f32.mxu0 0.0
  %3140 = vmatmul.mubr.f32.gmra.mrb[0].mxu0 %v2991
  %v3141 = vpop.f32.mrb[0].mxu0
  %v3142 = vadd.f32 0.0, %v3141
  %v3143 = vpop.f32.mrb[0].mxu0
  %3144 = vmatprep.mubr.f32.mxu0 0.0
  %3145 = vmatmul.mubr.f32.gmra.mrb[0].mxu0 %v2992
  %v3146 = vpop.f32.mrb[0].mxu0
  %v3147 = vadd.f32 0.0, %v3146
  %v3148 = vpop.f32.mrb[0].mxu0
  %3149 = vmatprep.mubr.f32.mxu0 0.0
  %3150 = vmatmul.mubr.f32.gmra.mrb[0].mxu0 %v2993
  %v3151 = vpop.f32.mrb[0].mxu0
  %v3152 = vadd.f32 0.0, %v3151
  %v3153 = vpop.f32.mrb[0].mxu0
  %3154 = vmatprep.mubr.f32.mxu0 0.0
  %3155 = vmatmul.mubr.f32.gmra.mrb[0].mxu0 %v2994
  %v3156 = vpop.f32.mrb[0].mxu0
  %v3157 = vadd.f32 0.0, %v3156
  %v3158 = vpop.f32.mrb[0].mxu0
  %3159 = vmatprep.mubr.f32.mxu0 0.0
  %3160 = vmatmul.mubr.f32.gmra.mrb[0].mxu0 %v2995
  %v3161 = vpop.f32.mrb[0].mxu0
  %v3162 = vadd.f32 0.0, %v3161
  %v3163 = vpop.f32.mrb[0].mxu0
  %3164 = vmatprep.mubr.f32.mxu0 0.0
  %3165 = vmatmul.mubr.f32.gmra.mrb[0].mxu0 %v2996
  %v3166 = vpop.f32.mrb[0].mxu0
  %v3167 = vadd.f32 0.0, %v3166
  %v3168 = vpop.f32.mrb[0].mxu0
  %3169 = vmatprep.mubr.f32.mxu0 0.0
  %3170 = vmatmul.mubr.f32.gmra.mrb[0].mxu0 %v2997
  %v3171 = vpop.f32.mrb[0].mxu0
  %v3172 = vadd.f32 0.0, %v3171
  %v3173 = vpop.f32.mrb[0].mxu0
  %3174 = vmatprep.mubr.f32.mxu0 0.0
  %3175 = vmatmul.mubr.f32.gmra.mrb[0].mxu0 %v2998
  %v3176 = vpop.f32.mrb[0].mxu0
  %v3177 = vadd.f32 0.0, %v3176
  %v3178 = vpop.f32.mrb[0].mxu0
  %3179 = vmatprep.mubr.f32.mxu0 0.0
  %3180 = vmatmul.mubr.f32.gmra.mrb[0].mxu0 %v2999
  %v3181 = vpop.f32.mrb[0].mxu0
  %v3182 = vadd.f32 0.0, %v3181
  %v3183 = vpop.f32.mrb[0].mxu0
  %3184 = vmatprep.mubr.f32.mxu0 0.0
  %3185 = vmatmul.mubr.f32.gmra.mrb[0].mxu0 %v3000
  %v3186 = vpop.f32.mrb[0].mxu0
  %v3187 = vadd.f32 0.0, %v3186
  %v3188 = vpop.f32.mrb[0].mxu0
  %3189 = vmatprep.mubr.f32.mxu0 0.0
  %3190 = vmatmul.mubr.f32.gmra.mrb[0].mxu0 %v3001
  %v3191 = vpop.f32.mrb[0].mxu0
  %v3192 = vadd.f32 0.0, %v3191
  %v3193 = vpop.f32.mrb[0].mxu0
  %3194 = vmatprep.mubr.f32.mxu0 0.0
  %3195 = vmatmul.mubr.f32.gmra.mrb[0].mxu0 %v3002
  %v3196 = vpop.f32.mrb[0].mxu0
  %v3197 = vadd.f32 0.0, %v3196
  %v3198 = vpop.f32.mrb[0].mxu0
  %3199 = vmatprep.mubr.f32.mxu0 0.0
  %3200 = vmatmul.mubr.f32.gmra.mrb[0].mxu0 %v3003
  %v3201 = vpop.f32.mrb[0].mxu0
  %v3202 = vadd.f32 0.0, %v3201
  %v3203 = vpop.f32.mrb[0].mxu0
  %3204 = vmatprep.mubr.f32.mxu0 0.0
  %3205 = vmatmul.mubr.f32.gmra.mrb[0].mxu0 %v3004
  %v3206 = vpop.f32.mrb[0].mxu0
  %v3207 = vadd.f32 0.0, %v3206
  %v3208 = vpop.f32.mrb[0].mxu0
  %3209 = vmatprep.mubr.f32.mxu0 0.0
  %3210 = vmatmul.mubr.f32.gmra.mrb[0].mxu0 %v3005
  %v3211 = vpop.f32.mrb[0].mxu0
  %v3212 = vadd.f32 0.0, %v3211
  %v3213 = vpop.f32.mrb[0].mxu0
  %3214 = vmatprep.mubr.f32.mxu0 0.0
  %3215 = vmatmul.mubr.f32.gmra.mrb[0].mxu0 %v3006
  %v3216 = vpop.f32.mrb[0].mxu0
  %v3217 = vadd.f32 0.0, %v3216
  %v3218 = vpop.f32.mrb[0].mxu0
  %3219 = vmatprep.mubr.f32.mxu0 0.0
  %3220 = vmatmul.mubr.f32.gmra.mrb[0].mxu0 %v3007
  %v3221 = vpop.f32.mrb[0].mxu0
  %v3222 = vadd.f32 0.0, %v3221
  %v3223 = vpop.f32.mrb[0].mxu0
  %3224 = vmatprep.mubr.f32.mxu0 0.0
  %3225 = vmatmul.mubr.f32.gmra.mrb[0].mxu0 %v3008
  %v3226 = vpop.f32.mrb[0].mxu0
  %v3227 = vadd.f32 0.0, %v3226
  %v3228 = vpop.f32.mrb[0].mxu0
  %3229 = vmatprep.mubr.f32.mxu0 0.0
  %3230 = vmatmul.mubr.f32.gmra.mrb[0].mxu0 %v3009
  %v3231 = vpop.f32.mrb[0].mxu0
  %v3232 = vadd.f32 0.0, %v3231
  %v3233 = vpop.f32.mrb[0].mxu0
  %3234 = vmatprep.mubr.f32.mxu0 0.0
  %3235 = vmatmul.mubr.f32.gmra.mrb[0].mxu0 %v3010
  %v3236 = vpop.f32.mrb[0].mxu0
  %v3237 = vadd.f32 0.0, %v3236
  %v3238 = vpop.f32.mrb[0].mxu0
  %3239 = vmatprep.mubr.f32.mxu0 0.0
  %3240 = vmatmul.mubr.f32.gmra.mrb[0].mxu0 %v3011
  %v3241 = vpop.f32.mrb[0].mxu0
  %v3242 = vadd.f32 0.0, %v3241
  %v3243 = vpop.f32.mrb[0].mxu0
  %3244 = vmatprep.mubr.f32.mxu0 0.0
  %3245 = vmatmul.mubr.f32.gmra.mrb[0].mxu0 %v3012
  %v3246 = vpop.f32.mrb[0].mxu0
  %v3247 = vadd.f32 0.0, %v3246
  %v3248 = vpop.f32.mrb[0].mxu0
  %3249 = vmatprep.mubr.f32.mxu0 0.0
  %3250 = vmatmul.mubr.f32.gmra.mrb[0].mxu0 %v3013
  %v3251 = vpop.f32.mrb[0].mxu0
  %v3252 = vadd.f32 0.0, %v3251
  %v3253 = vpop.f32.mrb[0].mxu0
  %3254 = vmatprep.mubr.f32.mxu0 0.0
  %3255 = vmatmul.mubr.f32.gmra.mrb[0].mxu0 %v3014
  %v3256 = vpop.f32.mrb[0].mxu0
  %v3257 = vadd.f32 0.0, %v3256
  %v3258 = vpop.f32.mrb[0].mxu0
  %3259 = vmatprep.mubr.f32.mxu0 0.0
  %3260 = vmatmul.mubr.f32.gmra.mrb[0].mxu0 %v3015
  %v3261 = vpop.f32.mrb[0].mxu0
  %v3262 = vadd.f32 0.0, %v3261
  %v3263 = vpop.f32.mrb[0].mxu0
  %3264 = vmatprep.mubr.f32.mxu0 0.0
  %3265 = vmatmul.mubr.f32.gmra.mrb[0].mxu0 %v3016
  %v3266 = vpop.f32.mrb[0].mxu0
  %v3267 = vadd.f32 0.0, %v3266
  %v3268 = vpop.f32.mrb[0].mxu0
  %3269 = vmatprep.mubr.f32.mxu0 0.0
  %3270 = vmatmul.mubr.f32.gmra.mrb[0].mxu0 %v3017
  %v3271 = vpop.f32.mrb[0].mxu0
  %v3272 = vadd.f32 0.0, %v3271
  %v3273 = vpop.f32.mrb[0].mxu0
  %3274 = vmatprep.mubr.f32.mxu0 0.0
  %3275 = vmatmul.mubr.f32.gmra.mrb[0].mxu0 %v3018
  %v3276 = vpop.f32.mrb[0].mxu0
  %v3277 = vadd.f32 0.0, %v3276
  %v3278 = vpop.f32.mrb[0].mxu0
  %3279 = vmatprep.mubr.f32.mxu0 0.0
  %3280 = vmatmul.mubr.f32.gmra.mrb[0].mxu0 %v3019
  %v3281 = vpop.f32.mrb[0].mxu0
  %v3282 = vadd.f32 0.0, %v3281
  %v3283 = vpop.f32.mrb[0].mxu0
  %3284 = vmatprep.mubr.f32.mxu0 0.0
  %3285 = vmatmul.mubr.f32.gmra.mrb[0].mxu0 %v3020
  %v3286 = vpop.f32.mrb[0].mxu0
  %v3287 = vadd.f32 0.0, %v3286
  %v3288 = vpop.f32.mrb[0].mxu0
  %3289 = vmatprep.mubr.f32.mxu0 0.0
  %3290 = vmatmul.mubr.f32.gmra.mrb[0].mxu0 %v3021
  %v3291 = vpop.f32.mrb[0].mxu0
  %v3292 = vadd.f32 0.0, %v3291
  %v3293 = vpop.f32.mrb[0].mxu0
  %3294 = vmatprep.mubr.f32.mxu0 0.0
  %3295 = vmatmul.mubr.f32.gmra.mrb[0].mxu0 %v3022
  %v3296 = vpop.f32.mrb[0].mxu0
  %v3297 = vadd.f32 0.0, %v3296
  %v3298 = vpop.f32.mrb[0].mxu0
  %3299 = vmatprep.mubr.f32.mxu0 0.0
  %3300 = vmatmul.mubr.f32.gmra.mrb[0].mxu0 %v3023
  %v3301 = vpop.f32.mrb[0].mxu0
  %v3302 = vadd.f32 0.0, %v3301
  %v3303 = vpop.f32.mrb[0].mxu0
  %3304 = vmatprep.mubr.f32.mxu0 0.0
  %3305 = vmatmul.mubr.f32.gmra.mrb[0].mxu0 %v3024
  %v3306 = vpop.f32.mrb[0].mxu0
  %v3307 = vadd.f32 0.0, %v3306
  %v3308 = vpop.f32.mrb[0].mxu0
  %3309 = vmatprep.mubr.f32.mxu0 0.0
  %3310 = vmatmul.mubr.f32.gmra.mrb[0].mxu0 %v3025
  %v3311 = vpop.f32.mrb[0].mxu0
  %v3312 = vadd.f32 0.0, %v3311
  %v3313 = vpop.f32.mrb[0].mxu0
  %3314 = vmatprep.mubr.f32.mxu0 0.0
  %3315 = vmatmul.mubr.f32.gmra.mrb[0].mxu0 %v3026
  %v3316 = vpop.f32.mrb[0].mxu0
  %v3317 = vadd.f32 0.0, %v3316
  %v3318 = vpop.f32.mrb[0].mxu0
  %3319 = vmatprep.mubr.f32.mxu0 0.0
  %3320 = vmatmul.mubr.f32.gmra.mrb[0].mxu0 %v3027
  %v3321 = vpop.f32.mrb[0].mxu0
  %v3322 = vadd.f32 0.0, %v3321
  %v3323 = vpop.f32.mrb[0].mxu0
  %3324 = vmatprep.mubr.f32.mxu0 0.0
  %3325 = vmatmul.mubr.f32.gmra.mrb[0].mxu0 %v3028
  %v3326 = vpop.f32.mrb[0].mxu0
  %v3327 = vadd.f32 0.0, %v3326
  %v3328 = vpop.f32.mrb[0].mxu0
  %3329 = vmatprep.mubr.f32.mxu0 0.0
  %3330 = vmatmul.mubr.f32.gmra.mrb[0].mxu0 %v3029
  %v3331 = vpop.f32.mrb[0].mxu0
  %v3332 = vadd.f32 0.0, %v3331
  %v3333 = vpop.f32.mrb[0].mxu0
  %3334 = vmatprep.mubr.f32.mxu0 0.0
  %3335 = vmatmul.mubr.f32.gmra.mrb[0].mxu0 %v3030
  %v3336 = vpop.f32.mrb[0].mxu0
  %v3337 = vadd.f32 0.0, %v3336
  %v3338 = vpop.f32.mrb[0].mxu0
  %3339 = vmatprep.mubr.f32.mxu0 0.0
  %3340 = vmatmul.mubr.f32.gmra.mrb[0].mxu0 %v3031
  %v3341 = vpop.f32.mrb[0].mxu0
  %v3342 = vadd.f32 0.0, %v3341
  %v3343 = vpop.f32.mrb[0].mxu0
  %3344 = vmatprep.mubr.f32.mxu0 0.0
  %3345 = vmatmul.mubr.f32.gmra.mrb[0].mxu0 %v3032
  %v3346 = vpop.f32.mrb[0].mxu0
  %v3347 = vadd.f32 0.0, %v3346
  %v3348 = vpop.f32.mrb[0].mxu0
  %3349 = vmatprep.mubr.f32.mxu0 0.0
  %3350 = vmatmul.mubr.f32.gmra.mrb[0].mxu0 %v3033
  %v3351 = vpop.f32.mrb[0].mxu0
  %v3352 = vadd.f32 0.0, %v3351
  %v3353 = vpop.f32.mrb[0].mxu0
  %3354 = vmatprep.mubr.f32.mxu0 0.0
  %3355 = vmatmul.mubr.f32.gmra.mrb[0].mxu0 %v3034
  %v3356 = vpop.f32.mrb[0].mxu0
  %v3357 = vadd.f32 0.0, %v3356
  %v3358 = vpop.f32.mrb[0].mxu0
  %3359 = vmatprep.mubr.f32.mxu0 0.0
  %3360 = vmatmul.mubr.f32.gmra.mrb[0].mxu0 %v3035
  %v3361 = vpop.f32.mrb[0].mxu0
  %v3362 = vadd.f32 0.0, %v3361
  %v3363 = vpop.f32.mrb[0].mxu0
  %3364 = vmatprep.mubr.f32.mxu0 0.0
  %3365 = vmatmul.mubr.f32.gmra.mrb[0].mxu0 %v3036
  %v3366 = vpop.f32.mrb[0].mxu0
  %v3367 = vadd.f32 0.0, %v3366
  %v3368 = vpop.f32.mrb[0].mxu0
  %3369 = vmatprep.mubr.f32.mxu0 0.0
  %3370 = vmatmul.mubr.f32.gmra.mrb[0].mxu0 %v3037
  %v3371 = vpop.f32.mrb[0].mxu0
  %v3372 = vadd.f32 0.0, %v3371
  %v3373 = vpop.f32.mrb[0].mxu0
  %3374 = vmatprep.mubr.f32.mxu0 0.0
  %3375 = vmatmul.mubr.f32.gmra.mrb[0].mxu0 %v3038
  %v3376 = vpop.f32.mrb[0].mxu0
  %v3377 = vadd.f32 0.0, %v3376
  %v3378 = vpop.f32.mrb[0].mxu0
  %3379 = vmatprep.mubr.f32.mxu0 0.0
  %3380 = vmatmul.mubr.f32.gmra.mrb[0].mxu0 %v3039
  %v3381 = vpop.f32.mrb[0].mxu0
  %v3382 = vadd.f32 0.0, %v3381
  %v3383 = vpop.f32.mrb[0].mxu0
  %3384 = vmatprep.mubr.f32.mxu0 0.0
  %3385 = vmatmul.mubr.f32.gmra.mrb[0].mxu0 %v3040
  %v3386 = vpop.f32.mrb[0].mxu0
  %v3387 = vadd.f32 0.0, %v3386
  %v3388 = vpop.f32.mrb[0].mxu0
  %3389 = vmatprep.mubr.f32.mxu0 0.0
  %3390 = vmatmul.mubr.f32.gmra.mrb[0].mxu0 %v3041
  %v3391 = vpop.f32.mrb[0].mxu0
  %v3392 = vadd.f32 0.0, %v3391
  %v3393 = vpop.f32.mrb[0].mxu0
  %3394 = vmatprep.mubr.f32.mxu0 0.0
  %3395 = vmatmul.mubr.f32.gmra.mrb[0].mxu0 %v3042
  %v3396 = vpop.f32.mrb[0].mxu0
  %v3397 = vadd.f32 0.0, %v3396
  %v3398 = vpop.f32.mrb[0].mxu0
  %3399 = vmatprep.mubr.f32.mxu0 0.0
  %3400 = vmatmul.mubr.f32.gmra.mrb[0].mxu0 %v3043
  %v3401 = vpop.f32.mrb[0].mxu0
  %v3402 = vadd.f32 0.0, %v3401
  %v3403 = vpop.f32.mrb[0].mxu0
  %3404 = vmatprep.mubr.f32.mxu0 0.0
  %3405 = vmatmul.mubr.f32.gmra.mrb[0].mxu0 %v3044
  %v3406 = vpop.f32.mrb[0].mxu0
  %v3407 = vadd.f32 0.0, %v3406
  %v3408 = vpop.f32.mrb[0].mxu0
  %3409 = vmatprep.mubr.f32.mxu0 0.0
  %3410 = vmatmul.mubr.f32.gmra.mrb[0].mxu0 %v3045
  %v3411 = vpop.f32.mrb[0].mxu0
  %v3412 = vadd.f32 0.0, %v3411
  %v3413 = vpop.f32.mrb[0].mxu0
  %3414 = vmatprep.mubr.f32.mxu0 0.0
  %3415 = vmatmul.mubr.f32.gmra.mrb[0].mxu0 %v3046
  %v3416 = vpop.f32.mrb[0].mxu0
  %v3417 = vadd.f32 0.0, %v3416
  %v3418 = vpop.f32.mrb[0].mxu0
  %3419 = vmatprep.mubr.f32.mxu0 0.0
  %3420 = vmatmul.mubr.f32.gmra.mrb[0].mxu0 %v3047
  %v3421 = vpop.f32.mrb[0].mxu0
  %v3422 = vadd.f32 0.0, %v3421
  %v3423 = vpop.f32.mrb[0].mxu0
  %3424 = vmatprep.mubr.f32.mxu0 0.0
  %3425 = vmatmul.mubr.f32.gmra.mrb[0].mxu0 %v3048
  %v3426 = vpop.f32.mrb[0].mxu0
  %v3427 = vadd.f32 0.0, %v3426
  %v3428 = vpop.f32.mrb[0].mxu0
  %3429 = vmatprep.mubr.f32.mxu0 0.0
  %3430 = vmatmul.mubr.f32.gmra.mrb[0].mxu0 %v3049
  %v3431 = vpop.f32.mrb[0].mxu0
  %v3432 = vadd.f32 0.0, %v3431
  %v3433 = vpop.f32.mrb[0].mxu0
  %3434 = vmatprep.mubr.f32.mxu0 0.0
  %3435 = vmatmul.mubr.f32.gmra.mrb[0].mxu0 %v3050
  %v3436 = vpop.f32.mrb[0].mxu0
  %v3437 = vadd.f32 0.0, %v3436
  %v3438 = vpop.f32.mrb[0].mxu0
  %3439 = vmatprep.mubr.f32.mxu0 0.0
  %3440 = vmatmul.mubr.f32.gmra.mrb[0].mxu0 %v3051
  %v3441 = vpop.f32.mrb[0].mxu0
  %v3442 = vadd.f32 0.0, %v3441
  %v3443 = vpop.f32.mrb[0].mxu0
  %3444 = vmatprep.mubr.f32.mxu0 0.0
  %3445 = vmatmul.mubr.f32.gmra.mrb[0].mxu0 %v3052
  %v3446 = vpop.f32.mrb[0].mxu0
  %v3447 = vadd.f32 0.0, %v3446
  %v3448 = vpop.f32.mrb[0].mxu0
  %3449 = vmatprep.mubr.f32.mxu0 0.0
  %3450 = vmatmul.mubr.f32.gmra.mrb[0].mxu0 %v3053
  %v3451 = vpop.f32.mrb[0].mxu0
  %v3452 = vadd.f32 0.0, %v3451
  %v3453 = vpop.f32.mrb[0].mxu0
  %3454 = vdwg.mxu0
  %v3455 = vadd.f32 %v2926, %v3137
  %v3456 = vadd.f32 %v2927, %v3142
  %v3457 = vadd.f32 %v2928, %v3147
  %v3458 = vadd.f32 %v2929, %v3152
  %v3459 = vadd.f32 %v2930, %v3157
  %v3460 = vadd.f32 %v2931, %v3162
  %v3461 = vadd.f32 %v2932, %v3167
  %v3462 = vadd.f32 %v2933, %v3172
  %v3463 = vadd.f32 %v2934, %v3177
  %v3464 = vadd.f32 %v2935, %v3182
  %v3465 = vadd.f32 %v2936, %v3187
  %v3466 = vadd.f32 %v2937, %v3192
  %v3467 = vadd.f32 %v2938, %v3197
  %v3468 = vadd.f32 %v2939, %v3202
  %v3469 = vadd.f32 %v2940, %v3207
  %v3470 = vadd.f32 %v2941, %v3212
  %v3471 = vadd.f32 %v2942, %v3217
  %v3472 = vadd.f32 %v2943, %v3222
  %v3473 = vadd.f32 %v2944, %v3227
  %v3474 = vadd.f32 %v2945, %v3232
  %v3475 = vadd.f32 %v2946, %v3237
  %v3476 = vadd.f32 %v2947, %v3242
  %v3477 = vadd.f32 %v2948, %v3247
  %v3478 = vadd.f32 %v2949, %v3252
  %v3479 = vadd.f32 %v2950, %v3257
  %v3480 = vadd.f32 %v2951, %v3262
  %v3481 = vadd.f32 %v2952, %v3267
  %v3482 = vadd.f32 %v2953, %v3272
  %v3483 = vadd.f32 %v2954, %v3277
  %v3484 = vadd.f32 %v2955, %v3282
  %v3485 = vadd.f32 %v2956, %v3287
  %v3486 = vadd.f32 %v2957, %v3292
  %v3487 = vadd.f32 %v2958, %v3297
  %v3488 = vadd.f32 %v2959, %v3302
  %v3489 = vadd.f32 %v2960, %v3307
  %v3490 = vadd.f32 %v2961, %v3312
  %v3491 = vadd.f32 %v2962, %v3317
  %v3492 = vadd.f32 %v2963, %v3322
  %v3493 = vadd.f32 %v2964, %v3327
  %v3494 = vadd.f32 %v2965, %v3332
  %v3495 = vadd.f32 %v2966, %v3337
  %v3496 = vadd.f32 %v2967, %v3342
  %v3497 = vadd.f32 %v2968, %v3347
  %v3498 = vadd.f32 %v2969, %v3352
  %v3499 = vadd.f32 %v2970, %v3357
  %v3500 = vadd.f32 %v2971, %v3362
  %v3501 = vadd.f32 %v2972, %v3367
  %v3502 = vadd.f32 %v2973, %v3372
  %v3503 = vadd.f32 %v2974, %v3377
  %v3504 = vadd.f32 %v2975, %v3382
  %v3505 = vadd.f32 %v2976, %v3387
  %v3506 = vadd.f32 %v2977, %v3392
  %v3507 = vadd.f32 %v2978, %v3397
  %v3508 = vadd.f32 %v2979, %v3402
  %v3509 = vadd.f32 %v2980, %v3407
  %v3510 = vadd.f32 %v2981, %v3412
  %v3511 = vadd.f32 %v2982, %v3417
  %v3512 = vadd.f32 %v2983, %v3422
  %v3513 = vadd.f32 %v2984, %v3427
  %v3514 = vadd.f32 %v2985, %v3432
  %v3515 = vadd.f32 %v2986, %v3437
  %v3516 = vadd.f32 %v2987, %v3442
  %v3517 = vadd.f32 %v2988, %v3447
  %v3518 = vadd.f32 %v2989, %v3452
  %s3519 = scalar_lea.vmem [#allocation2], 64
  %v3520 = vld [vmem:[%s3519 + $0x7] sm:$0xff]
  %v3521 = vld [vmem:[%s3519 + $0xf] sm:$0xff]
  %v3522 = vld [vmem:[%s3519 + $0x27] sm:$0xff]
  %v3523 = vld [vmem:[%s3519 + $0x2f] sm:$0xff]
  %v3524 = vld [vmem:[%s3519 + $0x47] sm:$0xff]
  %v3525 = vld [vmem:[%s3519 + $0x4f] sm:$0xff]
  %v3526 = vld [vmem:[%s3519 + $0x67] sm:$0xff]
  %v3527 = vld [vmem:[%s3519 + $0x6f] sm:$0xff]
  %v3528 = vld [vmem:[%s3519 + $0x87] sm:$0xff]
  %v3529 = vld [vmem:[%s3519 + $0x8f] sm:$0xff]
  %v3530 = vld [vmem:[%s3519 + $0xa7] sm:$0xff]
  %v3531 = vld [vmem:[%s3519 + $0xaf] sm:$0xff]
  %v3532 = vld [vmem:[%s3519 + $0xc7] sm:$0xff]
  %v3533 = vld [vmem:[%s3519 + $0xcf] sm:$0xff]
  %v3534 = vld [vmem:[%s3519 + $0xe7] sm:$0xff]
  %v3535 = vld [vmem:[%s3519 + $0xef] sm:$0xff]
  %v3536 = vld [vmem:[%s3519 + $0x107] sm:$0xff]
  %v3537 = vld [vmem:[%s3519 + $0x10f] sm:$0xff]
  %v3538 = vld [vmem:[%s3519 + $0x127] sm:$0xff]
  %v3539 = vld [vmem:[%s3519 + $0x12f] sm:$0xff]
  %v3540 = vld [vmem:[%s3519 + $0x147] sm:$0xff]
  %v3541 = vld [vmem:[%s3519 + $0x14f] sm:$0xff]
  %v3542 = vld [vmem:[%s3519 + $0x167] sm:$0xff]
  %v3543 = vld [vmem:[%s3519 + $0x16f] sm:$0xff]
  %v3544 = vld [vmem:[%s3519 + $0x187] sm:$0xff]
  %v3545 = vld [vmem:[%s3519 + $0x18f] sm:$0xff]
  %v3546 = vld [vmem:[%s3519 + $0x1a7] sm:$0xff]
  %v3547 = vld [vmem:[%s3519 + $0x1af] sm:$0xff]
  %v3548 = vld [vmem:[%s3519 + $0x1c7] sm:$0xff]
  %v3549 = vld [vmem:[%s3519 + $0x1cf] sm:$0xff]
  %v3550 = vld [vmem:[%s3519 + $0x1e7] sm:$0xff]
  %v3551 = vld [vmem:[%s3519 + $0x1ef] sm:$0xff]
  %v3552 = vld [vmem:[%s3519 + $0x247] sm:$0xff]
  %v3553 = vld [vmem:[%s3519 + $0x24f] sm:$0xff]
  %v3554 = vld [vmem:[%s3519 + $0x267] sm:$0xff]
  %v3555 = vld [vmem:[%s3519 + $0x26f] sm:$0xff]
  %v3556 = vld [vmem:[%s3519 + $0x287] sm:$0xff]
  %v3557 = vld [vmem:[%s3519 + $0x28f] sm:$0xff]
  %v3558 = vld [vmem:[%s3519 + $0x2a7] sm:$0xff]
  %v3559 = vld [vmem:[%s3519 + $0x2af] sm:$0xff]
  %v3560 = vld [vmem:[%s3519 + $0x2c7] sm:$0xff]
  %v3561 = vld [vmem:[%s3519 + $0x2cf] sm:$0xff]
  %v3562 = vld [vmem:[%s3519 + $0x2e7] sm:$0xff]
  %v3563 = vld [vmem:[%s3519 + $0x2ef] sm:$0xff]
  %v3564 = vld [vmem:[%s3519 + $0x307] sm:$0xff]
  %v3565 = vld [vmem:[%s3519 + $0x30f] sm:$0xff]
  %v3566 = vld [vmem:[%s3519 + $0x327] sm:$0xff]
  %v3567 = vld [vmem:[%s3519 + $0x32f] sm:$0xff]
  %v3568 = vld [vmem:[%s3519 + $0x347] sm:$0xff]
  %v3569 = vld [vmem:[%s3519 + $0x34f] sm:$0xff]
  %v3570 = vld [vmem:[%s3519 + $0x367] sm:$0xff]
  %v3571 = vld [vmem:[%s3519 + $0x36f] sm:$0xff]
  %v3572 = vld [vmem:[%s3519 + $0x387] sm:$0xff]
  %v3573 = vld [vmem:[%s3519 + $0x38f] sm:$0xff]
  %v3574 = vld [vmem:[%s3519 + $0x3a7] sm:$0xff]
  %v3575 = vld [vmem:[%s3519 + $0x3af] sm:$0xff]
  %v3576 = vld [vmem:[%s3519 + $0x3c7] sm:$0xff]
  %v3577 = vld [vmem:[%s3519 + $0x3cf] sm:$0xff]
  %v3578 = vld [vmem:[%s3519 + $0x3e7] sm:$0xff]
  %v3579 = vld [vmem:[%s3519 + $0x3ef] sm:$0xff]
  %v3580 = vld [vmem:[%s3519 + $0x407] sm:$0xff]
  %v3581 = vld [vmem:[%s3519 + $0x40f] sm:$0xff]
  %v3582 = vld [vmem:[%s3519 + $0x427] sm:$0xff]
  %v3583 = vld [vmem:[%s3519 + $0x42f] sm:$0xff]
  %v3584 = vld [vmem:[#allocation3 + $0x300] sm:$0xff]
  %v3585 = vld [vmem:[#allocation3 + $0x308] sm:$0xff]
  %v3586 = vld [vmem:[#allocation3 + $0x310] sm:$0xff]
  %v3587 = vld [vmem:[#allocation3 + $0x318] sm:$0xff]
  %v3588 = vld [vmem:[#allocation3 + $0x320] sm:$0xff]
  %v3589 = vld [vmem:[#allocation3 + $0x328] sm:$0xff]
  %v3590 = vld [vmem:[#allocation3 + $0x330] sm:$0xff]
  %v3591 = vld [vmem:[#allocation3 + $0x338] sm:$0xff]
  %v3592 = vld [vmem:[#allocation3 + $0x340] sm:$0xff]
  %v3593 = vld [vmem:[#allocation3 + $0x348] sm:$0xff]
  %v3594 = vld [vmem:[#allocation3 + $0x350] sm:$0xff]
  %v3595 = vld [vmem:[#allocation3 + $0x358] sm:$0xff]
  %v3596 = vld [vmem:[#allocation3 + $0x360] sm:$0xff]
  %v3597 = vld [vmem:[#allocation3 + $0x368] sm:$0xff]
  %v3598 = vld [vmem:[#allocation3 + $0x370] sm:$0xff]
  %v3599 = vld [vmem:[#allocation3 + $0x378] sm:$0xff]
  %3600 = vmatprep.subr.mxu0 0.0
  %3601 = vmatpush1.msra.mxu0 %v3584
  %3602 = vmatprep.subr.mxu0 0.0
  %3603 = vmatpush1.msra.mxu0 %v3585
  %3604 = vmatprep.subr.mxu0 0.0
  %3605 = vmatpush1.msra.mxu0 %v3586
  %3606 = vmatprep.subr.mxu0 0.0
  %3607 = vmatpush1.msra.mxu0 %v3587
  %3608 = vmatprep.subr.mxu0 0.0
  %3609 = vmatpush1.msra.mxu0 %v3588
  %3610 = vmatprep.subr.mxu0 0.0
  %3611 = vmatpush1.msra.mxu0 %v3589
  %3612 = vmatprep.subr.mxu0 0.0
  %3613 = vmatpush1.msra.mxu0 %v3590
  %3614 = vmatprep.subr.mxu0 0.0
  %3615 = vmatpush1.msra.mxu0 %v3591
  %3616 = vmatprep.subr.mxu0 0.0
  %3617 = vmatpush1.msra.mxu0 %v3592
  %3618 = vmatprep.subr.mxu0 0.0
  %3619 = vmatpush1.msra.mxu0 %v3593
  %3620 = vmatprep.subr.mxu0 0.0
  %3621 = vmatpush1.msra.mxu0 %v3594
  %3622 = vmatprep.subr.mxu0 0.0
  %3623 = vmatpush1.msra.mxu0 %v3595
  %3624 = vmatprep.subr.mxu0 0.0
  %3625 = vmatpush1.msra.mxu0 %v3596
  %3626 = vmatprep.subr.mxu0 0.0
  %3627 = vmatpush1.msra.mxu0 %v3597
  %3628 = vmatprep.subr.mxu0 0.0
  %3629 = vmatpush1.msra.mxu0 %v3598
  %3630 = vmatprep.subr.mxu0 0.0
  %3631 = vmatpush1.msra.mxu0 %v3599
  %3632 = vmatprep.subr.mxu0 0.0
  %3633 = vmatpush1.msra.mxu0 0.0
  %3634 = vmatprep.subr.mxu0 0.0
  %3635 = vmatpush1.msra.mxu0 0.0
  %3636 = vmatprep.subr.mxu0 0.0
  %3637 = vmatpush1.msra.mxu0 0.0
  %3638 = vmatprep.subr.mxu0 0.0
  %3639 = vmatpush1.msra.mxu0 0.0
  %3640 = vmatprep.subr.mxu0 0.0
  %3641 = vmatpush1.msra.mxu0 0.0
  %3642 = vmatprep.subr.mxu0 0.0
  %3643 = vmatpush1.msra.mxu0 0.0
  %3644 = vmatprep.subr.mxu0 0.0
  %3645 = vmatpush1.msra.mxu0 0.0
  %3646 = vmatprep.subr.mxu0 0.0
  %3647 = vmatpush1.msra.mxu0 0.0
  %3648 = vmatprep.subr.mxu0 0.0
  %3649 = vmatpush1.msra.mxu0 0.0
  %3650 = vmatprep.subr.mxu0 0.0
  %3651 = vmatpush1.msra.mxu0 0.0
  %3652 = vmatprep.subr.mxu0 0.0
  %3653 = vmatpush1.msra.mxu0 0.0
  %3654 = vmatprep.subr.mxu0 0.0
  %3655 = vmatpush1.msra.mxu0 0.0
  %3656 = vmatprep.subr.mxu0 0.0
  %3657 = vmatpush1.msra.mxu0 0.0
  %3658 = vmatprep.subr.mxu0 0.0
  %3659 = vmatpush1.msra.mxu0 0.0
  %3660 = vmatprep.subr.mxu0 0.0
  %3661 = vmatpush1.msra.mxu0 0.0
  %3662 = vmatprep.subr.mxu0 0.0
  %3663 = vmatpush1.msra.mxu0 0.0
  %3664 = vmatprep.mubr.f32.mxu0 0.0
  %3665 = vmatmul.mubr.f32.gmra.mrb[0].mxu0 %v3520
  %v3666 = vpop.f32.mrb[0].mxu0
  %v3667 = vadd.f32 0.0, %v3666
  %v3668 = vpop.f32.mrb[0].mxu0
  %3669 = vmatprep.mubr.f32.mxu0 0.0
  %3670 = vmatmul.mubr.f32.gmra.mrb[0].mxu0 %v3521
  %v3671 = vpop.f32.mrb[0].mxu0
  %v3672 = vadd.f32 0.0, %v3671
  %v3673 = vpop.f32.mrb[0].mxu0
  %3674 = vmatprep.mubr.f32.mxu0 0.0
  %3675 = vmatmul.mubr.f32.gmra.mrb[0].mxu0 %v3522
  %v3676 = vpop.f32.mrb[0].mxu0
  %v3677 = vadd.f32 0.0, %v3676
  %v3678 = vpop.f32.mrb[0].mxu0
  %3679 = vmatprep.mubr.f32.mxu0 0.0
  %3680 = vmatmul.mubr.f32.gmra.mrb[0].mxu0 %v3523
  %v3681 = vpop.f32.mrb[0].mxu0
  %v3682 = vadd.f32 0.0, %v3681
  %v3683 = vpop.f32.mrb[0].mxu0
  %3684 = vmatprep.mubr.f32.mxu0 0.0
  %3685 = vmatmul.mubr.f32.gmra.mrb[0].mxu0 %v3524
  %v3686 = vpop.f32.mrb[0].mxu0
  %v3687 = vadd.f32 0.0, %v3686
  %v3688 = vpop.f32.mrb[0].mxu0
  %3689 = vmatprep.mubr.f32.mxu0 0.0
  %3690 = vmatmul.mubr.f32.gmra.mrb[0].mxu0 %v3525
  %v3691 = vpop.f32.mrb[0].mxu0
  %v3692 = vadd.f32 0.0, %v3691
  %v3693 = vpop.f32.mrb[0].mxu0
  %3694 = vmatprep.mubr.f32.mxu0 0.0
  %3695 = vmatmul.mubr.f32.gmra.mrb[0].mxu0 %v3526
  %v3696 = vpop.f32.mrb[0].mxu0
  %v3697 = vadd.f32 0.0, %v3696
  %v3698 = vpop.f32.mrb[0].mxu0
  %3699 = vmatprep.mubr.f32.mxu0 0.0
  %3700 = vmatmul.mubr.f32.gmra.mrb[0].mxu0 %v3527
  %v3701 = vpop.f32.mrb[0].mxu0
  %v3702 = vadd.f32 0.0, %v3701
  %v3703 = vpop.f32.mrb[0].mxu0
  %3704 = vmatprep.mubr.f32.mxu0 0.0
  %3705 = vmatmul.mubr.f32.gmra.mrb[0].mxu0 %v3528
  %v3706 = vpop.f32.mrb[0].mxu0
  %v3707 = vadd.f32 0.0, %v3706
  %v3708 = vpop.f32.mrb[0].mxu0
  %3709 = vmatprep.mubr.f32.mxu0 0.0
  %3710 = vmatmul.mubr.f32.gmra.mrb[0].mxu0 %v3529
  %v3711 = vpop.f32.mrb[0].mxu0
  %v3712 = vadd.f32 0.0, %v3711
  %v3713 = vpop.f32.mrb[0].mxu0
  %3714 = vmatprep.mubr.f32.mxu0 0.0
  %3715 = vmatmul.mubr.f32.gmra.mrb[0].mxu0 %v3530
  %v3716 = vpop.f32.mrb[0].mxu0
  %v3717 = vadd.f32 0.0, %v3716
  %v3718 = vpop.f32.mrb[0].mxu0
  %3719 = vmatprep.mubr.f32.mxu0 0.0
  %3720 = vmatmul.mubr.f32.gmra.mrb[0].mxu0 %v3531
  %v3721 = vpop.f32.mrb[0].mxu0
  %v3722 = vadd.f32 0.0, %v3721
  %v3723 = vpop.f32.mrb[0].mxu0
  %3724 = vmatprep.mubr.f32.mxu0 0.0
  %3725 = vmatmul.mubr.f32.gmra.mrb[0].mxu0 %v3532
  %v3726 = vpop.f32.mrb[0].mxu0
  %v3727 = vadd.f32 0.0, %v3726
  %v3728 = vpop.f32.mrb[0].mxu0
  %3729 = vmatprep.mubr.f32.mxu0 0.0
  %3730 = vmatmul.mubr.f32.gmra.mrb[0].mxu0 %v3533
  %v3731 = vpop.f32.mrb[0].mxu0
  %v3732 = vadd.f32 0.0, %v3731
  %v3733 = vpop.f32.mrb[0].mxu0
  %3734 = vmatprep.mubr.f32.mxu0 0.0
  %3735 = vmatmul.mubr.f32.gmra.mrb[0].mxu0 %v3534
  %v3736 = vpop.f32.mrb[0].mxu0
  %v3737 = vadd.f32 0.0, %v3736
  %v3738 = vpop.f32.mrb[0].mxu0
  %3739 = vmatprep.mubr.f32.mxu0 0.0
  %3740 = vmatmul.mubr.f32.gmra.mrb[0].mxu0 %v3535
  %v3741 = vpop.f32.mrb[0].mxu0
  %v3742 = vadd.f32 0.0, %v3741
  %v3743 = vpop.f32.mrb[0].mxu0
  %3744 = vmatprep.mubr.f32.mxu0 0.0
  %3745 = vmatmul.mubr.f32.gmra.mrb[0].mxu0 %v3536
  %v3746 = vpop.f32.mrb[0].mxu0
  %v3747 = vadd.f32 0.0, %v3746
  %v3748 = vpop.f32.mrb[0].mxu0
  %3749 = vmatprep.mubr.f32.mxu0 0.0
  %3750 = vmatmul.mubr.f32.gmra.mrb[0].mxu0 %v3537
  %v3751 = vpop.f32.mrb[0].mxu0
  %v3752 = vadd.f32 0.0, %v3751
  %v3753 = vpop.f32.mrb[0].mxu0
  %3754 = vmatprep.mubr.f32.mxu0 0.0
  %3755 = vmatmul.mubr.f32.gmra.mrb[0].mxu0 %v3538
  %v3756 = vpop.f32.mrb[0].mxu0
  %v3757 = vadd.f32 0.0, %v3756
  %v3758 = vpop.f32.mrb[0].mxu0
  %3759 = vmatprep.mubr.f32.mxu0 0.0
  %3760 = vmatmul.mubr.f32.gmra.mrb[0].mxu0 %v3539
  %v3761 = vpop.f32.mrb[0].mxu0
  %v3762 = vadd.f32 0.0, %v3761
  %v3763 = vpop.f32.mrb[0].mxu0
  %3764 = vmatprep.mubr.f32.mxu0 0.0
  %3765 = vmatmul.mubr.f32.gmra.mrb[0].mxu0 %v3540
  %v3766 = vpop.f32.mrb[0].mxu0
  %v3767 = vadd.f32 0.0, %v3766
  %v3768 = vpop.f32.mrb[0].mxu0
  %3769 = vmatprep.mubr.f32.mxu0 0.0
  %3770 = vmatmul.mubr.f32.gmra.mrb[0].mxu0 %v3541
  %v3771 = vpop.f32.mrb[0].mxu0
  %v3772 = vadd.f32 0.0, %v3771
  %v3773 = vpop.f32.mrb[0].mxu0
  %3774 = vmatprep.mubr.f32.mxu0 0.0
  %3775 = vmatmul.mubr.f32.gmra.mrb[0].mxu0 %v3542
  %v3776 = vpop.f32.mrb[0].mxu0
  %v3777 = vadd.f32 0.0, %v3776
  %v3778 = vpop.f32.mrb[0].mxu0
  %3779 = vmatprep.mubr.f32.mxu0 0.0
  %3780 = vmatmul.mubr.f32.gmra.mrb[0].mxu0 %v3543
  %v3781 = vpop.f32.mrb[0].mxu0
  %v3782 = vadd.f32 0.0, %v3781
  %v3783 = vpop.f32.mrb[0].mxu0
  %3784 = vmatprep.mubr.f32.mxu0 0.0
  %3785 = vmatmul.mubr.f32.gmra.mrb[0].mxu0 %v3544
  %v3786 = vpop.f32.mrb[0].mxu0
  %v3787 = vadd.f32 0.0, %v3786
  %v3788 = vpop.f32.mrb[0].mxu0
  %3789 = vmatprep.mubr.f32.mxu0 0.0
  %3790 = vmatmul.mubr.f32.gmra.mrb[0].mxu0 %v3545
  %v3791 = vpop.f32.mrb[0].mxu0
  %v3792 = vadd.f32 0.0, %v3791
  %v3793 = vpop.f32.mrb[0].mxu0
  %3794 = vmatprep.mubr.f32.mxu0 0.0
  %3795 = vmatmul.mubr.f32.gmra.mrb[0].mxu0 %v3546
  %v3796 = vpop.f32.mrb[0].mxu0
  %v3797 = vadd.f32 0.0, %v3796
  %v3798 = vpop.f32.mrb[0].mxu0
  %3799 = vmatprep.mubr.f32.mxu0 0.0
  %3800 = vmatmul.mubr.f32.gmra.mrb[0].mxu0 %v3547
  %v3801 = vpop.f32.mrb[0].mxu0
  %v3802 = vadd.f32 0.0, %v3801
  %v3803 = vpop.f32.mrb[0].mxu0
  %3804 = vmatprep.mubr.f32.mxu0 0.0
  %3805 = vmatmul.mubr.f32.gmra.mrb[0].mxu0 %v3548
  %v3806 = vpop.f32.mrb[0].mxu0
  %v3807 = vadd.f32 0.0, %v3806
  %v3808 = vpop.f32.mrb[0].mxu0
  %3809 = vmatprep.mubr.f32.mxu0 0.0
  %3810 = vmatmul.mubr.f32.gmra.mrb[0].mxu0 %v3549
  %v3811 = vpop.f32.mrb[0].mxu0
  %v3812 = vadd.f32 0.0, %v3811
  %v3813 = vpop.f32.mrb[0].mxu0
  %3814 = vmatprep.mubr.f32.mxu0 0.0
  %3815 = vmatmul.mubr.f32.gmra.mrb[0].mxu0 %v3550
  %v3816 = vpop.f32.mrb[0].mxu0
  %v3817 = vadd.f32 0.0, %v3816
  %v3818 = vpop.f32.mrb[0].mxu0
  %3819 = vmatprep.mubr.f32.mxu0 0.0
  %3820 = vmatmul.mubr.f32.gmra.mrb[0].mxu0 %v3551
  %v3821 = vpop.f32.mrb[0].mxu0
  %v3822 = vadd.f32 0.0, %v3821
  %v3823 = vpop.f32.mrb[0].mxu0
  %3824 = vmatprep.mubr.f32.mxu0 0.0
  %3825 = vmatmul.mubr.f32.gmra.mrb[0].mxu0 %v3552
  %v3826 = vpop.f32.mrb[0].mxu0
  %v3827 = vadd.f32 0.0, %v3826
  %v3828 = vpop.f32.mrb[0].mxu0
  %3829 = vmatprep.mubr.f32.mxu0 0.0
  %3830 = vmatmul.mubr.f32.gmra.mrb[0].mxu0 %v3553
  %v3831 = vpop.f32.mrb[0].mxu0
  %v3832 = vadd.f32 0.0, %v3831
  %v3833 = vpop.f32.mrb[0].mxu0
  %3834 = vmatprep.mubr.f32.mxu0 0.0
  %3835 = vmatmul.mubr.f32.gmra.mrb[0].mxu0 %v3554
  %v3836 = vpop.f32.mrb[0].mxu0
  %v3837 = vadd.f32 0.0, %v3836
  %v3838 = vpop.f32.mrb[0].mxu0
  %3839 = vmatprep.mubr.f32.mxu0 0.0
  %3840 = vmatmul.mubr.f32.gmra.mrb[0].mxu0 %v3555
  %v3841 = vpop.f32.mrb[0].mxu0
  %v3842 = vadd.f32 0.0, %v3841
  %v3843 = vpop.f32.mrb[0].mxu0
  %3844 = vmatprep.mubr.f32.mxu0 0.0
  %3845 = vmatmul.mubr.f32.gmra.mrb[0].mxu0 %v3556
  %v3846 = vpop.f32.mrb[0].mxu0
  %v3847 = vadd.f32 0.0, %v3846
  %v3848 = vpop.f32.mrb[0].mxu0
  %3849 = vmatprep.mubr.f32.mxu0 0.0
  %3850 = vmatmul.mubr.f32.gmra.mrb[0].mxu0 %v3557
  %v3851 = vpop.f32.mrb[0].mxu0
  %v3852 = vadd.f32 0.0, %v3851
  %v3853 = vpop.f32.mrb[0].mxu0
  %3854 = vmatprep.mubr.f32.mxu0 0.0
  %3855 = vmatmul.mubr.f32.gmra.mrb[0].mxu0 %v3558
  %v3856 = vpop.f32.mrb[0].mxu0
  %v3857 = vadd.f32 0.0, %v3856
  %v3858 = vpop.f32.mrb[0].mxu0
  %3859 = vmatprep.mubr.f32.mxu0 0.0
  %3860 = vmatmul.mubr.f32.gmra.mrb[0].mxu0 %v3559
  %v3861 = vpop.f32.mrb[0].mxu0
  %v3862 = vadd.f32 0.0, %v3861
  %v3863 = vpop.f32.mrb[0].mxu0
  %3864 = vmatprep.mubr.f32.mxu0 0.0
  %3865 = vmatmul.mubr.f32.gmra.mrb[0].mxu0 %v3560
  %v3866 = vpop.f32.mrb[0].mxu0
  %v3867 = vadd.f32 0.0, %v3866
  %v3868 = vpop.f32.mrb[0].mxu0
  %3869 = vmatprep.mubr.f32.mxu0 0.0
  %3870 = vmatmul.mubr.f32.gmra.mrb[0].mxu0 %v3561
  %v3871 = vpop.f32.mrb[0].mxu0
  %v3872 = vadd.f32 0.0, %v3871
  %v3873 = vpop.f32.mrb[0].mxu0
  %3874 = vmatprep.mubr.f32.mxu0 0.0
  %3875 = vmatmul.mubr.f32.gmra.mrb[0].mxu0 %v3562
  %v3876 = vpop.f32.mrb[0].mxu0
  %v3877 = vadd.f32 0.0, %v3876
  %v3878 = vpop.f32.mrb[0].mxu0
  %3879 = vmatprep.mubr.f32.mxu0 0.0
  %3880 = vmatmul.mubr.f32.gmra.mrb[0].mxu0 %v3563
  %v3881 = vpop.f32.mrb[0].mxu0
  %v3882 = vadd.f32 0.0, %v3881
  %v3883 = vpop.f32.mrb[0].mxu0
  %3884 = vmatprep.mubr.f32.mxu0 0.0
  %3885 = vmatmul.mubr.f32.gmra.mrb[0].mxu0 %v3564
  %v3886 = vpop.f32.mrb[0].mxu0
  %v3887 = vadd.f32 0.0, %v3886
  %v3888 = vpop.f32.mrb[0].mxu0
  %3889 = vmatprep.mubr.f32.mxu0 0.0
  %3890 = vmatmul.mubr.f32.gmra.mrb[0].mxu0 %v3565
  %v3891 = vpop.f32.mrb[0].mxu0
  %v3892 = vadd.f32 0.0, %v3891
  %v3893 = vpop.f32.mrb[0].mxu0
  %3894 = vmatprep.mubr.f32.mxu0 0.0
  %3895 = vmatmul.mubr.f32.gmra.mrb[0].mxu0 %v3566
  %v3896 = vpop.f32.mrb[0].mxu0
  %v3897 = vadd.f32 0.0, %v3896
  %v3898 = vpop.f32.mrb[0].mxu0
  %3899 = vmatprep.mubr.f32.mxu0 0.0
  %3900 = vmatmul.mubr.f32.gmra.mrb[0].mxu0 %v3567
  %v3901 = vpop.f32.mrb[0].mxu0
  %v3902 = vadd.f32 0.0, %v3901
  %v3903 = vpop.f32.mrb[0].mxu0
  %3904 = vmatprep.mubr.f32.mxu0 0.0
  %3905 = vmatmul.mubr.f32.gmra.mrb[0].mxu0 %v3568
  %v3906 = vpop.f32.mrb[0].mxu0
  %v3907 = vadd.f32 0.0, %v3906
  %v3908 = vpop.f32.mrb[0].mxu0
  %3909 = vmatprep.mubr.f32.mxu0 0.0
  %3910 = vmatmul.mubr.f32.gmra.mrb[0].mxu0 %v3569
  %v3911 = vpop.f32.mrb[0].mxu0
  %v3912 = vadd.f32 0.0, %v3911
  %v3913 = vpop.f32.mrb[0].mxu0
  %3914 = vmatprep.mubr.f32.mxu0 0.0
  %3915 = vmatmul.mubr.f32.gmra.mrb[0].mxu0 %v3570
  %v3916 = vpop.f32.mrb[0].mxu0
  %v3917 = vadd.f32 0.0, %v3916
  %v3918 = vpop.f32.mrb[0].mxu0
  %3919 = vmatprep.mubr.f32.mxu0 0.0
  %3920 = vmatmul.mubr.f32.gmra.mrb[0].mxu0 %v3571
  %v3921 = vpop.f32.mrb[0].mxu0
  %v3922 = vadd.f32 0.0, %v3921
  %v3923 = vpop.f32.mrb[0].mxu0
  %3924 = vmatprep.mubr.f32.mxu0 0.0
  %3925 = vmatmul.mubr.f32.gmra.mrb[0].mxu0 %v3572
  %v3926 = vpop.f32.mrb[0].mxu0
  %v3927 = vadd.f32 0.0, %v3926
  %v3928 = vpop.f32.mrb[0].mxu0
  %3929 = vmatprep.mubr.f32.mxu0 0.0
  %3930 = vmatmul.mubr.f32.gmra.mrb[0].mxu0 %v3573
  %v3931 = vpop.f32.mrb[0].mxu0
  %v3932 = vadd.f32 0.0, %v3931
  %v3933 = vpop.f32.mrb[0].mxu0
  %3934 = vmatprep.mubr.f32.mxu0 0.0
  %3935 = vmatmul.mubr.f32.gmra.mrb[0].mxu0 %v3574
  %v3936 = vpop.f32.mrb[0].mxu0
  %v3937 = vadd.f32 0.0, %v3936
  %v3938 = vpop.f32.mrb[0].mxu0
  %3939 = vmatprep.mubr.f32.mxu0 0.0
  %3940 = vmatmul.mubr.f32.gmra.mrb[0].mxu0 %v3575
  %v3941 = vpop.f32.mrb[0].mxu0
  %v3942 = vadd.f32 0.0, %v3941
  %v3943 = vpop.f32.mrb[0].mxu0
  %3944 = vmatprep.mubr.f32.mxu0 0.0
  %3945 = vmatmul.mubr.f32.gmra.mrb[0].mxu0 %v3576
  %v3946 = vpop.f32.mrb[0].mxu0
  %v3947 = vadd.f32 0.0, %v3946
  %v3948 = vpop.f32.mrb[0].mxu0
  %3949 = vmatprep.mubr.f32.mxu0 0.0
  %3950 = vmatmul.mubr.f32.gmra.mrb[0].mxu0 %v3577
  %v3951 = vpop.f32.mrb[0].mxu0
  %v3952 = vadd.f32 0.0, %v3951
  %v3953 = vpop.f32.mrb[0].mxu0
  %3954 = vmatprep.mubr.f32.mxu0 0.0
  %3955 = vmatmul.mubr.f32.gmra.mrb[0].mxu0 %v3578
  %v3956 = vpop.f32.mrb[0].mxu0
  %v3957 = vadd.f32 0.0, %v3956
  %v3958 = vpop.f32.mrb[0].mxu0
  %3959 = vmatprep.mubr.f32.mxu0 0.0
  %3960 = vmatmul.mubr.f32.gmra.mrb[0].mxu0 %v3579
  %v3961 = vpop.f32.mrb[0].mxu0
  %v3962 = vadd.f32 0.0, %v3961
  %v3963 = vpop.f32.mrb[0].mxu0
  %3964 = vmatprep.mubr.f32.mxu0 0.0
  %3965 = vmatmul.mubr.f32.gmra.mrb[0].mxu0 %v3580
  %v3966 = vpop.f32.mrb[0].mxu0
  %v3967 = vadd.f32 0.0, %v3966
  %v3968 = vpop.f32.mrb[0].mxu0
  %3969 = vmatprep.mubr.f32.mxu0 0.0
  %3970 = vmatmul.mubr.f32.gmra.mrb[0].mxu0 %v3581
  %v3971 = vpop.f32.mrb[0].mxu0
  %v3972 = vadd.f32 0.0, %v3971
  %v3973 = vpop.f32.mrb[0].mxu0
  %3974 = vmatprep.mubr.f32.mxu0 0.0
  %3975 = vmatmul.mubr.f32.gmra.mrb[0].mxu0 %v3582
  %v3976 = vpop.f32.mrb[0].mxu0
  %v3977 = vadd.f32 0.0, %v3976
  %v3978 = vpop.f32.mrb[0].mxu0
  %3979 = vmatprep.mubr.f32.mxu0 0.0
  %3980 = vmatmul.mubr.f32.gmra.mrb[0].mxu0 %v3583
  %v3981 = vpop.f32.mrb[0].mxu0
  %v3982 = vadd.f32 0.0, %v3981
  %v3983 = vpop.f32.mrb[0].mxu0
  %3984 = vdwg.mxu0
  %v3985 = vadd.f32 %v3455, %v3667
  %v3986 = vadd.f32 %v3456, %v3672
  %v3987 = vadd.f32 %v3457, %v3677
  %v3988 = vadd.f32 %v3458, %v3682
  %v3989 = vadd.f32 %v3459, %v3687
  %v3990 = vadd.f32 %v3460, %v3692
  %v3991 = vadd.f32 %v3461, %v3697
  %v3992 = vadd.f32 %v3462, %v3702
  %v3993 = vadd.f32 %v3463, %v3707
  %v3994 = vadd.f32 %v3464, %v3712
  %v3995 = vadd.f32 %v3465, %v3717
  %v3996 = vadd.f32 %v3466, %v3722
  %v3997 = vadd.f32 %v3467, %v3727
  %v3998 = vadd.f32 %v3468, %v3732
  %v3999 = vadd.f32 %v3469, %v3737
  %v4000 = vadd.f32 %v3470, %v3742
  %v4001 = vadd.f32 %v3471, %v3747
  %v4002 = vadd.f32 %v3472, %v3752
  %v4003 = vadd.f32 %v3473, %v3757
  %v4004 = vadd.f32 %v3474, %v3762
  %v4005 = vadd.f32 %v3475, %v3767
  %v4006 = vadd.f32 %v3476, %v3772
  %v4007 = vadd.f32 %v3477, %v3777
  %v4008 = vadd.f32 %v3478, %v3782
  %v4009 = vadd.f32 %v3479, %v3787
  %v4010 = vadd.f32 %v3480, %v3792
  %v4011 = vadd.f32 %v3481, %v3797
  %v4012 = vadd.f32 %v3482, %v3802
  %v4013 = vadd.f32 %v3483, %v3807
  %v4014 = vadd.f32 %v3484, %v3812
  %v4015 = vadd.f32 %v3485, %v3817
  %v4016 = vadd.f32 %v3486, %v3822
  %v4017 = vadd.f32 %v3487, %v3827
  %v4018 = vadd.f32 %v3488, %v3832
  %v4019 = vadd.f32 %v3489, %v3837
  %v4020 = vadd.f32 %v3490, %v3842
  %v4021 = vadd.f32 %v3491, %v3847
  %v4022 = vadd.f32 %v3492, %v3852
  %v4023 = vadd.f32 %v3493, %v3857
  %v4024 = vadd.f32 %v3494, %v3862
  %v4025 = vadd.f32 %v3495, %v3867
  %v4026 = vadd.f32 %v3496, %v3872
  %v4027 = vadd.f32 %v3497, %v3877
  %v4028 = vadd.f32 %v3498, %v3882
  %v4029 = vadd.f32 %v3499, %v3887
  %v4030 = vadd.f32 %v3500, %v3892
  %v4031 = vadd.f32 %v3501, %v3897
  %v4032 = vadd.f32 %v3502, %v3902
  %v4033 = vadd.f32 %v3503, %v3907
  %v4034 = vadd.f32 %v3504, %v3912
  %v4035 = vadd.f32 %v3505, %v3917
  %v4036 = vadd.f32 %v3506, %v3922
  %v4037 = vadd.f32 %v3507, %v3927
  %v4038 = vadd.f32 %v3508, %v3932
  %v4039 = vadd.f32 %v3509, %v3937
  %v4040 = vadd.f32 %v3510, %v3942
  %v4041 = vadd.f32 %v3511, %v3947
  %v4042 = vadd.f32 %v3512, %v3952
  %v4043 = vadd.f32 %v3513, %v3957
  %v4044 = vadd.f32 %v3514, %v3962
  %v4045 = vadd.f32 %v3515, %v3967
  %v4046 = vadd.f32 %v3516, %v3972
  %v4047 = vadd.f32 %v3517, %v3977
  %v4048 = vadd.f32 %v3518, %v3982
  %v4049 = vld [vmem:[%s3519 + $0x8] sm:$0xff]
  %v4050 = vld [vmem:[%s3519 + $0x10] sm:$0xff]
  %v4051 = vld [vmem:[%s3519 + $0x28] sm:$0xff]
  %v4052 = vld [vmem:[%s3519 + $0x30] sm:$0xff]
  %v4053 = vld [vmem:[%s3519 + $0x48] sm:$0xff]
  %v4054 = vld [vmem:[%s3519 + $0x50] sm:$0xff]
  %v4055 = vld [vmem:[%s3519 + $0x68] sm:$0xff]
  %v4056 = vld [vmem:[%s3519 + $0x70] sm:$0xff]
  %v4057 = vld [vmem:[%s3519 + $0x88] sm:$0xff]
  %v4058 = vld [vmem:[%s3519 + $0x90] sm:$0xff]
  %v4059 = vld [vmem:[%s3519 + $0xa8] sm:$0xff]
  %v4060 = vld [vmem:[%s3519 + $0xb0] sm:$0xff]
  %v4061 = vld [vmem:[%s3519 + $0xc8] sm:$0xff]
  %v4062 = vld [vmem:[%s3519 + $0xd0] sm:$0xff]
  %v4063 = vld [vmem:[%s3519 + $0xe8] sm:$0xff]
  %v4064 = vld [vmem:[%s3519 + $0xf0] sm:$0xff]
  %v4065 = vld [vmem:[%s3519 + $0x108] sm:$0xff]
  %v4066 = vld [vmem:[%s3519 + $0x110] sm:$0xff]
  %v4067 = vld [vmem:[%s3519 + $0x128] sm:$0xff]
  %v4068 = vld [vmem:[%s3519 + $0x130] sm:$0xff]
  %v4069 = vld [vmem:[%s3519 + $0x148] sm:$0xff]
  %v4070 = vld [vmem:[%s3519 + $0x150] sm:$0xff]
  %v4071 = vld [vmem:[%s3519 + $0x168] sm:$0xff]
  %v4072 = vld [vmem:[%s3519 + $0x170] sm:$0xff]
  %v4073 = vld [vmem:[%s3519 + $0x188] sm:$0xff]
  %v4074 = vld [vmem:[%s3519 + $0x190] sm:$0xff]
  %v4075 = vld [vmem:[%s3519 + $0x1a8] sm:$0xff]
  %v4076 = vld [vmem:[%s3519 + $0x1b0] sm:$0xff]
  %v4077 = vld [vmem:[%s3519 + $0x1c8] sm:$0xff]
  %v4078 = vld [vmem:[%s3519 + $0x1d0] sm:$0xff]
  %v4079 = vld [vmem:[%s3519 + $0x1e8] sm:$0xff]
  %v4080 = vld [vmem:[%s3519 + $0x1f0] sm:$0xff]
  %v4081 = vld [vmem:[%s3519 + $0x248] sm:$0xff]
  %v4082 = vld [vmem:[%s3519 + $0x250] sm:$0xff]
  %v4083 = vld [vmem:[%s3519 + $0x268] sm:$0xff]
  %v4084 = vld [vmem:[%s3519 + $0x270] sm:$0xff]
  %v4085 = vld [vmem:[%s3519 + $0x288] sm:$0xff]
  %v4086 = vld [vmem:[%s3519 + $0x290] sm:$0xff]
  %v4087 = vld [vmem:[%s3519 + $0x2a8] sm:$0xff]
  %v4088 = vld [vmem:[%s3519 + $0x2b0] sm:$0xff]
  %v4089 = vld [vmem:[%s3519 + $0x2c8] sm:$0xff]
  %v4090 = vld [vmem:[%s3519 + $0x2d0] sm:$0xff]
  %v4091 = vld [vmem:[%s3519 + $0x2e8] sm:$0xff]
  %v4092 = vld [vmem:[%s3519 + $0x2f0] sm:$0xff]
  %v4093 = vld [vmem:[%s3519 + $0x308] sm:$0xff]
  %v4094 = vld [vmem:[%s3519 + $0x310] sm:$0xff]
  %v4095 = vld [vmem:[%s3519 + $0x328] sm:$0xff]
  %v4096 = vld [vmem:[%s3519 + $0x330] sm:$0xff]
  %v4097 = vld [vmem:[%s3519 + $0x348] sm:$0xff]
  %v4098 = vld [vmem:[%s3519 + $0x350] sm:$0xff]
  %v4099 = vld [vmem:[%s3519 + $0x368] sm:$0xff]
  %v4100 = vld [vmem:[%s3519 + $0x370] sm:$0xff]
  %v4101 = vld [vmem:[%s3519 + $0x388] sm:$0xff]
  %v4102 = vld [vmem:[%s3519 + $0x390] sm:$0xff]
  %v4103 = vld [vmem:[%s3519 + $0x3a8] sm:$0xff]
  %v4104 = vld [vmem:[%s3519 + $0x3b0] sm:$0xff]
  %v4105 = vld [vmem:[%s3519 + $0x3c8] sm:$0xff]
  %v4106 = vld [vmem:[%s3519 + $0x3d0] sm:$0xff]
  %v4107 = vld [vmem:[%s3519 + $0x3e8] sm:$0xff]
  %v4108 = vld [vmem:[%s3519 + $0x3f0] sm:$0xff]
  %v4109 = vld [vmem:[%s3519 + $0x408] sm:$0xff]
  %v4110 = vld [vmem:[%s3519 + $0x410] sm:$0xff]
  %v4111 = vld [vmem:[%s3519 + $0x428] sm:$0xff]
  %v4112 = vld [vmem:[%s3519 + $0x430] sm:$0xff]
  %v4113 = vld [vmem:[#allocation3 + $0x380] sm:$0xff]
  %v4114 = vld [vmem:[#allocation3 + $0x388] sm:$0xff]
  %v4115 = vld [vmem:[#allocation3 + $0x390] sm:$0xff]
  %v4116 = vld [vmem:[#allocation3 + $0x398] sm:$0xff]
  %v4117 = vld [vmem:[#allocation3 + $0x3a0] sm:$0xff]
  %v4118 = vld [vmem:[#allocation3 + $0x3a8] sm:$0xff]
  %v4119 = vld [vmem:[#allocation3 + $0x3b0] sm:$0xff]
  %v4120 = vld [vmem:[#allocation3 + $0x3b8] sm:$0xff]
  %v4121 = vld [vmem:[#allocation3 + $0x3c0] sm:$0xff]
  %v4122 = vld [vmem:[#allocation3 + $0x3c8] sm:$0xff]
  %v4123 = vld [vmem:[#allocation3 + $0x3d0] sm:$0xff]
  %v4124 = vld [vmem:[#allocation3 + $0x3d8] sm:$0xff]
  %v4125 = vld [vmem:[#allocation3 + $0x3e0] sm:$0xff]
  %v4126 = vld [vmem:[#allocation3 + $0x3e8] sm:$0xff]
  %v4127 = vld [vmem:[#allocation3 + $0x3f0] sm:$0xff]
  %v4128 = vld [vmem:[#allocation3 + $0x3f8] sm:$0xff]
  %4129 = vmatprep.subr.mxu0 0.0
  %4130 = vmatpush1.msra.mxu0 %v4113
  %4131 = vmatprep.subr.mxu0 0.0
  %4132 = vmatpush1.msra.mxu0 %v4114
  %4133 = vmatprep.subr.mxu0 0.0
  %4134 = vmatpush1.msra.mxu0 %v4115
  %4135 = vmatprep.subr.mxu0 0.0
  %4136 = vmatpush1.msra.mxu0 %v4116
  %4137 = vmatprep.subr.mxu0 0.0
  %4138 = vmatpush1.msra.mxu0 %v4117
  %4139 = vmatprep.subr.mxu0 0.0
  %4140 = vmatpush1.msra.mxu0 %v4118
  %4141 = vmatprep.subr.mxu0 0.0
  %4142 = vmatpush1.msra.mxu0 %v4119
  %4143 = vmatprep.subr.mxu0 0.0
  %4144 = vmatpush1.msra.mxu0 %v4120
  %4145 = vmatprep.subr.mxu0 0.0
  %4146 = vmatpush1.msra.mxu0 %v4121
  %4147 = vmatprep.subr.mxu0 0.0
  %4148 = vmatpush1.msra.mxu0 %v4122
  %4149 = vmatprep.subr.mxu0 0.0
  %4150 = vmatpush1.msra.mxu0 %v4123
  %4151 = vmatprep.subr.mxu0 0.0
  %4152 = vmatpush1.msra.mxu0 %v4124
  %4153 = vmatprep.subr.mxu0 0.0
  %4154 = vmatpush1.msra.mxu0 %v4125
  %4155 = vmatprep.subr.mxu0 0.0
  %4156 = vmatpush1.msra.mxu0 %v4126
  %4157 = vmatprep.subr.mxu0 0.0
  %4158 = vmatpush1.msra.mxu0 %v4127
  %4159 = vmatprep.subr.mxu0 0.0
  %4160 = vmatpush1.msra.mxu0 %v4128
  %4161 = vmatprep.subr.mxu0 0.0
  %4162 = vmatpush1.msra.mxu0 0.0
  %4163 = vmatprep.subr.mxu0 0.0
  %4164 = vmatpush1.msra.mxu0 0.0
  %4165 = vmatprep.subr.mxu0 0.0
  %4166 = vmatpush1.msra.mxu0 0.0
  %4167 = vmatprep.subr.mxu0 0.0
  %4168 = vmatpush1.msra.mxu0 0.0
  %4169 = vmatprep.subr.mxu0 0.0
  %4170 = vmatpush1.msra.mxu0 0.0
  %4171 = vmatprep.subr.mxu0 0.0
  %4172 = vmatpush1.msra.mxu0 0.0
  %4173 = vmatprep.subr.mxu0 0.0
  %4174 = vmatpush1.msra.mxu0 0.0
  %4175 = vmatprep.subr.mxu0 0.0
  %4176 = vmatpush1.msra.mxu0 0.0
  %4177 = vmatprep.subr.mxu0 0.0
  %4178 = vmatpush1.msra.mxu0 0.0
  %4179 = vmatprep.subr.mxu0 0.0
  %4180 = vmatpush1.msra.mxu0 0.0
  %4181 = vmatprep.subr.mxu0 0.0
  %4182 = vmatpush1.msra.mxu0 0.0
  %4183 = vmatprep.subr.mxu0 0.0
  %4184 = vmatpush1.msra.mxu0 0.0
  %4185 = vmatprep.subr.mxu0 0.0
  %4186 = vmatpush1.msra.mxu0 0.0
  %4187 = vmatprep.subr.mxu0 0.0
  %4188 = vmatpush1.msra.mxu0 0.0
  %4189 = vmatprep.subr.mxu0 0.0
  %4190 = vmatpush1.msra.mxu0 0.0
  %4191 = vmatprep.subr.mxu0 0.0
  %4192 = vmatpush1.msra.mxu0 0.0
  %4193 = vmatprep.mubr.f32.mxu0 0.0
  %4194 = vmatmul.mubr.f32.gmra.mrb[0].mxu0 %v4049
  %v4195 = vpop.f32.mrb[0].mxu0
  %v4196 = vadd.f32 0.0, %v4195
  %v4197 = vpop.f32.mrb[0].mxu0
  %4198 = vmatprep.mubr.f32.mxu0 0.0
  %4199 = vmatmul.mubr.f32.gmra.mrb[0].mxu0 %v4050
  %v4200 = vpop.f32.mrb[0].mxu0
  %v4201 = vadd.f32 0.0, %v4200
  %v4202 = vpop.f32.mrb[0].mxu0
  %4203 = vmatprep.mubr.f32.mxu0 0.0
  %4204 = vmatmul.mubr.f32.gmra.mrb[0].mxu0 %v4051
  %v4205 = vpop.f32.mrb[0].mxu0
  %v4206 = vadd.f32 0.0, %v4205
  %v4207 = vpop.f32.mrb[0].mxu0
  %4208 = vmatprep.mubr.f32.mxu0 0.0
  %4209 = vmatmul.mubr.f32.gmra.mrb[0].mxu0 %v4052
  %v4210 = vpop.f32.mrb[0].mxu0
  %v4211 = vadd.f32 0.0, %v4210
  %v4212 = vpop.f32.mrb[0].mxu0
  %4213 = vmatprep.mubr.f32.mxu0 0.0
  %4214 = vmatmul.mubr.f32.gmra.mrb[0].mxu0 %v4053
  %v4215 = vpop.f32.mrb[0].mxu0
  %v4216 = vadd.f32 0.0, %v4215
  %v4217 = vpop.f32.mrb[0].mxu0
  %4218 = vmatprep.mubr.f32.mxu0 0.0
  %4219 = vmatmul.mubr.f32.gmra.mrb[0].mxu0 %v4054
  %v4220 = vpop.f32.mrb[0].mxu0
  %v4221 = vadd.f32 0.0, %v4220
  %v4222 = vpop.f32.mrb[0].mxu0
  %4223 = vmatprep.mubr.f32.mxu0 0.0
  %4224 = vmatmul.mubr.f32.gmra.mrb[0].mxu0 %v4055
  %v4225 = vpop.f32.mrb[0].mxu0
  %v4226 = vadd.f32 0.0, %v4225
  %v4227 = vpop.f32.mrb[0].mxu0
  %4228 = vmatprep.mubr.f32.mxu0 0.0
  %4229 = vmatmul.mubr.f32.gmra.mrb[0].mxu0 %v4056
  %v4230 = vpop.f32.mrb[0].mxu0
  %v4231 = vadd.f32 0.0, %v4230
  %v4232 = vpop.f32.mrb[0].mxu0
  %4233 = vmatprep.mubr.f32.mxu0 0.0
  %4234 = vmatmul.mubr.f32.gmra.mrb[0].mxu0 %v4057
  %v4235 = vpop.f32.mrb[0].mxu0
  %v4236 = vadd.f32 0.0, %v4235
  %v4237 = vpop.f32.mrb[0].mxu0
  %4238 = vmatprep.mubr.f32.mxu0 0.0
  %4239 = vmatmul.mubr.f32.gmra.mrb[0].mxu0 %v4058
  %v4240 = vpop.f32.mrb[0].mxu0
  %v4241 = vadd.f32 0.0, %v4240
  %v4242 = vpop.f32.mrb[0].mxu0
  %4243 = vmatprep.mubr.f32.mxu0 0.0
  %4244 = vmatmul.mubr.f32.gmra.mrb[0].mxu0 %v4059
  %v4245 = vpop.f32.mrb[0].mxu0
  %v4246 = vadd.f32 0.0, %v4245
  %v4247 = vpop.f32.mrb[0].mxu0
  %4248 = vmatprep.mubr.f32.mxu0 0.0
  %4249 = vmatmul.mubr.f32.gmra.mrb[0].mxu0 %v4060
  %v4250 = vpop.f32.mrb[0].mxu0
  %v4251 = vadd.f32 0.0, %v4250
  %v4252 = vpop.f32.mrb[0].mxu0
  %4253 = vmatprep.mubr.f32.mxu0 0.0
  %4254 = vmatmul.mubr.f32.gmra.mrb[0].mxu0 %v4061
  %v4255 = vpop.f32.mrb[0].mxu0
  %v4256 = vadd.f32 0.0, %v4255
  %v4257 = vpop.f32.mrb[0].mxu0
  %4258 = vmatprep.mubr.f32.mxu0 0.0
  %4259 = vmatmul.mubr.f32.gmra.mrb[0].mxu0 %v4062
  %v4260 = vpop.f32.mrb[0].mxu0
  %v4261 = vadd.f32 0.0, %v4260
  %v4262 = vpop.f32.mrb[0].mxu0
  %4263 = vmatprep.mubr.f32.mxu0 0.0
  %4264 = vmatmul.mubr.f32.gmra.mrb[0].mxu0 %v4063
  %v4265 = vpop.f32.mrb[0].mxu0
  %v4266 = vadd.f32 0.0, %v4265
  %v4267 = vpop.f32.mrb[0].mxu0
  %4268 = vmatprep.mubr.f32.mxu0 0.0
  %4269 = vmatmul.mubr.f32.gmra.mrb[0].mxu0 %v4064
  %v4270 = vpop.f32.mrb[0].mxu0
  %v4271 = vadd.f32 0.0, %v4270
  %v4272 = vpop.f32.mrb[0].mxu0
  %4273 = vmatprep.mubr.f32.mxu0 0.0
  %4274 = vmatmul.mubr.f32.gmra.mrb[0].mxu0 %v4065
  %v4275 = vpop.f32.mrb[0].mxu0
  %v4276 = vadd.f32 0.0, %v4275
  %v4277 = vpop.f32.mrb[0].mxu0
  %4278 = vmatprep.mubr.f32.mxu0 0.0
  %4279 = vmatmul.mubr.f32.gmra.mrb[0].mxu0 %v4066
  %v4280 = vpop.f32.mrb[0].mxu0
  %v4281 = vadd.f32 0.0, %v4280
  %v4282 = vpop.f32.mrb[0].mxu0
  %4283 = vmatprep.mubr.f32.mxu0 0.0
  %4284 = vmatmul.mubr.f32.gmra.mrb[0].mxu0 %v4067
  %v4285 = vpop.f32.mrb[0].mxu0
  %v4286 = vadd.f32 0.0, %v4285
  %v4287 = vpop.f32.mrb[0].mxu0
  %4288 = vmatprep.mubr.f32.mxu0 0.0
  %4289 = vmatmul.mubr.f32.gmra.mrb[0].mxu0 %v4068
  %v4290 = vpop.f32.mrb[0].mxu0
  %v4291 = vadd.f32 0.0, %v4290
  %v4292 = vpop.f32.mrb[0].mxu0
  %4293 = vmatprep.mubr.f32.mxu0 0.0
  %4294 = vmatmul.mubr.f32.gmra.mrb[0].mxu0 %v4069
  %v4295 = vpop.f32.mrb[0].mxu0
  %v4296 = vadd.f32 0.0, %v4295
  %v4297 = vpop.f32.mrb[0].mxu0
  %4298 = vmatprep.mubr.f32.mxu0 0.0
  %4299 = vmatmul.mubr.f32.gmra.mrb[0].mxu0 %v4070
  %v4300 = vpop.f32.mrb[0].mxu0
  %v4301 = vadd.f32 0.0, %v4300
  %v4302 = vpop.f32.mrb[0].mxu0
  %4303 = vmatprep.mubr.f32.mxu0 0.0
  %4304 = vmatmul.mubr.f32.gmra.mrb[0].mxu0 %v4071
  %v4305 = vpop.f32.mrb[0].mxu0
  %v4306 = vadd.f32 0.0, %v4305
  %v4307 = vpop.f32.mrb[0].mxu0
  %4308 = vmatprep.mubr.f32.mxu0 0.0
  %4309 = vmatmul.mubr.f32.gmra.mrb[0].mxu0 %v4072
  %v4310 = vpop.f32.mrb[0].mxu0
  %v4311 = vadd.f32 0.0, %v4310
  %v4312 = vpop.f32.mrb[0].mxu0
  %4313 = vmatprep.mubr.f32.mxu0 0.0
  %4314 = vmatmul.mubr.f32.gmra.mrb[0].mxu0 %v4073
  %v4315 = vpop.f32.mrb[0].mxu0
  %v4316 = vadd.f32 0.0, %v4315
  %v4317 = vpop.f32.mrb[0].mxu0
  %4318 = vmatprep.mubr.f32.mxu0 0.0
  %4319 = vmatmul.mubr.f32.gmra.mrb[0].mxu0 %v4074
  %v4320 = vpop.f32.mrb[0].mxu0
  %v4321 = vadd.f32 0.0, %v4320
  %v4322 = vpop.f32.mrb[0].mxu0
  %4323 = vmatprep.mubr.f32.mxu0 0.0
  %4324 = vmatmul.mubr.f32.gmra.mrb[0].mxu0 %v4075
  %v4325 = vpop.f32.mrb[0].mxu0
  %v4326 = vadd.f32 0.0, %v4325
  %v4327 = vpop.f32.mrb[0].mxu0
  %4328 = vmatprep.mubr.f32.mxu0 0.0
  %4329 = vmatmul.mubr.f32.gmra.mrb[0].mxu0 %v4076
  %v4330 = vpop.f32.mrb[0].mxu0
  %v4331 = vadd.f32 0.0, %v4330
  %v4332 = vpop.f32.mrb[0].mxu0
  %4333 = vmatprep.mubr.f32.mxu0 0.0
  %4334 = vmatmul.mubr.f32.gmra.mrb[0].mxu0 %v4077
  %v4335 = vpop.f32.mrb[0].mxu0
  %v4336 = vadd.f32 0.0, %v4335
  %v4337 = vpop.f32.mrb[0].mxu0
  %4338 = vmatprep.mubr.f32.mxu0 0.0
  %4339 = vmatmul.mubr.f32.gmra.mrb[0].mxu0 %v4078
  %v4340 = vpop.f32.mrb[0].mxu0
  %v4341 = vadd.f32 0.0, %v4340
  %v4342 = vpop.f32.mrb[0].mxu0
  %4343 = vmatprep.mubr.f32.mxu0 0.0
  %4344 = vmatmul.mubr.f32.gmra.mrb[0].mxu0 %v4079
  %v4345 = vpop.f32.mrb[0].mxu0
  %v4346 = vadd.f32 0.0, %v4345
  %v4347 = vpop.f32.mrb[0].mxu0
  %4348 = vmatprep.mubr.f32.mxu0 0.0
  %4349 = vmatmul.mubr.f32.gmra.mrb[0].mxu0 %v4080
  %v4350 = vpop.f32.mrb[0].mxu0
  %v4351 = vadd.f32 0.0, %v4350
  %v4352 = vpop.f32.mrb[0].mxu0
  %4353 = vmatprep.mubr.f32.mxu0 0.0
  %4354 = vmatmul.mubr.f32.gmra.mrb[0].mxu0 %v4081
  %v4355 = vpop.f32.mrb[0].mxu0
  %v4356 = vadd.f32 0.0, %v4355
  %v4357 = vpop.f32.mrb[0].mxu0
  %4358 = vmatprep.mubr.f32.mxu0 0.0
  %4359 = vmatmul.mubr.f32.gmra.mrb[0].mxu0 %v4082
  %v4360 = vpop.f32.mrb[0].mxu0
  %v4361 = vadd.f32 0.0, %v4360
  %v4362 = vpop.f32.mrb[0].mxu0
  %4363 = vmatprep.mubr.f32.mxu0 0.0
  %4364 = vmatmul.mubr.f32.gmra.mrb[0].mxu0 %v4083
  %v4365 = vpop.f32.mrb[0].mxu0
  %v4366 = vadd.f32 0.0, %v4365
  %v4367 = vpop.f32.mrb[0].mxu0
  %4368 = vmatprep.mubr.f32.mxu0 0.0
  %4369 = vmatmul.mubr.f32.gmra.mrb[0].mxu0 %v4084
  %v4370 = vpop.f32.mrb[0].mxu0
  %v4371 = vadd.f32 0.0, %v4370
  %v4372 = vpop.f32.mrb[0].mxu0
  %4373 = vmatprep.mubr.f32.mxu0 0.0
  %4374 = vmatmul.mubr.f32.gmra.mrb[0].mxu0 %v4085
  %v4375 = vpop.f32.mrb[0].mxu0
  %v4376 = vadd.f32 0.0, %v4375
  %v4377 = vpop.f32.mrb[0].mxu0
  %4378 = vmatprep.mubr.f32.mxu0 0.0
  %4379 = vmatmul.mubr.f32.gmra.mrb[0].mxu0 %v4086
  %v4380 = vpop.f32.mrb[0].mxu0
  %v4381 = vadd.f32 0.0, %v4380
  %v4382 = vpop.f32.mrb[0].mxu0
  %4383 = vmatprep.mubr.f32.mxu0 0.0
  %4384 = vmatmul.mubr.f32.gmra.mrb[0].mxu0 %v4087
  %v4385 = vpop.f32.mrb[0].mxu0
  %v4386 = vadd.f32 0.0, %v4385
  %v4387 = vpop.f32.mrb[0].mxu0
  %4388 = vmatprep.mubr.f32.mxu0 0.0
  %4389 = vmatmul.mubr.f32.gmra.mrb[0].mxu0 %v4088
  %v4390 = vpop.f32.mrb[0].mxu0
  %v4391 = vadd.f32 0.0, %v4390
  %v4392 = vpop.f32.mrb[0].mxu0
  %4393 = vmatprep.mubr.f32.mxu0 0.0
  %4394 = vmatmul.mubr.f32.gmra.mrb[0].mxu0 %v4089
  %v4395 = vpop.f32.mrb[0].mxu0
  %v4396 = vadd.f32 0.0, %v4395
  %v4397 = vpop.f32.mrb[0].mxu0
  %4398 = vmatprep.mubr.f32.mxu0 0.0
  %4399 = vmatmul.mubr.f32.gmra.mrb[0].mxu0 %v4090
  %v4400 = vpop.f32.mrb[0].mxu0
  %v4401 = vadd.f32 0.0, %v4400
  %v4402 = vpop.f32.mrb[0].mxu0
  %4403 = vmatprep.mubr.f32.mxu0 0.0
  %4404 = vmatmul.mubr.f32.gmra.mrb[0].mxu0 %v4091
  %v4405 = vpop.f32.mrb[0].mxu0
  %v4406 = vadd.f32 0.0, %v4405
  %v4407 = vpop.f32.mrb[0].mxu0
  %4408 = vmatprep.mubr.f32.mxu0 0.0
  %4409 = vmatmul.mubr.f32.gmra.mrb[0].mxu0 %v4092
  %v4410 = vpop.f32.mrb[0].mxu0
  %v4411 = vadd.f32 0.0, %v4410
  %v4412 = vpop.f32.mrb[0].mxu0
  %4413 = vmatprep.mubr.f32.mxu0 0.0
  %4414 = vmatmul.mubr.f32.gmra.mrb[0].mxu0 %v4093
  %v4415 = vpop.f32.mrb[0].mxu0
  %v4416 = vadd.f32 0.0, %v4415
  %v4417 = vpop.f32.mrb[0].mxu0
  %4418 = vmatprep.mubr.f32.mxu0 0.0
  %4419 = vmatmul.mubr.f32.gmra.mrb[0].mxu0 %v4094
  %v4420 = vpop.f32.mrb[0].mxu0
  %v4421 = vadd.f32 0.0, %v4420
  %v4422 = vpop.f32.mrb[0].mxu0
  %4423 = vmatprep.mubr.f32.mxu0 0.0
  %4424 = vmatmul.mubr.f32.gmra.mrb[0].mxu0 %v4095
  %v4425 = vpop.f32.mrb[0].mxu0
  %v4426 = vadd.f32 0.0, %v4425
  %v4427 = vpop.f32.mrb[0].mxu0
  %4428 = vmatprep.mubr.f32.mxu0 0.0
  %4429 = vmatmul.mubr.f32.gmra.mrb[0].mxu0 %v4096
  %v4430 = vpop.f32.mrb[0].mxu0
  %v4431 = vadd.f32 0.0, %v4430
  %v4432 = vpop.f32.mrb[0].mxu0
  %4433 = vmatprep.mubr.f32.mxu0 0.0
  %4434 = vmatmul.mubr.f32.gmra.mrb[0].mxu0 %v4097
  %v4435 = vpop.f32.mrb[0].mxu0
  %v4436 = vadd.f32 0.0, %v4435
  %v4437 = vpop.f32.mrb[0].mxu0
  %4438 = vmatprep.mubr.f32.mxu0 0.0
  %4439 = vmatmul.mubr.f32.gmra.mrb[0].mxu0 %v4098
  %v4440 = vpop.f32.mrb[0].mxu0
  %v4441 = vadd.f32 0.0, %v4440
  %v4442 = vpop.f32.mrb[0].mxu0
  %4443 = vmatprep.mubr.f32.mxu0 0.0
  %4444 = vmatmul.mubr.f32.gmra.mrb[0].mxu0 %v4099
  %v4445 = vpop.f32.mrb[0].mxu0
  %v4446 = vadd.f32 0.0, %v4445
  %v4447 = vpop.f32.mrb[0].mxu0
  %4448 = vmatprep.mubr.f32.mxu0 0.0
  %4449 = vmatmul.mubr.f32.gmra.mrb[0].mxu0 %v4100
  %v4450 = vpop.f32.mrb[0].mxu0
  %v4451 = vadd.f32 0.0, %v4450
  %v4452 = vpop.f32.mrb[0].mxu0
  %4453 = vmatprep.mubr.f32.mxu0 0.0
  %4454 = vmatmul.mubr.f32.gmra.mrb[0].mxu0 %v4101
  %v4455 = vpop.f32.mrb[0].mxu0
  %v4456 = vadd.f32 0.0, %v4455
  %v4457 = vpop.f32.mrb[0].mxu0
  %4458 = vmatprep.mubr.f32.mxu0 0.0
  %4459 = vmatmul.mubr.f32.gmra.mrb[0].mxu0 %v4102
  %v4460 = vpop.f32.mrb[0].mxu0
  %v4461 = vadd.f32 0.0, %v4460
  %v4462 = vpop.f32.mrb[0].mxu0
  %4463 = vmatprep.mubr.f32.mxu0 0.0
  %4464 = vmatmul.mubr.f32.gmra.mrb[0].mxu0 %v4103
  %v4465 = vpop.f32.mrb[0].mxu0
  %v4466 = vadd.f32 0.0, %v4465
  %v4467 = vpop.f32.mrb[0].mxu0
  %4468 = vmatprep.mubr.f32.mxu0 0.0
  %4469 = vmatmul.mubr.f32.gmra.mrb[0].mxu0 %v4104
  %v4470 = vpop.f32.mrb[0].mxu0
  %v4471 = vadd.f32 0.0, %v4470
  %v4472 = vpop.f32.mrb[0].mxu0
  %4473 = vmatprep.mubr.f32.mxu0 0.0
  %4474 = vmatmul.mubr.f32.gmra.mrb[0].mxu0 %v4105
  %v4475 = vpop.f32.mrb[0].mxu0
  %v4476 = vadd.f32 0.0, %v4475
  %v4477 = vpop.f32.mrb[0].mxu0
  %4478 = vmatprep.mubr.f32.mxu0 0.0
  %4479 = vmatmul.mubr.f32.gmra.mrb[0].mxu0 %v4106
  %v4480 = vpop.f32.mrb[0].mxu0
  %v4481 = vadd.f32 0.0, %v4480
  %v4482 = vpop.f32.mrb[0].mxu0
  %4483 = vmatprep.mubr.f32.mxu0 0.0
  %4484 = vmatmul.mubr.f32.gmra.mrb[0].mxu0 %v4107
  %v4485 = vpop.f32.mrb[0].mxu0
  %v4486 = vadd.f32 0.0, %v4485
  %v4487 = vpop.f32.mrb[0].mxu0
  %4488 = vmatprep.mubr.f32.mxu0 0.0
  %4489 = vmatmul.mubr.f32.gmra.mrb[0].mxu0 %v4108
  %v4490 = vpop.f32.mrb[0].mxu0
  %v4491 = vadd.f32 0.0, %v4490
  %v4492 = vpop.f32.mrb[0].mxu0
  %4493 = vmatprep.mubr.f32.mxu0 0.0
  %4494 = vmatmul.mubr.f32.gmra.mrb[0].mxu0 %v4109
  %v4495 = vpop.f32.mrb[0].mxu0
  %v4496 = vadd.f32 0.0, %v4495
  %v4497 = vpop.f32.mrb[0].mxu0
  %4498 = vmatprep.mubr.f32.mxu0 0.0
  %4499 = vmatmul.mubr.f32.gmra.mrb[0].mxu0 %v4110
  %v4500 = vpop.f32.mrb[0].mxu0
  %v4501 = vadd.f32 0.0, %v4500
  %v4502 = vpop.f32.mrb[0].mxu0
  %4503 = vmatprep.mubr.f32.mxu0 0.0
  %4504 = vmatmul.mubr.f32.gmra.mrb[0].mxu0 %v4111
  %v4505 = vpop.f32.mrb[0].mxu0
  %v4506 = vadd.f32 0.0, %v4505
  %v4507 = vpop.f32.mrb[0].mxu0
  %4508 = vmatprep.mubr.f32.mxu0 0.0
  %4509 = vmatmul.mubr.f32.gmra.mrb[0].mxu0 %v4112
  %v4510 = vpop.f32.mrb[0].mxu0
  %v4511 = vadd.f32 0.0, %v4510
  %v4512 = vpop.f32.mrb[0].mxu0
  %4513 = vdwg.mxu0
  %v4514 = vadd.f32 %v3985, %v4196
  %v4515 = vadd.f32 %v3986, %v4201
  %v4516 = vadd.f32 %v3987, %v4206
  %v4517 = vadd.f32 %v3988, %v4211
  %v4518 = vadd.f32 %v3989, %v4216
  %v4519 = vadd.f32 %v3990, %v4221
  %v4520 = vadd.f32 %v3991, %v4226
  %v4521 = vadd.f32 %v3992, %v4231
  %v4522 = vadd.f32 %v3993, %v4236
  %v4523 = vadd.f32 %v3994, %v4241
  %v4524 = vadd.f32 %v3995, %v4246
  %v4525 = vadd.f32 %v3996, %v4251
  %v4526 = vadd.f32 %v3997, %v4256
  %v4527 = vadd.f32 %v3998, %v4261
  %v4528 = vadd.f32 %v3999, %v4266
  %v4529 = vadd.f32 %v4000, %v4271
  %v4530 = vadd.f32 %v4001, %v4276
  %v4531 = vadd.f32 %v4002, %v4281
  %v4532 = vadd.f32 %v4003, %v4286
  %v4533 = vadd.f32 %v4004, %v4291
  %v4534 = vadd.f32 %v4005, %v4296
  %v4535 = vadd.f32 %v4006, %v4301
  %v4536 = vadd.f32 %v4007, %v4306
  %v4537 = vadd.f32 %v4008, %v4311
  %v4538 = vadd.f32 %v4009, %v4316
  %v4539 = vadd.f32 %v4010, %v4321
  %v4540 = vadd.f32 %v4011, %v4326
  %v4541 = vadd.f32 %v4012, %v4331
  %v4542 = vadd.f32 %v4013, %v4336
  %v4543 = vadd.f32 %v4014, %v4341
  %v4544 = vadd.f32 %v4015, %v4346
  %v4545 = vadd.f32 %v4016, %v4351
  %v4546 = vadd.f32 %v4017, %v4356
  %v4547 = vadd.f32 %v4018, %v4361
  %v4548 = vadd.f32 %v4019, %v4366
  %v4549 = vadd.f32 %v4020, %v4371
  %v4550 = vadd.f32 %v4021, %v4376
  %v4551 = vadd.f32 %v4022, %v4381
  %v4552 = vadd.f32 %v4023, %v4386
  %v4553 = vadd.f32 %v4024, %v4391
  %v4554 = vadd.f32 %v4025, %v4396
  %v4555 = vadd.f32 %v4026, %v4401
  %v4556 = vadd.f32 %v4027, %v4406
  %v4557 = vadd.f32 %v4028, %v4411
  %v4558 = vadd.f32 %v4029, %v4416
  %v4559 = vadd.f32 %v4030, %v4421
  %v4560 = vadd.f32 %v4031, %v4426
  %v4561 = vadd.f32 %v4032, %v4431
  %v4562 = vadd.f32 %v4033, %v4436
  %v4563 = vadd.f32 %v4034, %v4441
  %v4564 = vadd.f32 %v4035, %v4446
  %v4565 = vadd.f32 %v4036, %v4451
  %v4566 = vadd.f32 %v4037, %v4456
  %v4567 = vadd.f32 %v4038, %v4461
  %v4568 = vadd.f32 %v4039, %v4466
  %v4569 = vadd.f32 %v4040, %v4471
  %v4570 = vadd.f32 %v4041, %v4476
  %v4571 = vadd.f32 %v4042, %v4481
  %v4572 = vadd.f32 %v4043, %v4486
  %v4573 = vadd.f32 %v4044, %v4491
  %v4574 = vadd.f32 %v4045, %v4496
  %v4575 = vadd.f32 %v4046, %v4501
  %v4576 = vadd.f32 %v4047, %v4506
  %v4577 = vadd.f32 %v4048, %v4511
  %v4578 = vld [vmem:[%s3519 + $0x9] sm:$0xff]
  %v4579 = vld [vmem:[%s3519 + $0x11] sm:$0xff]
  %v4580 = vld [vmem:[%s3519 + $0x29] sm:$0xff]
  %v4581 = vld [vmem:[%s3519 + $0x31] sm:$0xff]
  %v4582 = vld [vmem:[%s3519 + $0x49] sm:$0xff]
  %v4583 = vld [vmem:[%s3519 + $0x51] sm:$0xff]
  %v4584 = vld [vmem:[%s3519 + $0x69] sm:$0xff]
  %v4585 = vld [vmem:[%s3519 + $0x71] sm:$0xff]
  %v4586 = vld [vmem:[%s3519 + $0x89] sm:$0xff]
  %v4587 = vld [vmem:[%s3519 + $0x91] sm:$0xff]
  %v4588 = vld [vmem:[%s3519 + $0xa9] sm:$0xff]
  %v4589 = vld [vmem:[%s3519 + $0xb1] sm:$0xff]
  %v4590 = vld [vmem:[%s3519 + $0xc9] sm:$0xff]
  %v4591 = vld [vmem:[%s3519 + $0xd1] sm:$0xff]
  %v4592 = vld [vmem:[%s3519 + $0xe9] sm:$0xff]
  %v4593 = vld [vmem:[%s3519 + $0xf1] sm:$0xff]
  %v4594 = vld [vmem:[%s3519 + $0x109] sm:$0xff]
  %v4595 = vld [vmem:[%s3519 + $0x111] sm:$0xff]
  %v4596 = vld [vmem:[%s3519 + $0x129] sm:$0xff]
  %v4597 = vld [vmem:[%s3519 + $0x131] sm:$0xff]
  %v4598 = vld [vmem:[%s3519 + $0x149] sm:$0xff]
  %v4599 = vld [vmem:[%s3519 + $0x151] sm:$0xff]
  %v4600 = vld [vmem:[%s3519 + $0x169] sm:$0xff]
  %v4601 = vld [vmem:[%s3519 + $0x171] sm:$0xff]
  %v4602 = vld [vmem:[%s3519 + $0x189] sm:$0xff]
  %v4603 = vld [vmem:[%s3519 + $0x191] sm:$0xff]
  %v4604 = vld [vmem:[%s3519 + $0x1a9] sm:$0xff]
  %v4605 = vld [vmem:[%s3519 + $0x1b1] sm:$0xff]
  %v4606 = vld [vmem:[%s3519 + $0x1c9] sm:$0xff]
  %v4607 = vld [vmem:[%s3519 + $0x1d1] sm:$0xff]
  %v4608 = vld [vmem:[%s3519 + $0x1e9] sm:$0xff]
  %v4609 = vld [vmem:[%s3519 + $0x1f1] sm:$0xff]
  %v4610 = vld [vmem:[%s3519 + $0x249] sm:$0xff]
  %v4611 = vld [vmem:[%s3519 + $0x251] sm:$0xff]
  %v4612 = vld [vmem:[%s3519 + $0x269] sm:$0xff]
  %v4613 = vld [vmem:[%s3519 + $0x271] sm:$0xff]
  %v4614 = vld [vmem:[%s3519 + $0x289] sm:$0xff]
  %v4615 = vld [vmem:[%s3519 + $0x291] sm:$0xff]
  %v4616 = vld [vmem:[%s3519 + $0x2a9] sm:$0xff]
  %v4617 = vld [vmem:[%s3519 + $0x2b1] sm:$0xff]
  %v4618 = vld [vmem:[%s3519 + $0x2c9] sm:$0xff]
  %v4619 = vld [vmem:[%s3519 + $0x2d1] sm:$0xff]
  %v4620 = vld [vmem:[%s3519 + $0x2e9] sm:$0xff]
  %v4621 = vld [vmem:[%s3519 + $0x2f1] sm:$0xff]
  %v4622 = vld [vmem:[%s3519 + $0x309] sm:$0xff]
  %v4623 = vld [vmem:[%s3519 + $0x311] sm:$0xff]
  %v4624 = vld [vmem:[%s3519 + $0x329] sm:$0xff]
  %v4625 = vld [vmem:[%s3519 + $0x331] sm:$0xff]
  %v4626 = vld [vmem:[%s3519 + $0x349] sm:$0xff]
  %v4627 = vld [vmem:[%s3519 + $0x351] sm:$0xff]
  %v4628 = vld [vmem:[%s3519 + $0x369] sm:$0xff]
  %v4629 = vld [vmem:[%s3519 + $0x371] sm:$0xff]
  %v4630 = vld [vmem:[%s3519 + $0x389] sm:$0xff]
  %v4631 = vld [vmem:[%s3519 + $0x391] sm:$0xff]
  %v4632 = vld [vmem:[%s3519 + $0x3a9] sm:$0xff]
  %v4633 = vld [vmem:[%s3519 + $0x3b1] sm:$0xff]
  %v4634 = vld [vmem:[%s3519 + $0x3c9] sm:$0xff]
  %v4635 = vld [vmem:[%s3519 + $0x3d1] sm:$0xff]
  %v4636 = vld [vmem:[%s3519 + $0x3e9] sm:$0xff]
  %v4637 = vld [vmem:[%s3519 + $0x3f1] sm:$0xff]
  %v4638 = vld [vmem:[%s3519 + $0x409] sm:$0xff]
  %v4639 = vld [vmem:[%s3519 + $0x411] sm:$0xff]
  %v4640 = vld [vmem:[%s3519 + $0x429] sm:$0xff]
  %v4641 = vld [vmem:[%s3519 + $0x431] sm:$0xff]
  %v4642 = vld [vmem:[#allocation3 + $0x400] sm:$0xff]
  %v4643 = vld [vmem:[#allocation3 + $0x408] sm:$0xff]
  %v4644 = vld [vmem:[#allocation3 + $0x410] sm:$0xff]
  %v4645 = vld [vmem:[#allocation3 + $0x418] sm:$0xff]
  %v4646 = vld [vmem:[#allocation3 + $0x420] sm:$0xff]
  %v4647 = vld [vmem:[#allocation3 + $0x428] sm:$0xff]
  %v4648 = vld [vmem:[#allocation3 + $0x430] sm:$0xff]
  %v4649 = vld [vmem:[#allocation3 + $0x438] sm:$0xff]
  %v4650 = vld [vmem:[#allocation3 + $0x440] sm:$0xff]
  %v4651 = vld [vmem:[#allocation3 + $0x448] sm:$0xff]
  %v4652 = vld [vmem:[#allocation3 + $0x450] sm:$0xff]
  %v4653 = vld [vmem:[#allocation3 + $0x458] sm:$0xff]
  %v4654 = vld [vmem:[#allocation3 + $0x460] sm:$0xff]
  %v4655 = vld [vmem:[#allocation3 + $0x468] sm:$0xff]
  %v4656 = vld [vmem:[#allocation3 + $0x470] sm:$0xff]
  %v4657 = vld [vmem:[#allocation3 + $0x478] sm:$0xff]
  %4658 = vmatprep.subr.mxu0 0.0
  %4659 = vmatpush1.msra.mxu0 %v4642
  %4660 = vmatprep.subr.mxu0 0.0
  %4661 = vmatpush1.msra.mxu0 %v4643
  %4662 = vmatprep.subr.mxu0 0.0
  %4663 = vmatpush1.msra.mxu0 %v4644
  %4664 = vmatprep.subr.mxu0 0.0
  %4665 = vmatpush1.msra.mxu0 %v4645
  %4666 = vmatprep.subr.mxu0 0.0
  %4667 = vmatpush1.msra.mxu0 %v4646
  %4668 = vmatprep.subr.mxu0 0.0
  %4669 = vmatpush1.msra.mxu0 %v4647
  %4670 = vmatprep.subr.mxu0 0.0
  %4671 = vmatpush1.msra.mxu0 %v4648
  %4672 = vmatprep.subr.mxu0 0.0
  %4673 = vmatpush1.msra.mxu0 %v4649
  %4674 = vmatprep.subr.mxu0 0.0
  %4675 = vmatpush1.msra.mxu0 %v4650
  %4676 = vmatprep.subr.mxu0 0.0
  %4677 = vmatpush1.msra.mxu0 %v4651
  %4678 = vmatprep.subr.mxu0 0.0
  %4679 = vmatpush1.msra.mxu0 %v4652
  %4680 = vmatprep.subr.mxu0 0.0
  %4681 = vmatpush1.msra.mxu0 %v4653
  %4682 = vmatprep.subr.mxu0 0.0
  %4683 = vmatpush1.msra.mxu0 %v4654
  %4684 = vmatprep.subr.mxu0 0.0
  %4685 = vmatpush1.msra.mxu0 %v4655
  %4686 = vmatprep.subr.mxu0 0.0
  %4687 = vmatpush1.msra.mxu0 %v4656
  %4688 = vmatprep.subr.mxu0 0.0
  %4689 = vmatpush1.msra.mxu0 %v4657
  %4690 = vmatprep.subr.mxu0 0.0
  %4691 = vmatpush1.msra.mxu0 0.0
  %4692 = vmatprep.subr.mxu0 0.0
  %4693 = vmatpush1.msra.mxu0 0.0
  %4694 = vmatprep.subr.mxu0 0.0
  %4695 = vmatpush1.msra.mxu0 0.0
  %4696 = vmatprep.subr.mxu0 0.0
  %4697 = vmatpush1.msra.mxu0 0.0
  %4698 = vmatprep.subr.mxu0 0.0
  %4699 = vmatpush1.msra.mxu0 0.0
  %4700 = vmatprep.subr.mxu0 0.0
  %4701 = vmatpush1.msra.mxu0 0.0
  %4702 = vmatprep.subr.mxu0 0.0
  %4703 = vmatpush1.msra.mxu0 0.0
  %4704 = vmatprep.subr.mxu0 0.0
  %4705 = vmatpush1.msra.mxu0 0.0
  %4706 = vmatprep.subr.mxu0 0.0
  %4707 = vmatpush1.msra.mxu0 0.0
  %4708 = vmatprep.subr.mxu0 0.0
  %4709 = vmatpush1.msra.mxu0 0.0
  %4710 = vmatprep.subr.mxu0 0.0
  %4711 = vmatpush1.msra.mxu0 0.0
  %4712 = vmatprep.subr.mxu0 0.0
  %4713 = vmatpush1.msra.mxu0 0.0
  %4714 = vmatprep.subr.mxu0 0.0
  %4715 = vmatpush1.msra.mxu0 0.0
  %4716 = vmatprep.subr.mxu0 0.0
  %4717 = vmatpush1.msra.mxu0 0.0
  %4718 = vmatprep.subr.mxu0 0.0
  %4719 = vmatpush1.msra.mxu0 0.0
  %4720 = vmatprep.subr.mxu0 0.0
  %4721 = vmatpush1.msra.mxu0 0.0
  %4722 = vmatprep.mubr.f32.mxu0 0.0
  %4723 = vmatmul.mubr.f32.gmra.mrb[0].mxu0 %v4578
  %v4724 = vpop.f32.mrb[0].mxu0
  %v4725 = vadd.f32 0.0, %v4724
  %v4726 = vpop.f32.mrb[0].mxu0
  %4727 = vmatprep.mubr.f32.mxu0 0.0
  %4728 = vmatmul.mubr.f32.gmra.mrb[0].mxu0 %v4579
  %v4729 = vpop.f32.mrb[0].mxu0
  %v4730 = vadd.f32 0.0, %v4729
  %v4731 = vpop.f32.mrb[0].mxu0
  %4732 = vmatprep.mubr.f32.mxu0 0.0
  %4733 = vmatmul.mubr.f32.gmra.mrb[0].mxu0 %v4580
  %v4734 = vpop.f32.mrb[0].mxu0
  %v4735 = vadd.f32 0.0, %v4734
  %v4736 = vpop.f32.mrb[0].mxu0
  %4737 = vmatprep.mubr.f32.mxu0 0.0
  %4738 = vmatmul.mubr.f32.gmra.mrb[0].mxu0 %v4581
  %v4739 = vpop.f32.mrb[0].mxu0
  %v4740 = vadd.f32 0.0, %v4739
  %v4741 = vpop.f32.mrb[0].mxu0
  %4742 = vmatprep.mubr.f32.mxu0 0.0
  %4743 = vmatmul.mubr.f32.gmra.mrb[0].mxu0 %v4582
  %v4744 = vpop.f32.mrb[0].mxu0
  %v4745 = vadd.f32 0.0, %v4744
  %v4746 = vpop.f32.mrb[0].mxu0
  %4747 = vmatprep.mubr.f32.mxu0 0.0
  %4748 = vmatmul.mubr.f32.gmra.mrb[0].mxu0 %v4583
  %v4749 = vpop.f32.mrb[0].mxu0
  %v4750 = vadd.f32 0.0, %v4749
  %v4751 = vpop.f32.mrb[0].mxu0
  %4752 = vmatprep.mubr.f32.mxu0 0.0
  %4753 = vmatmul.mubr.f32.gmra.mrb[0].mxu0 %v4584
  %v4754 = vpop.f32.mrb[0].mxu0
  %v4755 = vadd.f32 0.0, %v4754
  %v4756 = vpop.f32.mrb[0].mxu0
  %4757 = vmatprep.mubr.f32.mxu0 0.0
  %4758 = vmatmul.mubr.f32.gmra.mrb[0].mxu0 %v4585
  %v4759 = vpop.f32.mrb[0].mxu0
  %v4760 = vadd.f32 0.0, %v4759
  %v4761 = vpop.f32.mrb[0].mxu0
  %4762 = vmatprep.mubr.f32.mxu0 0.0
  %4763 = vmatmul.mubr.f32.gmra.mrb[0].mxu0 %v4586
  %v4764 = vpop.f32.mrb[0].mxu0
  %v4765 = vadd.f32 0.0, %v4764
  %v4766 = vpop.f32.mrb[0].mxu0
  %4767 = vmatprep.mubr.f32.mxu0 0.0
  %4768 = vmatmul.mubr.f32.gmra.mrb[0].mxu0 %v4587
  %v4769 = vpop.f32.mrb[0].mxu0
  %v4770 = vadd.f32 0.0, %v4769
  %v4771 = vpop.f32.mrb[0].mxu0
  %4772 = vmatprep.mubr.f32.mxu0 0.0
  %4773 = vmatmul.mubr.f32.gmra.mrb[0].mxu0 %v4588
  %v4774 = vpop.f32.mrb[0].mxu0
  %v4775 = vadd.f32 0.0, %v4774
  %v4776 = vpop.f32.mrb[0].mxu0
  %4777 = vmatprep.mubr.f32.mxu0 0.0
  %4778 = vmatmul.mubr.f32.gmra.mrb[0].mxu0 %v4589
  %v4779 = vpop.f32.mrb[0].mxu0
  %v4780 = vadd.f32 0.0, %v4779
  %v4781 = vpop.f32.mrb[0].mxu0
  %4782 = vmatprep.mubr.f32.mxu0 0.0
  %4783 = vmatmul.mubr.f32.gmra.mrb[0].mxu0 %v4590
  %v4784 = vpop.f32.mrb[0].mxu0
  %v4785 = vadd.f32 0.0, %v4784
  %v4786 = vpop.f32.mrb[0].mxu0
  %4787 = vmatprep.mubr.f32.mxu0 0.0
  %4788 = vmatmul.mubr.f32.gmra.mrb[0].mxu0 %v4591
  %v4789 = vpop.f32.mrb[0].mxu0
  %v4790 = vadd.f32 0.0, %v4789
  %v4791 = vpop.f32.mrb[0].mxu0
  %4792 = vmatprep.mubr.f32.mxu0 0.0
  %4793 = vmatmul.mubr.f32.gmra.mrb[0].mxu0 %v4592
  %v4794 = vpop.f32.mrb[0].mxu0
  %v4795 = vadd.f32 0.0, %v4794
  %v4796 = vpop.f32.mrb[0].mxu0
  %4797 = vmatprep.mubr.f32.mxu0 0.0
  %4798 = vmatmul.mubr.f32.gmra.mrb[0].mxu0 %v4593
  %v4799 = vpop.f32.mrb[0].mxu0
  %v4800 = vadd.f32 0.0, %v4799
  %v4801 = vpop.f32.mrb[0].mxu0
  %4802 = vmatprep.mubr.f32.mxu0 0.0
  %4803 = vmatmul.mubr.f32.gmra.mrb[0].mxu0 %v4594
  %v4804 = vpop.f32.mrb[0].mxu0
  %v4805 = vadd.f32 0.0, %v4804
  %v4806 = vpop.f32.mrb[0].mxu0
  %4807 = vmatprep.mubr.f32.mxu0 0.0
  %4808 = vmatmul.mubr.f32.gmra.mrb[0].mxu0 %v4595
  %v4809 = vpop.f32.mrb[0].mxu0
  %v4810 = vadd.f32 0.0, %v4809
  %v4811 = vpop.f32.mrb[0].mxu0
  %4812 = vmatprep.mubr.f32.mxu0 0.0
  %4813 = vmatmul.mubr.f32.gmra.mrb[0].mxu0 %v4596
  %v4814 = vpop.f32.mrb[0].mxu0
  %v4815 = vadd.f32 0.0, %v4814
  %v4816 = vpop.f32.mrb[0].mxu0
  %4817 = vmatprep.mubr.f32.mxu0 0.0
  %4818 = vmatmul.mubr.f32.gmra.mrb[0].mxu0 %v4597
  %v4819 = vpop.f32.mrb[0].mxu0
  %v4820 = vadd.f32 0.0, %v4819
  %v4821 = vpop.f32.mrb[0].mxu0
  %4822 = vmatprep.mubr.f32.mxu0 0.0
  %4823 = vmatmul.mubr.f32.gmra.mrb[0].mxu0 %v4598
  %v4824 = vpop.f32.mrb[0].mxu0
  %v4825 = vadd.f32 0.0, %v4824
  %v4826 = vpop.f32.mrb[0].mxu0
  %4827 = vmatprep.mubr.f32.mxu0 0.0
  %4828 = vmatmul.mubr.f32.gmra.mrb[0].mxu0 %v4599
  %v4829 = vpop.f32.mrb[0].mxu0
  %v4830 = vadd.f32 0.0, %v4829
  %v4831 = vpop.f32.mrb[0].mxu0
  %4832 = vmatprep.mubr.f32.mxu0 0.0
  %4833 = vmatmul.mubr.f32.gmra.mrb[0].mxu0 %v4600
  %v4834 = vpop.f32.mrb[0].mxu0
  %v4835 = vadd.f32 0.0, %v4834
  %v4836 = vpop.f32.mrb[0].mxu0
  %4837 = vmatprep.mubr.f32.mxu0 0.0
  %4838 = vmatmul.mubr.f32.gmra.mrb[0].mxu0 %v4601
  %v4839 = vpop.f32.mrb[0].mxu0
  %v4840 = vadd.f32 0.0, %v4839
  %v4841 = vpop.f32.mrb[0].mxu0
  %4842 = vmatprep.mubr.f32.mxu0 0.0
  %4843 = vmatmul.mubr.f32.gmra.mrb[0].mxu0 %v4602
  %v4844 = vpop.f32.mrb[0].mxu0
  %v4845 = vadd.f32 0.0, %v4844
  %v4846 = vpop.f32.mrb[0].mxu0
  %4847 = vmatprep.mubr.f32.mxu0 0.0
  %4848 = vmatmul.mubr.f32.gmra.mrb[0].mxu0 %v4603
  %v4849 = vpop.f32.mrb[0].mxu0
  %v4850 = vadd.f32 0.0, %v4849
  %v4851 = vpop.f32.mrb[0].mxu0
  %4852 = vmatprep.mubr.f32.mxu0 0.0
  %4853 = vmatmul.mubr.f32.gmra.mrb[0].mxu0 %v4604
  %v4854 = vpop.f32.mrb[0].mxu0
  %v4855 = vadd.f32 0.0, %v4854
  %v4856 = vpop.f32.mrb[0].mxu0
  %4857 = vmatprep.mubr.f32.mxu0 0.0
  %4858 = vmatmul.mubr.f32.gmra.mrb[0].mxu0 %v4605
  %v4859 = vpop.f32.mrb[0].mxu0
  %v4860 = vadd.f32 0.0, %v4859
  %v4861 = vpop.f32.mrb[0].mxu0
  %4862 = vmatprep.mubr.f32.mxu0 0.0
  %4863 = vmatmul.mubr.f32.gmra.mrb[0].mxu0 %v4606
  %v4864 = vpop.f32.mrb[0].mxu0
  %v4865 = vadd.f32 0.0, %v4864
  %v4866 = vpop.f32.mrb[0].mxu0
  %4867 = vmatprep.mubr.f32.mxu0 0.0
  %4868 = vmatmul.mubr.f32.gmra.mrb[0].mxu0 %v4607
  %v4869 = vpop.f32.mrb[0].mxu0
  %v4870 = vadd.f32 0.0, %v4869
  %v4871 = vpop.f32.mrb[0].mxu0
  %4872 = vmatprep.mubr.f32.mxu0 0.0
  %4873 = vmatmul.mubr.f32.gmra.mrb[0].mxu0 %v4608
  %v4874 = vpop.f32.mrb[0].mxu0
  %v4875 = vadd.f32 0.0, %v4874
  %v4876 = vpop.f32.mrb[0].mxu0
  %4877 = vmatprep.mubr.f32.mxu0 0.0
  %4878 = vmatmul.mubr.f32.gmra.mrb[0].mxu0 %v4609
  %v4879 = vpop.f32.mrb[0].mxu0
  %v4880 = vadd.f32 0.0, %v4879
  %v4881 = vpop.f32.mrb[0].mxu0
  %4882 = vmatprep.mubr.f32.mxu0 0.0
  %4883 = vmatmul.mubr.f32.gmra.mrb[0].mxu0 %v4610
  %v4884 = vpop.f32.mrb[0].mxu0
  %v4885 = vadd.f32 0.0, %v4884
  %v4886 = vpop.f32.mrb[0].mxu0
  %4887 = vmatprep.mubr.f32.mxu0 0.0
  %4888 = vmatmul.mubr.f32.gmra.mrb[0].mxu0 %v4611
  %v4889 = vpop.f32.mrb[0].mxu0
  %v4890 = vadd.f32 0.0, %v4889
  %v4891 = vpop.f32.mrb[0].mxu0
  %4892 = vmatprep.mubr.f32.mxu0 0.0
  %4893 = vmatmul.mubr.f32.gmra.mrb[0].mxu0 %v4612
  %v4894 = vpop.f32.mrb[0].mxu0
  %v4895 = vadd.f32 0.0, %v4894
  %v4896 = vpop.f32.mrb[0].mxu0
  %4897 = vmatprep.mubr.f32.mxu0 0.0
  %4898 = vmatmul.mubr.f32.gmra.mrb[0].mxu0 %v4613
  %v4899 = vpop.f32.mrb[0].mxu0
  %v4900 = vadd.f32 0.0, %v4899
  %v4901 = vpop.f32.mrb[0].mxu0
  %4902 = vmatprep.mubr.f32.mxu0 0.0
  %4903 = vmatmul.mubr.f32.gmra.mrb[0].mxu0 %v4614
  %v4904 = vpop.f32.mrb[0].mxu0
  %v4905 = vadd.f32 0.0, %v4904
  %v4906 = vpop.f32.mrb[0].mxu0
  %4907 = vmatprep.mubr.f32.mxu0 0.0
  %4908 = vmatmul.mubr.f32.gmra.mrb[0].mxu0 %v4615
  %v4909 = vpop.f32.mrb[0].mxu0
  %v4910 = vadd.f32 0.0, %v4909
  %v4911 = vpop.f32.mrb[0].mxu0
  %4912 = vmatprep.mubr.f32.mxu0 0.0
  %4913 = vmatmul.mubr.f32.gmra.mrb[0].mxu0 %v4616
  %v4914 = vpop.f32.mrb[0].mxu0
  %v4915 = vadd.f32 0.0, %v4914
  %v4916 = vpop.f32.mrb[0].mxu0
  %4917 = vmatprep.mubr.f32.mxu0 0.0
  %4918 = vmatmul.mubr.f32.gmra.mrb[0].mxu0 %v4617
  %v4919 = vpop.f32.mrb[0].mxu0
  %v4920 = vadd.f32 0.0, %v4919
  %v4921 = vpop.f32.mrb[0].mxu0
  %4922 = vmatprep.mubr.f32.mxu0 0.0
  %4923 = vmatmul.mubr.f32.gmra.mrb[0].mxu0 %v4618
  %v4924 = vpop.f32.mrb[0].mxu0
  %v4925 = vadd.f32 0.0, %v4924
  %v4926 = vpop.f32.mrb[0].mxu0
  %4927 = vmatprep.mubr.f32.mxu0 0.0
  %4928 = vmatmul.mubr.f32.gmra.mrb[0].mxu0 %v4619
  %v4929 = vpop.f32.mrb[0].mxu0
  %v4930 = vadd.f32 0.0, %v4929
  %v4931 = vpop.f32.mrb[0].mxu0
  %4932 = vmatprep.mubr.f32.mxu0 0.0
  %4933 = vmatmul.mubr.f32.gmra.mrb[0].mxu0 %v4620
  %v4934 = vpop.f32.mrb[0].mxu0
  %v4935 = vadd.f32 0.0, %v4934
  %v4936 = vpop.f32.mrb[0].mxu0
  %4937 = vmatprep.mubr.f32.mxu0 0.0
  %4938 = vmatmul.mubr.f32.gmra.mrb[0].mxu0 %v4621
  %v4939 = vpop.f32.mrb[0].mxu0
  %v4940 = vadd.f32 0.0, %v4939
  %v4941 = vpop.f32.mrb[0].mxu0
  %4942 = vmatprep.mubr.f32.mxu0 0.0
  %4943 = vmatmul.mubr.f32.gmra.mrb[0].mxu0 %v4622
  %v4944 = vpop.f32.mrb[0].mxu0
  %v4945 = vadd.f32 0.0, %v4944
  %v4946 = vpop.f32.mrb[0].mxu0
  %4947 = vmatprep.mubr.f32.mxu0 0.0
  %4948 = vmatmul.mubr.f32.gmra.mrb[0].mxu0 %v4623
  %v4949 = vpop.f32.mrb[0].mxu0
  %v4950 = vadd.f32 0.0, %v4949
  %v4951 = vpop.f32.mrb[0].mxu0
  %4952 = vmatprep.mubr.f32.mxu0 0.0
  %4953 = vmatmul.mubr.f32.gmra.mrb[0].mxu0 %v4624
  %v4954 = vpop.f32.mrb[0].mxu0
  %v4955 = vadd.f32 0.0, %v4954
  %v4956 = vpop.f32.mrb[0].mxu0
  %4957 = vmatprep.mubr.f32.mxu0 0.0
  %4958 = vmatmul.mubr.f32.gmra.mrb[0].mxu0 %v4625
  %v4959 = vpop.f32.mrb[0].mxu0
  %v4960 = vadd.f32 0.0, %v4959
  %v4961 = vpop.f32.mrb[0].mxu0
  %4962 = vmatprep.mubr.f32.mxu0 0.0
  %4963 = vmatmul.mubr.f32.gmra.mrb[0].mxu0 %v4626
  %v4964 = vpop.f32.mrb[0].mxu0
  %v4965 = vadd.f32 0.0, %v4964
  %v4966 = vpop.f32.mrb[0].mxu0
  %4967 = vmatprep.mubr.f32.mxu0 0.0
  %4968 = vmatmul.mubr.f32.gmra.mrb[0].mxu0 %v4627
  %v4969 = vpop.f32.mrb[0].mxu0
  %v4970 = vadd.f32 0.0, %v4969
  %v4971 = vpop.f32.mrb[0].mxu0
  %4972 = vmatprep.mubr.f32.mxu0 0.0
  %4973 = vmatmul.mubr.f32.gmra.mrb[0].mxu0 %v4628
  %v4974 = vpop.f32.mrb[0].mxu0
  %v4975 = vadd.f32 0.0, %v4974
  %v4976 = vpop.f32.mrb[0].mxu0
  %4977 = vmatprep.mubr.f32.mxu0 0.0
  %4978 = vmatmul.mubr.f32.gmra.mrb[0].mxu0 %v4629
  %v4979 = vpop.f32.mrb[0].mxu0
  %v4980 = vadd.f32 0.0, %v4979
  %v4981 = vpop.f32.mrb[0].mxu0
  %4982 = vmatprep.mubr.f32.mxu0 0.0
  %4983 = vmatmul.mubr.f32.gmra.mrb[0].mxu0 %v4630
  %v4984 = vpop.f32.mrb[0].mxu0
  %v4985 = vadd.f32 0.0, %v4984
  %v4986 = vpop.f32.mrb[0].mxu0
  %4987 = vmatprep.mubr.f32.mxu0 0.0
  %4988 = vmatmul.mubr.f32.gmra.mrb[0].mxu0 %v4631
  %v4989 = vpop.f32.mrb[0].mxu0
  %v4990 = vadd.f32 0.0, %v4989
  %v4991 = vpop.f32.mrb[0].mxu0
  %4992 = vmatprep.mubr.f32.mxu0 0.0
  %4993 = vmatmul.mubr.f32.gmra.mrb[0].mxu0 %v4632
  %v4994 = vpop.f32.mrb[0].mxu0
  %v4995 = vadd.f32 0.0, %v4994
  %v4996 = vpop.f32.mrb[0].mxu0
  %4997 = vmatprep.mubr.f32.mxu0 0.0
  %4998 = vmatmul.mubr.f32.gmra.mrb[0].mxu0 %v4633
  %v4999 = vpop.f32.mrb[0].mxu0
  %v5000 = vadd.f32 0.0, %v4999
  %v5001 = vpop.f32.mrb[0].mxu0
  %5002 = vmatprep.mubr.f32.mxu0 0.0
  %5003 = vmatmul.mubr.f32.gmra.mrb[0].mxu0 %v4634
  %v5004 = vpop.f32.mrb[0].mxu0
  %v5005 = vadd.f32 0.0, %v5004
  %v5006 = vpop.f32.mrb[0].mxu0
  %5007 = vmatprep.mubr.f32.mxu0 0.0
  %5008 = vmatmul.mubr.f32.gmra.mrb[0].mxu0 %v4635
  %v5009 = vpop.f32.mrb[0].mxu0
  %v5010 = vadd.f32 0.0, %v5009
  %v5011 = vpop.f32.mrb[0].mxu0
  %5012 = vmatprep.mubr.f32.mxu0 0.0
  %5013 = vmatmul.mubr.f32.gmra.mrb[0].mxu0 %v4636
  %v5014 = vpop.f32.mrb[0].mxu0
  %v5015 = vadd.f32 0.0, %v5014
  %v5016 = vpop.f32.mrb[0].mxu0
  %5017 = vmatprep.mubr.f32.mxu0 0.0
  %5018 = vmatmul.mubr.f32.gmra.mrb[0].mxu0 %v4637
  %v5019 = vpop.f32.mrb[0].mxu0
  %v5020 = vadd.f32 0.0, %v5019
  %v5021 = vpop.f32.mrb[0].mxu0
  %5022 = vmatprep.mubr.f32.mxu0 0.0
  %5023 = vmatmul.mubr.f32.gmra.mrb[0].mxu0 %v4638
  %v5024 = vpop.f32.mrb[0].mxu0
  %v5025 = vadd.f32 0.0, %v5024
  %v5026 = vpop.f32.mrb[0].mxu0
  %5027 = vmatprep.mubr.f32.mxu0 0.0
  %5028 = vmatmul.mubr.f32.gmra.mrb[0].mxu0 %v4639
  %v5029 = vpop.f32.mrb[0].mxu0
  %v5030 = vadd.f32 0.0, %v5029
  %v5031 = vpop.f32.mrb[0].mxu0
  %5032 = vmatprep.mubr.f32.mxu0 0.0
  %5033 = vmatmul.mubr.f32.gmra.mrb[0].mxu0 %v4640
  %v5034 = vpop.f32.mrb[0].mxu0
  %v5035 = vadd.f32 0.0, %v5034
  %v5036 = vpop.f32.mrb[0].mxu0
  %5037 = vmatprep.mubr.f32.mxu0 0.0
  %5038 = vmatmul.mubr.f32.gmra.mrb[0].mxu0 %v4641
  %v5039 = vpop.f32.mrb[0].mxu0
  %v5040 = vadd.f32 0.0, %v5039
  %v5041 = vpop.f32.mrb[0].mxu0
  %5042 = vdwg.mxu0
  %v5043 = vadd.f32 %v4514, %v4725
  %v5044 = vadd.f32 %v4515, %v4730
  %v5045 = vadd.f32 %v4516, %v4735
  %v5046 = vadd.f32 %v4517, %v4740
  %v5047 = vadd.f32 %v4518, %v4745
  %v5048 = vadd.f32 %v4519, %v4750
  %v5049 = vadd.f32 %v4520, %v4755
  %v5050 = vadd.f32 %v4521, %v4760
  %v5051 = vadd.f32 %v4522, %v4765
  %v5052 = vadd.f32 %v4523, %v4770
  %v5053 = vadd.f32 %v4524, %v4775
  %v5054 = vadd.f32 %v4525, %v4780
  %v5055 = vadd.f32 %v4526, %v4785
  %v5056 = vadd.f32 %v4527, %v4790
  %v5057 = vadd.f32 %v4528, %v4795
  %v5058 = vadd.f32 %v4529, %v4800
  %v5059 = vadd.f32 %v4530, %v4805
  %v5060 = vadd.f32 %v4531, %v4810
  %v5061 = vadd.f32 %v4532, %v4815
  %v5062 = vadd.f32 %v4533, %v4820
  %v5063 = vadd.f32 %v4534, %v4825
  %v5064 = vadd.f32 %v4535, %v4830
  %v5065 = vadd.f32 %v4536, %v4835
  %v5066 = vadd.f32 %v4537, %v4840
  %v5067 = vadd.f32 %v4538, %v4845
  %v5068 = vadd.f32 %v4539, %v4850
  %v5069 = vadd.f32 %v4540, %v4855
  %v5070 = vadd.f32 %v4541, %v4860
  %v5071 = vadd.f32 %v4542, %v4865
  %v5072 = vadd.f32 %v4543, %v4870
  %v5073 = vadd.f32 %v4544, %v4875
  %v5074 = vadd.f32 %v4545, %v4880
  %v5075 = vadd.f32 %v4546, %v4885
  %v5076 = vadd.f32 %v4547, %v4890
  %v5077 = vadd.f32 %v4548, %v4895
  %v5078 = vadd.f32 %v4549, %v4900
  %v5079 = vadd.f32 %v4550, %v4905
  %v5080 = vadd.f32 %v4551, %v4910
  %v5081 = vadd.f32 %v4552, %v4915
  %v5082 = vadd.f32 %v4553, %v4920
  %v5083 = vadd.f32 %v4554, %v4925
  %v5084 = vadd.f32 %v4555, %v4930
  %v5085 = vadd.f32 %v4556, %v4935
  %v5086 = vadd.f32 %v4557, %v4940
  %v5087 = vadd.f32 %v4558, %v4945
  %v5088 = vadd.f32 %v4559, %v4950
  %v5089 = vadd.f32 %v4560, %v4955
  %v5090 = vadd.f32 %v4561, %v4960
  %v5091 = vadd.f32 %v4562, %v4965
  %v5092 = vadd.f32 %v4563, %v4970
  %v5093 = vadd.f32 %v4564, %v4975
  %v5094 = vadd.f32 %v4565, %v4980
  %v5095 = vadd.f32 %v4566, %v4985
  %v5096 = vadd.f32 %v4567, %v4990
  %v5097 = vadd.f32 %v4568, %v4995
  %v5098 = vadd.f32 %v4569, %v5000
  %v5099 = vadd.f32 %v4570, %v5005
  %v5100 = vadd.f32 %v4571, %v5010
  %v5101 = vadd.f32 %v4572, %v5015
  %v5102 = vadd.f32 %v4573, %v5020
  %v5103 = vadd.f32 %v4574, %v5025
  %v5104 = vadd.f32 %v4575, %v5030
  %v5105 = vadd.f32 %v4576, %v5035
  %v5106 = vadd.f32 %v4577, %v5040
  %v5107 = vadd.f32 %v5043, %v5044
  %v5108 = vadd.f32 %v5107, %v5045
  %v5109 = vadd.f32 %v5108, %v5046
  %v5110 = vadd.f32 %v5109, %v5047
  %v5111 = vadd.f32 %v5110, %v5048
  %v5112 = vadd.f32 %v5111, %v5049
  %v5113 = vadd.f32 %v5112, %v5050
  %v5114 = vadd.f32 %v5113, %v5051
  %v5115 = vadd.f32 %v5114, %v5052
  %v5116 = vadd.f32 %v5115, %v5053
  %v5117 = vadd.f32 %v5116, %v5054
  %v5118 = vadd.f32 %v5117, %v5055
  %v5119 = vadd.f32 %v5118, %v5056
  %v5120 = vadd.f32 %v5119, %v5057
  %v5121 = vadd.f32 %v5120, %v5058
  %v5122 = vadd.f32 %v5121, %v5059
  %v5123 = vadd.f32 %v5122, %v5060
  %v5124 = vadd.f32 %v5123, %v5061
  %v5125 = vadd.f32 %v5124, %v5062
  %v5126 = vadd.f32 %v5125, %v5063
  %v5127 = vadd.f32 %v5126, %v5064
  %v5128 = vadd.f32 %v5127, %v5065
  %v5129 = vadd.f32 %v5128, %v5066
  %v5130 = vadd.f32 %v5129, %v5067
  %v5131 = vadd.f32 %v5130, %v5068
  %v5132 = vadd.f32 %v5131, %v5069
  %v5133 = vadd.f32 %v5132, %v5070
  %v5134 = vadd.f32 %v5133, %v5071
  %v5135 = vadd.f32 %v5134, %v5072
  %v5136 = vadd.f32 %v5135, %v5073
  %v5137 = vadd.f32 %v5136, %v5074
  %v5138 = vadd.f32 %v5137, %v5075
  %v5139 = vadd.f32 %v5138, %v5076
  %v5140 = vadd.f32 %v5139, %v5077
  %v5141 = vadd.f32 %v5140, %v5078
  %v5142 = vadd.f32 %v5141, %v5079
  %v5143 = vadd.f32 %v5142, %v5080
  %v5144 = vadd.f32 %v5143, %v5081
  %v5145 = vadd.f32 %v5144, %v5082
  %v5146 = vadd.f32 %v5145, %v5083
  %v5147 = vadd.f32 %v5146, %v5084
  %v5148 = vadd.f32 %v5147, %v5085
  %v5149 = vadd.f32 %v5148, %v5086
  %v5150 = vadd.f32 %v5149, %v5087
  %v5151 = vadd.f32 %v5150, %v5088
  %v5152 = vadd.f32 %v5151, %v5089
  %v5153 = vadd.f32 %v5152, %v5090
  %v5154 = vadd.f32 %v5153, %v5091
  %v5155 = vadd.f32 %v5154, %v5092
  %v5156 = vadd.f32 %v5155, %v5093
  %v5157 = vadd.f32 %v5156, %v5094
  %v5158 = vadd.f32 %v5157, %v5095
  %v5159 = vadd.f32 %v5158, %v5096
  %v5160 = vadd.f32 %v5159, %v5097
  %v5161 = vadd.f32 %v5160, %v5098
  %v5162 = vadd.f32 %v5161, %v5099
  %v5163 = vadd.f32 %v5162, %v5100
  %v5164 = vadd.f32 %v5163, %v5101
  %v5165 = vadd.f32 %v5164, %v5102
  %v5166 = vadd.f32 %v5165, %v5103
  %v5167 = vadd.f32 %v5166, %v5104
  %v5168 = vadd.f32 %v5167, %v5105
  %v5169 = vadd.f32 %v5168, %v5106
  %v5170 = vrot.slane %v5169, 4
  %v5171 = vadd.f32 %v5169, %v5170
  %v5172 = vrot.slane %v5171, 2
  %v5173 = vadd.f32 %v5171, %v5172
  %v5174 = vrot.slane %v5173, 1
  %v5175 = vadd.f32 %v5173, %v5174
  %v5176 = vrcp.pop 512.0
  %v5177 = vmul.f32 %v5175, %v5176
  %v5178 = vsub.f32 %v5043, %v5177
  %v5179 = vsub.f32 %v5044, %v5177
  %v5180 = vsub.f32 %v5045, %v5177
  %v5181 = vsub.f32 %v5046, %v5177
  %v5182 = vsub.f32 %v5047, %v5177
  %v5183 = vsub.f32 %v5048, %v5177
  %v5184 = vsub.f32 %v5049, %v5177
  %v5185 = vsub.f32 %v5050, %v5177
  %v5186 = vsub.f32 %v5051, %v5177
  %v5187 = vsub.f32 %v5052, %v5177
  %v5188 = vsub.f32 %v5053, %v5177
  %v5189 = vsub.f32 %v5054, %v5177
  %v5190 = vsub.f32 %v5055, %v5177
  %v5191 = vsub.f32 %v5056, %v5177
  %v5192 = vsub.f32 %v5057, %v5177
  %v5193 = vsub.f32 %v5058, %v5177
  %v5194 = vsub.f32 %v5059, %v5177
  %v5195 = vsub.f32 %v5060, %v5177
  %v5196 = vsub.f32 %v5061, %v5177
  %v5197 = vsub.f32 %v5062, %v5177
  %v5198 = vsub.f32 %v5063, %v5177
  %v5199 = vsub.f32 %v5064, %v5177
  %v5200 = vsub.f32 %v5065, %v5177
  %v5201 = vsub.f32 %v5066, %v5177
  %v5202 = vsub.f32 %v5067, %v5177
  %v5203 = vsub.f32 %v5068, %v5177
  %v5204 = vsub.f32 %v5069, %v5177
  %v5205 = vsub.f32 %v5070, %v5177
  %v5206 = vsub.f32 %v5071, %v5177
  %v5207 = vsub.f32 %v5072, %v5177
  %v5208 = vsub.f32 %v5073, %v5177
  %v5209 = vsub.f32 %v5074, %v5177
  %v5210 = vsub.f32 %v5075, %v5177
  %v5211 = vsub.f32 %v5076, %v5177
  %v5212 = vsub.f32 %v5077, %v5177
  %v5213 = vsub.f32 %v5078, %v5177
  %v5214 = vsub.f32 %v5079, %v5177
  %v5215 = vsub.f32 %v5080, %v5177
  %v5216 = vsub.f32 %v5081, %v5177
  %v5217 = vsub.f32 %v5082, %v5177
  %v5218 = vsub.f32 %v5083, %v5177
  %v5219 = vsub.f32 %v5084, %v5177
  %v5220 = vsub.f32 %v5085, %v5177
  %v5221 = vsub.f32 %v5086, %v5177
  %v5222 = vsub.f32 %v5087, %v5177
  %v5223 = vsub.f32 %v5088, %v5177
  %v5224 = vsub.f32 %v5089, %v5177
  %v5225 = vsub.f32 %v5090, %v5177
  %v5226 = vsub.f32 %v5091, %v5177
  %v5227 = vsub.f32 %v5092, %v5177
  %v5228 = vsub.f32 %v5093, %v5177
  %v5229 = vsub.f32 %v5094, %v5177
  %v5230 = vsub.f32 %v5095, %v5177
  %v5231 = vsub.f32 %v5096, %v5177
  %v5232 = vsub.f32 %v5097, %v5177
  %v5233 = vsub.f32 %v5098, %v5177
  %v5234 = vsub.f32 %v5099, %v5177
  %v5235 = vsub.f32 %v5100, %v5177
  %v5236 = vsub.f32 %v5101, %v5177
  %v5237 = vsub.f32 %v5102, %v5177
  %v5238 = vsub.f32 %v5103, %v5177
  %v5239 = vsub.f32 %v5104, %v5177
  %v5240 = vsub.f32 %v5105, %v5177
  %v5241 = vsub.f32 %v5106, %v5177
  %v5242 = vmul.f32 %v5178, %v5178
  %v5243 = vmul.f32 %v5179, %v5179
  %v5244 = vmul.f32 %v5180, %v5180
  %v5245 = vmul.f32 %v5181, %v5181
  %v5246 = vmul.f32 %v5182, %v5182
  %v5247 = vmul.f32 %v5183, %v5183
  %v5248 = vmul.f32 %v5184, %v5184
  %v5249 = vmul.f32 %v5185, %v5185
  %v5250 = vmul.f32 %v5186, %v5186
  %v5251 = vmul.f32 %v5187, %v5187
  %v5252 = vmul.f32 %v5188, %v5188
  %v5253 = vmul.f32 %v5189, %v5189
  %v5254 = vmul.f32 %v5190, %v5190
  %v5255 = vmul.f32 %v5191, %v5191
  %v5256 = vmul.f32 %v5192, %v5192
  %v5257 = vmul.f32 %v5193, %v5193
  %v5258 = vmul.f32 %v5194, %v5194
  %v5259 = vmul.f32 %v5195, %v5195
  %v5260 = vmul.f32 %v5196, %v5196
  %v5261 = vmul.f32 %v5197, %v5197
  %v5262 = vmul.f32 %v5198, %v5198
  %v5263 = vmul.f32 %v5199, %v5199
  %v5264 = vmul.f32 %v5200, %v5200
  %v5265 = vmul.f32 %v5201, %v5201
  %v5266 = vmul.f32 %v5202, %v5202
  %v5267 = vmul.f32 %v5203, %v5203
  %v5268 = vmul.f32 %v5204, %v5204
  %v5269 = vmul.f32 %v5205, %v5205
  %v5270 = vmul.f32 %v5206, %v5206
  %v5271 = vmul.f32 %v5207, %v5207
  %v5272 = vmul.f32 %v5208, %v5208
  %v5273 = vmul.f32 %v5209, %v5209
  %v5274 = vmul.f32 %v5210, %v5210
  %v5275 = vmul.f32 %v5211, %v5211
  %v5276 = vmul.f32 %v5212, %v5212
  %v5277 = vmul.f32 %v5213, %v5213
  %v5278 = vmul.f32 %v5214, %v5214
  %v5279 = vmul.f32 %v5215, %v5215
  %v5280 = vmul.f32 %v5216, %v5216
  %v5281 = vmul.f32 %v5217, %v5217
  %v5282 = vmul.f32 %v5218, %v5218
  %v5283 = vmul.f32 %v5219, %v5219
  %v5284 = vmul.f32 %v5220, %v5220
  %v5285 = vmul.f32 %v5221, %v5221
  %v5286 = vmul.f32 %v5222, %v5222
  %v5287 = vmul.f32 %v5223, %v5223
  %v5288 = vmul.f32 %v5224, %v5224
  %v5289 = vmul.f32 %v5225, %v5225
  %v5290 = vmul.f32 %v5226, %v5226
  %v5291 = vmul.f32 %v5227, %v5227
  %v5292 = vmul.f32 %v5228, %v5228
  %v5293 = vmul.f32 %v5229, %v5229
  %v5294 = vmul.f32 %v5230, %v5230
  %v5295 = vmul.f32 %v5231, %v5231
  %v5296 = vmul.f32 %v5232, %v5232
  %v5297 = vmul.f32 %v5233, %v5233
  %v5298 = vmul.f32 %v5234, %v5234
  %v5299 = vmul.f32 %v5235, %v5235
  %v5300 = vmul.f32 %v5236, %v5236
  %v5301 = vmul.f32 %v5237, %v5237
  %v5302 = vmul.f32 %v5238, %v5238
  %v5303 = vmul.f32 %v5239, %v5239
  %v5304 = vmul.f32 %v5240, %v5240
  %v5305 = vmul.f32 %v5241, %v5241
  %v5306 = vadd.f32 %v5242, %v5243
  %v5307 = vadd.f32 %v5306, %v5244
  %v5308 = vadd.f32 %v5307, %v5245
  %v5309 = vadd.f32 %v5308, %v5246
  %v5310 = vadd.f32 %v5309, %v5247
  %v5311 = vadd.f32 %v5310, %v5248
  %v5312 = vadd.f32 %v5311, %v5249
  %v5313 = vadd.f32 %v5312, %v5250
  %v5314 = vadd.f32 %v5313, %v5251
  %v5315 = vadd.f32 %v5314, %v5252
  %v5316 = vadd.f32 %v5315, %v5253
  %v5317 = vadd.f32 %v5316, %v5254
  %v5318 = vadd.f32 %v5317, %v5255
  %v5319 = vadd.f32 %v5318, %v5256
  %v5320 = vadd.f32 %v5319, %v5257
  %v5321 = vadd.f32 %v5320, %v5258
  %v5322 = vadd.f32 %v5321, %v5259
  %v5323 = vadd.f32 %v5322, %v5260
  %v5324 = vadd.f32 %v5323, %v5261
  %v5325 = vadd.f32 %v5324, %v5262
  %v5326 = vadd.f32 %v5325, %v5263
  %v5327 = vadd.f32 %v5326, %v5264
  %v5328 = vadd.f32 %v5327, %v5265
  %v5329 = vadd.f32 %v5328, %v5266
  %v5330 = vadd.f32 %v5329, %v5267
  %v5331 = vadd.f32 %v5330, %v5268
  %v5332 = vadd.f32 %v5331, %v5269
  %v5333 = vadd.f32 %v5332, %v5270
  %v5334 = vadd.f32 %v5333, %v5271
  %v5335 = vadd.f32 %v5334, %v5272
  %v5336 = vadd.f32 %v5335, %v5273
  %v5337 = vadd.f32 %v5336, %v5274
  %v5338 = vadd.f32 %v5337, %v5275
  %v5339 = vadd.f32 %v5338, %v5276
  %v5340 = vadd.f32 %v5339, %v5277
  %v5341 = vadd.f32 %v5340, %v5278
  %v5342 = vadd.f32 %v5341, %v5279
  %v5343 = vadd.f32 %v5342, %v5280
  %v5344 = vadd.f32 %v5343, %v5281
  %v5345 = vadd.f32 %v5344, %v5282
  %v5346 = vadd.f32 %v5345, %v5283
  %v5347 = vadd.f32 %v5346, %v5284
  %v5348 = vadd.f32 %v5347, %v5285
  %v5349 = vadd.f32 %v5348, %v5286
  %v5350 = vadd.f32 %v5349, %v5287
  %v5351 = vadd.f32 %v5350, %v5288
  %v5352 = vadd.f32 %v5351, %v5289
  %v5353 = vadd.f32 %v5352, %v5290
  %v5354 = vadd.f32 %v5353, %v5291
  %v5355 = vadd.f32 %v5354, %v5292
  %v5356 = vadd.f32 %v5355, %v5293
  %v5357 = vadd.f32 %v5356, %v5294
  %v5358 = vadd.f32 %v5357, %v5295
  %v5359 = vadd.f32 %v5358, %v5296
  %v5360 = vadd.f32 %v5359, %v5297
  %v5361 = vadd.f32 %v5360, %v5298
  %v5362 = vadd.f32 %v5361, %v5299
  %v5363 = vadd.f32 %v5362, %v5300
  %v5364 = vadd.f32 %v5363, %v5301
  %v5365 = vadd.f32 %v5364, %v5302
  %v5366 = vadd.f32 %v5365, %v5303
  %v5367 = vadd.f32 %v5366, %v5304
  %v5368 = vadd.f32 %v5367, %v5305
  %v5369 = vrot.slane %v5368, 4
  %v5370 = vadd.f32 %v5368, %v5369
  %v5371 = vrot.slane %v5370, 2
  %v5372 = vadd.f32 %v5370, %v5371
  %v5373 = vrot.slane %v5372, 1
  %v5374 = vadd.f32 %v5372, %v5373
  %v5375 = vmul.f32 %v5374, %v5176
  %v5376 = vadd.f32 %v5375, 1e-05
  %v5377 = vrsqrt.pop %v5376
  %v5378 = vmul.f32 %v471, %v5377
  %v5379 = vmul.f32 %v5177, %v5378
  %v5380 = vsub.f32 %v472, %v5379
  %v5382 = vlaneseq
  %v5383 = vshrl.u32 %v5382, 7
  %v5384 = vsub.s32 0, %v5383
  %v5385 = vrot.slane %v5378, %v5384
  %v5387 = vmul.f32 %v5043, %v5385
  %v5388 = vmul.f32 %v5044, %v5385
  %v5389 = vmul.f32 %v5045, %v5385
  %v5390 = vmul.f32 %v5046, %v5385
  %v5391 = vmul.f32 %v5047, %v5385
  %v5392 = vmul.f32 %v5048, %v5385
  %v5393 = vmul.f32 %v5049, %v5385
  %v5394 = vmul.f32 %v5050, %v5385
  %v5395 = vmul.f32 %v5051, %v5385
  %v5396 = vmul.f32 %v5052, %v5385
  %v5397 = vmul.f32 %v5053, %v5385
  %v5398 = vmul.f32 %v5054, %v5385
  %v5399 = vmul.f32 %v5055, %v5385
  %v5400 = vmul.f32 %v5056, %v5385
  %v5401 = vmul.f32 %v5057, %v5385
  %v5402 = vmul.f32 %v5058, %v5385
  %v5403 = vmul.f32 %v5059, %v5385
  %v5404 = vmul.f32 %v5060, %v5385
  %v5405 = vmul.f32 %v5061, %v5385
  %v5406 = vmul.f32 %v5062, %v5385
  %v5407 = vmul.f32 %v5063, %v5385
  %v5408 = vmul.f32 %v5064, %v5385
  %v5409 = vmul.f32 %v5065, %v5385
  %v5410 = vmul.f32 %v5066, %v5385
  %v5411 = vmul.f32 %v5067, %v5385
  %v5412 = vmul.f32 %v5068, %v5385
  %v5413 = vmul.f32 %v5069, %v5385
  %v5414 = vmul.f32 %v5070, %v5385
  %v5415 = vmul.f32 %v5071, %v5385
  %v5416 = vmul.f32 %v5072, %v5385
  %v5417 = vmul.f32 %v5073, %v5385
  %v5418 = vmul.f32 %v5074, %v5385
  %v5419 = vmul.f32 %v5075, %v5385
  %v5420 = vmul.f32 %v5076, %v5385
  %v5421 = vmul.f32 %v5077, %v5385
  %v5422 = vmul.f32 %v5078, %v5385
  %v5423 = vmul.f32 %v5079, %v5385
  %v5424 = vmul.f32 %v5080, %v5385
  %v5425 = vmul.f32 %v5081, %v5385
  %v5426 = vmul.f32 %v5082, %v5385
  %v5427 = vmul.f32 %v5083, %v5385
  %v5428 = vmul.f32 %v5084, %v5385
  %v5429 = vmul.f32 %v5085, %v5385
  %v5430 = vmul.f32 %v5086, %v5385
  %v5431 = vmul.f32 %v5087, %v5385
  %v5432 = vmul.f32 %v5088, %v5385
  %v5433 = vmul.f32 %v5089, %v5385
  %v5434 = vmul.f32 %v5090, %v5385
  %v5435 = vmul.f32 %v5091, %v5385
  %v5436 = vmul.f32 %v5092, %v5385
  %v5437 = vmul.f32 %v5093, %v5385
  %v5438 = vmul.f32 %v5094, %v5385
  %v5439 = vmul.f32 %v5095, %v5385
  %v5440 = vmul.f32 %v5096, %v5385
  %v5441 = vmul.f32 %v5097, %v5385
  %v5442 = vmul.f32 %v5098, %v5385
  %v5443 = vmul.f32 %v5099, %v5385
  %v5444 = vmul.f32 %v5100, %v5385
  %v5445 = vmul.f32 %v5101, %v5385
  %v5446 = vmul.f32 %v5102, %v5385
  %v5447 = vmul.f32 %v5103, %v5385
  %v5448 = vmul.f32 %v5104, %v5385
  %v5449 = vmul.f32 %v5105, %v5385
  %v5450 = vmul.f32 %v5106, %v5385
  %v5452 = vlaneseq
  %v5453 = vshrl.u32 %v5452, 7
  %v5454 = vsub.s32 0, %v5453
  %v5455 = vrot.slane %v5380, %v5454
  %v5457 = vadd.f32 %v5387, %v5455
  %v5458 = vadd.f32 %v5388, %v5455
  %v5459 = vadd.f32 %v5389, %v5455
  %v5460 = vadd.f32 %v5390, %v5455
  %v5461 = vadd.f32 %v5391, %v5455
  %v5462 = vadd.f32 %v5392, %v5455
  %v5463 = vadd.f32 %v5393, %v5455
  %v5464 = vadd.f32 %v5394, %v5455
  %v5465 = vadd.f32 %v5395, %v5455
  %v5466 = vadd.f32 %v5396, %v5455
  %v5467 = vadd.f32 %v5397, %v5455
  %v5468 = vadd.f32 %v5398, %v5455
  %v5469 = vadd.f32 %v5399, %v5455
  %v5470 = vadd.f32 %v5400, %v5455
  %v5471 = vadd.f32 %v5401, %v5455
  %v5472 = vadd.f32 %v5402, %v5455
  %v5473 = vadd.f32 %v5403, %v5455
  %v5474 = vadd.f32 %v5404, %v5455
  %v5475 = vadd.f32 %v5405, %v5455
  %v5476 = vadd.f32 %v5406, %v5455
  %v5477 = vadd.f32 %v5407, %v5455
  %v5478 = vadd.f32 %v5408, %v5455
  %v5479 = vadd.f32 %v5409, %v5455
  %v5480 = vadd.f32 %v5410, %v5455
  %v5481 = vadd.f32 %v5411, %v5455
  %v5482 = vadd.f32 %v5412, %v5455
  %v5483 = vadd.f32 %v5413, %v5455
  %v5484 = vadd.f32 %v5414, %v5455
  %v5485 = vadd.f32 %v5415, %v5455
  %v5486 = vadd.f32 %v5416, %v5455
  %v5487 = vadd.f32 %v5417, %v5455
  %v5488 = vadd.f32 %v5418, %v5455
  %v5489 = vadd.f32 %v5419, %v5455
  %v5490 = vadd.f32 %v5420, %v5455
  %v5491 = vadd.f32 %v5421, %v5455
  %v5492 = vadd.f32 %v5422, %v5455
  %v5493 = vadd.f32 %v5423, %v5455
  %v5494 = vadd.f32 %v5424, %v5455
  %v5495 = vadd.f32 %v5425, %v5455
  %v5496 = vadd.f32 %v5426, %v5455
  %v5497 = vadd.f32 %v5427, %v5455
  %v5498 = vadd.f32 %v5428, %v5455
  %v5499 = vadd.f32 %v5429, %v5455
  %v5500 = vadd.f32 %v5430, %v5455
  %v5501 = vadd.f32 %v5431, %v5455
  %v5502 = vadd.f32 %v5432, %v5455
  %v5503 = vadd.f32 %v5433, %v5455
  %v5504 = vadd.f32 %v5434, %v5455
  %v5505 = vadd.f32 %v5435, %v5455
  %v5506 = vadd.f32 %v5436, %v5455
  %v5507 = vadd.f32 %v5437, %v5455
  %v5508 = vadd.f32 %v5438, %v5455
  %v5509 = vadd.f32 %v5439, %v5455
  %v5510 = vadd.f32 %v5440, %v5455
  %v5511 = vadd.f32 %v5441, %v5455
  %v5512 = vadd.f32 %v5442, %v5455
  %v5513 = vadd.f32 %v5443, %v5455
  %v5514 = vadd.f32 %v5444, %v5455
  %v5515 = vadd.f32 %v5445, %v5455
  %v5516 = vadd.f32 %v5446, %v5455
  %v5517 = vadd.f32 %v5447, %v5455
  %v5518 = vadd.f32 %v5448, %v5455
  %v5519 = vadd.f32 %v5449, %v5455
  %v5520 = vadd.f32 %v5450, %v5455
  %v5521 = vmax.f32 %v5457, 0.0
  %v5522 = vmax.f32 %v5458, 0.0
  %v5523 = vmax.f32 %v5459, 0.0
  %v5524 = vmax.f32 %v5460, 0.0
  %v5525 = vmax.f32 %v5461, 0.0
  %v5526 = vmax.f32 %v5462, 0.0
  %v5527 = vmax.f32 %v5463, 0.0
  %v5528 = vmax.f32 %v5464, 0.0
  %v5529 = vmax.f32 %v5465, 0.0
  %v5530 = vmax.f32 %v5466, 0.0
  %v5531 = vmax.f32 %v5467, 0.0
  %v5532 = vmax.f32 %v5468, 0.0
  %v5533 = vmax.f32 %v5469, 0.0
  %v5534 = vmax.f32 %v5470, 0.0
  %v5535 = vmax.f32 %v5471, 0.0
  %v5536 = vmax.f32 %v5472, 0.0
  %v5537 = vmax.f32 %v5473, 0.0
  %v5538 = vmax.f32 %v5474, 0.0
  %v5539 = vmax.f32 %v5475, 0.0
  %v5540 = vmax.f32 %v5476, 0.0
  %v5541 = vmax.f32 %v5477, 0.0
  %v5542 = vmax.f32 %v5478, 0.0
  %v5543 = vmax.f32 %v5479, 0.0
  %v5544 = vmax.f32 %v5480, 0.0
  %v5545 = vmax.f32 %v5481, 0.0
  %v5546 = vmax.f32 %v5482, 0.0
  %v5547 = vmax.f32 %v5483, 0.0
  %v5548 = vmax.f32 %v5484, 0.0
  %v5549 = vmax.f32 %v5485, 0.0
  %v5550 = vmax.f32 %v5486, 0.0
  %v5551 = vmax.f32 %v5487, 0.0
  %v5552 = vmax.f32 %v5488, 0.0
  %v5553 = vmax.f32 %v5489, 0.0
  %v5554 = vmax.f32 %v5490, 0.0
  %v5555 = vmax.f32 %v5491, 0.0
  %v5556 = vmax.f32 %v5492, 0.0
  %v5557 = vmax.f32 %v5493, 0.0
  %v5558 = vmax.f32 %v5494, 0.0
  %v5559 = vmax.f32 %v5495, 0.0
  %v5560 = vmax.f32 %v5496, 0.0
  %v5561 = vmax.f32 %v5497, 0.0
  %v5562 = vmax.f32 %v5498, 0.0
  %v5563 = vmax.f32 %v5499, 0.0
  %v5564 = vmax.f32 %v5500, 0.0
  %v5565 = vmax.f32 %v5501, 0.0
  %v5566 = vmax.f32 %v5502, 0.0
  %v5567 = vmax.f32 %v5503, 0.0
  %v5568 = vmax.f32 %v5504, 0.0
  %v5569 = vmax.f32 %v5505, 0.0
  %v5570 = vmax.f32 %v5506, 0.0
  %v5571 = vmax.f32 %v5507, 0.0
  %v5572 = vmax.f32 %v5508, 0.0
  %v5573 = vmax.f32 %v5509, 0.0
  %v5574 = vmax.f32 %v5510, 0.0
  %v5575 = vmax.f32 %v5511, 0.0
  %v5576 = vmax.f32 %v5512, 0.0
  %v5577 = vmax.f32 %v5513, 0.0
  %v5578 = vmax.f32 %v5514, 0.0
  %v5579 = vmax.f32 %v5515, 0.0
  %v5580 = vmax.f32 %v5516, 0.0
  %v5581 = vmax.f32 %v5517, 0.0
  %v5582 = vmax.f32 %v5518, 0.0
  %v5583 = vmax.f32 %v5519, 0.0
  %v5584 = vmax.f32 %v5520, 0.0
  %5585 = vst [vmem:[%s378 + $0x8] sm:$0xff] %v5521
  %5586 = vst [vmem:[%s378 + $0x10] sm:$0xff] %v5522
  %5587 = vst [vmem:[%s378 + $0x28] sm:$0xff] %v5523
  %5588 = vst [vmem:[%s378 + $0x30] sm:$0xff] %v5524
  %5589 = vst [vmem:[%s378 + $0x48] sm:$0xff] %v5525
  %5590 = vst [vmem:[%s378 + $0x50] sm:$0xff] %v5526
  %5591 = vst [vmem:[%s378 + $0x68] sm:$0xff] %v5527
  %5592 = vst [vmem:[%s378 + $0x70] sm:$0xff] %v5528
  %5593 = vst [vmem:[%s378 + $0x88] sm:$0xff] %v5529
  %5594 = vst [vmem:[%s378 + $0x90] sm:$0xff] %v5530
  %5595 = vst [vmem:[%s378 + $0xa8] sm:$0xff] %v5531
  %5596 = vst [vmem:[%s378 + $0xb0] sm:$0xff] %v5532
  %5597 = vst [vmem:[%s378 + $0xc8] sm:$0xff] %v5533
  %5598 = vst [vmem:[%s378 + $0xd0] sm:$0xff] %v5534
  %5599 = vst [vmem:[%s378 + $0xe8] sm:$0xff] %v5535
  %5600 = vst [vmem:[%s378 + $0xf0] sm:$0xff] %v5536
  %5601 = vst [vmem:[%s378 + $0x108] sm:$0xff] %v5537
  %5602 = vst [vmem:[%s378 + $0x110] sm:$0xff] %v5538
  %5603 = vst [vmem:[%s378 + $0x128] sm:$0xff] %v5539
  %5604 = vst [vmem:[%s378 + $0x130] sm:$0xff] %v5540
  %5605 = vst [vmem:[%s378 + $0x148] sm:$0xff] %v5541
  %5606 = vst [vmem:[%s378 + $0x150] sm:$0xff] %v5542
  %5607 = vst [vmem:[%s378 + $0x168] sm:$0xff] %v5543
  %5608 = vst [vmem:[%s378 + $0x170] sm:$0xff] %v5544
  %5609 = vst [vmem:[%s378 + $0x188] sm:$0xff] %v5545
  %5610 = vst [vmem:[%s378 + $0x190] sm:$0xff] %v5546
  %5611 = vst [vmem:[%s378 + $0x1a8] sm:$0xff] %v5547
  %5612 = vst [vmem:[%s378 + $0x1b0] sm:$0xff] %v5548
  %5613 = vst [vmem:[%s378 + $0x1c8] sm:$0xff] %v5549
  %5614 = vst [vmem:[%s378 + $0x1d0] sm:$0xff] %v5550
  %5615 = vst [vmem:[%s378 + $0x1e8] sm:$0xff] %v5551
  %5616 = vst [vmem:[%s378 + $0x1f0] sm:$0xff] %v5552
  %5617 = vst [vmem:[%s378 + $0x248] sm:$0xff] %v5553
  %5618 = vst [vmem:[%s378 + $0x250] sm:$0xff] %v5554
  %5619 = vst [vmem:[%s378 + $0x268] sm:$0xff] %v5555
  %5620 = vst [vmem:[%s378 + $0x270] sm:$0xff] %v5556
  %5621 = vst [vmem:[%s378 + $0x288] sm:$0xff] %v5557
  %5622 = vst [vmem:[%s378 + $0x290] sm:$0xff] %v5558
  %5623 = vst [vmem:[%s378 + $0x2a8] sm:$0xff] %v5559
  %5624 = vst [vmem:[%s378 + $0x2b0] sm:$0xff] %v5560
  %5625 = vst [vmem:[%s378 + $0x2c8] sm:$0xff] %v5561
  %5626 = vst [vmem:[%s378 + $0x2d0] sm:$0xff] %v5562
  %5627 = vst [vmem:[%s378 + $0x2e8] sm:$0xff] %v5563
  %5628 = vst [vmem:[%s378 + $0x2f0] sm:$0xff] %v5564
  %5629 = vst [vmem:[%s378 + $0x308] sm:$0xff] %v5565
  %5630 = vst [vmem:[%s378 + $0x310] sm:$0xff] %v5566
  %5631 = vst [vmem:[%s378 + $0x328] sm:$0xff] %v5567
  %5632 = vst [vmem:[%s378 + $0x330] sm:$0xff] %v5568
  %5633 = vst [vmem:[%s378 + $0x348] sm:$0xff] %v5569
  %5634 = vst [vmem:[%s378 + $0x350] sm:$0xff] %v5570
  %5635 = vst [vmem:[%s378 + $0x368] sm:$0xff] %v5571
  %5636 = vst [vmem:[%s378 + $0x370] sm:$0xff] %v5572
  %5637 = vst [vmem:[%s378 + $0x388] sm:$0xff] %v5573
  %5638 = vst [vmem:[%s378 + $0x390] sm:$0xff] %v5574
  %5639 = vst [vmem:[%s378 + $0x3a8] sm:$0xff] %v5575
  %5640 = vst [vmem:[%s378 + $0x3b0] sm:$0xff] %v5576
  %5641 = vst [vmem:[%s378 + $0x3c8] sm:$0xff] %v5577
  %5642 = vst [vmem:[%s378 + $0x3d0] sm:$0xff] %v5578
  %5643 = vst [vmem:[%s378 + $0x3e8] sm:$0xff] %v5579
  %5644 = vst [vmem:[%s378 + $0x3f0] sm:$0xff] %v5580
  %5645 = vst [vmem:[%s378 + $0x408] sm:$0xff] %v5581
  %5646 = vst [vmem:[%s378 + $0x410] sm:$0xff] %v5582
  %5647 = vst [vmem:[%s378 + $0x428] sm:$0xff] %v5583
  %5648 = vst [vmem:[%s378 + $0x430] sm:$0xff] %v5584
  %v5649 = vld [vmem:[%s4] sm:$0xff]
  %vm5650 = vcmask 64512
  %5651 = vst.msk [vmem:[#allocation3] sm:$0xff] %vm5650, %v5649
  %s5652 = scalar_lea.vmem %s4, 8
  %v5653 = vld [vmem:[%s5652] sm:$0xff]
  %5654 = vst.msk [vmem:[#allocation3 + $0x80] sm:$0xff] %vm5650, %v5653
  %s5655 = scalar_lea.vmem %s4, 16
  %v5656 = vld [vmem:[%s5655] sm:$0xff]
  %5657 = vst.msk [vmem:[#allocation3 + $0x100] sm:$0xff] %vm5650, %v5656
  %s5658 = scalar_lea.vmem %s4, 24
  %v5659 = vld [vmem:[%s5658] sm:$0xff]
  %5660 = vst.msk [vmem:[#allocation3 + $0x180] sm:$0xff] %vm5650, %v5659
  %s5661 = scalar_lea.vmem %s4, 32
  %v5662 = vld [vmem:[%s5661] sm:$0xff]
  %5663 = vst.msk [vmem:[#allocation3 + $0x200] sm:$0xff] %vm5650, %v5662
  %s5664 = scalar_lea.vmem %s4, 40
  %v5665 = vld [vmem:[%s5664] sm:$0xff]
  %5666 = vst.msk [vmem:[#allocation3 + $0x280] sm:$0xff] %vm5650, %v5665
  %s5667 = scalar_lea.vmem %s4, 48
  %v5668 = vld [vmem:[%s5667] sm:$0xff]
  %5669 = vst.msk [vmem:[#allocation3 + $0x300] sm:$0xff] %vm5650, %v5668
  %s5670 = scalar_lea.vmem %s4, 56
  %v5671 = vld [vmem:[%s5670] sm:$0xff]
  %5672 = vst.msk [vmem:[#allocation3 + $0x380] sm:$0xff] %vm5650, %v5671
  %s5673 = scalar_lea.vmem %s4, 64
  %v5674 = vld [vmem:[%s5673] sm:$0xff]
  %5675 = vst.msk [vmem:[#allocation3 + $0x400] sm:$0xff] %vm5650, %v5674
  %v5676 = vld [vmem:[%s5] sm:$0x1]
  %v5677 = vld [vmem:[%s6] sm:$0x1]
  %v5678 = vld [vmem:[#allocation2 + $0x7] sm:$0xff]
  %v5679 = vld [vmem:[#allocation2 + $0xf] sm:$0xff]
  %v5680 = vld [vmem:[#allocation2 + $0x27] sm:$0xff]
  %v5681 = vld [vmem:[#allocation2 + $0x2f] sm:$0xff]
  %v5682 = vld [vmem:[#allocation2 + $0x47] sm:$0xff]
  %v5683 = vld [vmem:[#allocation2 + $0x4f] sm:$0xff]
  %v5684 = vld [vmem:[#allocation2 + $0x67] sm:$0xff]
  %v5685 = vld [vmem:[#allocation2 + $0x6f] sm:$0xff]
  %v5686 = vld [vmem:[#allocation2 + $0x87] sm:$0xff]
  %v5687 = vld [vmem:[#allocation2 + $0x8f] sm:$0xff]
  %v5688 = vld [vmem:[#allocation2 + $0xa7] sm:$0xff]
  %v5689 = vld [vmem:[#allocation2 + $0xaf] sm:$0xff]
  %v5690 = vld [vmem:[#allocation2 + $0xc7] sm:$0xff]
  %v5691 = vld [vmem:[#allocation2 + $0xcf] sm:$0xff]
  %v5692 = vld [vmem:[#allocation2 + $0xe7] sm:$0xff]
  %v5693 = vld [vmem:[#allocation2 + $0xef] sm:$0xff]
  %v5694 = vld [vmem:[#allocation2 + $0x107] sm:$0xff]
  %v5695 = vld [vmem:[#allocation2 + $0x10f] sm:$0xff]
  %v5696 = vld [vmem:[#allocation2 + $0x127] sm:$0xff]
  %v5697 = vld [vmem:[#allocation2 + $0x12f] sm:$0xff]
  %v5698 = vld [vmem:[#allocation2 + $0x147] sm:$0xff]
  %v5699 = vld [vmem:[#allocation2 + $0x14f] sm:$0xff]
  %v5700 = vld [vmem:[#allocation2 + $0x167] sm:$0xff]
  %v5701 = vld [vmem:[#allocation2 + $0x16f] sm:$0xff]
  %v5702 = vld [vmem:[#allocation2 + $0x187] sm:$0xff]
  %v5703 = vld [vmem:[#allocation2 + $0x18f] sm:$0xff]
  %v5704 = vld [vmem:[#allocation2 + $0x1a7] sm:$0xff]
  %v5705 = vld [vmem:[#allocation2 + $0x1af] sm:$0xff]
  %v5706 = vld [vmem:[#allocation2 + $0x1c7] sm:$0xff]
  %v5707 = vld [vmem:[#allocation2 + $0x1cf] sm:$0xff]
  %v5708 = vld [vmem:[#allocation2 + $0x1e7] sm:$0xff]
  %v5709 = vld [vmem:[#allocation2 + $0x1ef] sm:$0xff]
  %v5710 = vld [vmem:[#allocation2 + $0x247] sm:$0xff]
  %v5711 = vld [vmem:[#allocation2 + $0x24f] sm:$0xff]
  %v5712 = vld [vmem:[#allocation2 + $0x267] sm:$0xff]
  %v5713 = vld [vmem:[#allocation2 + $0x26f] sm:$0xff]
  %v5714 = vld [vmem:[#allocation2 + $0x287] sm:$0xff]
  %v5715 = vld [vmem:[#allocation2 + $0x28f] sm:$0xff]
  %v5716 = vld [vmem:[#allocation2 + $0x2a7] sm:$0xff]
  %v5717 = vld [vmem:[#allocation2 + $0x2af] sm:$0xff]
  %v5718 = vld [vmem:[#allocation2 + $0x2c7] sm:$0xff]
  %v5719 = vld [vmem:[#allocation2 + $0x2cf] sm:$0xff]
  %v5720 = vld [vmem:[#allocation2 + $0x2e7] sm:$0xff]
  %v5721 = vld [vmem:[#allocation2 + $0x2ef] sm:$0xff]
  %v5722 = vld [vmem:[#allocation2 + $0x307] sm:$0xff]
  %v5723 = vld [vmem:[#allocation2 + $0x30f] sm:$0xff]
  %v5724 = vld [vmem:[#allocation2 + $0x327] sm:$0xff]
  %v5725 = vld [vmem:[#allocation2 + $0x32f] sm:$0xff]
  %v5726 = vld [vmem:[#allocation2 + $0x347] sm:$0xff]
  %v5727 = vld [vmem:[#allocation2 + $0x34f] sm:$0xff]
  %v5728 = vld [vmem:[#allocation2 + $0x367] sm:$0xff]
  %v5729 = vld [vmem:[#allocation2 + $0x36f] sm:$0xff]
  %v5730 = vld [vmem:[#allocation2 + $0x387] sm:$0xff]
  %v5731 = vld [vmem:[#allocation2 + $0x38f] sm:$0xff]
  %v5732 = vld [vmem:[#allocation2 + $0x3a7] sm:$0xff]
  %v5733 = vld [vmem:[#allocation2 + $0x3af] sm:$0xff]
  %v5734 = vld [vmem:[#allocation2 + $0x3c7] sm:$0xff]
  %v5735 = vld [vmem:[#allocation2 + $0x3cf] sm:$0xff]
  %v5736 = vld [vmem:[#allocation2 + $0x3e7] sm:$0xff]
  %v5737 = vld [vmem:[#allocation2 + $0x3ef] sm:$0xff]
  %v5738 = vld [vmem:[#allocation2 + $0x407] sm:$0xff]
  %v5739 = vld [vmem:[#allocation2 + $0x40f] sm:$0xff]
  %v5740 = vld [vmem:[#allocation2 + $0x427] sm:$0xff]
  %v5741 = vld [vmem:[#allocation2 + $0x42f] sm:$0xff]
  %v5742 = vld [vmem:[#allocation3] sm:$0xff]
  %v5743 = vld [vmem:[#allocation3 + $0x8] sm:$0xff]
  %v5744 = vld [vmem:[#allocation3 + $0x10] sm:$0xff]
  %v5745 = vld [vmem:[#allocation3 + $0x18] sm:$0xff]
  %v5746 = vld [vmem:[#allocation3 + $0x20] sm:$0xff]
  %v5747 = vld [vmem:[#allocation3 + $0x28] sm:$0xff]
  %v5748 = vld [vmem:[#allocation3 + $0x30] sm:$0xff]
  %v5749 = vld [vmem:[#allocation3 + $0x38] sm:$0xff]
  %v5750 = vld [vmem:[#allocation3 + $0x40] sm:$0xff]
  %v5751 = vld [vmem:[#allocation3 + $0x48] sm:$0xff]
  %v5752 = vld [vmem:[#allocation3 + $0x50] sm:$0xff]
  %v5753 = vld [vmem:[#allocation3 + $0x58] sm:$0xff]
  %v5754 = vld [vmem:[#allocation3 + $0x60] sm:$0xff]
  %v5755 = vld [vmem:[#allocation3 + $0x68] sm:$0xff]
  %v5756 = vld [vmem:[#allocation3 + $0x70] sm:$0xff]
  %v5757 = vld [vmem:[#allocation3 + $0x78] sm:$0xff]
  %v5758 = vld [vmem:[#allocation2 + $0x8] sm:$0xff]
  %v5759 = vld [vmem:[#allocation2 + $0x10] sm:$0xff]
  %v5760 = vld [vmem:[#allocation2 + $0x28] sm:$0xff]
  %v5761 = vld [vmem:[#allocation2 + $0x30] sm:$0xff]
  %v5762 = vld [vmem:[#allocation2 + $0x48] sm:$0xff]
  %v5763 = vld [vmem:[#allocation2 + $0x50] sm:$0xff]
  %v5764 = vld [vmem:[#allocation2 + $0x68] sm:$0xff]
  %v5765 = vld [vmem:[#allocation2 + $0x70] sm:$0xff]
  %v5766 = vld [vmem:[#allocation2 + $0x88] sm:$0xff]
  %v5767 = vld [vmem:[#allocation2 + $0x90] sm:$0xff]
  %v5768 = vld [vmem:[#allocation2 + $0xa8] sm:$0xff]
  %v5769 = vld [vmem:[#allocation2 + $0xb0] sm:$0xff]
  %v5770 = vld [vmem:[#allocation2 + $0xc8] sm:$0xff]
  %v5771 = vld [vmem:[#allocation2 + $0xd0] sm:$0xff]
  %v5772 = vld [vmem:[#allocation2 + $0xe8] sm:$0xff]
  %v5773 = vld [vmem:[#allocation2 + $0xf0] sm:$0xff]
  %v5774 = vld [vmem:[#allocation2 + $0x108] sm:$0xff]
  %v5775 = vld [vmem:[#allocation2 + $0x110] sm:$0xff]
  %v5776 = vld [vmem:[#allocation2 + $0x128] sm:$0xff]
  %v5777 = vld [vmem:[#allocation2 + $0x130] sm:$0xff]
  %v5778 = vld [vmem:[#allocation2 + $0x148] sm:$0xff]
  %v5779 = vld [vmem:[#allocation2 + $0x150] sm:$0xff]
  %v5780 = vld [vmem:[#allocation2 + $0x168] sm:$0xff]
  %v5781 = vld [vmem:[#allocation2 + $0x170] sm:$0xff]
  %v5782 = vld [vmem:[#allocation2 + $0x188] sm:$0xff]
  %v5783 = vld [vmem:[#allocation2 + $0x190] sm:$0xff]
  %v5784 = vld [vmem:[#allocation2 + $0x1a8] sm:$0xff]
  %v5785 = vld [vmem:[#allocation2 + $0x1b0] sm:$0xff]
  %v5786 = vld [vmem:[#allocation2 + $0x1c8] sm:$0xff]
  %v5787 = vld [vmem:[#allocation2 + $0x1d0] sm:$0xff]
  %v5788 = vld [vmem:[#allocation2 + $0x1e8] sm:$0xff]
  %v5789 = vld [vmem:[#allocation2 + $0x1f0] sm:$0xff]
  %v5790 = vld [vmem:[#allocation2 + $0x248] sm:$0xff]
  %v5791 = vld [vmem:[#allocation2 + $0x250] sm:$0xff]
  %v5792 = vld [vmem:[#allocation2 + $0x268] sm:$0xff]
  %v5793 = vld [vmem:[#allocation2 + $0x270] sm:$0xff]
  %v5794 = vld [vmem:[#allocation2 + $0x288] sm:$0xff]
  %v5795 = vld [vmem:[#allocation2 + $0x290] sm:$0xff]
  %v5796 = vld [vmem:[#allocation2 + $0x2a8] sm:$0xff]
  %v5797 = vld [vmem:[#allocation2 + $0x2b0] sm:$0xff]
  %v5798 = vld [vmem:[#allocation2 + $0x2c8] sm:$0xff]
  %v5799 = vld [vmem:[#allocation2 + $0x2d0] sm:$0xff]
  %v5800 = vld [vmem:[#allocation2 + $0x2e8] sm:$0xff]
  %v5801 = vld [vmem:[#allocation2 + $0x2f0] sm:$0xff]
  %v5802 = vld [vmem:[#allocation2 + $0x308] sm:$0xff]
  %v5803 = vld [vmem:[#allocation2 + $0x310] sm:$0xff]
  %v5804 = vld [vmem:[#allocation2 + $0x328] sm:$0xff]
  %v5805 = vld [vmem:[#allocation2 + $0x330] sm:$0xff]
  %v5806 = vld [vmem:[#allocation2 + $0x348] sm:$0xff]
  %v5807 = vld [vmem:[#allocation2 + $0x350] sm:$0xff]
  %v5808 = vld [vmem:[#allocation2 + $0x368] sm:$0xff]
  %v5809 = vld [vmem:[#allocation2 + $0x370] sm:$0xff]
  %v5810 = vld [vmem:[#allocation2 + $0x388] sm:$0xff]
  %v5811 = vld [vmem:[#allocation2 + $0x390] sm:$0xff]
  %v5812 = vld [vmem:[#allocation2 + $0x3a8] sm:$0xff]
  %v5813 = vld [vmem:[#allocation2 + $0x3b0] sm:$0xff]
  %v5814 = vld [vmem:[#allocation2 + $0x3c8] sm:$0xff]
  %v5815 = vld [vmem:[#allocation2 + $0x3d0] sm:$0xff]
  %v5816 = vld [vmem:[#allocation2 + $0x3e8] sm:$0xff]
  %v5817 = vld [vmem:[#allocation2 + $0x3f0] sm:$0xff]
  %v5818 = vld [vmem:[#allocation2 + $0x408] sm:$0xff]
  %v5819 = vld [vmem:[#allocation2 + $0x410] sm:$0xff]
  %v5820 = vld [vmem:[#allocation2 + $0x428] sm:$0xff]
  %v5821 = vld [vmem:[#allocation2 + $0x430] sm:$0xff]
  %v5822 = vld [vmem:[#allocation3 + $0x80] sm:$0xff]
  %v5823 = vld [vmem:[#allocation3 + $0x88] sm:$0xff]
  %v5824 = vld [vmem:[#allocation3 + $0x90] sm:$0xff]
  %v5825 = vld [vmem:[#allocation3 + $0x98] sm:$0xff]
  %v5826 = vld [vmem:[#allocation3 + $0xa0] sm:$0xff]
  %v5827 = vld [vmem:[#allocation3 + $0xa8] sm:$0xff]
  %v5828 = vld [vmem:[#allocation3 + $0xb0] sm:$0xff]
  %v5829 = vld [vmem:[#allocation3 + $0xb8] sm:$0xff]
  %v5830 = vld [vmem:[#allocation3 + $0xc0] sm:$0xff]
  %v5831 = vld [vmem:[#allocation3 + $0xc8] sm:$0xff]
  %v5832 = vld [vmem:[#allocation3 + $0xd0] sm:$0xff]
  %v5833 = vld [vmem:[#allocation3 + $0xd8] sm:$0xff]
  %v5834 = vld [vmem:[#allocation3 + $0xe0] sm:$0xff]
  %v5835 = vld [vmem:[#allocation3 + $0xe8] sm:$0xff]
  %v5836 = vld [vmem:[#allocation3 + $0xf0] sm:$0xff]
  %v5837 = vld [vmem:[#allocation3 + $0xf8] sm:$0xff]
  %5838 = vmatprep.subr.mxu0 0.0
  %5839 = vmatpush1.msra.mxu0 %v5822
  %5840 = vmatprep.subr.mxu0 0.0
  %5841 = vmatpush1.msra.mxu0 %v5823
  %5842 = vmatprep.subr.mxu0 0.0
  %5843 = vmatpush1.msra.mxu0 %v5824
  %5844 = vmatprep.subr.mxu0 0.0
  %5845 = vmatpush1.msra.mxu0 %v5825
  %5846 = vmatprep.subr.mxu0 0.0
  %5847 = vmatpush1.msra.mxu0 %v5826
  %5848 = vmatprep.subr.mxu0 0.0
  %5849 = vmatpush1.msra.mxu0 %v5827
  %5850 = vmatprep.subr.mxu0 0.0
  %5851 = vmatpush1.msra.mxu0 %v5828
  %5852 = vmatprep.subr.mxu0 0.0
  %5853 = vmatpush1.msra.mxu0 %v5829
  %5854 = vmatprep.subr.mxu0 0.0
  %5855 = vmatpush1.msra.mxu0 %v5830
  %5856 = vmatprep.subr.mxu0 0.0
  %5857 = vmatpush1.msra.mxu0 %v5831
  %5858 = vmatprep.subr.mxu0 0.0
  %5859 = vmatpush1.msra.mxu0 %v5832
  %5860 = vmatprep.subr.mxu0 0.0
  %5861 = vmatpush1.msra.mxu0 %v5833
  %5862 = vmatprep.subr.mxu0 0.0
  %5863 = vmatpush1.msra.mxu0 %v5834
  %5864 = vmatprep.subr.mxu0 0.0
  %5865 = vmatpush1.msra.mxu0 %v5835
  %5866 = vmatprep.subr.mxu0 0.0
  %5867 = vmatpush1.msra.mxu0 %v5836
  %5868 = vmatprep.subr.mxu0 0.0
  %5869 = vmatpush1.msra.mxu0 %v5837
  %5870 = vmatprep.subr.mxu0 0.0
  %5871 = vmatpush1.msra.mxu0 0.0
  %5872 = vmatprep.subr.mxu0 0.0
  %5873 = vmatpush1.msra.mxu0 0.0
  %5874 = vmatprep.subr.mxu0 0.0
  %5875 = vmatpush1.msra.mxu0 0.0
  %5876 = vmatprep.subr.mxu0 0.0
  %5877 = vmatpush1.msra.mxu0 0.0
  %5878 = vmatprep.subr.mxu0 0.0
  %5879 = vmatpush1.msra.mxu0 0.0
  %5880 = vmatprep.subr.mxu0 0.0
  %5881 = vmatpush1.msra.mxu0 0.0
  %5882 = vmatprep.subr.mxu0 0.0
  %5883 = vmatpush1.msra.mxu0 0.0
  %5884 = vmatprep.subr.mxu0 0.0
  %5885 = vmatpush1.msra.mxu0 0.0
  %5886 = vmatprep.subr.mxu0 0.0
  %5887 = vmatpush1.msra.mxu0 0.0
  %5888 = vmatprep.subr.mxu0 0.0
  %5889 = vmatpush1.msra.mxu0 0.0
  %5890 = vmatprep.subr.mxu0 0.0
  %5891 = vmatpush1.msra.mxu0 0.0
  %5892 = vmatprep.subr.mxu0 0.0
  %5893 = vmatpush1.msra.mxu0 0.0
  %5894 = vmatprep.subr.mxu0 0.0
  %5895 = vmatpush1.msra.mxu0 0.0
  %5896 = vmatprep.subr.mxu0 0.0
  %5897 = vmatpush1.msra.mxu0 0.0
  %5898 = vmatprep.subr.mxu0 0.0
  %5899 = vmatpush1.msra.mxu0 0.0
  %5900 = vmatprep.subr.mxu0 0.0
  %5901 = vmatpush1.msra.mxu0 0.0
  %5902 = vmatprep.mubr.f32.mxu0 0.0
  %5903 = vmatmul.mubr.f32.gmra.mrb[0].mxu0 %v5758
  %v5904 = vpop.f32.mrb[0].mxu0
  %v5905 = vadd.f32 0.0, %v5904
  %v5906 = vpop.f32.mrb[0].mxu0
  %5907 = vmatprep.mubr.f32.mxu0 0.0
  %5908 = vmatmul.mubr.f32.gmra.mrb[0].mxu0 %v5759
  %v5909 = vpop.f32.mrb[0].mxu0
  %v5910 = vadd.f32 0.0, %v5909
  %v5911 = vpop.f32.mrb[0].mxu0
  %5912 = vmatprep.mubr.f32.mxu0 0.0
  %5913 = vmatmul.mubr.f32.gmra.mrb[0].mxu0 %v5760
  %v5914 = vpop.f32.mrb[0].mxu0
  %v5915 = vadd.f32 0.0, %v5914
  %v5916 = vpop.f32.mrb[0].mxu0
  %5917 = vmatprep.mubr.f32.mxu0 0.0
  %5918 = vmatmul.mubr.f32.gmra.mrb[0].mxu0 %v5761
  %v5919 = vpop.f32.mrb[0].mxu0
  %v5920 = vadd.f32 0.0, %v5919
  %v5921 = vpop.f32.mrb[0].mxu0
  %5922 = vmatprep.mubr.f32.mxu0 0.0
  %5923 = vmatmul.mubr.f32.gmra.mrb[0].mxu0 %v5762
  %v5924 = vpop.f32.mrb[0].mxu0
  %v5925 = vadd.f32 0.0, %v5924
  %v5926 = vpop.f32.mrb[0].mxu0
  %5927 = vmatprep.mubr.f32.mxu0 0.0
  %5928 = vmatmul.mubr.f32.gmra.mrb[0].mxu0 %v5763
  %v5929 = vpop.f32.mrb[0].mxu0
  %v5930 = vadd.f32 0.0, %v5929
  %v5931 = vpop.f32.mrb[0].mxu0
  %5932 = vmatprep.mubr.f32.mxu0 0.0
  %5933 = vmatmul.mubr.f32.gmra.mrb[0].mxu0 %v5764
  %v5934 = vpop.f32.mrb[0].mxu0
  %v5935 = vadd.f32 0.0, %v5934
  %v5936 = vpop.f32.mrb[0].mxu0
  %5937 = vmatprep.mubr.f32.mxu0 0.0
  %5938 = vmatmul.mubr.f32.gmra.mrb[0].mxu0 %v5765
  %v5939 = vpop.f32.mrb[0].mxu0
  %v5940 = vadd.f32 0.0, %v5939
  %v5941 = vpop.f32.mrb[0].mxu0
  %5942 = vmatprep.mubr.f32.mxu0 0.0
  %5943 = vmatmul.mubr.f32.gmra.mrb[0].mxu0 %v5766
  %v5944 = vpop.f32.mrb[0].mxu0
  %v5945 = vadd.f32 0.0, %v5944
  %v5946 = vpop.f32.mrb[0].mxu0
  %5947 = vmatprep.mubr.f32.mxu0 0.0
  %5948 = vmatmul.mubr.f32.gmra.mrb[0].mxu0 %v5767
  %v5949 = vpop.f32.mrb[0].mxu0
  %v5950 = vadd.f32 0.0, %v5949
  %v5951 = vpop.f32.mrb[0].mxu0
  %5952 = vmatprep.mubr.f32.mxu0 0.0
  %5953 = vmatmul.mubr.f32.gmra.mrb[0].mxu0 %v5768
  %v5954 = vpop.f32.mrb[0].mxu0
  %v5955 = vadd.f32 0.0, %v5954
  %v5956 = vpop.f32.mrb[0].mxu0
  %5957 = vmatprep.mubr.f32.mxu0 0.0
  %5958 = vmatmul.mubr.f32.gmra.mrb[0].mxu0 %v5769
  %v5959 = vpop.f32.mrb[0].mxu0
  %v5960 = vadd.f32 0.0, %v5959
  %v5961 = vpop.f32.mrb[0].mxu0
  %5962 = vmatprep.mubr.f32.mxu0 0.0
  %5963 = vmatmul.mubr.f32.gmra.mrb[0].mxu0 %v5770
  %v5964 = vpop.f32.mrb[0].mxu0
  %v5965 = vadd.f32 0.0, %v5964
  %v5966 = vpop.f32.mrb[0].mxu0
  %5967 = vmatprep.mubr.f32.mxu0 0.0
  %5968 = vmatmul.mubr.f32.gmra.mrb[0].mxu0 %v5771
  %v5969 = vpop.f32.mrb[0].mxu0
  %v5970 = vadd.f32 0.0, %v5969
  %v5971 = vpop.f32.mrb[0].mxu0
  %5972 = vmatprep.mubr.f32.mxu0 0.0
  %5973 = vmatmul.mubr.f32.gmra.mrb[0].mxu0 %v5772
  %v5974 = vpop.f32.mrb[0].mxu0
  %v5975 = vadd.f32 0.0, %v5974
  %v5976 = vpop.f32.mrb[0].mxu0
  %5977 = vmatprep.mubr.f32.mxu0 0.0
  %5978 = vmatmul.mubr.f32.gmra.mrb[0].mxu0 %v5773
  %v5979 = vpop.f32.mrb[0].mxu0
  %v5980 = vadd.f32 0.0, %v5979
  %v5981 = vpop.f32.mrb[0].mxu0
  %5982 = vmatprep.mubr.f32.mxu0 0.0
  %5983 = vmatmul.mubr.f32.gmra.mrb[0].mxu0 %v5774
  %v5984 = vpop.f32.mrb[0].mxu0
  %v5985 = vadd.f32 0.0, %v5984
  %v5986 = vpop.f32.mrb[0].mxu0
  %5987 = vmatprep.mubr.f32.mxu0 0.0
  %5988 = vmatmul.mubr.f32.gmra.mrb[0].mxu0 %v5775
  %v5989 = vpop.f32.mrb[0].mxu0
  %v5990 = vadd.f32 0.0, %v5989
  %v5991 = vpop.f32.mrb[0].mxu0
  %5992 = vmatprep.mubr.f32.mxu0 0.0
  %5993 = vmatmul.mubr.f32.gmra.mrb[0].mxu0 %v5776
  %v5994 = vpop.f32.mrb[0].mxu0
  %v5995 = vadd.f32 0.0, %v5994
  %v5996 = vpop.f32.mrb[0].mxu0
  %5997 = vmatprep.mubr.f32.mxu0 0.0
  %5998 = vmatmul.mubr.f32.gmra.mrb[0].mxu0 %v5777
  %v5999 = vpop.f32.mrb[0].mxu0
  %v6000 = vadd.f32 0.0, %v5999
  %v6001 = vpop.f32.mrb[0].mxu0
  %6002 = vmatprep.mubr.f32.mxu0 0.0
  %6003 = vmatmul.mubr.f32.gmra.mrb[0].mxu0 %v5778
  %v6004 = vpop.f32.mrb[0].mxu0
  %v6005 = vadd.f32 0.0, %v6004
  %v6006 = vpop.f32.mrb[0].mxu0
  %6007 = vmatprep.mubr.f32.mxu0 0.0
  %6008 = vmatmul.mubr.f32.gmra.mrb[0].mxu0 %v5779
  %v6009 = vpop.f32.mrb[0].mxu0
  %v6010 = vadd.f32 0.0, %v6009
  %v6011 = vpop.f32.mrb[0].mxu0
  %6012 = vmatprep.mubr.f32.mxu0 0.0
  %6013 = vmatmul.mubr.f32.gmra.mrb[0].mxu0 %v5780
  %v6014 = vpop.f32.mrb[0].mxu0
  %v6015 = vadd.f32 0.0, %v6014
  %v6016 = vpop.f32.mrb[0].mxu0
  %6017 = vmatprep.mubr.f32.mxu0 0.0
  %6018 = vmatmul.mubr.f32.gmra.mrb[0].mxu0 %v5781
  %v6019 = vpop.f32.mrb[0].mxu0
  %v6020 = vadd.f32 0.0, %v6019
  %v6021 = vpop.f32.mrb[0].mxu0
  %6022 = vmatprep.mubr.f32.mxu0 0.0
  %6023 = vmatmul.mubr.f32.gmra.mrb[0].mxu0 %v5782
  %v6024 = vpop.f32.mrb[0].mxu0
  %v6025 = vadd.f32 0.0, %v6024
  %v6026 = vpop.f32.mrb[0].mxu0
  %6027 = vmatprep.mubr.f32.mxu0 0.0
  %6028 = vmatmul.mubr.f32.gmra.mrb[0].mxu0 %v5783
  %v6029 = vpop.f32.mrb[0].mxu0
  %v6030 = vadd.f32 0.0, %v6029
  %v6031 = vpop.f32.mrb[0].mxu0
  %6032 = vmatprep.mubr.f32.mxu0 0.0
  %6033 = vmatmul.mubr.f32.gmra.mrb[0].mxu0 %v5784
  %v6034 = vpop.f32.mrb[0].mxu0
  %v6035 = vadd.f32 0.0, %v6034
  %v6036 = vpop.f32.mrb[0].mxu0
  %6037 = vmatprep.mubr.f32.mxu0 0.0
  %6038 = vmatmul.mubr.f32.gmra.mrb[0].mxu0 %v5785
  %v6039 = vpop.f32.mrb[0].mxu0
  %v6040 = vadd.f32 0.0, %v6039
  %v6041 = vpop.f32.mrb[0].mxu0
  %6042 = vmatprep.mubr.f32.mxu0 0.0
  %6043 = vmatmul.mubr.f32.gmra.mrb[0].mxu0 %v5786
  %v6044 = vpop.f32.mrb[0].mxu0
  %v6045 = vadd.f32 0.0, %v6044
  %v6046 = vpop.f32.mrb[0].mxu0
  %6047 = vmatprep.mubr.f32.mxu0 0.0
  %6048 = vmatmul.mubr.f32.gmra.mrb[0].mxu0 %v5787
  %v6049 = vpop.f32.mrb[0].mxu0
  %v6050 = vadd.f32 0.0, %v6049
  %v6051 = vpop.f32.mrb[0].mxu0
  %6052 = vmatprep.mubr.f32.mxu0 0.0
  %6053 = vmatmul.mubr.f32.gmra.mrb[0].mxu0 %v5788
  %v6054 = vpop.f32.mrb[0].mxu0
  %v6055 = vadd.f32 0.0, %v6054
  %v6056 = vpop.f32.mrb[0].mxu0
  %6057 = vmatprep.mubr.f32.mxu0 0.0
  %6058 = vmatmul.mubr.f32.gmra.mrb[0].mxu0 %v5789
  %v6059 = vpop.f32.mrb[0].mxu0
  %v6060 = vadd.f32 0.0, %v6059
  %v6061 = vpop.f32.mrb[0].mxu0
  %6062 = vmatprep.mubr.f32.mxu0 0.0
  %6063 = vmatmul.mubr.f32.gmra.mrb[0].mxu0 %v5790
  %v6064 = vpop.f32.mrb[0].mxu0
  %v6065 = vadd.f32 0.0, %v6064
  %v6066 = vpop.f32.mrb[0].mxu0
  %6067 = vmatprep.mubr.f32.mxu0 0.0
  %6068 = vmatmul.mubr.f32.gmra.mrb[0].mxu0 %v5791
  %v6069 = vpop.f32.mrb[0].mxu0
  %v6070 = vadd.f32 0.0, %v6069
  %v6071 = vpop.f32.mrb[0].mxu0
  %6072 = vmatprep.mubr.f32.mxu0 0.0
  %6073 = vmatmul.mubr.f32.gmra.mrb[0].mxu0 %v5792
  %v6074 = vpop.f32.mrb[0].mxu0
  %v6075 = vadd.f32 0.0, %v6074
  %v6076 = vpop.f32.mrb[0].mxu0
  %6077 = vmatprep.mubr.f32.mxu0 0.0
  %6078 = vmatmul.mubr.f32.gmra.mrb[0].mxu0 %v5793
  %v6079 = vpop.f32.mrb[0].mxu0
  %v6080 = vadd.f32 0.0, %v6079
  %v6081 = vpop.f32.mrb[0].mxu0
  %6082 = vmatprep.mubr.f32.mxu0 0.0
  %6083 = vmatmul.mubr.f32.gmra.mrb[0].mxu0 %v5794
  %v6084 = vpop.f32.mrb[0].mxu0
  %v6085 = vadd.f32 0.0, %v6084
  %v6086 = vpop.f32.mrb[0].mxu0
  %6087 = vmatprep.mubr.f32.mxu0 0.0
  %6088 = vmatmul.mubr.f32.gmra.mrb[0].mxu0 %v5795
  %v6089 = vpop.f32.mrb[0].mxu0
  %v6090 = vadd.f32 0.0, %v6089
  %v6091 = vpop.f32.mrb[0].mxu0
  %6092 = vmatprep.mubr.f32.mxu0 0.0
  %6093 = vmatmul.mubr.f32.gmra.mrb[0].mxu0 %v5796
  %v6094 = vpop.f32.mrb[0].mxu0
  %v6095 = vadd.f32 0.0, %v6094
  %v6096 = vpop.f32.mrb[0].mxu0
  %6097 = vmatprep.mubr.f32.mxu0 0.0
  %6098 = vmatmul.mubr.f32.gmra.mrb[0].mxu0 %v5797
  %v6099 = vpop.f32.mrb[0].mxu0
  %v6100 = vadd.f32 0.0, %v6099
  %v6101 = vpop.f32.mrb[0].mxu0
  %6102 = vmatprep.mubr.f32.mxu0 0.0
  %6103 = vmatmul.mubr.f32.gmra.mrb[0].mxu0 %v5798
  %v6104 = vpop.f32.mrb[0].mxu0
  %v6105 = vadd.f32 0.0, %v6104
  %v6106 = vpop.f32.mrb[0].mxu0
  %6107 = vmatprep.mubr.f32.mxu0 0.0
  %6108 = vmatmul.mubr.f32.gmra.mrb[0].mxu0 %v5799
  %v6109 = vpop.f32.mrb[0].mxu0
  %v6110 = vadd.f32 0.0, %v6109
  %v6111 = vpop.f32.mrb[0].mxu0
  %6112 = vmatprep.mubr.f32.mxu0 0.0
  %6113 = vmatmul.mubr.f32.gmra.mrb[0].mxu0 %v5800
  %v6114 = vpop.f32.mrb[0].mxu0
  %v6115 = vadd.f32 0.0, %v6114
  %v6116 = vpop.f32.mrb[0].mxu0
  %6117 = vmatprep.mubr.f32.mxu0 0.0
  %6118 = vmatmul.mubr.f32.gmra.mrb[0].mxu0 %v5801
  %v6119 = vpop.f32.mrb[0].mxu0
  %v6120 = vadd.f32 0.0, %v6119
  %v6121 = vpop.f32.mrb[0].mxu0
  %6122 = vmatprep.mubr.f32.mxu0 0.0
  %6123 = vmatmul.mubr.f32.gmra.mrb[0].mxu0 %v5802
  %v6124 = vpop.f32.mrb[0].mxu0
  %v6125 = vadd.f32 0.0, %v6124
  %v6126 = vpop.f32.mrb[0].mxu0
  %6127 = vmatprep.mubr.f32.mxu0 0.0
  %6128 = vmatmul.mubr.f32.gmra.mrb[0].mxu0 %v5803
  %v6129 = vpop.f32.mrb[0].mxu0
  %v6130 = vadd.f32 0.0, %v6129
  %v6131 = vpop.f32.mrb[0].mxu0
  %6132 = vmatprep.mubr.f32.mxu0 0.0
  %6133 = vmatmul.mubr.f32.gmra.mrb[0].mxu0 %v5804
  %v6134 = vpop.f32.mrb[0].mxu0
  %v6135 = vadd.f32 0.0, %v6134
  %v6136 = vpop.f32.mrb[0].mxu0
  %6137 = vmatprep.mubr.f32.mxu0 0.0
  %6138 = vmatmul.mubr.f32.gmra.mrb[0].mxu0 %v5805
  %v6139 = vpop.f32.mrb[0].mxu0
  %v6140 = vadd.f32 0.0, %v6139
  %v6141 = vpop.f32.mrb[0].mxu0
  %6142 = vmatprep.mubr.f32.mxu0 0.0
  %6143 = vmatmul.mubr.f32.gmra.mrb[0].mxu0 %v5806
  %v6144 = vpop.f32.mrb[0].mxu0
  %v6145 = vadd.f32 0.0, %v6144
  %v6146 = vpop.f32.mrb[0].mxu0
  %6147 = vmatprep.mubr.f32.mxu0 0.0
  %6148 = vmatmul.mubr.f32.gmra.mrb[0].mxu0 %v5807
  %v6149 = vpop.f32.mrb[0].mxu0
  %v6150 = vadd.f32 0.0, %v6149
  %v6151 = vpop.f32.mrb[0].mxu0
  %6152 = vmatprep.mubr.f32.mxu0 0.0
  %6153 = vmatmul.mubr.f32.gmra.mrb[0].mxu0 %v5808
  %v6154 = vpop.f32.mrb[0].mxu0
  %v6155 = vadd.f32 0.0, %v6154
  %v6156 = vpop.f32.mrb[0].mxu0
  %6157 = vmatprep.mubr.f32.mxu0 0.0
  %6158 = vmatmul.mubr.f32.gmra.mrb[0].mxu0 %v5809
  %v6159 = vpop.f32.mrb[0].mxu0
  %v6160 = vadd.f32 0.0, %v6159
  %v6161 = vpop.f32.mrb[0].mxu0
  %6162 = vmatprep.mubr.f32.mxu0 0.0
  %6163 = vmatmul.mubr.f32.gmra.mrb[0].mxu0 %v5810
  %v6164 = vpop.f32.mrb[0].mxu0
  %v6165 = vadd.f32 0.0, %v6164
  %v6166 = vpop.f32.mrb[0].mxu0
  %6167 = vmatprep.mubr.f32.mxu0 0.0
  %6168 = vmatmul.mubr.f32.gmra.mrb[0].mxu0 %v5811
  %v6169 = vpop.f32.mrb[0].mxu0
  %v6170 = vadd.f32 0.0, %v6169
  %v6171 = vpop.f32.mrb[0].mxu0
  %6172 = vmatprep.mubr.f32.mxu0 0.0
  %6173 = vmatmul.mubr.f32.gmra.mrb[0].mxu0 %v5812
  %v6174 = vpop.f32.mrb[0].mxu0
  %v6175 = vadd.f32 0.0, %v6174
  %v6176 = vpop.f32.mrb[0].mxu0
  %6177 = vmatprep.mubr.f32.mxu0 0.0
  %6178 = vmatmul.mubr.f32.gmra.mrb[0].mxu0 %v5813
  %v6179 = vpop.f32.mrb[0].mxu0
  %v6180 = vadd.f32 0.0, %v6179
  %v6181 = vpop.f32.mrb[0].mxu0
  %6182 = vmatprep.mubr.f32.mxu0 0.0
  %6183 = vmatmul.mubr.f32.gmra.mrb[0].mxu0 %v5814
  %v6184 = vpop.f32.mrb[0].mxu0
  %v6185 = vadd.f32 0.0, %v6184
  %v6186 = vpop.f32.mrb[0].mxu0
  %6187 = vmatprep.mubr.f32.mxu0 0.0
  %6188 = vmatmul.mubr.f32.gmra.mrb[0].mxu0 %v5815
  %v6189 = vpop.f32.mrb[0].mxu0
  %v6190 = vadd.f32 0.0, %v6189
  %v6191 = vpop.f32.mrb[0].mxu0
  %6192 = vmatprep.mubr.f32.mxu0 0.0
  %6193 = vmatmul.mubr.f32.gmra.mrb[0].mxu0 %v5816
  %v6194 = vpop.f32.mrb[0].mxu0
  %v6195 = vadd.f32 0.0, %v6194
  %v6196 = vpop.f32.mrb[0].mxu0
  %6197 = vmatprep.mubr.f32.mxu0 0.0
  %6198 = vmatmul.mubr.f32.gmra.mrb[0].mxu0 %v5817
  %v6199 = vpop.f32.mrb[0].mxu0
  %v6200 = vadd.f32 0.0, %v6199
  %v6201 = vpop.f32.mrb[0].mxu0
  %6202 = vmatprep.mubr.f32.mxu0 0.0
  %6203 = vmatmul.mubr.f32.gmra.mrb[0].mxu0 %v5818
  %v6204 = vpop.f32.mrb[0].mxu0
  %v6205 = vadd.f32 0.0, %v6204
  %v6206 = vpop.f32.mrb[0].mxu0
  %6207 = vmatprep.mubr.f32.mxu0 0.0
  %6208 = vmatmul.mubr.f32.gmra.mrb[0].mxu0 %v5819
  %v6209 = vpop.f32.mrb[0].mxu0
  %v6210 = vadd.f32 0.0, %v6209
  %v6211 = vpop.f32.mrb[0].mxu0
  %6212 = vmatprep.mubr.f32.mxu0 0.0
  %6213 = vmatmul.mubr.f32.gmra.mrb[0].mxu0 %v5820
  %v6214 = vpop.f32.mrb[0].mxu0
  %v6215 = vadd.f32 0.0, %v6214
  %v6216 = vpop.f32.mrb[0].mxu0
  %6217 = vmatprep.mubr.f32.mxu0 0.0
  %6218 = vmatmul.mubr.f32.gmra.mrb[0].mxu0 %v5821
  %v6219 = vpop.f32.mrb[0].mxu0
  %v6220 = vadd.f32 0.0, %v6219
  %v6221 = vpop.f32.mrb[0].mxu0
  %6222 = vdwg.mxu0
  %6223 = vmatprep.subr.mxu0 0.0
  %6224 = vmatpush1.msra.mxu0 %v5742
  %6225 = vmatprep.subr.mxu0 0.0
  %6226 = vmatpush1.msra.mxu0 %v5743
  %6227 = vmatprep.subr.mxu0 0.0
  %6228 = vmatpush1.msra.mxu0 %v5744
  %6229 = vmatprep.subr.mxu0 0.0
  %6230 = vmatpush1.msra.mxu0 %v5745
  %6231 = vmatprep.subr.mxu0 0.0
  %6232 = vmatpush1.msra.mxu0 %v5746
  %6233 = vmatprep.subr.mxu0 0.0
  %6234 = vmatpush1.msra.mxu0 %v5747
  %6235 = vmatprep.subr.mxu0 0.0
  %6236 = vmatpush1.msra.mxu0 %v5748
  %6237 = vmatprep.subr.mxu0 0.0
  %6238 = vmatpush1.msra.mxu0 %v5749
  %6239 = vmatprep.subr.mxu0 0.0
  %6240 = vmatpush1.msra.mxu0 %v5750
  %6241 = vmatprep.subr.mxu0 0.0
  %6242 = vmatpush1.msra.mxu0 %v5751
  %6243 = vmatprep.subr.mxu0 0.0
  %6244 = vmatpush1.msra.mxu0 %v5752
  %6245 = vmatprep.subr.mxu0 0.0
  %6246 = vmatpush1.msra.mxu0 %v5753
  %6247 = vmatprep.subr.mxu0 0.0
  %6248 = vmatpush1.msra.mxu0 %v5754
  %6249 = vmatprep.subr.mxu0 0.0
  %6250 = vmatpush1.msra.mxu0 %v5755
  %6251 = vmatprep.subr.mxu0 0.0
  %6252 = vmatpush1.msra.mxu0 %v5756
  %6253 = vmatprep.subr.mxu0 0.0
  %6254 = vmatpush1.msra.mxu0 %v5757
  %6255 = vmatprep.subr.mxu0 0.0
  %6256 = vmatpush1.msra.mxu0 0.0
  %6257 = vmatprep.subr.mxu0 0.0
  %6258 = vmatpush1.msra.mxu0 0.0
  %6259 = vmatprep.subr.mxu0 0.0
  %6260 = vmatpush1.msra.mxu0 0.0
  %6261 = vmatprep.subr.mxu0 0.0
  %6262 = vmatpush1.msra.mxu0 0.0
  %6263 = vmatprep.subr.mxu0 0.0
  %6264 = vmatpush1.msra.mxu0 0.0
  %6265 = vmatprep.subr.mxu0 0.0
  %6266 = vmatpush1.msra.mxu0 0.0
  %6267 = vmatprep.subr.mxu0 0.0
  %6268 = vmatpush1.msra.mxu0 0.0
  %6269 = vmatprep.subr.mxu0 0.0
  %6270 = vmatpush1.msra.mxu0 0.0
  %6271 = vmatprep.subr.mxu0 0.0
  %6272 = vmatpush1.msra.mxu0 0.0
  %6273 = vmatprep.subr.mxu0 0.0
  %6274 = vmatpush1.msra.mxu0 0.0
  %6275 = vmatprep.subr.mxu0 0.0
  %6276 = vmatpush1.msra.mxu0 0.0
  %6277 = vmatprep.subr.mxu0 0.0
  %6278 = vmatpush1.msra.mxu0 0.0
  %6279 = vmatprep.subr.mxu0 0.0
  %6280 = vmatpush1.msra.mxu0 0.0
  %6281 = vmatprep.subr.mxu0 0.0
  %6282 = vmatpush1.msra.mxu0 0.0
  %6283 = vmatprep.subr.mxu0 0.0
  %6284 = vmatpush1.msra.mxu0 0.0
  %6285 = vmatprep.subr.mxu0 0.0
  %6286 = vmatpush1.msra.mxu0 0.0
  %6287 = vmatprep.mubr.f32.mxu0 0.0
  %6288 = vmatmul.mubr.f32.gmra.mrb[0].mxu0 %v5678
  %v6289 = vpop.f32.mrb[0].mxu0
  %v6290 = vadd.f32 %v5905, %v6289
  %v6291 = vpop.f32.mrb[0].mxu0
  %6292 = vmatprep.mubr.f32.mxu0 0.0
  %6293 = vmatmul.mubr.f32.gmra.mrb[0].mxu0 %v5679
  %v6294 = vpop.f32.mrb[0].mxu0
  %v6295 = vadd.f32 %v5910, %v6294
  %v6296 = vpop.f32.mrb[0].mxu0
  %6297 = vmatprep.mubr.f32.mxu0 0.0
  %6298 = vmatmul.mubr.f32.gmra.mrb[0].mxu0 %v5680
  %v6299 = vpop.f32.mrb[0].mxu0
  %v6300 = vadd.f32 %v5915, %v6299
  %v6301 = vpop.f32.mrb[0].mxu0
  %6302 = vmatprep.mubr.f32.mxu0 0.0
  %6303 = vmatmul.mubr.f32.gmra.mrb[0].mxu0 %v5681
  %v6304 = vpop.f32.mrb[0].mxu0
  %v6305 = vadd.f32 %v5920, %v6304
  %v6306 = vpop.f32.mrb[0].mxu0
  %6307 = vmatprep.mubr.f32.mxu0 0.0
  %6308 = vmatmul.mubr.f32.gmra.mrb[0].mxu0 %v5682
  %v6309 = vpop.f32.mrb[0].mxu0
  %v6310 = vadd.f32 %v5925, %v6309
  %v6311 = vpop.f32.mrb[0].mxu0
  %6312 = vmatprep.mubr.f32.mxu0 0.0
  %6313 = vmatmul.mubr.f32.gmra.mrb[0].mxu0 %v5683
  %v6314 = vpop.f32.mrb[0].mxu0
  %v6315 = vadd.f32 %v5930, %v6314
  %v6316 = vpop.f32.mrb[0].mxu0
  %6317 = vmatprep.mubr.f32.mxu0 0.0
  %6318 = vmatmul.mubr.f32.gmra.mrb[0].mxu0 %v5684
  %v6319 = vpop.f32.mrb[0].mxu0
  %v6320 = vadd.f32 %v5935, %v6319
  %v6321 = vpop.f32.mrb[0].mxu0
  %6322 = vmatprep.mubr.f32.mxu0 0.0
  %6323 = vmatmul.mubr.f32.gmra.mrb[0].mxu0 %v5685
  %v6324 = vpop.f32.mrb[0].mxu0
  %v6325 = vadd.f32 %v5940, %v6324
  %v6326 = vpop.f32.mrb[0].mxu0
  %6327 = vmatprep.mubr.f32.mxu0 0.0
  %6328 = vmatmul.mubr.f32.gmra.mrb[0].mxu0 %v5686
  %v6329 = vpop.f32.mrb[0].mxu0
  %v6330 = vadd.f32 %v5945, %v6329
  %v6331 = vpop.f32.mrb[0].mxu0
  %6332 = vmatprep.mubr.f32.mxu0 0.0
  %6333 = vmatmul.mubr.f32.gmra.mrb[0].mxu0 %v5687
  %v6334 = vpop.f32.mrb[0].mxu0
  %v6335 = vadd.f32 %v5950, %v6334
  %v6336 = vpop.f32.mrb[0].mxu0
  %6337 = vmatprep.mubr.f32.mxu0 0.0
  %6338 = vmatmul.mubr.f32.gmra.mrb[0].mxu0 %v5688
  %v6339 = vpop.f32.mrb[0].mxu0
  %v6340 = vadd.f32 %v5955, %v6339
  %v6341 = vpop.f32.mrb[0].mxu0
  %6342 = vmatprep.mubr.f32.mxu0 0.0
  %6343 = vmatmul.mubr.f32.gmra.mrb[0].mxu0 %v5689
  %v6344 = vpop.f32.mrb[0].mxu0
  %v6345 = vadd.f32 %v5960, %v6344
  %v6346 = vpop.f32.mrb[0].mxu0
  %6347 = vmatprep.mubr.f32.mxu0 0.0
  %6348 = vmatmul.mubr.f32.gmra.mrb[0].mxu0 %v5690
  %v6349 = vpop.f32.mrb[0].mxu0
  %v6350 = vadd.f32 %v5965, %v6349
  %v6351 = vpop.f32.mrb[0].mxu0
  %6352 = vmatprep.mubr.f32.mxu0 0.0
  %6353 = vmatmul.mubr.f32.gmra.mrb[0].mxu0 %v5691
  %v6354 = vpop.f32.mrb[0].mxu0
  %v6355 = vadd.f32 %v5970, %v6354
  %v6356 = vpop.f32.mrb[0].mxu0
  %6357 = vmatprep.mubr.f32.mxu0 0.0
  %6358 = vmatmul.mubr.f32.gmra.mrb[0].mxu0 %v5692
  %v6359 = vpop.f32.mrb[0].mxu0
  %v6360 = vadd.f32 %v5975, %v6359
  %v6361 = vpop.f32.mrb[0].mxu0
  %6362 = vmatprep.mubr.f32.mxu0 0.0
  %6363 = vmatmul.mubr.f32.gmra.mrb[0].mxu0 %v5693
  %v6364 = vpop.f32.mrb[0].mxu0
  %v6365 = vadd.f32 %v5980, %v6364
  %v6366 = vpop.f32.mrb[0].mxu0
  %6367 = vmatprep.mubr.f32.mxu0 0.0
  %6368 = vmatmul.mubr.f32.gmra.mrb[0].mxu0 %v5694
  %v6369 = vpop.f32.mrb[0].mxu0
  %v6370 = vadd.f32 %v5985, %v6369
  %v6371 = vpop.f32.mrb[0].mxu0
  %6372 = vmatprep.mubr.f32.mxu0 0.0
  %6373 = vmatmul.mubr.f32.gmra.mrb[0].mxu0 %v5695
  %v6374 = vpop.f32.mrb[0].mxu0
  %v6375 = vadd.f32 %v5990, %v6374
  %v6376 = vpop.f32.mrb[0].mxu0
  %6377 = vmatprep.mubr.f32.mxu0 0.0
  %6378 = vmatmul.mubr.f32.gmra.mrb[0].mxu0 %v5696
  %v6379 = vpop.f32.mrb[0].mxu0
  %v6380 = vadd.f32 %v5995, %v6379
  %v6381 = vpop.f32.mrb[0].mxu0
  %6382 = vmatprep.mubr.f32.mxu0 0.0
  %6383 = vmatmul.mubr.f32.gmra.mrb[0].mxu0 %v5697
  %v6384 = vpop.f32.mrb[0].mxu0
  %v6385 = vadd.f32 %v6000, %v6384
  %v6386 = vpop.f32.mrb[0].mxu0
  %6387 = vmatprep.mubr.f32.mxu0 0.0
  %6388 = vmatmul.mubr.f32.gmra.mrb[0].mxu0 %v5698
  %v6389 = vpop.f32.mrb[0].mxu0
  %v6390 = vadd.f32 %v6005, %v6389
  %v6391 = vpop.f32.mrb[0].mxu0
  %6392 = vmatprep.mubr.f32.mxu0 0.0
  %6393 = vmatmul.mubr.f32.gmra.mrb[0].mxu0 %v5699
  %v6394 = vpop.f32.mrb[0].mxu0
  %v6395 = vadd.f32 %v6010, %v6394
  %v6396 = vpop.f32.mrb[0].mxu0
  %6397 = vmatprep.mubr.f32.mxu0 0.0
  %6398 = vmatmul.mubr.f32.gmra.mrb[0].mxu0 %v5700
  %v6399 = vpop.f32.mrb[0].mxu0
  %v6400 = vadd.f32 %v6015, %v6399
  %v6401 = vpop.f32.mrb[0].mxu0
  %6402 = vmatprep.mubr.f32.mxu0 0.0
  %6403 = vmatmul.mubr.f32.gmra.mrb[0].mxu0 %v5701
  %v6404 = vpop.f32.mrb[0].mxu0
  %v6405 = vadd.f32 %v6020, %v6404
  %v6406 = vpop.f32.mrb[0].mxu0
  %6407 = vmatprep.mubr.f32.mxu0 0.0
  %6408 = vmatmul.mubr.f32.gmra.mrb[0].mxu0 %v5702
  %v6409 = vpop.f32.mrb[0].mxu0
  %v6410 = vadd.f32 %v6025, %v6409
  %v6411 = vpop.f32.mrb[0].mxu0
  %6412 = vmatprep.mubr.f32.mxu0 0.0
  %6413 = vmatmul.mubr.f32.gmra.mrb[0].mxu0 %v5703
  %v6414 = vpop.f32.mrb[0].mxu0
  %v6415 = vadd.f32 %v6030, %v6414
  %v6416 = vpop.f32.mrb[0].mxu0
  %6417 = vmatprep.mubr.f32.mxu0 0.0
  %6418 = vmatmul.mubr.f32.gmra.mrb[0].mxu0 %v5704
  %v6419 = vpop.f32.mrb[0].mxu0
  %v6420 = vadd.f32 %v6035, %v6419
  %v6421 = vpop.f32.mrb[0].mxu0
  %6422 = vmatprep.mubr.f32.mxu0 0.0
  %6423 = vmatmul.mubr.f32.gmra.mrb[0].mxu0 %v5705
  %v6424 = vpop.f32.mrb[0].mxu0
  %v6425 = vadd.f32 %v6040, %v6424
  %v6426 = vpop.f32.mrb[0].mxu0
  %6427 = vmatprep.mubr.f32.mxu0 0.0
  %6428 = vmatmul.mubr.f32.gmra.mrb[0].mxu0 %v5706
  %v6429 = vpop.f32.mrb[0].mxu0
  %v6430 = vadd.f32 %v6045, %v6429
  %v6431 = vpop.f32.mrb[0].mxu0
  %6432 = vmatprep.mubr.f32.mxu0 0.0
  %6433 = vmatmul.mubr.f32.gmra.mrb[0].mxu0 %v5707
  %v6434 = vpop.f32.mrb[0].mxu0
  %v6435 = vadd.f32 %v6050, %v6434
  %v6436 = vpop.f32.mrb[0].mxu0
  %6437 = vmatprep.mubr.f32.mxu0 0.0
  %6438 = vmatmul.mubr.f32.gmra.mrb[0].mxu0 %v5708
  %v6439 = vpop.f32.mrb[0].mxu0
  %v6440 = vadd.f32 %v6055, %v6439
  %v6441 = vpop.f32.mrb[0].mxu0
  %6442 = vmatprep.mubr.f32.mxu0 0.0
  %6443 = vmatmul.mubr.f32.gmra.mrb[0].mxu0 %v5709
  %v6444 = vpop.f32.mrb[0].mxu0
  %v6445 = vadd.f32 %v6060, %v6444
  %v6446 = vpop.f32.mrb[0].mxu0
  %6447 = vmatprep.mubr.f32.mxu0 0.0
  %6448 = vmatmul.mubr.f32.gmra.mrb[0].mxu0 %v5710
  %v6449 = vpop.f32.mrb[0].mxu0
  %v6450 = vadd.f32 %v6065, %v6449
  %v6451 = vpop.f32.mrb[0].mxu0
  %6452 = vmatprep.mubr.f32.mxu0 0.0
  %6453 = vmatmul.mubr.f32.gmra.mrb[0].mxu0 %v5711
  %v6454 = vpop.f32.mrb[0].mxu0
  %v6455 = vadd.f32 %v6070, %v6454
  %v6456 = vpop.f32.mrb[0].mxu0
  %6457 = vmatprep.mubr.f32.mxu0 0.0
  %6458 = vmatmul.mubr.f32.gmra.mrb[0].mxu0 %v5712
  %v6459 = vpop.f32.mrb[0].mxu0
  %v6460 = vadd.f32 %v6075, %v6459
  %v6461 = vpop.f32.mrb[0].mxu0
  %6462 = vmatprep.mubr.f32.mxu0 0.0
  %6463 = vmatmul.mubr.f32.gmra.mrb[0].mxu0 %v5713
  %v6464 = vpop.f32.mrb[0].mxu0
  %v6465 = vadd.f32 %v6080, %v6464
  %v6466 = vpop.f32.mrb[0].mxu0
  %6467 = vmatprep.mubr.f32.mxu0 0.0
  %6468 = vmatmul.mubr.f32.gmra.mrb[0].mxu0 %v5714
  %v6469 = vpop.f32.mrb[0].mxu0
  %v6470 = vadd.f32 %v6085, %v6469
  %v6471 = vpop.f32.mrb[0].mxu0
  %6472 = vmatprep.mubr.f32.mxu0 0.0
  %6473 = vmatmul.mubr.f32.gmra.mrb[0].mxu0 %v5715
  %v6474 = vpop.f32.mrb[0].mxu0
  %v6475 = vadd.f32 %v6090, %v6474
  %v6476 = vpop.f32.mrb[0].mxu0
  %6477 = vmatprep.mubr.f32.mxu0 0.0
  %6478 = vmatmul.mubr.f32.gmra.mrb[0].mxu0 %v5716
  %v6479 = vpop.f32.mrb[0].mxu0
  %v6480 = vadd.f32 %v6095, %v6479
  %v6481 = vpop.f32.mrb[0].mxu0
  %6482 = vmatprep.mubr.f32.mxu0 0.0
  %6483 = vmatmul.mubr.f32.gmra.mrb[0].mxu0 %v5717
  %v6484 = vpop.f32.mrb[0].mxu0
  %v6485 = vadd.f32 %v6100, %v6484
  %v6486 = vpop.f32.mrb[0].mxu0
  %6487 = vmatprep.mubr.f32.mxu0 0.0
  %6488 = vmatmul.mubr.f32.gmra.mrb[0].mxu0 %v5718
  %v6489 = vpop.f32.mrb[0].mxu0
  %v6490 = vadd.f32 %v6105, %v6489
  %v6491 = vpop.f32.mrb[0].mxu0
  %6492 = vmatprep.mubr.f32.mxu0 0.0
  %6493 = vmatmul.mubr.f32.gmra.mrb[0].mxu0 %v5719
  %v6494 = vpop.f32.mrb[0].mxu0
  %v6495 = vadd.f32 %v6110, %v6494
  %v6496 = vpop.f32.mrb[0].mxu0
  %6497 = vmatprep.mubr.f32.mxu0 0.0
  %6498 = vmatmul.mubr.f32.gmra.mrb[0].mxu0 %v5720
  %v6499 = vpop.f32.mrb[0].mxu0
  %v6500 = vadd.f32 %v6115, %v6499
  %v6501 = vpop.f32.mrb[0].mxu0
  %6502 = vmatprep.mubr.f32.mxu0 0.0
  %6503 = vmatmul.mubr.f32.gmra.mrb[0].mxu0 %v5721
  %v6504 = vpop.f32.mrb[0].mxu0
  %v6505 = vadd.f32 %v6120, %v6504
  %v6506 = vpop.f32.mrb[0].mxu0
  %6507 = vmatprep.mubr.f32.mxu0 0.0
  %6508 = vmatmul.mubr.f32.gmra.mrb[0].mxu0 %v5722
  %v6509 = vpop.f32.mrb[0].mxu0
  %v6510 = vadd.f32 %v6125, %v6509
  %v6511 = vpop.f32.mrb[0].mxu0
  %6512 = vmatprep.mubr.f32.mxu0 0.0
  %6513 = vmatmul.mubr.f32.gmra.mrb[0].mxu0 %v5723
  %v6514 = vpop.f32.mrb[0].mxu0
  %v6515 = vadd.f32 %v6130, %v6514
  %v6516 = vpop.f32.mrb[0].mxu0
  %6517 = vmatprep.mubr.f32.mxu0 0.0
  %6518 = vmatmul.mubr.f32.gmra.mrb[0].mxu0 %v5724
  %v6519 = vpop.f32.mrb[0].mxu0
  %v6520 = vadd.f32 %v6135, %v6519
  %v6521 = vpop.f32.mrb[0].mxu0
  %6522 = vmatprep.mubr.f32.mxu0 0.0
  %6523 = vmatmul.mubr.f32.gmra.mrb[0].mxu0 %v5725
  %v6524 = vpop.f32.mrb[0].mxu0
  %v6525 = vadd.f32 %v6140, %v6524
  %v6526 = vpop.f32.mrb[0].mxu0
  %6527 = vmatprep.mubr.f32.mxu0 0.0
  %6528 = vmatmul.mubr.f32.gmra.mrb[0].mxu0 %v5726
  %v6529 = vpop.f32.mrb[0].mxu0
  %v6530 = vadd.f32 %v6145, %v6529
  %v6531 = vpop.f32.mrb[0].mxu0
  %6532 = vmatprep.mubr.f32.mxu0 0.0
  %6533 = vmatmul.mubr.f32.gmra.mrb[0].mxu0 %v5727
  %v6534 = vpop.f32.mrb[0].mxu0
  %v6535 = vadd.f32 %v6150, %v6534
  %v6536 = vpop.f32.mrb[0].mxu0
  %6537 = vmatprep.mubr.f32.mxu0 0.0
  %6538 = vmatmul.mubr.f32.gmra.mrb[0].mxu0 %v5728
  %v6539 = vpop.f32.mrb[0].mxu0
  %v6540 = vadd.f32 %v6155, %v6539
  %v6541 = vpop.f32.mrb[0].mxu0
  %6542 = vmatprep.mubr.f32.mxu0 0.0
  %6543 = vmatmul.mubr.f32.gmra.mrb[0].mxu0 %v5729
  %v6544 = vpop.f32.mrb[0].mxu0
  %v6545 = vadd.f32 %v6160, %v6544
  %v6546 = vpop.f32.mrb[0].mxu0
  %6547 = vmatprep.mubr.f32.mxu0 0.0
  %6548 = vmatmul.mubr.f32.gmra.mrb[0].mxu0 %v5730
  %v6549 = vpop.f32.mrb[0].mxu0
  %v6550 = vadd.f32 %v6165, %v6549
  %v6551 = vpop.f32.mrb[0].mxu0
  %6552 = vmatprep.mubr.f32.mxu0 0.0
  %6553 = vmatmul.mubr.f32.gmra.mrb[0].mxu0 %v5731
  %v6554 = vpop.f32.mrb[0].mxu0
  %v6555 = vadd.f32 %v6170, %v6554
  %v6556 = vpop.f32.mrb[0].mxu0
  %6557 = vmatprep.mubr.f32.mxu0 0.0
  %6558 = vmatmul.mubr.f32.gmra.mrb[0].mxu0 %v5732
  %v6559 = vpop.f32.mrb[0].mxu0
  %v6560 = vadd.f32 %v6175, %v6559
  %v6561 = vpop.f32.mrb[0].mxu0
  %6562 = vmatprep.mubr.f32.mxu0 0.0
  %6563 = vmatmul.mubr.f32.gmra.mrb[0].mxu0 %v5733
  %v6564 = vpop.f32.mrb[0].mxu0
  %v6565 = vadd.f32 %v6180, %v6564
  %v6566 = vpop.f32.mrb[0].mxu0
  %6567 = vmatprep.mubr.f32.mxu0 0.0
  %6568 = vmatmul.mubr.f32.gmra.mrb[0].mxu0 %v5734
  %v6569 = vpop.f32.mrb[0].mxu0
  %v6570 = vadd.f32 %v6185, %v6569
  %v6571 = vpop.f32.mrb[0].mxu0
  %6572 = vmatprep.mubr.f32.mxu0 0.0
  %6573 = vmatmul.mubr.f32.gmra.mrb[0].mxu0 %v5735
  %v6574 = vpop.f32.mrb[0].mxu0
  %v6575 = vadd.f32 %v6190, %v6574
  %v6576 = vpop.f32.mrb[0].mxu0
  %6577 = vmatprep.mubr.f32.mxu0 0.0
  %6578 = vmatmul.mubr.f32.gmra.mrb[0].mxu0 %v5736
  %v6579 = vpop.f32.mrb[0].mxu0
  %v6580 = vadd.f32 %v6195, %v6579
  %v6581 = vpop.f32.mrb[0].mxu0
  %6582 = vmatprep.mubr.f32.mxu0 0.0
  %6583 = vmatmul.mubr.f32.gmra.mrb[0].mxu0 %v5737
  %v6584 = vpop.f32.mrb[0].mxu0
  %v6585 = vadd.f32 %v6200, %v6584
  %v6586 = vpop.f32.mrb[0].mxu0
  %6587 = vmatprep.mubr.f32.mxu0 0.0
  %6588 = vmatmul.mubr.f32.gmra.mrb[0].mxu0 %v5738
  %v6589 = vpop.f32.mrb[0].mxu0
  %v6590 = vadd.f32 %v6205, %v6589
  %v6591 = vpop.f32.mrb[0].mxu0
  %6592 = vmatprep.mubr.f32.mxu0 0.0
  %6593 = vmatmul.mubr.f32.gmra.mrb[0].mxu0 %v5739
  %v6594 = vpop.f32.mrb[0].mxu0
  %v6595 = vadd.f32 %v6210, %v6594
  %v6596 = vpop.f32.mrb[0].mxu0
  %6597 = vmatprep.mubr.f32.mxu0 0.0
  %6598 = vmatmul.mubr.f32.gmra.mrb[0].mxu0 %v5740
  %v6599 = vpop.f32.mrb[0].mxu0
  %v6600 = vadd.f32 %v6215, %v6599
  %v6601 = vpop.f32.mrb[0].mxu0
  %6602 = vmatprep.mubr.f32.mxu0 0.0
  %6603 = vmatmul.mubr.f32.gmra.mrb[0].mxu0 %v5741
  %v6604 = vpop.f32.mrb[0].mxu0
  %v6605 = vadd.f32 %v6220, %v6604
  %v6606 = vpop.f32.mrb[0].mxu0
  %6607 = vdwg.mxu0
  %v6608 = vld [vmem:[#allocation2 + $0x9] sm:$0xff]
  %v6609 = vld [vmem:[#allocation2 + $0x11] sm:$0xff]
  %v6610 = vld [vmem:[#allocation2 + $0x29] sm:$0xff]
  %v6611 = vld [vmem:[#allocation2 + $0x31] sm:$0xff]
  %v6612 = vld [vmem:[#allocation2 + $0x49] sm:$0xff]
  %v6613 = vld [vmem:[#allocation2 + $0x51] sm:$0xff]
  %v6614 = vld [vmem:[#allocation2 + $0x69] sm:$0xff]
  %v6615 = vld [vmem:[#allocation2 + $0x71] sm:$0xff]
  %v6616 = vld [vmem:[#allocation2 + $0x89] sm:$0xff]
  %v6617 = vld [vmem:[#allocation2 + $0x91] sm:$0xff]
  %v6618 = vld [vmem:[#allocation2 + $0xa9] sm:$0xff]
  %v6619 = vld [vmem:[#allocation2 + $0xb1] sm:$0xff]
  %v6620 = vld [vmem:[#allocation2 + $0xc9] sm:$0xff]
  %v6621 = vld [vmem:[#allocation2 + $0xd1] sm:$0xff]
  %v6622 = vld [vmem:[#allocation2 + $0xe9] sm:$0xff]
  %v6623 = vld [vmem:[#allocation2 + $0xf1] sm:$0xff]
  %v6624 = vld [vmem:[#allocation2 + $0x109] sm:$0xff]
  %v6625 = vld [vmem:[#allocation2 + $0x111] sm:$0xff]
  %v6626 = vld [vmem:[#allocation2 + $0x129] sm:$0xff]
  %v6627 = vld [vmem:[#allocation2 + $0x131] sm:$0xff]
  %v6628 = vld [vmem:[#allocation2 + $0x149] sm:$0xff]
  %v6629 = vld [vmem:[#allocation2 + $0x151] sm:$0xff]
  %v6630 = vld [vmem:[#allocation2 + $0x169] sm:$0xff]
  %v6631 = vld [vmem:[#allocation2 + $0x171] sm:$0xff]
  %v6632 = vld [vmem:[#allocation2 + $0x189] sm:$0xff]
  %v6633 = vld [vmem:[#allocation2 + $0x191] sm:$0xff]
  %v6634 = vld [vmem:[#allocation2 + $0x1a9] sm:$0xff]
  %v6635 = vld [vmem:[#allocation2 + $0x1b1] sm:$0xff]
  %v6636 = vld [vmem:[#allocation2 + $0x1c9] sm:$0xff]
  %v6637 = vld [vmem:[#allocation2 + $0x1d1] sm:$0xff]
  %v6638 = vld [vmem:[#allocation2 + $0x1e9] sm:$0xff]
  %v6639 = vld [vmem:[#allocation2 + $0x1f1] sm:$0xff]
  %v6640 = vld [vmem:[#allocation2 + $0x249] sm:$0xff]
  %v6641 = vld [vmem:[#allocation2 + $0x251] sm:$0xff]
  %v6642 = vld [vmem:[#allocation2 + $0x269] sm:$0xff]
  %v6643 = vld [vmem:[#allocation2 + $0x271] sm:$0xff]
  %v6644 = vld [vmem:[#allocation2 + $0x289] sm:$0xff]
  %v6645 = vld [vmem:[#allocation2 + $0x291] sm:$0xff]
  %v6646 = vld [vmem:[#allocation2 + $0x2a9] sm:$0xff]
  %v6647 = vld [vmem:[#allocation2 + $0x2b1] sm:$0xff]
  %v6648 = vld [vmem:[#allocation2 + $0x2c9] sm:$0xff]
  %v6649 = vld [vmem:[#allocation2 + $0x2d1] sm:$0xff]
  %v6650 = vld [vmem:[#allocation2 + $0x2e9] sm:$0xff]
  %v6651 = vld [vmem:[#allocation2 + $0x2f1] sm:$0xff]
  %v6652 = vld [vmem:[#allocation2 + $0x309] sm:$0xff]
  %v6653 = vld [vmem:[#allocation2 + $0x311] sm:$0xff]
  %v6654 = vld [vmem:[#allocation2 + $0x329] sm:$0xff]
  %v6655 = vld [vmem:[#allocation2 + $0x331] sm:$0xff]
  %v6656 = vld [vmem:[#allocation2 + $0x349] sm:$0xff]
  %v6657 = vld [vmem:[#allocation2 + $0x351] sm:$0xff]
  %v6658 = vld [vmem:[#allocation2 + $0x369] sm:$0xff]
  %v6659 = vld [vmem:[#allocation2 + $0x371] sm:$0xff]
  %v6660 = vld [vmem:[#allocation2 + $0x389] sm:$0xff]
  %v6661 = vld [vmem:[#allocation2 + $0x391] sm:$0xff]
  %v6662 = vld [vmem:[#allocation2 + $0x3a9] sm:$0xff]
  %v6663 = vld [vmem:[#allocation2 + $0x3b1] sm:$0xff]
  %v6664 = vld [vmem:[#allocation2 + $0x3c9] sm:$0xff]
  %v6665 = vld [vmem:[#allocation2 + $0x3d1] sm:$0xff]
  %v6666 = vld [vmem:[#allocation2 + $0x3e9] sm:$0xff]
  %v6667 = vld [vmem:[#allocation2 + $0x3f1] sm:$0xff]
  %v6668 = vld [vmem:[#allocation2 + $0x409] sm:$0xff]
  %v6669 = vld [vmem:[#allocation2 + $0x411] sm:$0xff]
  %v6670 = vld [vmem:[#allocation2 + $0x429] sm:$0xff]
  %v6671 = vld [vmem:[#allocation2 + $0x431] sm:$0xff]
  %v6672 = vld [vmem:[#allocation3 + $0x100] sm:$0xff]
  %v6673 = vld [vmem:[#allocation3 + $0x108] sm:$0xff]
  %v6674 = vld [vmem:[#allocation3 + $0x110] sm:$0xff]
  %v6675 = vld [vmem:[#allocation3 + $0x118] sm:$0xff]
  %v6676 = vld [vmem:[#allocation3 + $0x120] sm:$0xff]
  %v6677 = vld [vmem:[#allocation3 + $0x128] sm:$0xff]
  %v6678 = vld [vmem:[#allocation3 + $0x130] sm:$0xff]
  %v6679 = vld [vmem:[#allocation3 + $0x138] sm:$0xff]
  %v6680 = vld [vmem:[#allocation3 + $0x140] sm:$0xff]
  %v6681 = vld [vmem:[#allocation3 + $0x148] sm:$0xff]
  %v6682 = vld [vmem:[#allocation3 + $0x150] sm:$0xff]
  %v6683 = vld [vmem:[#allocation3 + $0x158] sm:$0xff]
  %v6684 = vld [vmem:[#allocation3 + $0x160] sm:$0xff]
  %v6685 = vld [vmem:[#allocation3 + $0x168] sm:$0xff]
  %v6686 = vld [vmem:[#allocation3 + $0x170] sm:$0xff]
  %v6687 = vld [vmem:[#allocation3 + $0x178] sm:$0xff]
  %6688 = vmatprep.subr.mxu0 0.0
  %6689 = vmatpush1.msra.mxu0 %v6672
  %6690 = vmatprep.subr.mxu0 0.0
  %6691 = vmatpush1.msra.mxu0 %v6673
  %6692 = vmatprep.subr.mxu0 0.0
  %6693 = vmatpush1.msra.mxu0 %v6674
  %6694 = vmatprep.subr.mxu0 0.0
  %6695 = vmatpush1.msra.mxu0 %v6675
  %6696 = vmatprep.subr.mxu0 0.0
  %6697 = vmatpush1.msra.mxu0 %v6676
  %6698 = vmatprep.subr.mxu0 0.0
  %6699 = vmatpush1.msra.mxu0 %v6677
  %6700 = vmatprep.subr.mxu0 0.0
  %6701 = vmatpush1.msra.mxu0 %v6678
  %6702 = vmatprep.subr.mxu0 0.0
  %6703 = vmatpush1.msra.mxu0 %v6679
  %6704 = vmatprep.subr.mxu0 0.0
  %6705 = vmatpush1.msra.mxu0 %v6680
  %6706 = vmatprep.subr.mxu0 0.0
  %6707 = vmatpush1.msra.mxu0 %v6681
  %6708 = vmatprep.subr.mxu0 0.0
  %6709 = vmatpush1.msra.mxu0 %v6682
  %6710 = vmatprep.subr.mxu0 0.0
  %6711 = vmatpush1.msra.mxu0 %v6683
  %6712 = vmatprep.subr.mxu0 0.0
  %6713 = vmatpush1.msra.mxu0 %v6684
  %6714 = vmatprep.subr.mxu0 0.0
  %6715 = vmatpush1.msra.mxu0 %v6685
  %6716 = vmatprep.subr.mxu0 0.0
  %6717 = vmatpush1.msra.mxu0 %v6686
  %6718 = vmatprep.subr.mxu0 0.0
  %6719 = vmatpush1.msra.mxu0 %v6687
  %6720 = vmatprep.subr.mxu0 0.0
  %6721 = vmatpush1.msra.mxu0 0.0
  %6722 = vmatprep.subr.mxu0 0.0
  %6723 = vmatpush1.msra.mxu0 0.0
  %6724 = vmatprep.subr.mxu0 0.0
  %6725 = vmatpush1.msra.mxu0 0.0
  %6726 = vmatprep.subr.mxu0 0.0
  %6727 = vmatpush1.msra.mxu0 0.0
  %6728 = vmatprep.subr.mxu0 0.0
  %6729 = vmatpush1.msra.mxu0 0.0
  %6730 = vmatprep.subr.mxu0 0.0
  %6731 = vmatpush1.msra.mxu0 0.0
  %6732 = vmatprep.subr.mxu0 0.0
  %6733 = vmatpush1.msra.mxu0 0.0
  %6734 = vmatprep.subr.mxu0 0.0
  %6735 = vmatpush1.msra.mxu0 0.0
  %6736 = vmatprep.subr.mxu0 0.0
  %6737 = vmatpush1.msra.mxu0 0.0
  %6738 = vmatprep.subr.mxu0 0.0
  %6739 = vmatpush1.msra.mxu0 0.0
  %6740 = vmatprep.subr.mxu0 0.0
  %6741 = vmatpush1.msra.mxu0 0.0
  %6742 = vmatprep.subr.mxu0 0.0
  %6743 = vmatpush1.msra.mxu0 0.0
  %6744 = vmatprep.subr.mxu0 0.0
  %6745 = vmatpush1.msra.mxu0 0.0
  %6746 = vmatprep.subr.mxu0 0.0
  %6747 = vmatpush1.msra.mxu0 0.0
  %6748 = vmatprep.subr.mxu0 0.0
  %6749 = vmatpush1.msra.mxu0 0.0
  %6750 = vmatprep.subr.mxu0 0.0
  %6751 = vmatpush1.msra.mxu0 0.0
  %6752 = vmatprep.mubr.f32.mxu0 0.0
  %6753 = vmatmul.mubr.f32.gmra.mrb[0].mxu0 %v6608
  %v6754 = vpop.f32.mrb[0].mxu0
  %v6755 = vadd.f32 0.0, %v6754
  %v6756 = vpop.f32.mrb[0].mxu0
  %6757 = vmatprep.mubr.f32.mxu0 0.0
  %6758 = vmatmul.mubr.f32.gmra.mrb[0].mxu0 %v6609
  %v6759 = vpop.f32.mrb[0].mxu0
  %v6760 = vadd.f32 0.0, %v6759
  %v6761 = vpop.f32.mrb[0].mxu0
  %6762 = vmatprep.mubr.f32.mxu0 0.0
  %6763 = vmatmul.mubr.f32.gmra.mrb[0].mxu0 %v6610
  %v6764 = vpop.f32.mrb[0].mxu0
  %v6765 = vadd.f32 0.0, %v6764
  %v6766 = vpop.f32.mrb[0].mxu0
  %6767 = vmatprep.mubr.f32.mxu0 0.0
  %6768 = vmatmul.mubr.f32.gmra.mrb[0].mxu0 %v6611
  %v6769 = vpop.f32.mrb[0].mxu0
  %v6770 = vadd.f32 0.0, %v6769
  %v6771 = vpop.f32.mrb[0].mxu0
  %6772 = vmatprep.mubr.f32.mxu0 0.0
  %6773 = vmatmul.mubr.f32.gmra.mrb[0].mxu0 %v6612
  %v6774 = vpop.f32.mrb[0].mxu0
  %v6775 = vadd.f32 0.0, %v6774
  %v6776 = vpop.f32.mrb[0].mxu0
  %6777 = vmatprep.mubr.f32.mxu0 0.0
  %6778 = vmatmul.mubr.f32.gmra.mrb[0].mxu0 %v6613
  %v6779 = vpop.f32.mrb[0].mxu0
  %v6780 = vadd.f32 0.0, %v6779
  %v6781 = vpop.f32.mrb[0].mxu0
  %6782 = vmatprep.mubr.f32.mxu0 0.0
  %6783 = vmatmul.mubr.f32.gmra.mrb[0].mxu0 %v6614
  %v6784 = vpop.f32.mrb[0].mxu0
  %v6785 = vadd.f32 0.0, %v6784
  %v6786 = vpop.f32.mrb[0].mxu0
  %6787 = vmatprep.mubr.f32.mxu0 0.0
  %6788 = vmatmul.mubr.f32.gmra.mrb[0].mxu0 %v6615
  %v6789 = vpop.f32.mrb[0].mxu0
  %v6790 = vadd.f32 0.0, %v6789
  %v6791 = vpop.f32.mrb[0].mxu0
  %6792 = vmatprep.mubr.f32.mxu0 0.0
  %6793 = vmatmul.mubr.f32.gmra.mrb[0].mxu0 %v6616
  %v6794 = vpop.f32.mrb[0].mxu0
  %v6795 = vadd.f32 0.0, %v6794
  %v6796 = vpop.f32.mrb[0].mxu0
  %6797 = vmatprep.mubr.f32.mxu0 0.0
  %6798 = vmatmul.mubr.f32.gmra.mrb[0].mxu0 %v6617
  %v6799 = vpop.f32.mrb[0].mxu0
  %v6800 = vadd.f32 0.0, %v6799
  %v6801 = vpop.f32.mrb[0].mxu0
  %6802 = vmatprep.mubr.f32.mxu0 0.0
  %6803 = vmatmul.mubr.f32.gmra.mrb[0].mxu0 %v6618
  %v6804 = vpop.f32.mrb[0].mxu0
  %v6805 = vadd.f32 0.0, %v6804
  %v6806 = vpop.f32.mrb[0].mxu0
  %6807 = vmatprep.mubr.f32.mxu0 0.0
  %6808 = vmatmul.mubr.f32.gmra.mrb[0].mxu0 %v6619
  %v6809 = vpop.f32.mrb[0].mxu0
  %v6810 = vadd.f32 0.0, %v6809
  %v6811 = vpop.f32.mrb[0].mxu0
  %6812 = vmatprep.mubr.f32.mxu0 0.0
  %6813 = vmatmul.mubr.f32.gmra.mrb[0].mxu0 %v6620
  %v6814 = vpop.f32.mrb[0].mxu0
  %v6815 = vadd.f32 0.0, %v6814
  %v6816 = vpop.f32.mrb[0].mxu0
  %6817 = vmatprep.mubr.f32.mxu0 0.0
  %6818 = vmatmul.mubr.f32.gmra.mrb[0].mxu0 %v6621
  %v6819 = vpop.f32.mrb[0].mxu0
  %v6820 = vadd.f32 0.0, %v6819
  %v6821 = vpop.f32.mrb[0].mxu0
  %6822 = vmatprep.mubr.f32.mxu0 0.0
  %6823 = vmatmul.mubr.f32.gmra.mrb[0].mxu0 %v6622
  %v6824 = vpop.f32.mrb[0].mxu0
  %v6825 = vadd.f32 0.0, %v6824
  %v6826 = vpop.f32.mrb[0].mxu0
  %6827 = vmatprep.mubr.f32.mxu0 0.0
  %6828 = vmatmul.mubr.f32.gmra.mrb[0].mxu0 %v6623
  %v6829 = vpop.f32.mrb[0].mxu0
  %v6830 = vadd.f32 0.0, %v6829
  %v6831 = vpop.f32.mrb[0].mxu0
  %6832 = vmatprep.mubr.f32.mxu0 0.0
  %6833 = vmatmul.mubr.f32.gmra.mrb[0].mxu0 %v6624
  %v6834 = vpop.f32.mrb[0].mxu0
  %v6835 = vadd.f32 0.0, %v6834
  %v6836 = vpop.f32.mrb[0].mxu0
  %6837 = vmatprep.mubr.f32.mxu0 0.0
  %6838 = vmatmul.mubr.f32.gmra.mrb[0].mxu0 %v6625
  %v6839 = vpop.f32.mrb[0].mxu0
  %v6840 = vadd.f32 0.0, %v6839
  %v6841 = vpop.f32.mrb[0].mxu0
  %6842 = vmatprep.mubr.f32.mxu0 0.0
  %6843 = vmatmul.mubr.f32.gmra.mrb[0].mxu0 %v6626
  %v6844 = vpop.f32.mrb[0].mxu0
  %v6845 = vadd.f32 0.0, %v6844
  %v6846 = vpop.f32.mrb[0].mxu0
  %6847 = vmatprep.mubr.f32.mxu0 0.0
  %6848 = vmatmul.mubr.f32.gmra.mrb[0].mxu0 %v6627
  %v6849 = vpop.f32.mrb[0].mxu0
  %v6850 = vadd.f32 0.0, %v6849
  %v6851 = vpop.f32.mrb[0].mxu0
  %6852 = vmatprep.mubr.f32.mxu0 0.0
  %6853 = vmatmul.mubr.f32.gmra.mrb[0].mxu0 %v6628
  %v6854 = vpop.f32.mrb[0].mxu0
  %v6855 = vadd.f32 0.0, %v6854
  %v6856 = vpop.f32.mrb[0].mxu0
  %6857 = vmatprep.mubr.f32.mxu0 0.0
  %6858 = vmatmul.mubr.f32.gmra.mrb[0].mxu0 %v6629
  %v6859 = vpop.f32.mrb[0].mxu0
  %v6860 = vadd.f32 0.0, %v6859
  %v6861 = vpop.f32.mrb[0].mxu0
  %6862 = vmatprep.mubr.f32.mxu0 0.0
  %6863 = vmatmul.mubr.f32.gmra.mrb[0].mxu0 %v6630
  %v6864 = vpop.f32.mrb[0].mxu0
  %v6865 = vadd.f32 0.0, %v6864
  %v6866 = vpop.f32.mrb[0].mxu0
  %6867 = vmatprep.mubr.f32.mxu0 0.0
  %6868 = vmatmul.mubr.f32.gmra.mrb[0].mxu0 %v6631
  %v6869 = vpop.f32.mrb[0].mxu0
  %v6870 = vadd.f32 0.0, %v6869
  %v6871 = vpop.f32.mrb[0].mxu0
  %6872 = vmatprep.mubr.f32.mxu0 0.0
  %6873 = vmatmul.mubr.f32.gmra.mrb[0].mxu0 %v6632
  %v6874 = vpop.f32.mrb[0].mxu0
  %v6875 = vadd.f32 0.0, %v6874
  %v6876 = vpop.f32.mrb[0].mxu0
  %6877 = vmatprep.mubr.f32.mxu0 0.0
  %6878 = vmatmul.mubr.f32.gmra.mrb[0].mxu0 %v6633
  %v6879 = vpop.f32.mrb[0].mxu0
  %v6880 = vadd.f32 0.0, %v6879
  %v6881 = vpop.f32.mrb[0].mxu0
  %6882 = vmatprep.mubr.f32.mxu0 0.0
  %6883 = vmatmul.mubr.f32.gmra.mrb[0].mxu0 %v6634
  %v6884 = vpop.f32.mrb[0].mxu0
  %v6885 = vadd.f32 0.0, %v6884
  %v6886 = vpop.f32.mrb[0].mxu0
  %6887 = vmatprep.mubr.f32.mxu0 0.0
  %6888 = vmatmul.mubr.f32.gmra.mrb[0].mxu0 %v6635
  %v6889 = vpop.f32.mrb[0].mxu0
  %v6890 = vadd.f32 0.0, %v6889
  %v6891 = vpop.f32.mrb[0].mxu0
  %6892 = vmatprep.mubr.f32.mxu0 0.0
  %6893 = vmatmul.mubr.f32.gmra.mrb[0].mxu0 %v6636
  %v6894 = vpop.f32.mrb[0].mxu0
  %v6895 = vadd.f32 0.0, %v6894
  %v6896 = vpop.f32.mrb[0].mxu0
  %6897 = vmatprep.mubr.f32.mxu0 0.0
  %6898 = vmatmul.mubr.f32.gmra.mrb[0].mxu0 %v6637
  %v6899 = vpop.f32.mrb[0].mxu0
  %v6900 = vadd.f32 0.0, %v6899
  %v6901 = vpop.f32.mrb[0].mxu0
  %6902 = vmatprep.mubr.f32.mxu0 0.0
  %6903 = vmatmul.mubr.f32.gmra.mrb[0].mxu0 %v6638
  %v6904 = vpop.f32.mrb[0].mxu0
  %v6905 = vadd.f32 0.0, %v6904
  %v6906 = vpop.f32.mrb[0].mxu0
  %6907 = vmatprep.mubr.f32.mxu0 0.0
  %6908 = vmatmul.mubr.f32.gmra.mrb[0].mxu0 %v6639
  %v6909 = vpop.f32.mrb[0].mxu0
  %v6910 = vadd.f32 0.0, %v6909
  %v6911 = vpop.f32.mrb[0].mxu0
  %6912 = vmatprep.mubr.f32.mxu0 0.0
  %6913 = vmatmul.mubr.f32.gmra.mrb[0].mxu0 %v6640
  %v6914 = vpop.f32.mrb[0].mxu0
  %v6915 = vadd.f32 0.0, %v6914
  %v6916 = vpop.f32.mrb[0].mxu0
  %6917 = vmatprep.mubr.f32.mxu0 0.0
  %6918 = vmatmul.mubr.f32.gmra.mrb[0].mxu0 %v6641
  %v6919 = vpop.f32.mrb[0].mxu0
  %v6920 = vadd.f32 0.0, %v6919
  %v6921 = vpop.f32.mrb[0].mxu0
  %6922 = vmatprep.mubr.f32.mxu0 0.0
  %6923 = vmatmul.mubr.f32.gmra.mrb[0].mxu0 %v6642
  %v6924 = vpop.f32.mrb[0].mxu0
  %v6925 = vadd.f32 0.0, %v6924
  %v6926 = vpop.f32.mrb[0].mxu0
  %6927 = vmatprep.mubr.f32.mxu0 0.0
  %6928 = vmatmul.mubr.f32.gmra.mrb[0].mxu0 %v6643
  %v6929 = vpop.f32.mrb[0].mxu0
  %v6930 = vadd.f32 0.0, %v6929
  %v6931 = vpop.f32.mrb[0].mxu0
  %6932 = vmatprep.mubr.f32.mxu0 0.0
  %6933 = vmatmul.mubr.f32.gmra.mrb[0].mxu0 %v6644
  %v6934 = vpop.f32.mrb[0].mxu0
  %v6935 = vadd.f32 0.0, %v6934
  %v6936 = vpop.f32.mrb[0].mxu0
  %6937 = vmatprep.mubr.f32.mxu0 0.0
  %6938 = vmatmul.mubr.f32.gmra.mrb[0].mxu0 %v6645
  %v6939 = vpop.f32.mrb[0].mxu0
  %v6940 = vadd.f32 0.0, %v6939
  %v6941 = vpop.f32.mrb[0].mxu0
  %6942 = vmatprep.mubr.f32.mxu0 0.0
  %6943 = vmatmul.mubr.f32.gmra.mrb[0].mxu0 %v6646
  %v6944 = vpop.f32.mrb[0].mxu0
  %v6945 = vadd.f32 0.0, %v6944
  %v6946 = vpop.f32.mrb[0].mxu0
  %6947 = vmatprep.mubr.f32.mxu0 0.0
  %6948 = vmatmul.mubr.f32.gmra.mrb[0].mxu0 %v6647
  %v6949 = vpop.f32.mrb[0].mxu0
  %v6950 = vadd.f32 0.0, %v6949
  %v6951 = vpop.f32.mrb[0].mxu0
  %6952 = vmatprep.mubr.f32.mxu0 0.0
  %6953 = vmatmul.mubr.f32.gmra.mrb[0].mxu0 %v6648
  %v6954 = vpop.f32.mrb[0].mxu0
  %v6955 = vadd.f32 0.0, %v6954
  %v6956 = vpop.f32.mrb[0].mxu0
  %6957 = vmatprep.mubr.f32.mxu0 0.0
  %6958 = vmatmul.mubr.f32.gmra.mrb[0].mxu0 %v6649
  %v6959 = vpop.f32.mrb[0].mxu0
  %v6960 = vadd.f32 0.0, %v6959
  %v6961 = vpop.f32.mrb[0].mxu0
  %6962 = vmatprep.mubr.f32.mxu0 0.0
  %6963 = vmatmul.mubr.f32.gmra.mrb[0].mxu0 %v6650
  %v6964 = vpop.f32.mrb[0].mxu0
  %v6965 = vadd.f32 0.0, %v6964
  %v6966 = vpop.f32.mrb[0].mxu0
  %6967 = vmatprep.mubr.f32.mxu0 0.0
  %6968 = vmatmul.mubr.f32.gmra.mrb[0].mxu0 %v6651
  %v6969 = vpop.f32.mrb[0].mxu0
  %v6970 = vadd.f32 0.0, %v6969
  %v6971 = vpop.f32.mrb[0].mxu0
  %6972 = vmatprep.mubr.f32.mxu0 0.0
  %6973 = vmatmul.mubr.f32.gmra.mrb[0].mxu0 %v6652
  %v6974 = vpop.f32.mrb[0].mxu0
  %v6975 = vadd.f32 0.0, %v6974
  %v6976 = vpop.f32.mrb[0].mxu0
  %6977 = vmatprep.mubr.f32.mxu0 0.0
  %6978 = vmatmul.mubr.f32.gmra.mrb[0].mxu0 %v6653
  %v6979 = vpop.f32.mrb[0].mxu0
  %v6980 = vadd.f32 0.0, %v6979
  %v6981 = vpop.f32.mrb[0].mxu0
  %6982 = vmatprep.mubr.f32.mxu0 0.0
  %6983 = vmatmul.mubr.f32.gmra.mrb[0].mxu0 %v6654
  %v6984 = vpop.f32.mrb[0].mxu0
  %v6985 = vadd.f32 0.0, %v6984
  %v6986 = vpop.f32.mrb[0].mxu0
  %6987 = vmatprep.mubr.f32.mxu0 0.0
  %6988 = vmatmul.mubr.f32.gmra.mrb[0].mxu0 %v6655
  %v6989 = vpop.f32.mrb[0].mxu0
  %v6990 = vadd.f32 0.0, %v6989
  %v6991 = vpop.f32.mrb[0].mxu0
  %6992 = vmatprep.mubr.f32.mxu0 0.0
  %6993 = vmatmul.mubr.f32.gmra.mrb[0].mxu0 %v6656
  %v6994 = vpop.f32.mrb[0].mxu0
  %v6995 = vadd.f32 0.0, %v6994
  %v6996 = vpop.f32.mrb[0].mxu0
  %6997 = vmatprep.mubr.f32.mxu0 0.0
  %6998 = vmatmul.mubr.f32.gmra.mrb[0].mxu0 %v6657
  %v6999 = vpop.f32.mrb[0].mxu0
  %v7000 = vadd.f32 0.0, %v6999
  %v7001 = vpop.f32.mrb[0].mxu0
  %7002 = vmatprep.mubr.f32.mxu0 0.0
  %7003 = vmatmul.mubr.f32.gmra.mrb[0].mxu0 %v6658
  %v7004 = vpop.f32.mrb[0].mxu0
  %v7005 = vadd.f32 0.0, %v7004
  %v7006 = vpop.f32.mrb[0].mxu0
  %7007 = vmatprep.mubr.f32.mxu0 0.0
  %7008 = vmatmul.mubr.f32.gmra.mrb[0].mxu0 %v6659
  %v7009 = vpop.f32.mrb[0].mxu0
  %v7010 = vadd.f32 0.0, %v7009
  %v7011 = vpop.f32.mrb[0].mxu0
  %7012 = vmatprep.mubr.f32.mxu0 0.0
  %7013 = vmatmul.mubr.f32.gmra.mrb[0].mxu0 %v6660
  %v7014 = vpop.f32.mrb[0].mxu0
  %v7015 = vadd.f32 0.0, %v7014
  %v7016 = vpop.f32.mrb[0].mxu0
  %7017 = vmatprep.mubr.f32.mxu0 0.0
  %7018 = vmatmul.mubr.f32.gmra.mrb[0].mxu0 %v6661
  %v7019 = vpop.f32.mrb[0].mxu0
  %v7020 = vadd.f32 0.0, %v7019
  %v7021 = vpop.f32.mrb[0].mxu0
  %7022 = vmatprep.mubr.f32.mxu0 0.0
  %7023 = vmatmul.mubr.f32.gmra.mrb[0].mxu0 %v6662
  %v7024 = vpop.f32.mrb[0].mxu0
  %v7025 = vadd.f32 0.0, %v7024
  %v7026 = vpop.f32.mrb[0].mxu0
  %7027 = vmatprep.mubr.f32.mxu0 0.0
  %7028 = vmatmul.mubr.f32.gmra.mrb[0].mxu0 %v6663
  %v7029 = vpop.f32.mrb[0].mxu0
  %v7030 = vadd.f32 0.0, %v7029
  %v7031 = vpop.f32.mrb[0].mxu0
  %7032 = vmatprep.mubr.f32.mxu0 0.0
  %7033 = vmatmul.mubr.f32.gmra.mrb[0].mxu0 %v6664
  %v7034 = vpop.f32.mrb[0].mxu0
  %v7035 = vadd.f32 0.0, %v7034
  %v7036 = vpop.f32.mrb[0].mxu0
  %7037 = vmatprep.mubr.f32.mxu0 0.0
  %7038 = vmatmul.mubr.f32.gmra.mrb[0].mxu0 %v6665
  %v7039 = vpop.f32.mrb[0].mxu0
  %v7040 = vadd.f32 0.0, %v7039
  %v7041 = vpop.f32.mrb[0].mxu0
  %7042 = vmatprep.mubr.f32.mxu0 0.0
  %7043 = vmatmul.mubr.f32.gmra.mrb[0].mxu0 %v6666
  %v7044 = vpop.f32.mrb[0].mxu0
  %v7045 = vadd.f32 0.0, %v7044
  %v7046 = vpop.f32.mrb[0].mxu0
  %7047 = vmatprep.mubr.f32.mxu0 0.0
  %7048 = vmatmul.mubr.f32.gmra.mrb[0].mxu0 %v6667
  %v7049 = vpop.f32.mrb[0].mxu0
  %v7050 = vadd.f32 0.0, %v7049
  %v7051 = vpop.f32.mrb[0].mxu0
  %7052 = vmatprep.mubr.f32.mxu0 0.0
  %7053 = vmatmul.mubr.f32.gmra.mrb[0].mxu0 %v6668
  %v7054 = vpop.f32.mrb[0].mxu0
  %v7055 = vadd.f32 0.0, %v7054
  %v7056 = vpop.f32.mrb[0].mxu0
  %7057 = vmatprep.mubr.f32.mxu0 0.0
  %7058 = vmatmul.mubr.f32.gmra.mrb[0].mxu0 %v6669
  %v7059 = vpop.f32.mrb[0].mxu0
  %v7060 = vadd.f32 0.0, %v7059
  %v7061 = vpop.f32.mrb[0].mxu0
  %7062 = vmatprep.mubr.f32.mxu0 0.0
  %7063 = vmatmul.mubr.f32.gmra.mrb[0].mxu0 %v6670
  %v7064 = vpop.f32.mrb[0].mxu0
  %v7065 = vadd.f32 0.0, %v7064
  %v7066 = vpop.f32.mrb[0].mxu0
  %7067 = vmatprep.mubr.f32.mxu0 0.0
  %7068 = vmatmul.mubr.f32.gmra.mrb[0].mxu0 %v6671
  %v7069 = vpop.f32.mrb[0].mxu0
  %v7070 = vadd.f32 0.0, %v7069
  %v7071 = vpop.f32.mrb[0].mxu0
  %7072 = vdwg.mxu0
  %v7073 = vadd.f32 %v6290, %v6755
  %v7074 = vadd.f32 %v6295, %v6760
  %v7075 = vadd.f32 %v6300, %v6765
  %v7076 = vadd.f32 %v6305, %v6770
  %v7077 = vadd.f32 %v6310, %v6775
  %v7078 = vadd.f32 %v6315, %v6780
  %v7079 = vadd.f32 %v6320, %v6785
  %v7080 = vadd.f32 %v6325, %v6790
  %v7081 = vadd.f32 %v6330, %v6795
  %v7082 = vadd.f32 %v6335, %v6800
  %v7083 = vadd.f32 %v6340, %v6805
  %v7084 = vadd.f32 %v6345, %v6810
  %v7085 = vadd.f32 %v6350, %v6815
  %v7086 = vadd.f32 %v6355, %v6820
  %v7087 = vadd.f32 %v6360, %v6825
  %v7088 = vadd.f32 %v6365, %v6830
  %v7089 = vadd.f32 %v6370, %v6835
  %v7090 = vadd.f32 %v6375, %v6840
  %v7091 = vadd.f32 %v6380, %v6845
  %v7092 = vadd.f32 %v6385, %v6850
  %v7093 = vadd.f32 %v6390, %v6855
  %v7094 = vadd.f32 %v6395, %v6860
  %v7095 = vadd.f32 %v6400, %v6865
  %v7096 = vadd.f32 %v6405, %v6870
  %v7097 = vadd.f32 %v6410, %v6875
  %v7098 = vadd.f32 %v6415, %v6880
  %v7099 = vadd.f32 %v6420, %v6885
  %v7100 = vadd.f32 %v6425, %v6890
  %v7101 = vadd.f32 %v6430, %v6895
  %v7102 = vadd.f32 %v6435, %v6900
  %v7103 = vadd.f32 %v6440, %v6905
  %v7104 = vadd.f32 %v6445, %v6910
  %v7105 = vadd.f32 %v6450, %v6915
  %v7106 = vadd.f32 %v6455, %v6920
  %v7107 = vadd.f32 %v6460, %v6925
  %v7108 = vadd.f32 %v6465, %v6930
  %v7109 = vadd.f32 %v6470, %v6935
  %v7110 = vadd.f32 %v6475, %v6940
  %v7111 = vadd.f32 %v6480, %v6945
  %v7112 = vadd.f32 %v6485, %v6950
  %v7113 = vadd.f32 %v6490, %v6955
  %v7114 = vadd.f32 %v6495, %v6960
  %v7115 = vadd.f32 %v6500, %v6965
  %v7116 = vadd.f32 %v6505, %v6970
  %v7117 = vadd.f32 %v6510, %v6975
  %v7118 = vadd.f32 %v6515, %v6980
  %v7119 = vadd.f32 %v6520, %v6985
  %v7120 = vadd.f32 %v6525, %v6990
  %v7121 = vadd.f32 %v6530, %v6995
  %v7122 = vadd.f32 %v6535, %v7000
  %v7123 = vadd.f32 %v6540, %v7005
  %v7124 = vadd.f32 %v6545, %v7010
  %v7125 = vadd.f32 %v6550, %v7015
  %v7126 = vadd.f32 %v6555, %v7020
  %v7127 = vadd.f32 %v6560, %v7025
  %v7128 = vadd.f32 %v6565, %v7030
  %v7129 = vadd.f32 %v6570, %v7035
  %v7130 = vadd.f32 %v6575, %v7040
  %v7131 = vadd.f32 %v6580, %v7045
  %v7132 = vadd.f32 %v6585, %v7050
  %v7133 = vadd.f32 %v6590, %v7055
  %v7134 = vadd.f32 %v6595, %v7060
  %v7135 = vadd.f32 %v6600, %v7065
  %v7136 = vadd.f32 %v6605, %v7070
  %v7137 = vld [vmem:[%s378 + $0x7] sm:$0xff]
  %v7138 = vld [vmem:[%s378 + $0xf] sm:$0xff]
  %v7139 = vld [vmem:[%s378 + $0x27] sm:$0xff]
  %v7140 = vld [vmem:[%s378 + $0x2f] sm:$0xff]
  %v7141 = vld [vmem:[%s378 + $0x47] sm:$0xff]
  %v7142 = vld [vmem:[%s378 + $0x4f] sm:$0xff]
  %v7143 = vld [vmem:[%s378 + $0x67] sm:$0xff]
  %v7144 = vld [vmem:[%s378 + $0x6f] sm:$0xff]
  %v7145 = vld [vmem:[%s378 + $0x87] sm:$0xff]
  %v7146 = vld [vmem:[%s378 + $0x8f] sm:$0xff]
  %v7147 = vld [vmem:[%s378 + $0xa7] sm:$0xff]
  %v7148 = vld [vmem:[%s378 + $0xaf] sm:$0xff]
  %v7149 = vld [vmem:[%s378 + $0xc7] sm:$0xff]
  %v7150 = vld [vmem:[%s378 + $0xcf] sm:$0xff]
  %v7151 = vld [vmem:[%s378 + $0xe7] sm:$0xff]
  %v7152 = vld [vmem:[%s378 + $0xef] sm:$0xff]
  %v7153 = vld [vmem:[%s378 + $0x107] sm:$0xff]
  %v7154 = vld [vmem:[%s378 + $0x10f] sm:$0xff]
  %v7155 = vld [vmem:[%s378 + $0x127] sm:$0xff]
  %v7156 = vld [vmem:[%s378 + $0x12f] sm:$0xff]
  %v7157 = vld [vmem:[%s378 + $0x147] sm:$0xff]
  %v7158 = vld [vmem:[%s378 + $0x14f] sm:$0xff]
  %v7159 = vld [vmem:[%s378 + $0x167] sm:$0xff]
  %v7160 = vld [vmem:[%s378 + $0x16f] sm:$0xff]
  %v7161 = vld [vmem:[%s378 + $0x187] sm:$0xff]
  %v7162 = vld [vmem:[%s378 + $0x18f] sm:$0xff]
  %v7163 = vld [vmem:[%s378 + $0x1a7] sm:$0xff]
  %v7164 = vld [vmem:[%s378 + $0x1af] sm:$0xff]
  %v7165 = vld [vmem:[%s378 + $0x1c7] sm:$0xff]
  %v7166 = vld [vmem:[%s378 + $0x1cf] sm:$0xff]
  %v7167 = vld [vmem:[%s378 + $0x1e7] sm:$0xff]
  %v7168 = vld [vmem:[%s378 + $0x1ef] sm:$0xff]
  %v7169 = vld [vmem:[%s378 + $0x247] sm:$0xff]
  %v7170 = vld [vmem:[%s378 + $0x24f] sm:$0xff]
  %v7171 = vld [vmem:[%s378 + $0x267] sm:$0xff]
  %v7172 = vld [vmem:[%s378 + $0x26f] sm:$0xff]
  %v7173 = vld [vmem:[%s378 + $0x287] sm:$0xff]
  %v7174 = vld [vmem:[%s378 + $0x28f] sm:$0xff]
  %v7175 = vld [vmem:[%s378 + $0x2a7] sm:$0xff]
  %v7176 = vld [vmem:[%s378 + $0x2af] sm:$0xff]
  %v7177 = vld [vmem:[%s378 + $0x2c7] sm:$0xff]
  %v7178 = vld [vmem:[%s378 + $0x2cf] sm:$0xff]
  %v7179 = vld [vmem:[%s378 + $0x2e7] sm:$0xff]
  %v7180 = vld [vmem:[%s378 + $0x2ef] sm:$0xff]
  %v7181 = vld [vmem:[%s378 + $0x307] sm:$0xff]
  %v7182 = vld [vmem:[%s378 + $0x30f] sm:$0xff]
  %v7183 = vld [vmem:[%s378 + $0x327] sm:$0xff]
  %v7184 = vld [vmem:[%s378 + $0x32f] sm:$0xff]
  %v7185 = vld [vmem:[%s378 + $0x347] sm:$0xff]
  %v7186 = vld [vmem:[%s378 + $0x34f] sm:$0xff]
  %v7187 = vld [vmem:[%s378 + $0x367] sm:$0xff]
  %v7188 = vld [vmem:[%s378 + $0x36f] sm:$0xff]
  %v7189 = vld [vmem:[%s378 + $0x387] sm:$0xff]
  %v7190 = vld [vmem:[%s378 + $0x38f] sm:$0xff]
  %v7191 = vld [vmem:[%s378 + $0x3a7] sm:$0xff]
  %v7192 = vld [vmem:[%s378 + $0x3af] sm:$0xff]
  %v7193 = vld [vmem:[%s378 + $0x3c7] sm:$0xff]
  %v7194 = vld [vmem:[%s378 + $0x3cf] sm:$0xff]
  %v7195 = vld [vmem:[%s378 + $0x3e7] sm:$0xff]
  %v7196 = vld [vmem:[%s378 + $0x3ef] sm:$0xff]
  %v7197 = vld [vmem:[%s378 + $0x407] sm:$0xff]
  %v7198 = vld [vmem:[%s378 + $0x40f] sm:$0xff]
  %v7199 = vld [vmem:[%s378 + $0x427] sm:$0xff]
  %v7200 = vld [vmem:[%s378 + $0x42f] sm:$0xff]
  %v7201 = vld [vmem:[#allocation3 + $0x180] sm:$0xff]
  %v7202 = vld [vmem:[#allocation3 + $0x188] sm:$0xff]
  %v7203 = vld [vmem:[#allocation3 + $0x190] sm:$0xff]
  %v7204 = vld [vmem:[#allocation3 + $0x198] sm:$0xff]
  %v7205 = vld [vmem:[#allocation3 + $0x1a0] sm:$0xff]
  %v7206 = vld [vmem:[#allocation3 + $0x1a8] sm:$0xff]
  %v7207 = vld [vmem:[#allocation3 + $0x1b0] sm:$0xff]
  %v7208 = vld [vmem:[#allocation3 + $0x1b8] sm:$0xff]
  %v7209 = vld [vmem:[#allocation3 + $0x1c0] sm:$0xff]
  %v7210 = vld [vmem:[#allocation3 + $0x1c8] sm:$0xff]
  %v7211 = vld [vmem:[#allocation3 + $0x1d0] sm:$0xff]
  %v7212 = vld [vmem:[#allocation3 + $0x1d8] sm:$0xff]
  %v7213 = vld [vmem:[#allocation3 + $0x1e0] sm:$0xff]
  %v7214 = vld [vmem:[#allocation3 + $0x1e8] sm:$0xff]
  %v7215 = vld [vmem:[#allocation3 + $0x1f0] sm:$0xff]
  %v7216 = vld [vmem:[#allocation3 + $0x1f8] sm:$0xff]
  %7217 = vmatprep.subr.mxu0 0.0
  %7218 = vmatpush1.msra.mxu0 %v7201
  %7219 = vmatprep.subr.mxu0 0.0
  %7220 = vmatpush1.msra.mxu0 %v7202
  %7221 = vmatprep.subr.mxu0 0.0
  %7222 = vmatpush1.msra.mxu0 %v7203
  %7223 = vmatprep.subr.mxu0 0.0
  %7224 = vmatpush1.msra.mxu0 %v7204
  %7225 = vmatprep.subr.mxu0 0.0
  %7226 = vmatpush1.msra.mxu0 %v7205
  %7227 = vmatprep.subr.mxu0 0.0
  %7228 = vmatpush1.msra.mxu0 %v7206
  %7229 = vmatprep.subr.mxu0 0.0
  %7230 = vmatpush1.msra.mxu0 %v7207
  %7231 = vmatprep.subr.mxu0 0.0
  %7232 = vmatpush1.msra.mxu0 %v7208
  %7233 = vmatprep.subr.mxu0 0.0
  %7234 = vmatpush1.msra.mxu0 %v7209
  %7235 = vmatprep.subr.mxu0 0.0
  %7236 = vmatpush1.msra.mxu0 %v7210
  %7237 = vmatprep.subr.mxu0 0.0
  %7238 = vmatpush1.msra.mxu0 %v7211
  %7239 = vmatprep.subr.mxu0 0.0
  %7240 = vmatpush1.msra.mxu0 %v7212
  %7241 = vmatprep.subr.mxu0 0.0
  %7242 = vmatpush1.msra.mxu0 %v7213
  %7243 = vmatprep.subr.mxu0 0.0
  %7244 = vmatpush1.msra.mxu0 %v7214
  %7245 = vmatprep.subr.mxu0 0.0
  %7246 = vmatpush1.msra.mxu0 %v7215
  %7247 = vmatprep.subr.mxu0 0.0
  %7248 = vmatpush1.msra.mxu0 %v7216
  %7249 = vmatprep.subr.mxu0 0.0
  %7250 = vmatpush1.msra.mxu0 0.0
  %7251 = vmatprep.subr.mxu0 0.0
  %7252 = vmatpush1.msra.mxu0 0.0
  %7253 = vmatprep.subr.mxu0 0.0
  %7254 = vmatpush1.msra.mxu0 0.0
  %7255 = vmatprep.subr.mxu0 0.0
  %7256 = vmatpush1.msra.mxu0 0.0
  %7257 = vmatprep.subr.mxu0 0.0
  %7258 = vmatpush1.msra.mxu0 0.0
  %7259 = vmatprep.subr.mxu0 0.0
  %7260 = vmatpush1.msra.mxu0 0.0
  %7261 = vmatprep.subr.mxu0 0.0
  %7262 = vmatpush1.msra.mxu0 0.0
  %7263 = vmatprep.subr.mxu0 0.0
  %7264 = vmatpush1.msra.mxu0 0.0
  %7265 = vmatprep.subr.mxu0 0.0
  %7266 = vmatpush1.msra.mxu0 0.0
  %7267 = vmatprep.subr.mxu0 0.0
  %7268 = vmatpush1.msra.mxu0 0.0
  %7269 = vmatprep.subr.mxu0 0.0
  %7270 = vmatpush1.msra.mxu0 0.0
  %7271 = vmatprep.subr.mxu0 0.0
  %7272 = vmatpush1.msra.mxu0 0.0
  %7273 = vmatprep.subr.mxu0 0.0
  %7274 = vmatpush1.msra.mxu0 0.0
  %7275 = vmatprep.subr.mxu0 0.0
  %7276 = vmatpush1.msra.mxu0 0.0
  %7277 = vmatprep.subr.mxu0 0.0
  %7278 = vmatpush1.msra.mxu0 0.0
  %7279 = vmatprep.subr.mxu0 0.0
  %7280 = vmatpush1.msra.mxu0 0.0
  %7281 = vmatprep.mubr.f32.mxu0 0.0
  %7282 = vmatmul.mubr.f32.gmra.mrb[0].mxu0 %v7137
  %v7283 = vpop.f32.mrb[0].mxu0
  %v7284 = vadd.f32 0.0, %v7283
  %v7285 = vpop.f32.mrb[0].mxu0
  %7286 = vmatprep.mubr.f32.mxu0 0.0
  %7287 = vmatmul.mubr.f32.gmra.mrb[0].mxu0 %v7138
  %v7288 = vpop.f32.mrb[0].mxu0
  %v7289 = vadd.f32 0.0, %v7288
  %v7290 = vpop.f32.mrb[0].mxu0
  %7291 = vmatprep.mubr.f32.mxu0 0.0
  %7292 = vmatmul.mubr.f32.gmra.mrb[0].mxu0 %v7139
  %v7293 = vpop.f32.mrb[0].mxu0
  %v7294 = vadd.f32 0.0, %v7293
  %v7295 = vpop.f32.mrb[0].mxu0
  %7296 = vmatprep.mubr.f32.mxu0 0.0
  %7297 = vmatmul.mubr.f32.gmra.mrb[0].mxu0 %v7140
  %v7298 = vpop.f32.mrb[0].mxu0
  %v7299 = vadd.f32 0.0, %v7298
  %v7300 = vpop.f32.mrb[0].mxu0
  %7301 = vmatprep.mubr.f32.mxu0 0.0
  %7302 = vmatmul.mubr.f32.gmra.mrb[0].mxu0 %v7141
  %v7303 = vpop.f32.mrb[0].mxu0
  %v7304 = vadd.f32 0.0, %v7303
  %v7305 = vpop.f32.mrb[0].mxu0
  %7306 = vmatprep.mubr.f32.mxu0 0.0
  %7307 = vmatmul.mubr.f32.gmra.mrb[0].mxu0 %v7142
  %v7308 = vpop.f32.mrb[0].mxu0
  %v7309 = vadd.f32 0.0, %v7308
  %v7310 = vpop.f32.mrb[0].mxu0
  %7311 = vmatprep.mubr.f32.mxu0 0.0
  %7312 = vmatmul.mubr.f32.gmra.mrb[0].mxu0 %v7143
  %v7313 = vpop.f32.mrb[0].mxu0
  %v7314 = vadd.f32 0.0, %v7313
  %v7315 = vpop.f32.mrb[0].mxu0
  %7316 = vmatprep.mubr.f32.mxu0 0.0
  %7317 = vmatmul.mubr.f32.gmra.mrb[0].mxu0 %v7144
  %v7318 = vpop.f32.mrb[0].mxu0
  %v7319 = vadd.f32 0.0, %v7318
  %v7320 = vpop.f32.mrb[0].mxu0
  %7321 = vmatprep.mubr.f32.mxu0 0.0
  %7322 = vmatmul.mubr.f32.gmra.mrb[0].mxu0 %v7145
  %v7323 = vpop.f32.mrb[0].mxu0
  %v7324 = vadd.f32 0.0, %v7323
  %v7325 = vpop.f32.mrb[0].mxu0
  %7326 = vmatprep.mubr.f32.mxu0 0.0
  %7327 = vmatmul.mubr.f32.gmra.mrb[0].mxu0 %v7146
  %v7328 = vpop.f32.mrb[0].mxu0
  %v7329 = vadd.f32 0.0, %v7328
  %v7330 = vpop.f32.mrb[0].mxu0
  %7331 = vmatprep.mubr.f32.mxu0 0.0
  %7332 = vmatmul.mubr.f32.gmra.mrb[0].mxu0 %v7147
  %v7333 = vpop.f32.mrb[0].mxu0
  %v7334 = vadd.f32 0.0, %v7333
  %v7335 = vpop.f32.mrb[0].mxu0
  %7336 = vmatprep.mubr.f32.mxu0 0.0
  %7337 = vmatmul.mubr.f32.gmra.mrb[0].mxu0 %v7148
  %v7338 = vpop.f32.mrb[0].mxu0
  %v7339 = vadd.f32 0.0, %v7338
  %v7340 = vpop.f32.mrb[0].mxu0
  %7341 = vmatprep.mubr.f32.mxu0 0.0
  %7342 = vmatmul.mubr.f32.gmra.mrb[0].mxu0 %v7149
  %v7343 = vpop.f32.mrb[0].mxu0
  %v7344 = vadd.f32 0.0, %v7343
  %v7345 = vpop.f32.mrb[0].mxu0
  %7346 = vmatprep.mubr.f32.mxu0 0.0
  %7347 = vmatmul.mubr.f32.gmra.mrb[0].mxu0 %v7150
  %v7348 = vpop.f32.mrb[0].mxu0
  %v7349 = vadd.f32 0.0, %v7348
  %v7350 = vpop.f32.mrb[0].mxu0
  %7351 = vmatprep.mubr.f32.mxu0 0.0
  %7352 = vmatmul.mubr.f32.gmra.mrb[0].mxu0 %v7151
  %v7353 = vpop.f32.mrb[0].mxu0
  %v7354 = vadd.f32 0.0, %v7353
  %v7355 = vpop.f32.mrb[0].mxu0
  %7356 = vmatprep.mubr.f32.mxu0 0.0
  %7357 = vmatmul.mubr.f32.gmra.mrb[0].mxu0 %v7152
  %v7358 = vpop.f32.mrb[0].mxu0
  %v7359 = vadd.f32 0.0, %v7358
  %v7360 = vpop.f32.mrb[0].mxu0
  %7361 = vmatprep.mubr.f32.mxu0 0.0
  %7362 = vmatmul.mubr.f32.gmra.mrb[0].mxu0 %v7153
  %v7363 = vpop.f32.mrb[0].mxu0
  %v7364 = vadd.f32 0.0, %v7363
  %v7365 = vpop.f32.mrb[0].mxu0
  %7366 = vmatprep.mubr.f32.mxu0 0.0
  %7367 = vmatmul.mubr.f32.gmra.mrb[0].mxu0 %v7154
  %v7368 = vpop.f32.mrb[0].mxu0
  %v7369 = vadd.f32 0.0, %v7368
  %v7370 = vpop.f32.mrb[0].mxu0
  %7371 = vmatprep.mubr.f32.mxu0 0.0
  %7372 = vmatmul.mubr.f32.gmra.mrb[0].mxu0 %v7155
  %v7373 = vpop.f32.mrb[0].mxu0
  %v7374 = vadd.f32 0.0, %v7373
  %v7375 = vpop.f32.mrb[0].mxu0
  %7376 = vmatprep.mubr.f32.mxu0 0.0
  %7377 = vmatmul.mubr.f32.gmra.mrb[0].mxu0 %v7156
  %v7378 = vpop.f32.mrb[0].mxu0
  %v7379 = vadd.f32 0.0, %v7378
  %v7380 = vpop.f32.mrb[0].mxu0
  %7381 = vmatprep.mubr.f32.mxu0 0.0
  %7382 = vmatmul.mubr.f32.gmra.mrb[0].mxu0 %v7157
  %v7383 = vpop.f32.mrb[0].mxu0
  %v7384 = vadd.f32 0.0, %v7383
  %v7385 = vpop.f32.mrb[0].mxu0
  %7386 = vmatprep.mubr.f32.mxu0 0.0
  %7387 = vmatmul.mubr.f32.gmra.mrb[0].mxu0 %v7158
  %v7388 = vpop.f32.mrb[0].mxu0
  %v7389 = vadd.f32 0.0, %v7388
  %v7390 = vpop.f32.mrb[0].mxu0
  %7391 = vmatprep.mubr.f32.mxu0 0.0
  %7392 = vmatmul.mubr.f32.gmra.mrb[0].mxu0 %v7159
  %v7393 = vpop.f32.mrb[0].mxu0
  %v7394 = vadd.f32 0.0, %v7393
  %v7395 = vpop.f32.mrb[0].mxu0
  %7396 = vmatprep.mubr.f32.mxu0 0.0
  %7397 = vmatmul.mubr.f32.gmra.mrb[0].mxu0 %v7160
  %v7398 = vpop.f32.mrb[0].mxu0
  %v7399 = vadd.f32 0.0, %v7398
  %v7400 = vpop.f32.mrb[0].mxu0
  %7401 = vmatprep.mubr.f32.mxu0 0.0
  %7402 = vmatmul.mubr.f32.gmra.mrb[0].mxu0 %v7161
  %v7403 = vpop.f32.mrb[0].mxu0
  %v7404 = vadd.f32 0.0, %v7403
  %v7405 = vpop.f32.mrb[0].mxu0
  %7406 = vmatprep.mubr.f32.mxu0 0.0
  %7407 = vmatmul.mubr.f32.gmra.mrb[0].mxu0 %v7162
  %v7408 = vpop.f32.mrb[0].mxu0
  %v7409 = vadd.f32 0.0, %v7408
  %v7410 = vpop.f32.mrb[0].mxu0
  %7411 = vmatprep.mubr.f32.mxu0 0.0
  %7412 = vmatmul.mubr.f32.gmra.mrb[0].mxu0 %v7163
  %v7413 = vpop.f32.mrb[0].mxu0
  %v7414 = vadd.f32 0.0, %v7413
  %v7415 = vpop.f32.mrb[0].mxu0
  %7416 = vmatprep.mubr.f32.mxu0 0.0
  %7417 = vmatmul.mubr.f32.gmra.mrb[0].mxu0 %v7164
  %v7418 = vpop.f32.mrb[0].mxu0
  %v7419 = vadd.f32 0.0, %v7418
  %v7420 = vpop.f32.mrb[0].mxu0
  %7421 = vmatprep.mubr.f32.mxu0 0.0
  %7422 = vmatmul.mubr.f32.gmra.mrb[0].mxu0 %v7165
  %v7423 = vpop.f32.mrb[0].mxu0
  %v7424 = vadd.f32 0.0, %v7423
  %v7425 = vpop.f32.mrb[0].mxu0
  %7426 = vmatprep.mubr.f32.mxu0 0.0
  %7427 = vmatmul.mubr.f32.gmra.mrb[0].mxu0 %v7166
  %v7428 = vpop.f32.mrb[0].mxu0
  %v7429 = vadd.f32 0.0, %v7428
  %v7430 = vpop.f32.mrb[0].mxu0
  %7431 = vmatprep.mubr.f32.mxu0 0.0
  %7432 = vmatmul.mubr.f32.gmra.mrb[0].mxu0 %v7167
  %v7433 = vpop.f32.mrb[0].mxu0
  %v7434 = vadd.f32 0.0, %v7433
  %v7435 = vpop.f32.mrb[0].mxu0
  %7436 = vmatprep.mubr.f32.mxu0 0.0
  %7437 = vmatmul.mubr.f32.gmra.mrb[0].mxu0 %v7168
  %v7438 = vpop.f32.mrb[0].mxu0
  %v7439 = vadd.f32 0.0, %v7438
  %v7440 = vpop.f32.mrb[0].mxu0
  %7441 = vmatprep.mubr.f32.mxu0 0.0
  %7442 = vmatmul.mubr.f32.gmra.mrb[0].mxu0 %v7169
  %v7443 = vpop.f32.mrb[0].mxu0
  %v7444 = vadd.f32 0.0, %v7443
  %v7445 = vpop.f32.mrb[0].mxu0
  %7446 = vmatprep.mubr.f32.mxu0 0.0
  %7447 = vmatmul.mubr.f32.gmra.mrb[0].mxu0 %v7170
  %v7448 = vpop.f32.mrb[0].mxu0
  %v7449 = vadd.f32 0.0, %v7448
  %v7450 = vpop.f32.mrb[0].mxu0
  %7451 = vmatprep.mubr.f32.mxu0 0.0
  %7452 = vmatmul.mubr.f32.gmra.mrb[0].mxu0 %v7171
  %v7453 = vpop.f32.mrb[0].mxu0
  %v7454 = vadd.f32 0.0, %v7453
  %v7455 = vpop.f32.mrb[0].mxu0
  %7456 = vmatprep.mubr.f32.mxu0 0.0
  %7457 = vmatmul.mubr.f32.gmra.mrb[0].mxu0 %v7172
  %v7458 = vpop.f32.mrb[0].mxu0
  %v7459 = vadd.f32 0.0, %v7458
  %v7460 = vpop.f32.mrb[0].mxu0
  %7461 = vmatprep.mubr.f32.mxu0 0.0
  %7462 = vmatmul.mubr.f32.gmra.mrb[0].mxu0 %v7173
  %v7463 = vpop.f32.mrb[0].mxu0
  %v7464 = vadd.f32 0.0, %v7463
  %v7465 = vpop.f32.mrb[0].mxu0
  %7466 = vmatprep.mubr.f32.mxu0 0.0
  %7467 = vmatmul.mubr.f32.gmra.mrb[0].mxu0 %v7174
  %v7468 = vpop.f32.mrb[0].mxu0
  %v7469 = vadd.f32 0.0, %v7468
  %v7470 = vpop.f32.mrb[0].mxu0
  %7471 = vmatprep.mubr.f32.mxu0 0.0
  %7472 = vmatmul.mubr.f32.gmra.mrb[0].mxu0 %v7175
  %v7473 = vpop.f32.mrb[0].mxu0
  %v7474 = vadd.f32 0.0, %v7473
  %v7475 = vpop.f32.mrb[0].mxu0
  %7476 = vmatprep.mubr.f32.mxu0 0.0
  %7477 = vmatmul.mubr.f32.gmra.mrb[0].mxu0 %v7176
  %v7478 = vpop.f32.mrb[0].mxu0
  %v7479 = vadd.f32 0.0, %v7478
  %v7480 = vpop.f32.mrb[0].mxu0
  %7481 = vmatprep.mubr.f32.mxu0 0.0
  %7482 = vmatmul.mubr.f32.gmra.mrb[0].mxu0 %v7177
  %v7483 = vpop.f32.mrb[0].mxu0
  %v7484 = vadd.f32 0.0, %v7483
  %v7485 = vpop.f32.mrb[0].mxu0
  %7486 = vmatprep.mubr.f32.mxu0 0.0
  %7487 = vmatmul.mubr.f32.gmra.mrb[0].mxu0 %v7178
  %v7488 = vpop.f32.mrb[0].mxu0
  %v7489 = vadd.f32 0.0, %v7488
  %v7490 = vpop.f32.mrb[0].mxu0
  %7491 = vmatprep.mubr.f32.mxu0 0.0
  %7492 = vmatmul.mubr.f32.gmra.mrb[0].mxu0 %v7179
  %v7493 = vpop.f32.mrb[0].mxu0
  %v7494 = vadd.f32 0.0, %v7493
  %v7495 = vpop.f32.mrb[0].mxu0
  %7496 = vmatprep.mubr.f32.mxu0 0.0
  %7497 = vmatmul.mubr.f32.gmra.mrb[0].mxu0 %v7180
  %v7498 = vpop.f32.mrb[0].mxu0
  %v7499 = vadd.f32 0.0, %v7498
  %v7500 = vpop.f32.mrb[0].mxu0
  %7501 = vmatprep.mubr.f32.mxu0 0.0
  %7502 = vmatmul.mubr.f32.gmra.mrb[0].mxu0 %v7181
  %v7503 = vpop.f32.mrb[0].mxu0
  %v7504 = vadd.f32 0.0, %v7503
  %v7505 = vpop.f32.mrb[0].mxu0
  %7506 = vmatprep.mubr.f32.mxu0 0.0
  %7507 = vmatmul.mubr.f32.gmra.mrb[0].mxu0 %v7182
  %v7508 = vpop.f32.mrb[0].mxu0
  %v7509 = vadd.f32 0.0, %v7508
  %v7510 = vpop.f32.mrb[0].mxu0
  %7511 = vmatprep.mubr.f32.mxu0 0.0
  %7512 = vmatmul.mubr.f32.gmra.mrb[0].mxu0 %v7183
  %v7513 = vpop.f32.mrb[0].mxu0
  %v7514 = vadd.f32 0.0, %v7513
  %v7515 = vpop.f32.mrb[0].mxu0
  %7516 = vmatprep.mubr.f32.mxu0 0.0
  %7517 = vmatmul.mubr.f32.gmra.mrb[0].mxu0 %v7184
  %v7518 = vpop.f32.mrb[0].mxu0
  %v7519 = vadd.f32 0.0, %v7518
  %v7520 = vpop.f32.mrb[0].mxu0
  %7521 = vmatprep.mubr.f32.mxu0 0.0
  %7522 = vmatmul.mubr.f32.gmra.mrb[0].mxu0 %v7185
  %v7523 = vpop.f32.mrb[0].mxu0
  %v7524 = vadd.f32 0.0, %v7523
  %v7525 = vpop.f32.mrb[0].mxu0
  %7526 = vmatprep.mubr.f32.mxu0 0.0
  %7527 = vmatmul.mubr.f32.gmra.mrb[0].mxu0 %v7186
  %v7528 = vpop.f32.mrb[0].mxu0
  %v7529 = vadd.f32 0.0, %v7528
  %v7530 = vpop.f32.mrb[0].mxu0
  %7531 = vmatprep.mubr.f32.mxu0 0.0
  %7532 = vmatmul.mubr.f32.gmra.mrb[0].mxu0 %v7187
  %v7533 = vpop.f32.mrb[0].mxu0
  %v7534 = vadd.f32 0.0, %v7533
  %v7535 = vpop.f32.mrb[0].mxu0
  %7536 = vmatprep.mubr.f32.mxu0 0.0
  %7537 = vmatmul.mubr.f32.gmra.mrb[0].mxu0 %v7188
  %v7538 = vpop.f32.mrb[0].mxu0
  %v7539 = vadd.f32 0.0, %v7538
  %v7540 = vpop.f32.mrb[0].mxu0
  %7541 = vmatprep.mubr.f32.mxu0 0.0
  %7542 = vmatmul.mubr.f32.gmra.mrb[0].mxu0 %v7189
  %v7543 = vpop.f32.mrb[0].mxu0
  %v7544 = vadd.f32 0.0, %v7543
  %v7545 = vpop.f32.mrb[0].mxu0
  %7546 = vmatprep.mubr.f32.mxu0 0.0
  %7547 = vmatmul.mubr.f32.gmra.mrb[0].mxu0 %v7190
  %v7548 = vpop.f32.mrb[0].mxu0
  %v7549 = vadd.f32 0.0, %v7548
  %v7550 = vpop.f32.mrb[0].mxu0
  %7551 = vmatprep.mubr.f32.mxu0 0.0
  %7552 = vmatmul.mubr.f32.gmra.mrb[0].mxu0 %v7191
  %v7553 = vpop.f32.mrb[0].mxu0
  %v7554 = vadd.f32 0.0, %v7553
  %v7555 = vpop.f32.mrb[0].mxu0
  %7556 = vmatprep.mubr.f32.mxu0 0.0
  %7557 = vmatmul.mubr.f32.gmra.mrb[0].mxu0 %v7192
  %v7558 = vpop.f32.mrb[0].mxu0
  %v7559 = vadd.f32 0.0, %v7558
  %v7560 = vpop.f32.mrb[0].mxu0
  %7561 = vmatprep.mubr.f32.mxu0 0.0
  %7562 = vmatmul.mubr.f32.gmra.mrb[0].mxu0 %v7193
  %v7563 = vpop.f32.mrb[0].mxu0
  %v7564 = vadd.f32 0.0, %v7563
  %v7565 = vpop.f32.mrb[0].mxu0
  %7566 = vmatprep.mubr.f32.mxu0 0.0
  %7567 = vmatmul.mubr.f32.gmra.mrb[0].mxu0 %v7194
  %v7568 = vpop.f32.mrb[0].mxu0
  %v7569 = vadd.f32 0.0, %v7568
  %v7570 = vpop.f32.mrb[0].mxu0
  %7571 = vmatprep.mubr.f32.mxu0 0.0
  %7572 = vmatmul.mubr.f32.gmra.mrb[0].mxu0 %v7195
  %v7573 = vpop.f32.mrb[0].mxu0
  %v7574 = vadd.f32 0.0, %v7573
  %v7575 = vpop.f32.mrb[0].mxu0
  %7576 = vmatprep.mubr.f32.mxu0 0.0
  %7577 = vmatmul.mubr.f32.gmra.mrb[0].mxu0 %v7196
  %v7578 = vpop.f32.mrb[0].mxu0
  %v7579 = vadd.f32 0.0, %v7578
  %v7580 = vpop.f32.mrb[0].mxu0
  %7581 = vmatprep.mubr.f32.mxu0 0.0
  %7582 = vmatmul.mubr.f32.gmra.mrb[0].mxu0 %v7197
  %v7583 = vpop.f32.mrb[0].mxu0
  %v7584 = vadd.f32 0.0, %v7583
  %v7585 = vpop.f32.mrb[0].mxu0
  %7586 = vmatprep.mubr.f32.mxu0 0.0
  %7587 = vmatmul.mubr.f32.gmra.mrb[0].mxu0 %v7198
  %v7588 = vpop.f32.mrb[0].mxu0
  %v7589 = vadd.f32 0.0, %v7588
  %v7590 = vpop.f32.mrb[0].mxu0
  %7591 = vmatprep.mubr.f32.mxu0 0.0
  %7592 = vmatmul.mubr.f32.gmra.mrb[0].mxu0 %v7199
  %v7593 = vpop.f32.mrb[0].mxu0
  %v7594 = vadd.f32 0.0, %v7593
  %v7595 = vpop.f32.mrb[0].mxu0
  %7596 = vmatprep.mubr.f32.mxu0 0.0
  %7597 = vmatmul.mubr.f32.gmra.mrb[0].mxu0 %v7200
  %v7598 = vpop.f32.mrb[0].mxu0
  %v7599 = vadd.f32 0.0, %v7598
  %v7600 = vpop.f32.mrb[0].mxu0
  %7601 = vdwg.mxu0
  %v7602 = vadd.f32 %v7073, %v7284
  %v7603 = vadd.f32 %v7074, %v7289
  %v7604 = vadd.f32 %v7075, %v7294
  %v7605 = vadd.f32 %v7076, %v7299
  %v7606 = vadd.f32 %v7077, %v7304
  %v7607 = vadd.f32 %v7078, %v7309
  %v7608 = vadd.f32 %v7079, %v7314
  %v7609 = vadd.f32 %v7080, %v7319
  %v7610 = vadd.f32 %v7081, %v7324
  %v7611 = vadd.f32 %v7082, %v7329
  %v7612 = vadd.f32 %v7083, %v7334
  %v7613 = vadd.f32 %v7084, %v7339
  %v7614 = vadd.f32 %v7085, %v7344
  %v7615 = vadd.f32 %v7086, %v7349
  %v7616 = vadd.f32 %v7087, %v7354
  %v7617 = vadd.f32 %v7088, %v7359
  %v7618 = vadd.f32 %v7089, %v7364
  %v7619 = vadd.f32 %v7090, %v7369
  %v7620 = vadd.f32 %v7091, %v7374
  %v7621 = vadd.f32 %v7092, %v7379
  %v7622 = vadd.f32 %v7093, %v7384
  %v7623 = vadd.f32 %v7094, %v7389
  %v7624 = vadd.f32 %v7095, %v7394
  %v7625 = vadd.f32 %v7096, %v7399
  %v7626 = vadd.f32 %v7097, %v7404
  %v7627 = vadd.f32 %v7098, %v7409
  %v7628 = vadd.f32 %v7099, %v7414
  %v7629 = vadd.f32 %v7100, %v7419
  %v7630 = vadd.f32 %v7101, %v7424
  %v7631 = vadd.f32 %v7102, %v7429
  %v7632 = vadd.f32 %v7103, %v7434
  %v7633 = vadd.f32 %v7104, %v7439
  %v7634 = vadd.f32 %v7105, %v7444
  %v7635 = vadd.f32 %v7106, %v7449
  %v7636 = vadd.f32 %v7107, %v7454
  %v7637 = vadd.f32 %v7108, %v7459
  %v7638 = vadd.f32 %v7109, %v7464
  %v7639 = vadd.f32 %v7110, %v7469
  %v7640 = vadd.f32 %v7111, %v7474
  %v7641 = vadd.f32 %v7112, %v7479
  %v7642 = vadd.f32 %v7113, %v7484
  %v7643 = vadd.f32 %v7114, %v7489
  %v7644 = vadd.f32 %v7115, %v7494
  %v7645 = vadd.f32 %v7116, %v7499
  %v7646 = vadd.f32 %v7117, %v7504
  %v7647 = vadd.f32 %v7118, %v7509
  %v7648 = vadd.f32 %v7119, %v7514
  %v7649 = vadd.f32 %v7120, %v7519
  %v7650 = vadd.f32 %v7121, %v7524
  %v7651 = vadd.f32 %v7122, %v7529
  %v7652 = vadd.f32 %v7123, %v7534
  %v7653 = vadd.f32 %v7124, %v7539
  %v7654 = vadd.f32 %v7125, %v7544
  %v7655 = vadd.f32 %v7126, %v7549
  %v7656 = vadd.f32 %v7127, %v7554
  %v7657 = vadd.f32 %v7128, %v7559
  %v7658 = vadd.f32 %v7129, %v7564
  %v7659 = vadd.f32 %v7130, %v7569
  %v7660 = vadd.f32 %v7131, %v7574
  %v7661 = vadd.f32 %v7132, %v7579
  %v7662 = vadd.f32 %v7133, %v7584
  %v7663 = vadd.f32 %v7134, %v7589
  %v7664 = vadd.f32 %v7135, %v7594
  %v7665 = vadd.f32 %v7136, %v7599
  %v7666 = vld [vmem:[%s378 + $0x8] sm:$0xff]
  %v7667 = vld [vmem:[%s378 + $0x10] sm:$0xff]
  %v7668 = vld [vmem:[%s378 + $0x28] sm:$0xff]
  %v7669 = vld [vmem:[%s378 + $0x30] sm:$0xff]
  %v7670 = vld [vmem:[%s378 + $0x48] sm:$0xff]
  %v7671 = vld [vmem:[%s378 + $0x50] sm:$0xff]
  %v7672 = vld [vmem:[%s378 + $0x68] sm:$0xff]
  %v7673 = vld [vmem:[%s378 + $0x70] sm:$0xff]
  %v7674 = vld [vmem:[%s378 + $0x88] sm:$0xff]
  %v7675 = vld [vmem:[%s378 + $0x90] sm:$0xff]
  %v7676 = vld [vmem:[%s378 + $0xa8] sm:$0xff]
  %v7677 = vld [vmem:[%s378 + $0xb0] sm:$0xff]
  %v7678 = vld [vmem:[%s378 + $0xc8] sm:$0xff]
  %v7679 = vld [vmem:[%s378 + $0xd0] sm:$0xff]
  %v7680 = vld [vmem:[%s378 + $0xe8] sm:$0xff]
  %v7681 = vld [vmem:[%s378 + $0xf0] sm:$0xff]
  %v7682 = vld [vmem:[%s378 + $0x108] sm:$0xff]
  %v7683 = vld [vmem:[%s378 + $0x110] sm:$0xff]
  %v7684 = vld [vmem:[%s378 + $0x128] sm:$0xff]
  %v7685 = vld [vmem:[%s378 + $0x130] sm:$0xff]
  %v7686 = vld [vmem:[%s378 + $0x148] sm:$0xff]
  %v7687 = vld [vmem:[%s378 + $0x150] sm:$0xff]
  %v7688 = vld [vmem:[%s378 + $0x168] sm:$0xff]
  %v7689 = vld [vmem:[%s378 + $0x170] sm:$0xff]
  %v7690 = vld [vmem:[%s378 + $0x188] sm:$0xff]
  %v7691 = vld [vmem:[%s378 + $0x190] sm:$0xff]
  %v7692 = vld [vmem:[%s378 + $0x1a8] sm:$0xff]
  %v7693 = vld [vmem:[%s378 + $0x1b0] sm:$0xff]
  %v7694 = vld [vmem:[%s378 + $0x1c8] sm:$0xff]
  %v7695 = vld [vmem:[%s378 + $0x1d0] sm:$0xff]
  %v7696 = vld [vmem:[%s378 + $0x1e8] sm:$0xff]
  %v7697 = vld [vmem:[%s378 + $0x1f0] sm:$0xff]
  %v7698 = vld [vmem:[%s378 + $0x248] sm:$0xff]
  %v7699 = vld [vmem:[%s378 + $0x250] sm:$0xff]
  %v7700 = vld [vmem:[%s378 + $0x268] sm:$0xff]
  %v7701 = vld [vmem:[%s378 + $0x270] sm:$0xff]
  %v7702 = vld [vmem:[%s378 + $0x288] sm:$0xff]
  %v7703 = vld [vmem:[%s378 + $0x290] sm:$0xff]
  %v7704 = vld [vmem:[%s378 + $0x2a8] sm:$0xff]
  %v7705 = vld [vmem:[%s378 + $0x2b0] sm:$0xff]
  %v7706 = vld [vmem:[%s378 + $0x2c8] sm:$0xff]
  %v7707 = vld [vmem:[%s378 + $0x2d0] sm:$0xff]
  %v7708 = vld [vmem:[%s378 + $0x2e8] sm:$0xff]
  %v7709 = vld [vmem:[%s378 + $0x2f0] sm:$0xff]
  %v7710 = vld [vmem:[%s378 + $0x308] sm:$0xff]
  %v7711 = vld [vmem:[%s378 + $0x310] sm:$0xff]
  %v7712 = vld [vmem:[%s378 + $0x328] sm:$0xff]
  %v7713 = vld [vmem:[%s378 + $0x330] sm:$0xff]
  %v7714 = vld [vmem:[%s378 + $0x348] sm:$0xff]
  %v7715 = vld [vmem:[%s378 + $0x350] sm:$0xff]
  %v7716 = vld [vmem:[%s378 + $0x368] sm:$0xff]
  %v7717 = vld [vmem:[%s378 + $0x370] sm:$0xff]
  %v7718 = vld [vmem:[%s378 + $0x388] sm:$0xff]
  %v7719 = vld [vmem:[%s378 + $0x390] sm:$0xff]
  %v7720 = vld [vmem:[%s378 + $0x3a8] sm:$0xff]
  %v7721 = vld [vmem:[%s378 + $0x3b0] sm:$0xff]
  %v7722 = vld [vmem:[%s378 + $0x3c8] sm:$0xff]
  %v7723 = vld [vmem:[%s378 + $0x3d0] sm:$0xff]
  %v7724 = vld [vmem:[%s378 + $0x3e8] sm:$0xff]
  %v7725 = vld [vmem:[%s378 + $0x3f0] sm:$0xff]
  %v7726 = vld [vmem:[%s378 + $0x408] sm:$0xff]
  %v7727 = vld [vmem:[%s378 + $0x410] sm:$0xff]
  %v7728 = vld [vmem:[%s378 + $0x428] sm:$0xff]
  %v7729 = vld [vmem:[%s378 + $0x430] sm:$0xff]
  %v7730 = vld [vmem:[#allocation3 + $0x200] sm:$0xff]
  %v7731 = vld [vmem:[#allocation3 + $0x208] sm:$0xff]
  %v7732 = vld [vmem:[#allocation3 + $0x210] sm:$0xff]
  %v7733 = vld [vmem:[#allocation3 + $0x218] sm:$0xff]
  %v7734 = vld [vmem:[#allocation3 + $0x220] sm:$0xff]
  %v7735 = vld [vmem:[#allocation3 + $0x228] sm:$0xff]
  %v7736 = vld [vmem:[#allocation3 + $0x230] sm:$0xff]
  %v7737 = vld [vmem:[#allocation3 + $0x238] sm:$0xff]
  %v7738 = vld [vmem:[#allocation3 + $0x240] sm:$0xff]
  %v7739 = vld [vmem:[#allocation3 + $0x248] sm:$0xff]
  %v7740 = vld [vmem:[#allocation3 + $0x250] sm:$0xff]
  %v7741 = vld [vmem:[#allocation3 + $0x258] sm:$0xff]
  %v7742 = vld [vmem:[#allocation3 + $0x260] sm:$0xff]
  %v7743 = vld [vmem:[#allocation3 + $0x268] sm:$0xff]
  %v7744 = vld [vmem:[#allocation3 + $0x270] sm:$0xff]
  %v7745 = vld [vmem:[#allocation3 + $0x278] sm:$0xff]
  %7746 = vmatprep.subr.mxu0 0.0
  %7747 = vmatpush1.msra.mxu0 %v7730
  %7748 = vmatprep.subr.mxu0 0.0
  %7749 = vmatpush1.msra.mxu0 %v7731
  %7750 = vmatprep.subr.mxu0 0.0
  %7751 = vmatpush1.msra.mxu0 %v7732
  %7752 = vmatprep.subr.mxu0 0.0
  %7753 = vmatpush1.msra.mxu0 %v7733
  %7754 = vmatprep.subr.mxu0 0.0
  %7755 = vmatpush1.msra.mxu0 %v7734
  %7756 = vmatprep.subr.mxu0 0.0
  %7757 = vmatpush1.msra.mxu0 %v7735
  %7758 = vmatprep.subr.mxu0 0.0
  %7759 = vmatpush1.msra.mxu0 %v7736
  %7760 = vmatprep.subr.mxu0 0.0
  %7761 = vmatpush1.msra.mxu0 %v7737
  %7762 = vmatprep.subr.mxu0 0.0
  %7763 = vmatpush1.msra.mxu0 %v7738
  %7764 = vmatprep.subr.mxu0 0.0
  %7765 = vmatpush1.msra.mxu0 %v7739
  %7766 = vmatprep.subr.mxu0 0.0
  %7767 = vmatpush1.msra.mxu0 %v7740
  %7768 = vmatprep.subr.mxu0 0.0
  %7769 = vmatpush1.msra.mxu0 %v7741
  %7770 = vmatprep.subr.mxu0 0.0
  %7771 = vmatpush1.msra.mxu0 %v7742
  %7772 = vmatprep.subr.mxu0 0.0
  %7773 = vmatpush1.msra.mxu0 %v7743
  %7774 = vmatprep.subr.mxu0 0.0
  %7775 = vmatpush1.msra.mxu0 %v7744
  %7776 = vmatprep.subr.mxu0 0.0
  %7777 = vmatpush1.msra.mxu0 %v7745
  %7778 = vmatprep.subr.mxu0 0.0
  %7779 = vmatpush1.msra.mxu0 0.0
  %7780 = vmatprep.subr.mxu0 0.0
  %7781 = vmatpush1.msra.mxu0 0.0
  %7782 = vmatprep.subr.mxu0 0.0
  %7783 = vmatpush1.msra.mxu0 0.0
  %7784 = vmatprep.subr.mxu0 0.0
  %7785 = vmatpush1.msra.mxu0 0.0
  %7786 = vmatprep.subr.mxu0 0.0
  %7787 = vmatpush1.msra.mxu0 0.0
  %7788 = vmatprep.subr.mxu0 0.0
  %7789 = vmatpush1.msra.mxu0 0.0
  %7790 = vmatprep.subr.mxu0 0.0
  %7791 = vmatpush1.msra.mxu0 0.0
  %7792 = vmatprep.subr.mxu0 0.0
  %7793 = vmatpush1.msra.mxu0 0.0
  %7794 = vmatprep.subr.mxu0 0.0
  %7795 = vmatpush1.msra.mxu0 0.0
  %7796 = vmatprep.subr.mxu0 0.0
  %7797 = vmatpush1.msra.mxu0 0.0
  %7798 = vmatprep.subr.mxu0 0.0
  %7799 = vmatpush1.msra.mxu0 0.0
  %7800 = vmatprep.subr.mxu0 0.0
  %7801 = vmatpush1.msra.mxu0 0.0
  %7802 = vmatprep.subr.mxu0 0.0
  %7803 = vmatpush1.msra.mxu0 0.0
  %7804 = vmatprep.subr.mxu0 0.0
  %7805 = vmatpush1.msra.mxu0 0.0
  %7806 = vmatprep.subr.mxu0 0.0
  %7807 = vmatpush1.msra.mxu0 0.0
  %7808 = vmatprep.subr.mxu0 0.0
  %7809 = vmatpush1.msra.mxu0 0.0
  %7810 = vmatprep.mubr.f32.mxu0 0.0
  %7811 = vmatmul.mubr.f32.gmra.mrb[0].mxu0 %v7666
  %v7812 = vpop.f32.mrb[0].mxu0
  %v7813 = vadd.f32 0.0, %v7812
  %v7814 = vpop.f32.mrb[0].mxu0
  %7815 = vmatprep.mubr.f32.mxu0 0.0
  %7816 = vmatmul.mubr.f32.gmra.mrb[0].mxu0 %v7667
  %v7817 = vpop.f32.mrb[0].mxu0
  %v7818 = vadd.f32 0.0, %v7817
  %v7819 = vpop.f32.mrb[0].mxu0
  %7820 = vmatprep.mubr.f32.mxu0 0.0
  %7821 = vmatmul.mubr.f32.gmra.mrb[0].mxu0 %v7668
  %v7822 = vpop.f32.mrb[0].mxu0
  %v7823 = vadd.f32 0.0, %v7822
  %v7824 = vpop.f32.mrb[0].mxu0
  %7825 = vmatprep.mubr.f32.mxu0 0.0
  %7826 = vmatmul.mubr.f32.gmra.mrb[0].mxu0 %v7669
  %v7827 = vpop.f32.mrb[0].mxu0
  %v7828 = vadd.f32 0.0, %v7827
  %v7829 = vpop.f32.mrb[0].mxu0
  %7830 = vmatprep.mubr.f32.mxu0 0.0
  %7831 = vmatmul.mubr.f32.gmra.mrb[0].mxu0 %v7670
  %v7832 = vpop.f32.mrb[0].mxu0
  %v7833 = vadd.f32 0.0, %v7832
  %v7834 = vpop.f32.mrb[0].mxu0
  %7835 = vmatprep.mubr.f32.mxu0 0.0
  %7836 = vmatmul.mubr.f32.gmra.mrb[0].mxu0 %v7671
  %v7837 = vpop.f32.mrb[0].mxu0
  %v7838 = vadd.f32 0.0, %v7837
  %v7839 = vpop.f32.mrb[0].mxu0
  %7840 = vmatprep.mubr.f32.mxu0 0.0
  %7841 = vmatmul.mubr.f32.gmra.mrb[0].mxu0 %v7672
  %v7842 = vpop.f32.mrb[0].mxu0
  %v7843 = vadd.f32 0.0, %v7842
  %v7844 = vpop.f32.mrb[0].mxu0
  %7845 = vmatprep.mubr.f32.mxu0 0.0
  %7846 = vmatmul.mubr.f32.gmra.mrb[0].mxu0 %v7673
  %v7847 = vpop.f32.mrb[0].mxu0
  %v7848 = vadd.f32 0.0, %v7847
  %v7849 = vpop.f32.mrb[0].mxu0
  %7850 = vmatprep.mubr.f32.mxu0 0.0
  %7851 = vmatmul.mubr.f32.gmra.mrb[0].mxu0 %v7674
  %v7852 = vpop.f32.mrb[0].mxu0
  %v7853 = vadd.f32 0.0, %v7852
  %v7854 = vpop.f32.mrb[0].mxu0
  %7855 = vmatprep.mubr.f32.mxu0 0.0
  %7856 = vmatmul.mubr.f32.gmra.mrb[0].mxu0 %v7675
  %v7857 = vpop.f32.mrb[0].mxu0
  %v7858 = vadd.f32 0.0, %v7857
  %v7859 = vpop.f32.mrb[0].mxu0
  %7860 = vmatprep.mubr.f32.mxu0 0.0
  %7861 = vmatmul.mubr.f32.gmra.mrb[0].mxu0 %v7676
  %v7862 = vpop.f32.mrb[0].mxu0
  %v7863 = vadd.f32 0.0, %v7862
  %v7864 = vpop.f32.mrb[0].mxu0
  %7865 = vmatprep.mubr.f32.mxu0 0.0
  %7866 = vmatmul.mubr.f32.gmra.mrb[0].mxu0 %v7677
  %v7867 = vpop.f32.mrb[0].mxu0
  %v7868 = vadd.f32 0.0, %v7867
  %v7869 = vpop.f32.mrb[0].mxu0
  %7870 = vmatprep.mubr.f32.mxu0 0.0
  %7871 = vmatmul.mubr.f32.gmra.mrb[0].mxu0 %v7678
  %v7872 = vpop.f32.mrb[0].mxu0
  %v7873 = vadd.f32 0.0, %v7872
  %v7874 = vpop.f32.mrb[0].mxu0
  %7875 = vmatprep.mubr.f32.mxu0 0.0
  %7876 = vmatmul.mubr.f32.gmra.mrb[0].mxu0 %v7679
  %v7877 = vpop.f32.mrb[0].mxu0
  %v7878 = vadd.f32 0.0, %v7877
  %v7879 = vpop.f32.mrb[0].mxu0
  %7880 = vmatprep.mubr.f32.mxu0 0.0
  %7881 = vmatmul.mubr.f32.gmra.mrb[0].mxu0 %v7680
  %v7882 = vpop.f32.mrb[0].mxu0
  %v7883 = vadd.f32 0.0, %v7882
  %v7884 = vpop.f32.mrb[0].mxu0
  %7885 = vmatprep.mubr.f32.mxu0 0.0
  %7886 = vmatmul.mubr.f32.gmra.mrb[0].mxu0 %v7681
  %v7887 = vpop.f32.mrb[0].mxu0
  %v7888 = vadd.f32 0.0, %v7887
  %v7889 = vpop.f32.mrb[0].mxu0
  %7890 = vmatprep.mubr.f32.mxu0 0.0
  %7891 = vmatmul.mubr.f32.gmra.mrb[0].mxu0 %v7682
  %v7892 = vpop.f32.mrb[0].mxu0
  %v7893 = vadd.f32 0.0, %v7892
  %v7894 = vpop.f32.mrb[0].mxu0
  %7895 = vmatprep.mubr.f32.mxu0 0.0
  %7896 = vmatmul.mubr.f32.gmra.mrb[0].mxu0 %v7683
  %v7897 = vpop.f32.mrb[0].mxu0
  %v7898 = vadd.f32 0.0, %v7897
  %v7899 = vpop.f32.mrb[0].mxu0
  %7900 = vmatprep.mubr.f32.mxu0 0.0
  %7901 = vmatmul.mubr.f32.gmra.mrb[0].mxu0 %v7684
  %v7902 = vpop.f32.mrb[0].mxu0
  %v7903 = vadd.f32 0.0, %v7902
  %v7904 = vpop.f32.mrb[0].mxu0
  %7905 = vmatprep.mubr.f32.mxu0 0.0
  %7906 = vmatmul.mubr.f32.gmra.mrb[0].mxu0 %v7685
  %v7907 = vpop.f32.mrb[0].mxu0
  %v7908 = vadd.f32 0.0, %v7907
  %v7909 = vpop.f32.mrb[0].mxu0
  %7910 = vmatprep.mubr.f32.mxu0 0.0
  %7911 = vmatmul.mubr.f32.gmra.mrb[0].mxu0 %v7686
  %v7912 = vpop.f32.mrb[0].mxu0
  %v7913 = vadd.f32 0.0, %v7912
  %v7914 = vpop.f32.mrb[0].mxu0
  %7915 = vmatprep.mubr.f32.mxu0 0.0
  %7916 = vmatmul.mubr.f32.gmra.mrb[0].mxu0 %v7687
  %v7917 = vpop.f32.mrb[0].mxu0
  %v7918 = vadd.f32 0.0, %v7917
  %v7919 = vpop.f32.mrb[0].mxu0
  %7920 = vmatprep.mubr.f32.mxu0 0.0
  %7921 = vmatmul.mubr.f32.gmra.mrb[0].mxu0 %v7688
  %v7922 = vpop.f32.mrb[0].mxu0
  %v7923 = vadd.f32 0.0, %v7922
  %v7924 = vpop.f32.mrb[0].mxu0
  %7925 = vmatprep.mubr.f32.mxu0 0.0
  %7926 = vmatmul.mubr.f32.gmra.mrb[0].mxu0 %v7689
  %v7927 = vpop.f32.mrb[0].mxu0
  %v7928 = vadd.f32 0.0, %v7927
  %v7929 = vpop.f32.mrb[0].mxu0
  %7930 = vmatprep.mubr.f32.mxu0 0.0
  %7931 = vmatmul.mubr.f32.gmra.mrb[0].mxu0 %v7690
  %v7932 = vpop.f32.mrb[0].mxu0
  %v7933 = vadd.f32 0.0, %v7932
  %v7934 = vpop.f32.mrb[0].mxu0
  %7935 = vmatprep.mubr.f32.mxu0 0.0
  %7936 = vmatmul.mubr.f32.gmra.mrb[0].mxu0 %v7691
  %v7937 = vpop.f32.mrb[0].mxu0
  %v7938 = vadd.f32 0.0, %v7937
  %v7939 = vpop.f32.mrb[0].mxu0
  %7940 = vmatprep.mubr.f32.mxu0 0.0
  %7941 = vmatmul.mubr.f32.gmra.mrb[0].mxu0 %v7692
  %v7942 = vpop.f32.mrb[0].mxu0
  %v7943 = vadd.f32 0.0, %v7942
  %v7944 = vpop.f32.mrb[0].mxu0
  %7945 = vmatprep.mubr.f32.mxu0 0.0
  %7946 = vmatmul.mubr.f32.gmra.mrb[0].mxu0 %v7693
  %v7947 = vpop.f32.mrb[0].mxu0
  %v7948 = vadd.f32 0.0, %v7947
  %v7949 = vpop.f32.mrb[0].mxu0
  %7950 = vmatprep.mubr.f32.mxu0 0.0
  %7951 = vmatmul.mubr.f32.gmra.mrb[0].mxu0 %v7694
  %v7952 = vpop.f32.mrb[0].mxu0
  %v7953 = vadd.f32 0.0, %v7952
  %v7954 = vpop.f32.mrb[0].mxu0
  %7955 = vmatprep.mubr.f32.mxu0 0.0
  %7956 = vmatmul.mubr.f32.gmra.mrb[0].mxu0 %v7695
  %v7957 = vpop.f32.mrb[0].mxu0
  %v7958 = vadd.f32 0.0, %v7957
  %v7959 = vpop.f32.mrb[0].mxu0
  %7960 = vmatprep.mubr.f32.mxu0 0.0
  %7961 = vmatmul.mubr.f32.gmra.mrb[0].mxu0 %v7696
  %v7962 = vpop.f32.mrb[0].mxu0
  %v7963 = vadd.f32 0.0, %v7962
  %v7964 = vpop.f32.mrb[0].mxu0
  %7965 = vmatprep.mubr.f32.mxu0 0.0
  %7966 = vmatmul.mubr.f32.gmra.mrb[0].mxu0 %v7697
  %v7967 = vpop.f32.mrb[0].mxu0
  %v7968 = vadd.f32 0.0, %v7967
  %v7969 = vpop.f32.mrb[0].mxu0
  %7970 = vmatprep.mubr.f32.mxu0 0.0
  %7971 = vmatmul.mubr.f32.gmra.mrb[0].mxu0 %v7698
  %v7972 = vpop.f32.mrb[0].mxu0
  %v7973 = vadd.f32 0.0, %v7972
  %v7974 = vpop.f32.mrb[0].mxu0
  %7975 = vmatprep.mubr.f32.mxu0 0.0
  %7976 = vmatmul.mubr.f32.gmra.mrb[0].mxu0 %v7699
  %v7977 = vpop.f32.mrb[0].mxu0
  %v7978 = vadd.f32 0.0, %v7977
  %v7979 = vpop.f32.mrb[0].mxu0
  %7980 = vmatprep.mubr.f32.mxu0 0.0
  %7981 = vmatmul.mubr.f32.gmra.mrb[0].mxu0 %v7700
  %v7982 = vpop.f32.mrb[0].mxu0
  %v7983 = vadd.f32 0.0, %v7982
  %v7984 = vpop.f32.mrb[0].mxu0
  %7985 = vmatprep.mubr.f32.mxu0 0.0
  %7986 = vmatmul.mubr.f32.gmra.mrb[0].mxu0 %v7701
  %v7987 = vpop.f32.mrb[0].mxu0
  %v7988 = vadd.f32 0.0, %v7987
  %v7989 = vpop.f32.mrb[0].mxu0
  %7990 = vmatprep.mubr.f32.mxu0 0.0
  %7991 = vmatmul.mubr.f32.gmra.mrb[0].mxu0 %v7702
  %v7992 = vpop.f32.mrb[0].mxu0
  %v7993 = vadd.f32 0.0, %v7992
  %v7994 = vpop.f32.mrb[0].mxu0
  %7995 = vmatprep.mubr.f32.mxu0 0.0
  %7996 = vmatmul.mubr.f32.gmra.mrb[0].mxu0 %v7703
  %v7997 = vpop.f32.mrb[0].mxu0
  %v7998 = vadd.f32 0.0, %v7997
  %v7999 = vpop.f32.mrb[0].mxu0
  %8000 = vmatprep.mubr.f32.mxu0 0.0
  %8001 = vmatmul.mubr.f32.gmra.mrb[0].mxu0 %v7704
  %v8002 = vpop.f32.mrb[0].mxu0
  %v8003 = vadd.f32 0.0, %v8002
  %v8004 = vpop.f32.mrb[0].mxu0
  %8005 = vmatprep.mubr.f32.mxu0 0.0
  %8006 = vmatmul.mubr.f32.gmra.mrb[0].mxu0 %v7705
  %v8007 = vpop.f32.mrb[0].mxu0
  %v8008 = vadd.f32 0.0, %v8007
  %v8009 = vpop.f32.mrb[0].mxu0
  %8010 = vmatprep.mubr.f32.mxu0 0.0
  %8011 = vmatmul.mubr.f32.gmra.mrb[0].mxu0 %v7706
  %v8012 = vpop.f32.mrb[0].mxu0
  %v8013 = vadd.f32 0.0, %v8012
  %v8014 = vpop.f32.mrb[0].mxu0
  %8015 = vmatprep.mubr.f32.mxu0 0.0
  %8016 = vmatmul.mubr.f32.gmra.mrb[0].mxu0 %v7707
  %v8017 = vpop.f32.mrb[0].mxu0
  %v8018 = vadd.f32 0.0, %v8017
  %v8019 = vpop.f32.mrb[0].mxu0
  %8020 = vmatprep.mubr.f32.mxu0 0.0
  %8021 = vmatmul.mubr.f32.gmra.mrb[0].mxu0 %v7708
  %v8022 = vpop.f32.mrb[0].mxu0
  %v8023 = vadd.f32 0.0, %v8022
  %v8024 = vpop.f32.mrb[0].mxu0
  %8025 = vmatprep.mubr.f32.mxu0 0.0
  %8026 = vmatmul.mubr.f32.gmra.mrb[0].mxu0 %v7709
  %v8027 = vpop.f32.mrb[0].mxu0
  %v8028 = vadd.f32 0.0, %v8027
  %v8029 = vpop.f32.mrb[0].mxu0
  %8030 = vmatprep.mubr.f32.mxu0 0.0
  %8031 = vmatmul.mubr.f32.gmra.mrb[0].mxu0 %v7710
  %v8032 = vpop.f32.mrb[0].mxu0
  %v8033 = vadd.f32 0.0, %v8032
  %v8034 = vpop.f32.mrb[0].mxu0
  %8035 = vmatprep.mubr.f32.mxu0 0.0
  %8036 = vmatmul.mubr.f32.gmra.mrb[0].mxu0 %v7711
  %v8037 = vpop.f32.mrb[0].mxu0
  %v8038 = vadd.f32 0.0, %v8037
  %v8039 = vpop.f32.mrb[0].mxu0
  %8040 = vmatprep.mubr.f32.mxu0 0.0
  %8041 = vmatmul.mubr.f32.gmra.mrb[0].mxu0 %v7712
  %v8042 = vpop.f32.mrb[0].mxu0
  %v8043 = vadd.f32 0.0, %v8042
  %v8044 = vpop.f32.mrb[0].mxu0
  %8045 = vmatprep.mubr.f32.mxu0 0.0
  %8046 = vmatmul.mubr.f32.gmra.mrb[0].mxu0 %v7713
  %v8047 = vpop.f32.mrb[0].mxu0
  %v8048 = vadd.f32 0.0, %v8047
  %v8049 = vpop.f32.mrb[0].mxu0
  %8050 = vmatprep.mubr.f32.mxu0 0.0
  %8051 = vmatmul.mubr.f32.gmra.mrb[0].mxu0 %v7714
  %v8052 = vpop.f32.mrb[0].mxu0
  %v8053 = vadd.f32 0.0, %v8052
  %v8054 = vpop.f32.mrb[0].mxu0
  %8055 = vmatprep.mubr.f32.mxu0 0.0
  %8056 = vmatmul.mubr.f32.gmra.mrb[0].mxu0 %v7715
  %v8057 = vpop.f32.mrb[0].mxu0
  %v8058 = vadd.f32 0.0, %v8057
  %v8059 = vpop.f32.mrb[0].mxu0
  %8060 = vmatprep.mubr.f32.mxu0 0.0
  %8061 = vmatmul.mubr.f32.gmra.mrb[0].mxu0 %v7716
  %v8062 = vpop.f32.mrb[0].mxu0
  %v8063 = vadd.f32 0.0, %v8062
  %v8064 = vpop.f32.mrb[0].mxu0
  %8065 = vmatprep.mubr.f32.mxu0 0.0
  %8066 = vmatmul.mubr.f32.gmra.mrb[0].mxu0 %v7717
  %v8067 = vpop.f32.mrb[0].mxu0
  %v8068 = vadd.f32 0.0, %v8067
  %v8069 = vpop.f32.mrb[0].mxu0
  %8070 = vmatprep.mubr.f32.mxu0 0.0
  %8071 = vmatmul.mubr.f32.gmra.mrb[0].mxu0 %v7718
  %v8072 = vpop.f32.mrb[0].mxu0
  %v8073 = vadd.f32 0.0, %v8072
  %v8074 = vpop.f32.mrb[0].mxu0
  %8075 = vmatprep.mubr.f32.mxu0 0.0
  %8076 = vmatmul.mubr.f32.gmra.mrb[0].mxu0 %v7719
  %v8077 = vpop.f32.mrb[0].mxu0
  %v8078 = vadd.f32 0.0, %v8077
  %v8079 = vpop.f32.mrb[0].mxu0
  %8080 = vmatprep.mubr.f32.mxu0 0.0
  %8081 = vmatmul.mubr.f32.gmra.mrb[0].mxu0 %v7720
  %v8082 = vpop.f32.mrb[0].mxu0
  %v8083 = vadd.f32 0.0, %v8082
  %v8084 = vpop.f32.mrb[0].mxu0
  %8085 = vmatprep.mubr.f32.mxu0 0.0
  %8086 = vmatmul.mubr.f32.gmra.mrb[0].mxu0 %v7721
  %v8087 = vpop.f32.mrb[0].mxu0
  %v8088 = vadd.f32 0.0, %v8087
  %v8089 = vpop.f32.mrb[0].mxu0
  %8090 = vmatprep.mubr.f32.mxu0 0.0
  %8091 = vmatmul.mubr.f32.gmra.mrb[0].mxu0 %v7722
  %v8092 = vpop.f32.mrb[0].mxu0
  %v8093 = vadd.f32 0.0, %v8092
  %v8094 = vpop.f32.mrb[0].mxu0
  %8095 = vmatprep.mubr.f32.mxu0 0.0
  %8096 = vmatmul.mubr.f32.gmra.mrb[0].mxu0 %v7723
  %v8097 = vpop.f32.mrb[0].mxu0
  %v8098 = vadd.f32 0.0, %v8097
  %v8099 = vpop.f32.mrb[0].mxu0
  %8100 = vmatprep.mubr.f32.mxu0 0.0
  %8101 = vmatmul.mubr.f32.gmra.mrb[0].mxu0 %v7724
  %v8102 = vpop.f32.mrb[0].mxu0
  %v8103 = vadd.f32 0.0, %v8102
  %v8104 = vpop.f32.mrb[0].mxu0
  %8105 = vmatprep.mubr.f32.mxu0 0.0
  %8106 = vmatmul.mubr.f32.gmra.mrb[0].mxu0 %v7725
  %v8107 = vpop.f32.mrb[0].mxu0
  %v8108 = vadd.f32 0.0, %v8107
  %v8109 = vpop.f32.mrb[0].mxu0
  %8110 = vmatprep.mubr.f32.mxu0 0.0
  %8111 = vmatmul.mubr.f32.gmra.mrb[0].mxu0 %v7726
  %v8112 = vpop.f32.mrb[0].mxu0
  %v8113 = vadd.f32 0.0, %v8112
  %v8114 = vpop.f32.mrb[0].mxu0
  %8115 = vmatprep.mubr.f32.mxu0 0.0
  %8116 = vmatmul.mubr.f32.gmra.mrb[0].mxu0 %v7727
  %v8117 = vpop.f32.mrb[0].mxu0
  %v8118 = vadd.f32 0.0, %v8117
  %v8119 = vpop.f32.mrb[0].mxu0
  %8120 = vmatprep.mubr.f32.mxu0 0.0
  %8121 = vmatmul.mubr.f32.gmra.mrb[0].mxu0 %v7728
  %v8122 = vpop.f32.mrb[0].mxu0
  %v8123 = vadd.f32 0.0, %v8122
  %v8124 = vpop.f32.mrb[0].mxu0
  %8125 = vmatprep.mubr.f32.mxu0 0.0
  %8126 = vmatmul.mubr.f32.gmra.mrb[0].mxu0 %v7729
  %v8127 = vpop.f32.mrb[0].mxu0
  %v8128 = vadd.f32 0.0, %v8127
  %v8129 = vpop.f32.mrb[0].mxu0
  %8130 = vdwg.mxu0
  %v8131 = vadd.f32 %v7602, %v7813
  %v8132 = vadd.f32 %v7603, %v7818
  %v8133 = vadd.f32 %v7604, %v7823
  %v8134 = vadd.f32 %v7605, %v7828
  %v8135 = vadd.f32 %v7606, %v7833
  %v8136 = vadd.f32 %v7607, %v7838
  %v8137 = vadd.f32 %v7608, %v7843
  %v8138 = vadd.f32 %v7609, %v7848
  %v8139 = vadd.f32 %v7610, %v7853
  %v8140 = vadd.f32 %v7611, %v7858
  %v8141 = vadd.f32 %v7612, %v7863
  %v8142 = vadd.f32 %v7613, %v7868
  %v8143 = vadd.f32 %v7614, %v7873
  %v8144 = vadd.f32 %v7615, %v7878
  %v8145 = vadd.f32 %v7616, %v7883
  %v8146 = vadd.f32 %v7617, %v7888
  %v8147 = vadd.f32 %v7618, %v7893
  %v8148 = vadd.f32 %v7619, %v7898
  %v8149 = vadd.f32 %v7620, %v7903
  %v8150 = vadd.f32 %v7621, %v7908
  %v8151 = vadd.f32 %v7622, %v7913
  %v8152 = vadd.f32 %v7623, %v7918
  %v8153 = vadd.f32 %v7624, %v7923
  %v8154 = vadd.f32 %v7625, %v7928
  %v8155 = vadd.f32 %v7626, %v7933
  %v8156 = vadd.f32 %v7627, %v7938
  %v8157 = vadd.f32 %v7628, %v7943
  %v8158 = vadd.f32 %v7629, %v7948
  %v8159 = vadd.f32 %v7630, %v7953
  %v8160 = vadd.f32 %v7631, %v7958
  %v8161 = vadd.f32 %v7632, %v7963
  %v8162 = vadd.f32 %v7633, %v7968
  %v8163 = vadd.f32 %v7634, %v7973
  %v8164 = vadd.f32 %v7635, %v7978
  %v8165 = vadd.f32 %v7636, %v7983
  %v8166 = vadd.f32 %v7637, %v7988
  %v8167 = vadd.f32 %v7638, %v7993
  %v8168 = vadd.f32 %v7639, %v7998
  %v8169 = vadd.f32 %v7640, %v8003
  %v8170 = vadd.f32 %v7641, %v8008
  %v8171 = vadd.f32 %v7642, %v8013
  %v8172 = vadd.f32 %v7643, %v8018
  %v8173 = vadd.f32 %v7644, %v8023
  %v8174 = vadd.f32 %v7645, %v8028
  %v8175 = vadd.f32 %v7646, %v8033
  %v8176 = vadd.f32 %v7647, %v8038
  %v8177 = vadd.f32 %v7648, %v8043
  %v8178 = vadd.f32 %v7649, %v8048
  %v8179 = vadd.f32 %v7650, %v8053
  %v8180 = vadd.f32 %v7651, %v8058
  %v8181 = vadd.f32 %v7652, %v8063
  %v8182 = vadd.f32 %v7653, %v8068
  %v8183 = vadd.f32 %v7654, %v8073
  %v8184 = vadd.f32 %v7655, %v8078
  %v8185 = vadd.f32 %v7656, %v8083
  %v8186 = vadd.f32 %v7657, %v8088
  %v8187 = vadd.f32 %v7658, %v8093
  %v8188 = vadd.f32 %v7659, %v8098
  %v8189 = vadd.f32 %v7660, %v8103
  %v8190 = vadd.f32 %v7661, %v8108
  %v8191 = vadd.f32 %v7662, %v8113
  %v8192 = vadd.f32 %v7663, %v8118
  %v8193 = vadd.f32 %v7664, %v8123
  %v8194 = vadd.f32 %v7665, %v8128
  %v8195 = vld [vmem:[%s378 + $0x9] sm:$0xff]
  %v8196 = vld [vmem:[%s378 + $0x11] sm:$0xff]
  %v8197 = vld [vmem:[%s378 + $0x29] sm:$0xff]
  %v8198 = vld [vmem:[%s378 + $0x31] sm:$0xff]
  %v8199 = vld [vmem:[%s378 + $0x49] sm:$0xff]
  %v8200 = vld [vmem:[%s378 + $0x51] sm:$0xff]
  %v8201 = vld [vmem:[%s378 + $0x69] sm:$0xff]
  %v8202 = vld [vmem:[%s378 + $0x71] sm:$0xff]
  %v8203 = vld [vmem:[%s378 + $0x89] sm:$0xff]
  %v8204 = vld [vmem:[%s378 + $0x91] sm:$0xff]
  %v8205 = vld [vmem:[%s378 + $0xa9] sm:$0xff]
  %v8206 = vld [vmem:[%s378 + $0xb1] sm:$0xff]
  %v8207 = vld [vmem:[%s378 + $0xc9] sm:$0xff]
  %v8208 = vld [vmem:[%s378 + $0xd1] sm:$0xff]
  %v8209 = vld [vmem:[%s378 + $0xe9] sm:$0xff]
  %v8210 = vld [vmem:[%s378 + $0xf1] sm:$0xff]
  %v8211 = vld [vmem:[%s378 + $0x109] sm:$0xff]
  %v8212 = vld [vmem:[%s378 + $0x111] sm:$0xff]
  %v8213 = vld [vmem:[%s378 + $0x129] sm:$0xff]
  %v8214 = vld [vmem:[%s378 + $0x131] sm:$0xff]
  %v8215 = vld [vmem:[%s378 + $0x149] sm:$0xff]
  %v8216 = vld [vmem:[%s378 + $0x151] sm:$0xff]
  %v8217 = vld [vmem:[%s378 + $0x169] sm:$0xff]
  %v8218 = vld [vmem:[%s378 + $0x171] sm:$0xff]
  %v8219 = vld [vmem:[%s378 + $0x189] sm:$0xff]
  %v8220 = vld [vmem:[%s378 + $0x191] sm:$0xff]
  %v8221 = vld [vmem:[%s378 + $0x1a9] sm:$0xff]
  %v8222 = vld [vmem:[%s378 + $0x1b1] sm:$0xff]
  %v8223 = vld [vmem:[%s378 + $0x1c9] sm:$0xff]
  %v8224 = vld [vmem:[%s378 + $0x1d1] sm:$0xff]
  %v8225 = vld [vmem:[%s378 + $0x1e9] sm:$0xff]
  %v8226 = vld [vmem:[%s378 + $0x1f1] sm:$0xff]
  %v8227 = vld [vmem:[%s378 + $0x249] sm:$0xff]
  %v8228 = vld [vmem:[%s378 + $0x251] sm:$0xff]
  %v8229 = vld [vmem:[%s378 + $0x269] sm:$0xff]
  %v8230 = vld [vmem:[%s378 + $0x271] sm:$0xff]
  %v8231 = vld [vmem:[%s378 + $0x289] sm:$0xff]
  %v8232 = vld [vmem:[%s378 + $0x291] sm:$0xff]
  %v8233 = vld [vmem:[%s378 + $0x2a9] sm:$0xff]
  %v8234 = vld [vmem:[%s378 + $0x2b1] sm:$0xff]
  %v8235 = vld [vmem:[%s378 + $0x2c9] sm:$0xff]
  %v8236 = vld [vmem:[%s378 + $0x2d1] sm:$0xff]
  %v8237 = vld [vmem:[%s378 + $0x2e9] sm:$0xff]
  %v8238 = vld [vmem:[%s378 + $0x2f1] sm:$0xff]
  %v8239 = vld [vmem:[%s378 + $0x309] sm:$0xff]
  %v8240 = vld [vmem:[%s378 + $0x311] sm:$0xff]
  %v8241 = vld [vmem:[%s378 + $0x329] sm:$0xff]
  %v8242 = vld [vmem:[%s378 + $0x331] sm:$0xff]
  %v8243 = vld [vmem:[%s378 + $0x349] sm:$0xff]
  %v8244 = vld [vmem:[%s378 + $0x351] sm:$0xff]
  %v8245 = vld [vmem:[%s378 + $0x369] sm:$0xff]
  %v8246 = vld [vmem:[%s378 + $0x371] sm:$0xff]
  %v8247 = vld [vmem:[%s378 + $0x389] sm:$0xff]
  %v8248 = vld [vmem:[%s378 + $0x391] sm:$0xff]
  %v8249 = vld [vmem:[%s378 + $0x3a9] sm:$0xff]
  %v8250 = vld [vmem:[%s378 + $0x3b1] sm:$0xff]
  %v8251 = vld [vmem:[%s378 + $0x3c9] sm:$0xff]
  %v8252 = vld [vmem:[%s378 + $0x3d1] sm:$0xff]
  %v8253 = vld [vmem:[%s378 + $0x3e9] sm:$0xff]
  %v8254 = vld [vmem:[%s378 + $0x3f1] sm:$0xff]
  %v8255 = vld [vmem:[%s378 + $0x409] sm:$0xff]
  %v8256 = vld [vmem:[%s378 + $0x411] sm:$0xff]
  %v8257 = vld [vmem:[%s378 + $0x429] sm:$0xff]
  %v8258 = vld [vmem:[%s378 + $0x431] sm:$0xff]
  %v8259 = vld [vmem:[#allocation3 + $0x280] sm:$0xff]
  %v8260 = vld [vmem:[#allocation3 + $0x288] sm:$0xff]
  %v8261 = vld [vmem:[#allocation3 + $0x290] sm:$0xff]
  %v8262 = vld [vmem:[#allocation3 + $0x298] sm:$0xff]
  %v8263 = vld [vmem:[#allocation3 + $0x2a0] sm:$0xff]
  %v8264 = vld [vmem:[#allocation3 + $0x2a8] sm:$0xff]
  %v8265 = vld [vmem:[#allocation3 + $0x2b0] sm:$0xff]
  %v8266 = vld [vmem:[#allocation3 + $0x2b8] sm:$0xff]
  %v8267 = vld [vmem:[#allocation3 + $0x2c0] sm:$0xff]
  %v8268 = vld [vmem:[#allocation3 + $0x2c8] sm:$0xff]
  %v8269 = vld [vmem:[#allocation3 + $0x2d0] sm:$0xff]
  %v8270 = vld [vmem:[#allocation3 + $0x2d8] sm:$0xff]
  %v8271 = vld [vmem:[#allocation3 + $0x2e0] sm:$0xff]
  %v8272 = vld [vmem:[#allocation3 + $0x2e8] sm:$0xff]
  %v8273 = vld [vmem:[#allocation3 + $0x2f0] sm:$0xff]
  %v8274 = vld [vmem:[#allocation3 + $0x2f8] sm:$0xff]
  %8275 = vmatprep.subr.mxu0 0.0
  %8276 = vmatpush1.msra.mxu0 %v8259
  %8277 = vmatprep.subr.mxu0 0.0
  %8278 = vmatpush1.msra.mxu0 %v8260
  %8279 = vmatprep.subr.mxu0 0.0
  %8280 = vmatpush1.msra.mxu0 %v8261
  %8281 = vmatprep.subr.mxu0 0.0
  %8282 = vmatpush1.msra.mxu0 %v8262
  %8283 = vmatprep.subr.mxu0 0.0
  %8284 = vmatpush1.msra.mxu0 %v8263
  %8285 = vmatprep.subr.mxu0 0.0
  %8286 = vmatpush1.msra.mxu0 %v8264
  %8287 = vmatprep.subr.mxu0 0.0
  %8288 = vmatpush1.msra.mxu0 %v8265
  %8289 = vmatprep.subr.mxu0 0.0
  %8290 = vmatpush1.msra.mxu0 %v8266
  %8291 = vmatprep.subr.mxu0 0.0
  %8292 = vmatpush1.msra.mxu0 %v8267
  %8293 = vmatprep.subr.mxu0 0.0
  %8294 = vmatpush1.msra.mxu0 %v8268
  %8295 = vmatprep.subr.mxu0 0.0
  %8296 = vmatpush1.msra.mxu0 %v8269
  %8297 = vmatprep.subr.mxu0 0.0
  %8298 = vmatpush1.msra.mxu0 %v8270
  %8299 = vmatprep.subr.mxu0 0.0
  %8300 = vmatpush1.msra.mxu0 %v8271
  %8301 = vmatprep.subr.mxu0 0.0
  %8302 = vmatpush1.msra.mxu0 %v8272
  %8303 = vmatprep.subr.mxu0 0.0
  %8304 = vmatpush1.msra.mxu0 %v8273
  %8305 = vmatprep.subr.mxu0 0.0
  %8306 = vmatpush1.msra.mxu0 %v8274
  %8307 = vmatprep.subr.mxu0 0.0
  %8308 = vmatpush1.msra.mxu0 0.0
  %8309 = vmatprep.subr.mxu0 0.0
  %8310 = vmatpush1.msra.mxu0 0.0
  %8311 = vmatprep.subr.mxu0 0.0
  %8312 = vmatpush1.msra.mxu0 0.0
  %8313 = vmatprep.subr.mxu0 0.0
  %8314 = vmatpush1.msra.mxu0 0.0
  %8315 = vmatprep.subr.mxu0 0.0
  %8316 = vmatpush1.msra.mxu0 0.0
  %8317 = vmatprep.subr.mxu0 0.0
  %8318 = vmatpush1.msra.mxu0 0.0
  %8319 = vmatprep.subr.mxu0 0.0
  %8320 = vmatpush1.msra.mxu0 0.0
  %8321 = vmatprep.subr.mxu0 0.0
  %8322 = vmatpush1.msra.mxu0 0.0
  %8323 = vmatprep.subr.mxu0 0.0
  %8324 = vmatpush1.msra.mxu0 0.0
  %8325 = vmatprep.subr.mxu0 0.0
  %8326 = vmatpush1.msra.mxu0 0.0
  %8327 = vmatprep.subr.mxu0 0.0
  %8328 = vmatpush1.msra.mxu0 0.0
  %8329 = vmatprep.subr.mxu0 0.0
  %8330 = vmatpush1.msra.mxu0 0.0
  %8331 = vmatprep.subr.mxu0 0.0
  %8332 = vmatpush1.msra.mxu0 0.0
  %8333 = vmatprep.subr.mxu0 0.0
  %8334 = vmatpush1.msra.mxu0 0.0
  %8335 = vmatprep.subr.mxu0 0.0
  %8336 = vmatpush1.msra.mxu0 0.0
  %8337 = vmatprep.subr.mxu0 0.0
  %8338 = vmatpush1.msra.mxu0 0.0
  %8339 = vmatprep.mubr.f32.mxu0 0.0
  %8340 = vmatmul.mubr.f32.gmra.mrb[0].mxu0 %v8195
  %v8341 = vpop.f32.mrb[0].mxu0
  %v8342 = vadd.f32 0.0, %v8341
  %v8343 = vpop.f32.mrb[0].mxu0
  %8344 = vmatprep.mubr.f32.mxu0 0.0
  %8345 = vmatmul.mubr.f32.gmra.mrb[0].mxu0 %v8196
  %v8346 = vpop.f32.mrb[0].mxu0
  %v8347 = vadd.f32 0.0, %v8346
  %v8348 = vpop.f32.mrb[0].mxu0
  %8349 = vmatprep.mubr.f32.mxu0 0.0
  %8350 = vmatmul.mubr.f32.gmra.mrb[0].mxu0 %v8197
  %v8351 = vpop.f32.mrb[0].mxu0
  %v8352 = vadd.f32 0.0, %v8351
  %v8353 = vpop.f32.mrb[0].mxu0
  %8354 = vmatprep.mubr.f32.mxu0 0.0
  %8355 = vmatmul.mubr.f32.gmra.mrb[0].mxu0 %v8198
  %v8356 = vpop.f32.mrb[0].mxu0
  %v8357 = vadd.f32 0.0, %v8356
  %v8358 = vpop.f32.mrb[0].mxu0
  %8359 = vmatprep.mubr.f32.mxu0 0.0
  %8360 = vmatmul.mubr.f32.gmra.mrb[0].mxu0 %v8199
  %v8361 = vpop.f32.mrb[0].mxu0
  %v8362 = vadd.f32 0.0, %v8361
  %v8363 = vpop.f32.mrb[0].mxu0
  %8364 = vmatprep.mubr.f32.mxu0 0.0
  %8365 = vmatmul.mubr.f32.gmra.mrb[0].mxu0 %v8200
  %v8366 = vpop.f32.mrb[0].mxu0
  %v8367 = vadd.f32 0.0, %v8366
  %v8368 = vpop.f32.mrb[0].mxu0
  %8369 = vmatprep.mubr.f32.mxu0 0.0
  %8370 = vmatmul.mubr.f32.gmra.mrb[0].mxu0 %v8201
  %v8371 = vpop.f32.mrb[0].mxu0
  %v8372 = vadd.f32 0.0, %v8371
  %v8373 = vpop.f32.mrb[0].mxu0
  %8374 = vmatprep.mubr.f32.mxu0 0.0
  %8375 = vmatmul.mubr.f32.gmra.mrb[0].mxu0 %v8202
  %v8376 = vpop.f32.mrb[0].mxu0
  %v8377 = vadd.f32 0.0, %v8376
  %v8378 = vpop.f32.mrb[0].mxu0
  %8379 = vmatprep.mubr.f32.mxu0 0.0
  %8380 = vmatmul.mubr.f32.gmra.mrb[0].mxu0 %v8203
  %v8381 = vpop.f32.mrb[0].mxu0
  %v8382 = vadd.f32 0.0, %v8381
  %v8383 = vpop.f32.mrb[0].mxu0
  %8384 = vmatprep.mubr.f32.mxu0 0.0
  %8385 = vmatmul.mubr.f32.gmra.mrb[0].mxu0 %v8204
  %v8386 = vpop.f32.mrb[0].mxu0
  %v8387 = vadd.f32 0.0, %v8386
  %v8388 = vpop.f32.mrb[0].mxu0
  %8389 = vmatprep.mubr.f32.mxu0 0.0
  %8390 = vmatmul.mubr.f32.gmra.mrb[0].mxu0 %v8205
  %v8391 = vpop.f32.mrb[0].mxu0
  %v8392 = vadd.f32 0.0, %v8391
  %v8393 = vpop.f32.mrb[0].mxu0
  %8394 = vmatprep.mubr.f32.mxu0 0.0
  %8395 = vmatmul.mubr.f32.gmra.mrb[0].mxu0 %v8206
  %v8396 = vpop.f32.mrb[0].mxu0
  %v8397 = vadd.f32 0.0, %v8396
  %v8398 = vpop.f32.mrb[0].mxu0
  %8399 = vmatprep.mubr.f32.mxu0 0.0
  %8400 = vmatmul.mubr.f32.gmra.mrb[0].mxu0 %v8207
  %v8401 = vpop.f32.mrb[0].mxu0
  %v8402 = vadd.f32 0.0, %v8401
  %v8403 = vpop.f32.mrb[0].mxu0
  %8404 = vmatprep.mubr.f32.mxu0 0.0
  %8405 = vmatmul.mubr.f32.gmra.mrb[0].mxu0 %v8208
  %v8406 = vpop.f32.mrb[0].mxu0
  %v8407 = vadd.f32 0.0, %v8406
  %v8408 = vpop.f32.mrb[0].mxu0
  %8409 = vmatprep.mubr.f32.mxu0 0.0
  %8410 = vmatmul.mubr.f32.gmra.mrb[0].mxu0 %v8209
  %v8411 = vpop.f32.mrb[0].mxu0
  %v8412 = vadd.f32 0.0, %v8411
  %v8413 = vpop.f32.mrb[0].mxu0
  %8414 = vmatprep.mubr.f32.mxu0 0.0
  %8415 = vmatmul.mubr.f32.gmra.mrb[0].mxu0 %v8210
  %v8416 = vpop.f32.mrb[0].mxu0
  %v8417 = vadd.f32 0.0, %v8416
  %v8418 = vpop.f32.mrb[0].mxu0
  %8419 = vmatprep.mubr.f32.mxu0 0.0
  %8420 = vmatmul.mubr.f32.gmra.mrb[0].mxu0 %v8211
  %v8421 = vpop.f32.mrb[0].mxu0
  %v8422 = vadd.f32 0.0, %v8421
  %v8423 = vpop.f32.mrb[0].mxu0
  %8424 = vmatprep.mubr.f32.mxu0 0.0
  %8425 = vmatmul.mubr.f32.gmra.mrb[0].mxu0 %v8212
  %v8426 = vpop.f32.mrb[0].mxu0
  %v8427 = vadd.f32 0.0, %v8426
  %v8428 = vpop.f32.mrb[0].mxu0
  %8429 = vmatprep.mubr.f32.mxu0 0.0
  %8430 = vmatmul.mubr.f32.gmra.mrb[0].mxu0 %v8213
  %v8431 = vpop.f32.mrb[0].mxu0
  %v8432 = vadd.f32 0.0, %v8431
  %v8433 = vpop.f32.mrb[0].mxu0
  %8434 = vmatprep.mubr.f32.mxu0 0.0
  %8435 = vmatmul.mubr.f32.gmra.mrb[0].mxu0 %v8214
  %v8436 = vpop.f32.mrb[0].mxu0
  %v8437 = vadd.f32 0.0, %v8436
  %v8438 = vpop.f32.mrb[0].mxu0
  %8439 = vmatprep.mubr.f32.mxu0 0.0
  %8440 = vmatmul.mubr.f32.gmra.mrb[0].mxu0 %v8215
  %v8441 = vpop.f32.mrb[0].mxu0
  %v8442 = vadd.f32 0.0, %v8441
  %v8443 = vpop.f32.mrb[0].mxu0
  %8444 = vmatprep.mubr.f32.mxu0 0.0
  %8445 = vmatmul.mubr.f32.gmra.mrb[0].mxu0 %v8216
  %v8446 = vpop.f32.mrb[0].mxu0
  %v8447 = vadd.f32 0.0, %v8446
  %v8448 = vpop.f32.mrb[0].mxu0
  %8449 = vmatprep.mubr.f32.mxu0 0.0
  %8450 = vmatmul.mubr.f32.gmra.mrb[0].mxu0 %v8217
  %v8451 = vpop.f32.mrb[0].mxu0
  %v8452 = vadd.f32 0.0, %v8451
  %v8453 = vpop.f32.mrb[0].mxu0
  %8454 = vmatprep.mubr.f32.mxu0 0.0
  %8455 = vmatmul.mubr.f32.gmra.mrb[0].mxu0 %v8218
  %v8456 = vpop.f32.mrb[0].mxu0
  %v8457 = vadd.f32 0.0, %v8456
  %v8458 = vpop.f32.mrb[0].mxu0
  %8459 = vmatprep.mubr.f32.mxu0 0.0
  %8460 = vmatmul.mubr.f32.gmra.mrb[0].mxu0 %v8219
  %v8461 = vpop.f32.mrb[0].mxu0
  %v8462 = vadd.f32 0.0, %v8461
  %v8463 = vpop.f32.mrb[0].mxu0
  %8464 = vmatprep.mubr.f32.mxu0 0.0
  %8465 = vmatmul.mubr.f32.gmra.mrb[0].mxu0 %v8220
  %v8466 = vpop.f32.mrb[0].mxu0
  %v8467 = vadd.f32 0.0, %v8466
  %v8468 = vpop.f32.mrb[0].mxu0
  %8469 = vmatprep.mubr.f32.mxu0 0.0
  %8470 = vmatmul.mubr.f32.gmra.mrb[0].mxu0 %v8221
  %v8471 = vpop.f32.mrb[0].mxu0
  %v8472 = vadd.f32 0.0, %v8471
  %v8473 = vpop.f32.mrb[0].mxu0
  %8474 = vmatprep.mubr.f32.mxu0 0.0
  %8475 = vmatmul.mubr.f32.gmra.mrb[0].mxu0 %v8222
  %v8476 = vpop.f32.mrb[0].mxu0
  %v8477 = vadd.f32 0.0, %v8476
  %v8478 = vpop.f32.mrb[0].mxu0
  %8479 = vmatprep.mubr.f32.mxu0 0.0
  %8480 = vmatmul.mubr.f32.gmra.mrb[0].mxu0 %v8223
  %v8481 = vpop.f32.mrb[0].mxu0
  %v8482 = vadd.f32 0.0, %v8481
  %v8483 = vpop.f32.mrb[0].mxu0
  %8484 = vmatprep.mubr.f32.mxu0 0.0
  %8485 = vmatmul.mubr.f32.gmra.mrb[0].mxu0 %v8224
  %v8486 = vpop.f32.mrb[0].mxu0
  %v8487 = vadd.f32 0.0, %v8486
  %v8488 = vpop.f32.mrb[0].mxu0
  %8489 = vmatprep.mubr.f32.mxu0 0.0
  %8490 = vmatmul.mubr.f32.gmra.mrb[0].mxu0 %v8225
  %v8491 = vpop.f32.mrb[0].mxu0
  %v8492 = vadd.f32 0.0, %v8491
  %v8493 = vpop.f32.mrb[0].mxu0
  %8494 = vmatprep.mubr.f32.mxu0 0.0
  %8495 = vmatmul.mubr.f32.gmra.mrb[0].mxu0 %v8226
  %v8496 = vpop.f32.mrb[0].mxu0
  %v8497 = vadd.f32 0.0, %v8496
  %v8498 = vpop.f32.mrb[0].mxu0
  %8499 = vmatprep.mubr.f32.mxu0 0.0
  %8500 = vmatmul.mubr.f32.gmra.mrb[0].mxu0 %v8227
  %v8501 = vpop.f32.mrb[0].mxu0
  %v8502 = vadd.f32 0.0, %v8501
  %v8503 = vpop.f32.mrb[0].mxu0
  %8504 = vmatprep.mubr.f32.mxu0 0.0
  %8505 = vmatmul.mubr.f32.gmra.mrb[0].mxu0 %v8228
  %v8506 = vpop.f32.mrb[0].mxu0
  %v8507 = vadd.f32 0.0, %v8506
  %v8508 = vpop.f32.mrb[0].mxu0
  %8509 = vmatprep.mubr.f32.mxu0 0.0
  %8510 = vmatmul.mubr.f32.gmra.mrb[0].mxu0 %v8229
  %v8511 = vpop.f32.mrb[0].mxu0
  %v8512 = vadd.f32 0.0, %v8511
  %v8513 = vpop.f32.mrb[0].mxu0
  %8514 = vmatprep.mubr.f32.mxu0 0.0
  %8515 = vmatmul.mubr.f32.gmra.mrb[0].mxu0 %v8230
  %v8516 = vpop.f32.mrb[0].mxu0
  %v8517 = vadd.f32 0.0, %v8516
  %v8518 = vpop.f32.mrb[0].mxu0
  %8519 = vmatprep.mubr.f32.mxu0 0.0
  %8520 = vmatmul.mubr.f32.gmra.mrb[0].mxu0 %v8231
  %v8521 = vpop.f32.mrb[0].mxu0
  %v8522 = vadd.f32 0.0, %v8521
  %v8523 = vpop.f32.mrb[0].mxu0
  %8524 = vmatprep.mubr.f32.mxu0 0.0
  %8525 = vmatmul.mubr.f32.gmra.mrb[0].mxu0 %v8232
  %v8526 = vpop.f32.mrb[0].mxu0
  %v8527 = vadd.f32 0.0, %v8526
  %v8528 = vpop.f32.mrb[0].mxu0
  %8529 = vmatprep.mubr.f32.mxu0 0.0
  %8530 = vmatmul.mubr.f32.gmra.mrb[0].mxu0 %v8233
  %v8531 = vpop.f32.mrb[0].mxu0
  %v8532 = vadd.f32 0.0, %v8531
  %v8533 = vpop.f32.mrb[0].mxu0
  %8534 = vmatprep.mubr.f32.mxu0 0.0
  %8535 = vmatmul.mubr.f32.gmra.mrb[0].mxu0 %v8234
  %v8536 = vpop.f32.mrb[0].mxu0
  %v8537 = vadd.f32 0.0, %v8536
  %v8538 = vpop.f32.mrb[0].mxu0
  %8539 = vmatprep.mubr.f32.mxu0 0.0
  %8540 = vmatmul.mubr.f32.gmra.mrb[0].mxu0 %v8235
  %v8541 = vpop.f32.mrb[0].mxu0
  %v8542 = vadd.f32 0.0, %v8541
  %v8543 = vpop.f32.mrb[0].mxu0
  %8544 = vmatprep.mubr.f32.mxu0 0.0
  %8545 = vmatmul.mubr.f32.gmra.mrb[0].mxu0 %v8236
  %v8546 = vpop.f32.mrb[0].mxu0
  %v8547 = vadd.f32 0.0, %v8546
  %v8548 = vpop.f32.mrb[0].mxu0
  %8549 = vmatprep.mubr.f32.mxu0 0.0
  %8550 = vmatmul.mubr.f32.gmra.mrb[0].mxu0 %v8237
  %v8551 = vpop.f32.mrb[0].mxu0
  %v8552 = vadd.f32 0.0, %v8551
  %v8553 = vpop.f32.mrb[0].mxu0
  %8554 = vmatprep.mubr.f32.mxu0 0.0
  %8555 = vmatmul.mubr.f32.gmra.mrb[0].mxu0 %v8238
  %v8556 = vpop.f32.mrb[0].mxu0
  %v8557 = vadd.f32 0.0, %v8556
  %v8558 = vpop.f32.mrb[0].mxu0
  %8559 = vmatprep.mubr.f32.mxu0 0.0
  %8560 = vmatmul.mubr.f32.gmra.mrb[0].mxu0 %v8239
  %v8561 = vpop.f32.mrb[0].mxu0
  %v8562 = vadd.f32 0.0, %v8561
  %v8563 = vpop.f32.mrb[0].mxu0
  %8564 = vmatprep.mubr.f32.mxu0 0.0
  %8565 = vmatmul.mubr.f32.gmra.mrb[0].mxu0 %v8240
  %v8566 = vpop.f32.mrb[0].mxu0
  %v8567 = vadd.f32 0.0, %v8566
  %v8568 = vpop.f32.mrb[0].mxu0
  %8569 = vmatprep.mubr.f32.mxu0 0.0
  %8570 = vmatmul.mubr.f32.gmra.mrb[0].mxu0 %v8241
  %v8571 = vpop.f32.mrb[0].mxu0
  %v8572 = vadd.f32 0.0, %v8571
  %v8573 = vpop.f32.mrb[0].mxu0
  %8574 = vmatprep.mubr.f32.mxu0 0.0
  %8575 = vmatmul.mubr.f32.gmra.mrb[0].mxu0 %v8242
  %v8576 = vpop.f32.mrb[0].mxu0
  %v8577 = vadd.f32 0.0, %v8576
  %v8578 = vpop.f32.mrb[0].mxu0
  %8579 = vmatprep.mubr.f32.mxu0 0.0
  %8580 = vmatmul.mubr.f32.gmra.mrb[0].mxu0 %v8243
  %v8581 = vpop.f32.mrb[0].mxu0
  %v8582 = vadd.f32 0.0, %v8581
  %v8583 = vpop.f32.mrb[0].mxu0
  %8584 = vmatprep.mubr.f32.mxu0 0.0
  %8585 = vmatmul.mubr.f32.gmra.mrb[0].mxu0 %v8244
  %v8586 = vpop.f32.mrb[0].mxu0
  %v8587 = vadd.f32 0.0, %v8586
  %v8588 = vpop.f32.mrb[0].mxu0
  %8589 = vmatprep.mubr.f32.mxu0 0.0
  %8590 = vmatmul.mubr.f32.gmra.mrb[0].mxu0 %v8245
  %v8591 = vpop.f32.mrb[0].mxu0
  %v8592 = vadd.f32 0.0, %v8591
  %v8593 = vpop.f32.mrb[0].mxu0
  %8594 = vmatprep.mubr.f32.mxu0 0.0
  %8595 = vmatmul.mubr.f32.gmra.mrb[0].mxu0 %v8246
  %v8596 = vpop.f32.mrb[0].mxu0
  %v8597 = vadd.f32 0.0, %v8596
  %v8598 = vpop.f32.mrb[0].mxu0
  %8599 = vmatprep.mubr.f32.mxu0 0.0
  %8600 = vmatmul.mubr.f32.gmra.mrb[0].mxu0 %v8247
  %v8601 = vpop.f32.mrb[0].mxu0
  %v8602 = vadd.f32 0.0, %v8601
  %v8603 = vpop.f32.mrb[0].mxu0
  %8604 = vmatprep.mubr.f32.mxu0 0.0
  %8605 = vmatmul.mubr.f32.gmra.mrb[0].mxu0 %v8248
  %v8606 = vpop.f32.mrb[0].mxu0
  %v8607 = vadd.f32 0.0, %v8606
  %v8608 = vpop.f32.mrb[0].mxu0
  %8609 = vmatprep.mubr.f32.mxu0 0.0
  %8610 = vmatmul.mubr.f32.gmra.mrb[0].mxu0 %v8249
  %v8611 = vpop.f32.mrb[0].mxu0
  %v8612 = vadd.f32 0.0, %v8611
  %v8613 = vpop.f32.mrb[0].mxu0
  %8614 = vmatprep.mubr.f32.mxu0 0.0
  %8615 = vmatmul.mubr.f32.gmra.mrb[0].mxu0 %v8250
  %v8616 = vpop.f32.mrb[0].mxu0
  %v8617 = vadd.f32 0.0, %v8616
  %v8618 = vpop.f32.mrb[0].mxu0
  %8619 = vmatprep.mubr.f32.mxu0 0.0
  %8620 = vmatmul.mubr.f32.gmra.mrb[0].mxu0 %v8251
  %v8621 = vpop.f32.mrb[0].mxu0
  %v8622 = vadd.f32 0.0, %v8621
  %v8623 = vpop.f32.mrb[0].mxu0
  %8624 = vmatprep.mubr.f32.mxu0 0.0
  %8625 = vmatmul.mubr.f32.gmra.mrb[0].mxu0 %v8252
  %v8626 = vpop.f32.mrb[0].mxu0
  %v8627 = vadd.f32 0.0, %v8626
  %v8628 = vpop.f32.mrb[0].mxu0
  %8629 = vmatprep.mubr.f32.mxu0 0.0
  %8630 = vmatmul.mubr.f32.gmra.mrb[0].mxu0 %v8253
  %v8631 = vpop.f32.mrb[0].mxu0
  %v8632 = vadd.f32 0.0, %v8631
  %v8633 = vpop.f32.mrb[0].mxu0
  %8634 = vmatprep.mubr.f32.mxu0 0.0
  %8635 = vmatmul.mubr.f32.gmra.mrb[0].mxu0 %v8254
  %v8636 = vpop.f32.mrb[0].mxu0
  %v8637 = vadd.f32 0.0, %v8636
  %v8638 = vpop.f32.mrb[0].mxu0
  %8639 = vmatprep.mubr.f32.mxu0 0.0
  %8640 = vmatmul.mubr.f32.gmra.mrb[0].mxu0 %v8255
  %v8641 = vpop.f32.mrb[0].mxu0
  %v8642 = vadd.f32 0.0, %v8641
  %v8643 = vpop.f32.mrb[0].mxu0
  %8644 = vmatprep.mubr.f32.mxu0 0.0
  %8645 = vmatmul.mubr.f32.gmra.mrb[0].mxu0 %v8256
  %v8646 = vpop.f32.mrb[0].mxu0
  %v8647 = vadd.f32 0.0, %v8646
  %v8648 = vpop.f32.mrb[0].mxu0
  %8649 = vmatprep.mubr.f32.mxu0 0.0
  %8650 = vmatmul.mubr.f32.gmra.mrb[0].mxu0 %v8257
  %v8651 = vpop.f32.mrb[0].mxu0
  %v8652 = vadd.f32 0.0, %v8651
  %v8653 = vpop.f32.mrb[0].mxu0
  %8654 = vmatprep.mubr.f32.mxu0 0.0
  %8655 = vmatmul.mubr.f32.gmra.mrb[0].mxu0 %v8258
  %v8656 = vpop.f32.mrb[0].mxu0
  %v8657 = vadd.f32 0.0, %v8656
  %v8658 = vpop.f32.mrb[0].mxu0
  %8659 = vdwg.mxu0
  %v8660 = vadd.f32 %v8131, %v8342
  %v8661 = vadd.f32 %v8132, %v8347
  %v8662 = vadd.f32 %v8133, %v8352
  %v8663 = vadd.f32 %v8134, %v8357
  %v8664 = vadd.f32 %v8135, %v8362
  %v8665 = vadd.f32 %v8136, %v8367
  %v8666 = vadd.f32 %v8137, %v8372
  %v8667 = vadd.f32 %v8138, %v8377
  %v8668 = vadd.f32 %v8139, %v8382
  %v8669 = vadd.f32 %v8140, %v8387
  %v8670 = vadd.f32 %v8141, %v8392
  %v8671 = vadd.f32 %v8142, %v8397
  %v8672 = vadd.f32 %v8143, %v8402
  %v8673 = vadd.f32 %v8144, %v8407
  %v8674 = vadd.f32 %v8145, %v8412
  %v8675 = vadd.f32 %v8146, %v8417
  %v8676 = vadd.f32 %v8147, %v8422
  %v8677 = vadd.f32 %v8148, %v8427
  %v8678 = vadd.f32 %v8149, %v8432
  %v8679 = vadd.f32 %v8150, %v8437
  %v8680 = vadd.f32 %v8151, %v8442
  %v8681 = vadd.f32 %v8152, %v8447
  %v8682 = vadd.f32 %v8153, %v8452
  %v8683 = vadd.f32 %v8154, %v8457
  %v8684 = vadd.f32 %v8155, %v8462
  %v8685 = vadd.f32 %v8156, %v8467
  %v8686 = vadd.f32 %v8157, %v8472
  %v8687 = vadd.f32 %v8158, %v8477
  %v8688 = vadd.f32 %v8159, %v8482
  %v8689 = vadd.f32 %v8160, %v8487
  %v8690 = vadd.f32 %v8161, %v8492
  %v8691 = vadd.f32 %v8162, %v8497
  %v8692 = vadd.f32 %v8163, %v8502
  %v8693 = vadd.f32 %v8164, %v8507
  %v8694 = vadd.f32 %v8165, %v8512
  %v8695 = vadd.f32 %v8166, %v8517
  %v8696 = vadd.f32 %v8167, %v8522
  %v8697 = vadd.f32 %v8168, %v8527
  %v8698 = vadd.f32 %v8169, %v8532
  %v8699 = vadd.f32 %v8170, %v8537
  %v8700 = vadd.f32 %v8171, %v8542
  %v8701 = vadd.f32 %v8172, %v8547
  %v8702 = vadd.f32 %v8173, %v8552
  %v8703 = vadd.f32 %v8174, %v8557
  %v8704 = vadd.f32 %v8175, %v8562
  %v8705 = vadd.f32 %v8176, %v8567
  %v8706 = vadd.f32 %v8177, %v8572
  %v8707 = vadd.f32 %v8178, %v8577
  %v8708 = vadd.f32 %v8179, %v8582
  %v8709 = vadd.f32 %v8180, %v8587
  %v8710 = vadd.f32 %v8181, %v8592
  %v8711 = vadd.f32 %v8182, %v8597
  %v8712 = vadd.f32 %v8183, %v8602
  %v8713 = vadd.f32 %v8184, %v8607
  %v8714 = vadd.f32 %v8185, %v8612
  %v8715 = vadd.f32 %v8186, %v8617
  %v8716 = vadd.f32 %v8187, %v8622
  %v8717 = vadd.f32 %v8188, %v8627
  %v8718 = vadd.f32 %v8189, %v8632
  %v8719 = vadd.f32 %v8190, %v8637
  %v8720 = vadd.f32 %v8191, %v8642
  %v8721 = vadd.f32 %v8192, %v8647
  %v8722 = vadd.f32 %v8193, %v8652
  %v8723 = vadd.f32 %v8194, %v8657
  %v8724 = vld [vmem:[%s3519 + $0x7] sm:$0xff]
  %v8725 = vld [vmem:[%s3519 + $0xf] sm:$0xff]
  %v8726 = vld [vmem:[%s3519 + $0x27] sm:$0xff]
  %v8727 = vld [vmem:[%s3519 + $0x2f] sm:$0xff]
  %v8728 = vld [vmem:[%s3519 + $0x47] sm:$0xff]
  %v8729 = vld [vmem:[%s3519 + $0x4f] sm:$0xff]
  %v8730 = vld [vmem:[%s3519 + $0x67] sm:$0xff]
  %v8731 = vld [vmem:[%s3519 + $0x6f] sm:$0xff]
  %v8732 = vld [vmem:[%s3519 + $0x87] sm:$0xff]
  %v8733 = vld [vmem:[%s3519 + $0x8f] sm:$0xff]
  %v8734 = vld [vmem:[%s3519 + $0xa7] sm:$0xff]
  %v8735 = vld [vmem:[%s3519 + $0xaf] sm:$0xff]
  %v8736 = vld [vmem:[%s3519 + $0xc7] sm:$0xff]
  %v8737 = vld [vmem:[%s3519 + $0xcf] sm:$0xff]
  %v8738 = vld [vmem:[%s3519 + $0xe7] sm:$0xff]
  %v8739 = vld [vmem:[%s3519 + $0xef] sm:$0xff]
  %v8740 = vld [vmem:[%s3519 + $0x107] sm:$0xff]
  %v8741 = vld [vmem:[%s3519 + $0x10f] sm:$0xff]
  %v8742 = vld [vmem:[%s3519 + $0x127] sm:$0xff]
  %v8743 = vld [vmem:[%s3519 + $0x12f] sm:$0xff]
  %v8744 = vld [vmem:[%s3519 + $0x147] sm:$0xff]
  %v8745 = vld [vmem:[%s3519 + $0x14f] sm:$0xff]
  %v8746 = vld [vmem:[%s3519 + $0x167] sm:$0xff]
  %v8747 = vld [vmem:[%s3519 + $0x16f] sm:$0xff]
  %v8748 = vld [vmem:[%s3519 + $0x187] sm:$0xff]
  %v8749 = vld [vmem:[%s3519 + $0x18f] sm:$0xff]
  %v8750 = vld [vmem:[%s3519 + $0x1a7] sm:$0xff]
  %v8751 = vld [vmem:[%s3519 + $0x1af] sm:$0xff]
  %v8752 = vld [vmem:[%s3519 + $0x1c7] sm:$0xff]
  %v8753 = vld [vmem:[%s3519 + $0x1cf] sm:$0xff]
  %v8754 = vld [vmem:[%s3519 + $0x1e7] sm:$0xff]
  %v8755 = vld [vmem:[%s3519 + $0x1ef] sm:$0xff]
  %v8756 = vld [vmem:[%s3519 + $0x247] sm:$0xff]
  %v8757 = vld [vmem:[%s3519 + $0x24f] sm:$0xff]
  %v8758 = vld [vmem:[%s3519 + $0x267] sm:$0xff]
  %v8759 = vld [vmem:[%s3519 + $0x26f] sm:$0xff]
  %v8760 = vld [vmem:[%s3519 + $0x287] sm:$0xff]
  %v8761 = vld [vmem:[%s3519 + $0x28f] sm:$0xff]
  %v8762 = vld [vmem:[%s3519 + $0x2a7] sm:$0xff]
  %v8763 = vld [vmem:[%s3519 + $0x2af] sm:$0xff]
  %v8764 = vld [vmem:[%s3519 + $0x2c7] sm:$0xff]
  %v8765 = vld [vmem:[%s3519 + $0x2cf] sm:$0xff]
  %v8766 = vld [vmem:[%s3519 + $0x2e7] sm:$0xff]
  %v8767 = vld [vmem:[%s3519 + $0x2ef] sm:$0xff]
  %v8768 = vld [vmem:[%s3519 + $0x307] sm:$0xff]
  %v8769 = vld [vmem:[%s3519 + $0x30f] sm:$0xff]
  %v8770 = vld [vmem:[%s3519 + $0x327] sm:$0xff]
  %v8771 = vld [vmem:[%s3519 + $0x32f] sm:$0xff]
  %v8772 = vld [vmem:[%s3519 + $0x347] sm:$0xff]
  %v8773 = vld [vmem:[%s3519 + $0x34f] sm:$0xff]
  %v8774 = vld [vmem:[%s3519 + $0x367] sm:$0xff]
  %v8775 = vld [vmem:[%s3519 + $0x36f] sm:$0xff]
  %v8776 = vld [vmem:[%s3519 + $0x387] sm:$0xff]
  %v8777 = vld [vmem:[%s3519 + $0x38f] sm:$0xff]
  %v8778 = vld [vmem:[%s3519 + $0x3a7] sm:$0xff]
  %v8779 = vld [vmem:[%s3519 + $0x3af] sm:$0xff]
  %v8780 = vld [vmem:[%s3519 + $0x3c7] sm:$0xff]
  %v8781 = vld [vmem:[%s3519 + $0x3cf] sm:$0xff]
  %v8782 = vld [vmem:[%s3519 + $0x3e7] sm:$0xff]
  %v8783 = vld [vmem:[%s3519 + $0x3ef] sm:$0xff]
  %v8784 = vld [vmem:[%s3519 + $0x407] sm:$0xff]
  %v8785 = vld [vmem:[%s3519 + $0x40f] sm:$0xff]
  %v8786 = vld [vmem:[%s3519 + $0x427] sm:$0xff]
  %v8787 = vld [vmem:[%s3519 + $0x42f] sm:$0xff]
  %v8788 = vld [vmem:[#allocation3 + $0x300] sm:$0xff]
  %v8789 = vld [vmem:[#allocation3 + $0x308] sm:$0xff]
  %v8790 = vld [vmem:[#allocation3 + $0x310] sm:$0xff]
  %v8791 = vld [vmem:[#allocation3 + $0x318] sm:$0xff]
  %v8792 = vld [vmem:[#allocation3 + $0x320] sm:$0xff]
  %v8793 = vld [vmem:[#allocation3 + $0x328] sm:$0xff]
  %v8794 = vld [vmem:[#allocation3 + $0x330] sm:$0xff]
  %v8795 = vld [vmem:[#allocation3 + $0x338] sm:$0xff]
  %v8796 = vld [vmem:[#allocation3 + $0x340] sm:$0xff]
  %v8797 = vld [vmem:[#allocation3 + $0x348] sm:$0xff]
  %v8798 = vld [vmem:[#allocation3 + $0x350] sm:$0xff]
  %v8799 = vld [vmem:[#allocation3 + $0x358] sm:$0xff]
  %v8800 = vld [vmem:[#allocation3 + $0x360] sm:$0xff]
  %v8801 = vld [vmem:[#allocation3 + $0x368] sm:$0xff]
  %v8802 = vld [vmem:[#allocation3 + $0x370] sm:$0xff]
  %v8803 = vld [vmem:[#allocation3 + $0x378] sm:$0xff]
  %8804 = vmatprep.subr.mxu0 0.0
  %8805 = vmatpush1.msra.mxu0 %v8788
  %8806 = vmatprep.subr.mxu0 0.0
  %8807 = vmatpush1.msra.mxu0 %v8789
  %8808 = vmatprep.subr.mxu0 0.0
  %8809 = vmatpush1.msra.mxu0 %v8790
  %8810 = vmatprep.subr.mxu0 0.0
  %8811 = vmatpush1.msra.mxu0 %v8791
  %8812 = vmatprep.subr.mxu0 0.0
  %8813 = vmatpush1.msra.mxu0 %v8792
  %8814 = vmatprep.subr.mxu0 0.0
  %8815 = vmatpush1.msra.mxu0 %v8793
  %8816 = vmatprep.subr.mxu0 0.0
  %8817 = vmatpush1.msra.mxu0 %v8794
  %8818 = vmatprep.subr.mxu0 0.0
  %8819 = vmatpush1.msra.mxu0 %v8795
  %8820 = vmatprep.subr.mxu0 0.0
  %8821 = vmatpush1.msra.mxu0 %v8796
  %8822 = vmatprep.subr.mxu0 0.0
  %8823 = vmatpush1.msra.mxu0 %v8797
  %8824 = vmatprep.subr.mxu0 0.0
  %8825 = vmatpush1.msra.mxu0 %v8798
  %8826 = vmatprep.subr.mxu0 0.0
  %8827 = vmatpush1.msra.mxu0 %v8799
  %8828 = vmatprep.subr.mxu0 0.0
  %8829 = vmatpush1.msra.mxu0 %v8800
  %8830 = vmatprep.subr.mxu0 0.0
  %8831 = vmatpush1.msra.mxu0 %v8801
  %8832 = vmatprep.subr.mxu0 0.0
  %8833 = vmatpush1.msra.mxu0 %v8802
  %8834 = vmatprep.subr.mxu0 0.0
  %8835 = vmatpush1.msra.mxu0 %v8803
  %8836 = vmatprep.subr.mxu0 0.0
  %8837 = vmatpush1.msra.mxu0 0.0
  %8838 = vmatprep.subr.mxu0 0.0
  %8839 = vmatpush1.msra.mxu0 0.0
  %8840 = vmatprep.subr.mxu0 0.0
  %8841 = vmatpush1.msra.mxu0 0.0
  %8842 = vmatprep.subr.mxu0 0.0
  %8843 = vmatpush1.msra.mxu0 0.0
  %8844 = vmatprep.subr.mxu0 0.0
  %8845 = vmatpush1.msra.mxu0 0.0
  %8846 = vmatprep.subr.mxu0 0.0
  %8847 = vmatpush1.msra.mxu0 0.0
  %8848 = vmatprep.subr.mxu0 0.0
  %8849 = vmatpush1.msra.mxu0 0.0
  %8850 = vmatprep.subr.mxu0 0.0
  %8851 = vmatpush1.msra.mxu0 0.0
  %8852 = vmatprep.subr.mxu0 0.0
  %8853 = vmatpush1.msra.mxu0 0.0
  %8854 = vmatprep.subr.mxu0 0.0
  %8855 = vmatpush1.msra.mxu0 0.0
  %8856 = vmatprep.subr.mxu0 0.0
  %8857 = vmatpush1.msra.mxu0 0.0
  %8858 = vmatprep.subr.mxu0 0.0
  %8859 = vmatpush1.msra.mxu0 0.0
  %8860 = vmatprep.subr.mxu0 0.0
  %8861 = vmatpush1.msra.mxu0 0.0
  %8862 = vmatprep.subr.mxu0 0.0
  %8863 = vmatpush1.msra.mxu0 0.0
  %8864 = vmatprep.subr.mxu0 0.0
  %8865 = vmatpush1.msra.mxu0 0.0
  %8866 = vmatprep.subr.mxu0 0.0
  %8867 = vmatpush1.msra.mxu0 0.0
  %8868 = vmatprep.mubr.f32.mxu0 0.0
  %8869 = vmatmul.mubr.f32.gmra.mrb[0].mxu0 %v8724
  %v8870 = vpop.f32.mrb[0].mxu0
  %v8871 = vadd.f32 0.0, %v8870
  %v8872 = vpop.f32.mrb[0].mxu0
  %8873 = vmatprep.mubr.f32.mxu0 0.0
  %8874 = vmatmul.mubr.f32.gmra.mrb[0].mxu0 %v8725
  %v8875 = vpop.f32.mrb[0].mxu0
  %v8876 = vadd.f32 0.0, %v8875
  %v8877 = vpop.f32.mrb[0].mxu0
  %8878 = vmatprep.mubr.f32.mxu0 0.0
  %8879 = vmatmul.mubr.f32.gmra.mrb[0].mxu0 %v8726
  %v8880 = vpop.f32.mrb[0].mxu0
  %v8881 = vadd.f32 0.0, %v8880
  %v8882 = vpop.f32.mrb[0].mxu0
  %8883 = vmatprep.mubr.f32.mxu0 0.0
  %8884 = vmatmul.mubr.f32.gmra.mrb[0].mxu0 %v8727
  %v8885 = vpop.f32.mrb[0].mxu0
  %v8886 = vadd.f32 0.0, %v8885
  %v8887 = vpop.f32.mrb[0].mxu0
  %8888 = vmatprep.mubr.f32.mxu0 0.0
  %8889 = vmatmul.mubr.f32.gmra.mrb[0].mxu0 %v8728
  %v8890 = vpop.f32.mrb[0].mxu0
  %v8891 = vadd.f32 0.0, %v8890
  %v8892 = vpop.f32.mrb[0].mxu0
  %8893 = vmatprep.mubr.f32.mxu0 0.0
  %8894 = vmatmul.mubr.f32.gmra.mrb[0].mxu0 %v8729
  %v8895 = vpop.f32.mrb[0].mxu0
  %v8896 = vadd.f32 0.0, %v8895
  %v8897 = vpop.f32.mrb[0].mxu0
  %8898 = vmatprep.mubr.f32.mxu0 0.0
  %8899 = vmatmul.mubr.f32.gmra.mrb[0].mxu0 %v8730
  %v8900 = vpop.f32.mrb[0].mxu0
  %v8901 = vadd.f32 0.0, %v8900
  %v8902 = vpop.f32.mrb[0].mxu0
  %8903 = vmatprep.mubr.f32.mxu0 0.0
  %8904 = vmatmul.mubr.f32.gmra.mrb[0].mxu0 %v8731
  %v8905 = vpop.f32.mrb[0].mxu0
  %v8906 = vadd.f32 0.0, %v8905
  %v8907 = vpop.f32.mrb[0].mxu0
  %8908 = vmatprep.mubr.f32.mxu0 0.0
  %8909 = vmatmul.mubr.f32.gmra.mrb[0].mxu0 %v8732
  %v8910 = vpop.f32.mrb[0].mxu0
  %v8911 = vadd.f32 0.0, %v8910
  %v8912 = vpop.f32.mrb[0].mxu0
  %8913 = vmatprep.mubr.f32.mxu0 0.0
  %8914 = vmatmul.mubr.f32.gmra.mrb[0].mxu0 %v8733
  %v8915 = vpop.f32.mrb[0].mxu0
  %v8916 = vadd.f32 0.0, %v8915
  %v8917 = vpop.f32.mrb[0].mxu0
  %8918 = vmatprep.mubr.f32.mxu0 0.0
  %8919 = vmatmul.mubr.f32.gmra.mrb[0].mxu0 %v8734
  %v8920 = vpop.f32.mrb[0].mxu0
  %v8921 = vadd.f32 0.0, %v8920
  %v8922 = vpop.f32.mrb[0].mxu0
  %8923 = vmatprep.mubr.f32.mxu0 0.0
  %8924 = vmatmul.mubr.f32.gmra.mrb[0].mxu0 %v8735
  %v8925 = vpop.f32.mrb[0].mxu0
  %v8926 = vadd.f32 0.0, %v8925
  %v8927 = vpop.f32.mrb[0].mxu0
  %8928 = vmatprep.mubr.f32.mxu0 0.0
  %8929 = vmatmul.mubr.f32.gmra.mrb[0].mxu0 %v8736
  %v8930 = vpop.f32.mrb[0].mxu0
  %v8931 = vadd.f32 0.0, %v8930
  %v8932 = vpop.f32.mrb[0].mxu0
  %8933 = vmatprep.mubr.f32.mxu0 0.0
  %8934 = vmatmul.mubr.f32.gmra.mrb[0].mxu0 %v8737
  %v8935 = vpop.f32.mrb[0].mxu0
  %v8936 = vadd.f32 0.0, %v8935
  %v8937 = vpop.f32.mrb[0].mxu0
  %8938 = vmatprep.mubr.f32.mxu0 0.0
  %8939 = vmatmul.mubr.f32.gmra.mrb[0].mxu0 %v8738
  %v8940 = vpop.f32.mrb[0].mxu0
  %v8941 = vadd.f32 0.0, %v8940
  %v8942 = vpop.f32.mrb[0].mxu0
  %8943 = vmatprep.mubr.f32.mxu0 0.0
  %8944 = vmatmul.mubr.f32.gmra.mrb[0].mxu0 %v8739
  %v8945 = vpop.f32.mrb[0].mxu0
  %v8946 = vadd.f32 0.0, %v8945
  %v8947 = vpop.f32.mrb[0].mxu0
  %8948 = vmatprep.mubr.f32.mxu0 0.0
  %8949 = vmatmul.mubr.f32.gmra.mrb[0].mxu0 %v8740
  %v8950 = vpop.f32.mrb[0].mxu0
  %v8951 = vadd.f32 0.0, %v8950
  %v8952 = vpop.f32.mrb[0].mxu0
  %8953 = vmatprep.mubr.f32.mxu0 0.0
  %8954 = vmatmul.mubr.f32.gmra.mrb[0].mxu0 %v8741
  %v8955 = vpop.f32.mrb[0].mxu0
  %v8956 = vadd.f32 0.0, %v8955
  %v8957 = vpop.f32.mrb[0].mxu0
  %8958 = vmatprep.mubr.f32.mxu0 0.0
  %8959 = vmatmul.mubr.f32.gmra.mrb[0].mxu0 %v8742
  %v8960 = vpop.f32.mrb[0].mxu0
  %v8961 = vadd.f32 0.0, %v8960
  %v8962 = vpop.f32.mrb[0].mxu0
  %8963 = vmatprep.mubr.f32.mxu0 0.0
  %8964 = vmatmul.mubr.f32.gmra.mrb[0].mxu0 %v8743
  %v8965 = vpop.f32.mrb[0].mxu0
  %v8966 = vadd.f32 0.0, %v8965
  %v8967 = vpop.f32.mrb[0].mxu0
  %8968 = vmatprep.mubr.f32.mxu0 0.0
  %8969 = vmatmul.mubr.f32.gmra.mrb[0].mxu0 %v8744
  %v8970 = vpop.f32.mrb[0].mxu0
  %v8971 = vadd.f32 0.0, %v8970
  %v8972 = vpop.f32.mrb[0].mxu0
  %8973 = vmatprep.mubr.f32.mxu0 0.0
  %8974 = vmatmul.mubr.f32.gmra.mrb[0].mxu0 %v8745
  %v8975 = vpop.f32.mrb[0].mxu0
  %v8976 = vadd.f32 0.0, %v8975
  %v8977 = vpop.f32.mrb[0].mxu0
  %8978 = vmatprep.mubr.f32.mxu0 0.0
  %8979 = vmatmul.mubr.f32.gmra.mrb[0].mxu0 %v8746
  %v8980 = vpop.f32.mrb[0].mxu0
  %v8981 = vadd.f32 0.0, %v8980
  %v8982 = vpop.f32.mrb[0].mxu0
  %8983 = vmatprep.mubr.f32.mxu0 0.0
  %8984 = vmatmul.mubr.f32.gmra.mrb[0].mxu0 %v8747
  %v8985 = vpop.f32.mrb[0].mxu0
  %v8986 = vadd.f32 0.0, %v8985
  %v8987 = vpop.f32.mrb[0].mxu0
  %8988 = vmatprep.mubr.f32.mxu0 0.0
  %8989 = vmatmul.mubr.f32.gmra.mrb[0].mxu0 %v8748
  %v8990 = vpop.f32.mrb[0].mxu0
  %v8991 = vadd.f32 0.0, %v8990
  %v8992 = vpop.f32.mrb[0].mxu0
  %8993 = vmatprep.mubr.f32.mxu0 0.0
  %8994 = vmatmul.mubr.f32.gmra.mrb[0].mxu0 %v8749
  %v8995 = vpop.f32.mrb[0].mxu0
  %v8996 = vadd.f32 0.0, %v8995
  %v8997 = vpop.f32.mrb[0].mxu0
  %8998 = vmatprep.mubr.f32.mxu0 0.0
  %8999 = vmatmul.mubr.f32.gmra.mrb[0].mxu0 %v8750
  %v9000 = vpop.f32.mrb[0].mxu0
  %v9001 = vadd.f32 0.0, %v9000
  %v9002 = vpop.f32.mrb[0].mxu0
  %9003 = vmatprep.mubr.f32.mxu0 0.0
  %9004 = vmatmul.mubr.f32.gmra.mrb[0].mxu0 %v8751
  %v9005 = vpop.f32.mrb[0].mxu0
  %v9006 = vadd.f32 0.0, %v9005
  %v9007 = vpop.f32.mrb[0].mxu0
  %9008 = vmatprep.mubr.f32.mxu0 0.0
  %9009 = vmatmul.mubr.f32.gmra.mrb[0].mxu0 %v8752
  %v9010 = vpop.f32.mrb[0].mxu0
  %v9011 = vadd.f32 0.0, %v9010
  %v9012 = vpop.f32.mrb[0].mxu0
  %9013 = vmatprep.mubr.f32.mxu0 0.0
  %9014 = vmatmul.mubr.f32.gmra.mrb[0].mxu0 %v8753
  %v9015 = vpop.f32.mrb[0].mxu0
  %v9016 = vadd.f32 0.0, %v9015
  %v9017 = vpop.f32.mrb[0].mxu0
  %9018 = vmatprep.mubr.f32.mxu0 0.0
  %9019 = vmatmul.mubr.f32.gmra.mrb[0].mxu0 %v8754
  %v9020 = vpop.f32.mrb[0].mxu0
  %v9021 = vadd.f32 0.0, %v9020
  %v9022 = vpop.f32.mrb[0].mxu0
  %9023 = vmatprep.mubr.f32.mxu0 0.0
  %9024 = vmatmul.mubr.f32.gmra.mrb[0].mxu0 %v8755
  %v9025 = vpop.f32.mrb[0].mxu0
  %v9026 = vadd.f32 0.0, %v9025
  %v9027 = vpop.f32.mrb[0].mxu0
  %9028 = vmatprep.mubr.f32.mxu0 0.0
  %9029 = vmatmul.mubr.f32.gmra.mrb[0].mxu0 %v8756
  %v9030 = vpop.f32.mrb[0].mxu0
  %v9031 = vadd.f32 0.0, %v9030
  %v9032 = vpop.f32.mrb[0].mxu0
  %9033 = vmatprep.mubr.f32.mxu0 0.0
  %9034 = vmatmul.mubr.f32.gmra.mrb[0].mxu0 %v8757
  %v9035 = vpop.f32.mrb[0].mxu0
  %v9036 = vadd.f32 0.0, %v9035
  %v9037 = vpop.f32.mrb[0].mxu0
  %9038 = vmatprep.mubr.f32.mxu0 0.0
  %9039 = vmatmul.mubr.f32.gmra.mrb[0].mxu0 %v8758
  %v9040 = vpop.f32.mrb[0].mxu0
  %v9041 = vadd.f32 0.0, %v9040
  %v9042 = vpop.f32.mrb[0].mxu0
  %9043 = vmatprep.mubr.f32.mxu0 0.0
  %9044 = vmatmul.mubr.f32.gmra.mrb[0].mxu0 %v8759
  %v9045 = vpop.f32.mrb[0].mxu0
  %v9046 = vadd.f32 0.0, %v9045
  %v9047 = vpop.f32.mrb[0].mxu0
  %9048 = vmatprep.mubr.f32.mxu0 0.0
  %9049 = vmatmul.mubr.f32.gmra.mrb[0].mxu0 %v8760
  %v9050 = vpop.f32.mrb[0].mxu0
  %v9051 = vadd.f32 0.0, %v9050
  %v9052 = vpop.f32.mrb[0].mxu0
  %9053 = vmatprep.mubr.f32.mxu0 0.0
  %9054 = vmatmul.mubr.f32.gmra.mrb[0].mxu0 %v8761
  %v9055 = vpop.f32.mrb[0].mxu0
  %v9056 = vadd.f32 0.0, %v9055
  %v9057 = vpop.f32.mrb[0].mxu0
  %9058 = vmatprep.mubr.f32.mxu0 0.0
  %9059 = vmatmul.mubr.f32.gmra.mrb[0].mxu0 %v8762
  %v9060 = vpop.f32.mrb[0].mxu0
  %v9061 = vadd.f32 0.0, %v9060
  %v9062 = vpop.f32.mrb[0].mxu0
  %9063 = vmatprep.mubr.f32.mxu0 0.0
  %9064 = vmatmul.mubr.f32.gmra.mrb[0].mxu0 %v8763
  %v9065 = vpop.f32.mrb[0].mxu0
  %v9066 = vadd.f32 0.0, %v9065
  %v9067 = vpop.f32.mrb[0].mxu0
  %9068 = vmatprep.mubr.f32.mxu0 0.0
  %9069 = vmatmul.mubr.f32.gmra.mrb[0].mxu0 %v8764
  %v9070 = vpop.f32.mrb[0].mxu0
  %v9071 = vadd.f32 0.0, %v9070
  %v9072 = vpop.f32.mrb[0].mxu0
  %9073 = vmatprep.mubr.f32.mxu0 0.0
  %9074 = vmatmul.mubr.f32.gmra.mrb[0].mxu0 %v8765
  %v9075 = vpop.f32.mrb[0].mxu0
  %v9076 = vadd.f32 0.0, %v9075
  %v9077 = vpop.f32.mrb[0].mxu0
  %9078 = vmatprep.mubr.f32.mxu0 0.0
  %9079 = vmatmul.mubr.f32.gmra.mrb[0].mxu0 %v8766
  %v9080 = vpop.f32.mrb[0].mxu0
  %v9081 = vadd.f32 0.0, %v9080
  %v9082 = vpop.f32.mrb[0].mxu0
  %9083 = vmatprep.mubr.f32.mxu0 0.0
  %9084 = vmatmul.mubr.f32.gmra.mrb[0].mxu0 %v8767
  %v9085 = vpop.f32.mrb[0].mxu0
  %v9086 = vadd.f32 0.0, %v9085
  %v9087 = vpop.f32.mrb[0].mxu0
  %9088 = vmatprep.mubr.f32.mxu0 0.0
  %9089 = vmatmul.mubr.f32.gmra.mrb[0].mxu0 %v8768
  %v9090 = vpop.f32.mrb[0].mxu0
  %v9091 = vadd.f32 0.0, %v9090
  %v9092 = vpop.f32.mrb[0].mxu0
  %9093 = vmatprep.mubr.f32.mxu0 0.0
  %9094 = vmatmul.mubr.f32.gmra.mrb[0].mxu0 %v8769
  %v9095 = vpop.f32.mrb[0].mxu0
  %v9096 = vadd.f32 0.0, %v9095
  %v9097 = vpop.f32.mrb[0].mxu0
  %9098 = vmatprep.mubr.f32.mxu0 0.0
  %9099 = vmatmul.mubr.f32.gmra.mrb[0].mxu0 %v8770
  %v9100 = vpop.f32.mrb[0].mxu0
  %v9101 = vadd.f32 0.0, %v9100
  %v9102 = vpop.f32.mrb[0].mxu0
  %9103 = vmatprep.mubr.f32.mxu0 0.0
  %9104 = vmatmul.mubr.f32.gmra.mrb[0].mxu0 %v8771
  %v9105 = vpop.f32.mrb[0].mxu0
  %v9106 = vadd.f32 0.0, %v9105
  %v9107 = vpop.f32.mrb[0].mxu0
  %9108 = vmatprep.mubr.f32.mxu0 0.0
  %9109 = vmatmul.mubr.f32.gmra.mrb[0].mxu0 %v8772
  %v9110 = vpop.f32.mrb[0].mxu0
  %v9111 = vadd.f32 0.0, %v9110
  %v9112 = vpop.f32.mrb[0].mxu0
  %9113 = vmatprep.mubr.f32.mxu0 0.0
  %9114 = vmatmul.mubr.f32.gmra.mrb[0].mxu0 %v8773
  %v9115 = vpop.f32.mrb[0].mxu0
  %v9116 = vadd.f32 0.0, %v9115
  %v9117 = vpop.f32.mrb[0].mxu0
  %9118 = vmatprep.mubr.f32.mxu0 0.0
  %9119 = vmatmul.mubr.f32.gmra.mrb[0].mxu0 %v8774
  %v9120 = vpop.f32.mrb[0].mxu0
  %v9121 = vadd.f32 0.0, %v9120
  %v9122 = vpop.f32.mrb[0].mxu0
  %9123 = vmatprep.mubr.f32.mxu0 0.0
  %9124 = vmatmul.mubr.f32.gmra.mrb[0].mxu0 %v8775
  %v9125 = vpop.f32.mrb[0].mxu0
  %v9126 = vadd.f32 0.0, %v9125
  %v9127 = vpop.f32.mrb[0].mxu0
  %9128 = vmatprep.mubr.f32.mxu0 0.0
  %9129 = vmatmul.mubr.f32.gmra.mrb[0].mxu0 %v8776
  %v9130 = vpop.f32.mrb[0].mxu0
  %v9131 = vadd.f32 0.0, %v9130
  %v9132 = vpop.f32.mrb[0].mxu0
  %9133 = vmatprep.mubr.f32.mxu0 0.0
  %9134 = vmatmul.mubr.f32.gmra.mrb[0].mxu0 %v8777
  %v9135 = vpop.f32.mrb[0].mxu0
  %v9136 = vadd.f32 0.0, %v9135
  %v9137 = vpop.f32.mrb[0].mxu0
  %9138 = vmatprep.mubr.f32.mxu0 0.0
  %9139 = vmatmul.mubr.f32.gmra.mrb[0].mxu0 %v8778
  %v9140 = vpop.f32.mrb[0].mxu0
  %v9141 = vadd.f32 0.0, %v9140
  %v9142 = vpop.f32.mrb[0].mxu0
  %9143 = vmatprep.mubr.f32.mxu0 0.0
  %9144 = vmatmul.mubr.f32.gmra.mrb[0].mxu0 %v8779
  %v9145 = vpop.f32.mrb[0].mxu0
  %v9146 = vadd.f32 0.0, %v9145
  %v9147 = vpop.f32.mrb[0].mxu0
  %9148 = vmatprep.mubr.f32.mxu0 0.0
  %9149 = vmatmul.mubr.f32.gmra.mrb[0].mxu0 %v8780
  %v9150 = vpop.f32.mrb[0].mxu0
  %v9151 = vadd.f32 0.0, %v9150
  %v9152 = vpop.f32.mrb[0].mxu0
  %9153 = vmatprep.mubr.f32.mxu0 0.0
  %9154 = vmatmul.mubr.f32.gmra.mrb[0].mxu0 %v8781
  %v9155 = vpop.f32.mrb[0].mxu0
  %v9156 = vadd.f32 0.0, %v9155
  %v9157 = vpop.f32.mrb[0].mxu0
  %9158 = vmatprep.mubr.f32.mxu0 0.0
  %9159 = vmatmul.mubr.f32.gmra.mrb[0].mxu0 %v8782
  %v9160 = vpop.f32.mrb[0].mxu0
  %v9161 = vadd.f32 0.0, %v9160
  %v9162 = vpop.f32.mrb[0].mxu0
  %9163 = vmatprep.mubr.f32.mxu0 0.0
  %9164 = vmatmul.mubr.f32.gmra.mrb[0].mxu0 %v8783
  %v9165 = vpop.f32.mrb[0].mxu0
  %v9166 = vadd.f32 0.0, %v9165
  %v9167 = vpop.f32.mrb[0].mxu0
  %9168 = vmatprep.mubr.f32.mxu0 0.0
  %9169 = vmatmul.mubr.f32.gmra.mrb[0].mxu0 %v8784
  %v9170 = vpop.f32.mrb[0].mxu0
  %v9171 = vadd.f32 0.0, %v9170
  %v9172 = vpop.f32.mrb[0].mxu0
  %9173 = vmatprep.mubr.f32.mxu0 0.0
  %9174 = vmatmul.mubr.f32.gmra.mrb[0].mxu0 %v8785
  %v9175 = vpop.f32.mrb[0].mxu0
  %v9176 = vadd.f32 0.0, %v9175
  %v9177 = vpop.f32.mrb[0].mxu0
  %9178 = vmatprep.mubr.f32.mxu0 0.0
  %9179 = vmatmul.mubr.f32.gmra.mrb[0].mxu0 %v8786
  %v9180 = vpop.f32.mrb[0].mxu0
  %v9181 = vadd.f32 0.0, %v9180
  %v9182 = vpop.f32.mrb[0].mxu0
  %9183 = vmatprep.mubr.f32.mxu0 0.0
  %9184 = vmatmul.mubr.f32.gmra.mrb[0].mxu0 %v8787
  %v9185 = vpop.f32.mrb[0].mxu0
  %v9186 = vadd.f32 0.0, %v9185
  %v9187 = vpop.f32.mrb[0].mxu0
  %9188 = vdwg.mxu0
  %v9189 = vadd.f32 %v8660, %v8871
  %v9190 = vadd.f32 %v8661, %v8876
  %v9191 = vadd.f32 %v8662, %v8881
  %v9192 = vadd.f32 %v8663, %v8886
  %v9193 = vadd.f32 %v8664, %v8891
  %v9194 = vadd.f32 %v8665, %v8896
  %v9195 = vadd.f32 %v8666, %v8901
  %v9196 = vadd.f32 %v8667, %v8906
  %v9197 = vadd.f32 %v8668, %v8911
  %v9198 = vadd.f32 %v8669, %v8916
  %v9199 = vadd.f32 %v8670, %v8921
  %v9200 = vadd.f32 %v8671, %v8926
  %v9201 = vadd.f32 %v8672, %v8931
  %v9202 = vadd.f32 %v8673, %v8936
  %v9203 = vadd.f32 %v8674, %v8941
  %v9204 = vadd.f32 %v8675, %v8946
  %v9205 = vadd.f32 %v8676, %v8951
  %v9206 = vadd.f32 %v8677, %v8956
  %v9207 = vadd.f32 %v8678, %v8961
  %v9208 = vadd.f32 %v8679, %v8966
  %v9209 = vadd.f32 %v8680, %v8971
  %v9210 = vadd.f32 %v8681, %v8976
  %v9211 = vadd.f32 %v8682, %v8981
  %v9212 = vadd.f32 %v8683, %v8986
  %v9213 = vadd.f32 %v8684, %v8991
  %v9214 = vadd.f32 %v8685, %v8996
  %v9215 = vadd.f32 %v8686, %v9001
  %v9216 = vadd.f32 %v8687, %v9006
  %v9217 = vadd.f32 %v8688, %v9011
  %v9218 = vadd.f32 %v8689, %v9016
  %v9219 = vadd.f32 %v8690, %v9021
  %v9220 = vadd.f32 %v8691, %v9026
  %v9221 = vadd.f32 %v8692, %v9031
  %v9222 = vadd.f32 %v8693, %v9036
  %v9223 = vadd.f32 %v8694, %v9041
  %v9224 = vadd.f32 %v8695, %v9046
  %v9225 = vadd.f32 %v8696, %v9051
  %v9226 = vadd.f32 %v8697, %v9056
  %v9227 = vadd.f32 %v8698, %v9061
  %v9228 = vadd.f32 %v8699, %v9066
  %v9229 = vadd.f32 %v8700, %v9071
  %v9230 = vadd.f32 %v8701, %v9076
  %v9231 = vadd.f32 %v8702, %v9081
  %v9232 = vadd.f32 %v8703, %v9086
  %v9233 = vadd.f32 %v8704, %v9091
  %v9234 = vadd.f32 %v8705, %v9096
  %v9235 = vadd.f32 %v8706, %v9101
  %v9236 = vadd.f32 %v8707, %v9106
  %v9237 = vadd.f32 %v8708, %v9111
  %v9238 = vadd.f32 %v8709, %v9116
  %v9239 = vadd.f32 %v8710, %v9121
  %v9240 = vadd.f32 %v8711, %v9126
  %v9241 = vadd.f32 %v8712, %v9131
  %v9242 = vadd.f32 %v8713, %v9136
  %v9243 = vadd.f32 %v8714, %v9141
  %v9244 = vadd.f32 %v8715, %v9146
  %v9245 = vadd.f32 %v8716, %v9151
  %v9246 = vadd.f32 %v8717, %v9156
  %v9247 = vadd.f32 %v8718, %v9161
  %v9248 = vadd.f32 %v8719, %v9166
  %v9249 = vadd.f32 %v8720, %v9171
  %v9250 = vadd.f32 %v8721, %v9176
  %v9251 = vadd.f32 %v8722, %v9181
  %v9252 = vadd.f32 %v8723, %v9186
  %v9253 = vld [vmem:[%s3519 + $0x8] sm:$0xff]
  %v9254 = vld [vmem:[%s3519 + $0x10] sm:$0xff]
  %v9255 = vld [vmem:[%s3519 + $0x28] sm:$0xff]
  %v9256 = vld [vmem:[%s3519 + $0x30] sm:$0xff]
  %v9257 = vld [vmem:[%s3519 + $0x48] sm:$0xff]
  %v9258 = vld [vmem:[%s3519 + $0x50] sm:$0xff]
  %v9259 = vld [vmem:[%s3519 + $0x68] sm:$0xff]
  %v9260 = vld [vmem:[%s3519 + $0x70] sm:$0xff]
  %v9261 = vld [vmem:[%s3519 + $0x88] sm:$0xff]
  %v9262 = vld [vmem:[%s3519 + $0x90] sm:$0xff]
  %v9263 = vld [vmem:[%s3519 + $0xa8] sm:$0xff]
  %v9264 = vld [vmem:[%s3519 + $0xb0] sm:$0xff]
  %v9265 = vld [vmem:[%s3519 + $0xc8] sm:$0xff]
  %v9266 = vld [vmem:[%s3519 + $0xd0] sm:$0xff]
  %v9267 = vld [vmem:[%s3519 + $0xe8] sm:$0xff]
  %v9268 = vld [vmem:[%s3519 + $0xf0] sm:$0xff]
  %v9269 = vld [vmem:[%s3519 + $0x108] sm:$0xff]
  %v9270 = vld [vmem:[%s3519 + $0x110] sm:$0xff]
  %v9271 = vld [vmem:[%s3519 + $0x128] sm:$0xff]
  %v9272 = vld [vmem:[%s3519 + $0x130] sm:$0xff]
  %v9273 = vld [vmem:[%s3519 + $0x148] sm:$0xff]
  %v9274 = vld [vmem:[%s3519 + $0x150] sm:$0xff]
  %v9275 = vld [vmem:[%s3519 + $0x168] sm:$0xff]
  %v9276 = vld [vmem:[%s3519 + $0x170] sm:$0xff]
  %v9277 = vld [vmem:[%s3519 + $0x188] sm:$0xff]
  %v9278 = vld [vmem:[%s3519 + $0x190] sm:$0xff]
  %v9279 = vld [vmem:[%s3519 + $0x1a8] sm:$0xff]
  %v9280 = vld [vmem:[%s3519 + $0x1b0] sm:$0xff]
  %v9281 = vld [vmem:[%s3519 + $0x1c8] sm:$0xff]
  %v9282 = vld [vmem:[%s3519 + $0x1d0] sm:$0xff]
  %v9283 = vld [vmem:[%s3519 + $0x1e8] sm:$0xff]
  %v9284 = vld [vmem:[%s3519 + $0x1f0] sm:$0xff]
  %v9285 = vld [vmem:[%s3519 + $0x248] sm:$0xff]
  %v9286 = vld [vmem:[%s3519 + $0x250] sm:$0xff]
  %v9287 = vld [vmem:[%s3519 + $0x268] sm:$0xff]
  %v9288 = vld [vmem:[%s3519 + $0x270] sm:$0xff]
  %v9289 = vld [vmem:[%s3519 + $0x288] sm:$0xff]
  %v9290 = vld [vmem:[%s3519 + $0x290] sm:$0xff]
  %v9291 = vld [vmem:[%s3519 + $0x2a8] sm:$0xff]
  %v9292 = vld [vmem:[%s3519 + $0x2b0] sm:$0xff]
  %v9293 = vld [vmem:[%s3519 + $0x2c8] sm:$0xff]
  %v9294 = vld [vmem:[%s3519 + $0x2d0] sm:$0xff]
  %v9295 = vld [vmem:[%s3519 + $0x2e8] sm:$0xff]
  %v9296 = vld [vmem:[%s3519 + $0x2f0] sm:$0xff]
  %v9297 = vld [vmem:[%s3519 + $0x308] sm:$0xff]
  %v9298 = vld [vmem:[%s3519 + $0x310] sm:$0xff]
  %v9299 = vld [vmem:[%s3519 + $0x328] sm:$0xff]
  %v9300 = vld [vmem:[%s3519 + $0x330] sm:$0xff]
  %v9301 = vld [vmem:[%s3519 + $0x348] sm:$0xff]
  %v9302 = vld [vmem:[%s3519 + $0x350] sm:$0xff]
  %v9303 = vld [vmem:[%s3519 + $0x368] sm:$0xff]
  %v9304 = vld [vmem:[%s3519 + $0x370] sm:$0xff]
  %v9305 = vld [vmem:[%s3519 + $0x388] sm:$0xff]
  %v9306 = vld [vmem:[%s3519 + $0x390] sm:$0xff]
  %v9307 = vld [vmem:[%s3519 + $0x3a8] sm:$0xff]
  %v9308 = vld [vmem:[%s3519 + $0x3b0] sm:$0xff]
  %v9309 = vld [vmem:[%s3519 + $0x3c8] sm:$0xff]
  %v9310 = vld [vmem:[%s3519 + $0x3d0] sm:$0xff]
  %v9311 = vld [vmem:[%s3519 + $0x3e8] sm:$0xff]
  %v9312 = vld [vmem:[%s3519 + $0x3f0] sm:$0xff]
  %v9313 = vld [vmem:[%s3519 + $0x408] sm:$0xff]
  %v9314 = vld [vmem:[%s3519 + $0x410] sm:$0xff]
  %v9315 = vld [vmem:[%s3519 + $0x428] sm:$0xff]
  %v9316 = vld [vmem:[%s3519 + $0x430] sm:$0xff]
  %v9317 = vld [vmem:[#allocation3 + $0x380] sm:$0xff]
  %v9318 = vld [vmem:[#allocation3 + $0x388] sm:$0xff]
  %v9319 = vld [vmem:[#allocation3 + $0x390] sm:$0xff]
  %v9320 = vld [vmem:[#allocation3 + $0x398] sm:$0xff]
  %v9321 = vld [vmem:[#allocation3 + $0x3a0] sm:$0xff]
  %v9322 = vld [vmem:[#allocation3 + $0x3a8] sm:$0xff]
  %v9323 = vld [vmem:[#allocation3 + $0x3b0] sm:$0xff]
  %v9324 = vld [vmem:[#allocation3 + $0x3b8] sm:$0xff]
  %v9325 = vld [vmem:[#allocation3 + $0x3c0] sm:$0xff]
  %v9326 = vld [vmem:[#allocation3 + $0x3c8] sm:$0xff]
  %v9327 = vld [vmem:[#allocation3 + $0x3d0] sm:$0xff]
  %v9328 = vld [vmem:[#allocation3 + $0x3d8] sm:$0xff]
  %v9329 = vld [vmem:[#allocation3 + $0x3e0] sm:$0xff]
  %v9330 = vld [vmem:[#allocation3 + $0x3e8] sm:$0xff]
  %v9331 = vld [vmem:[#allocation3 + $0x3f0] sm:$0xff]
  %v9332 = vld [vmem:[#allocation3 + $0x3f8] sm:$0xff]
  %9333 = vmatprep.subr.mxu0 0.0
  %9334 = vmatpush1.msra.mxu0 %v9317
  %9335 = vmatprep.subr.mxu0 0.0
  %9336 = vmatpush1.msra.mxu0 %v9318
  %9337 = vmatprep.subr.mxu0 0.0
  %9338 = vmatpush1.msra.mxu0 %v9319
  %9339 = vmatprep.subr.mxu0 0.0
  %9340 = vmatpush1.msra.mxu0 %v9320
  %9341 = vmatprep.subr.mxu0 0.0
  %9342 = vmatpush1.msra.mxu0 %v9321
  %9343 = vmatprep.subr.mxu0 0.0
  %9344 = vmatpush1.msra.mxu0 %v9322
  %9345 = vmatprep.subr.mxu0 0.0
  %9346 = vmatpush1.msra.mxu0 %v9323
  %9347 = vmatprep.subr.mxu0 0.0
  %9348 = vmatpush1.msra.mxu0 %v9324
  %9349 = vmatprep.subr.mxu0 0.0
  %9350 = vmatpush1.msra.mxu0 %v9325
  %9351 = vmatprep.subr.mxu0 0.0
  %9352 = vmatpush1.msra.mxu0 %v9326
  %9353 = vmatprep.subr.mxu0 0.0
  %9354 = vmatpush1.msra.mxu0 %v9327
  %9355 = vmatprep.subr.mxu0 0.0
  %9356 = vmatpush1.msra.mxu0 %v9328
  %9357 = vmatprep.subr.mxu0 0.0
  %9358 = vmatpush1.msra.mxu0 %v9329
  %9359 = vmatprep.subr.mxu0 0.0
  %9360 = vmatpush1.msra.mxu0 %v9330
  %9361 = vmatprep.subr.mxu0 0.0
  %9362 = vmatpush1.msra.mxu0 %v9331
  %9363 = vmatprep.subr.mxu0 0.0
  %9364 = vmatpush1.msra.mxu0 %v9332
  %9365 = vmatprep.subr.mxu0 0.0
  %9366 = vmatpush1.msra.mxu0 0.0
  %9367 = vmatprep.subr.mxu0 0.0
  %9368 = vmatpush1.msra.mxu0 0.0
  %9369 = vmatprep.subr.mxu0 0.0
  %9370 = vmatpush1.msra.mxu0 0.0
  %9371 = vmatprep.subr.mxu0 0.0
  %9372 = vmatpush1.msra.mxu0 0.0
  %9373 = vmatprep.subr.mxu0 0.0
  %9374 = vmatpush1.msra.mxu0 0.0
  %9375 = vmatprep.subr.mxu0 0.0
  %9376 = vmatpush1.msra.mxu0 0.0
  %9377 = vmatprep.subr.mxu0 0.0
  %9378 = vmatpush1.msra.mxu0 0.0
  %9379 = vmatprep.subr.mxu0 0.0
  %9380 = vmatpush1.msra.mxu0 0.0
  %9381 = vmatprep.subr.mxu0 0.0
  %9382 = vmatpush1.msra.mxu0 0.0
  %9383 = vmatprep.subr.mxu0 0.0
  %9384 = vmatpush1.msra.mxu0 0.0
  %9385 = vmatprep.subr.mxu0 0.0
  %9386 = vmatpush1.msra.mxu0 0.0
  %9387 = vmatprep.subr.mxu0 0.0
  %9388 = vmatpush1.msra.mxu0 0.0
  %9389 = vmatprep.subr.mxu0 0.0
  %9390 = vmatpush1.msra.mxu0 0.0
  %9391 = vmatprep.subr.mxu0 0.0
  %9392 = vmatpush1.msra.mxu0 0.0
  %9393 = vmatprep.subr.mxu0 0.0
  %9394 = vmatpush1.msra.mxu0 0.0
  %9395 = vmatprep.subr.mxu0 0.0
  %9396 = vmatpush1.msra.mxu0 0.0
  %9397 = vmatprep.mubr.f32.mxu0 0.0
  %9398 = vmatmul.mubr.f32.gmra.mrb[0].mxu0 %v9253
  %v9399 = vpop.f32.mrb[0].mxu0
  %v9400 = vadd.f32 0.0, %v9399
  %v9401 = vpop.f32.mrb[0].mxu0
  %9402 = vmatprep.mubr.f32.mxu0 0.0
  %9403 = vmatmul.mubr.f32.gmra.mrb[0].mxu0 %v9254
  %v9404 = vpop.f32.mrb[0].mxu0
  %v9405 = vadd.f32 0.0, %v9404
  %v9406 = vpop.f32.mrb[0].mxu0
  %9407 = vmatprep.mubr.f32.mxu0 0.0
  %9408 = vmatmul.mubr.f32.gmra.mrb[0].mxu0 %v9255
  %v9409 = vpop.f32.mrb[0].mxu0
  %v9410 = vadd.f32 0.0, %v9409
  %v9411 = vpop.f32.mrb[0].mxu0
  %9412 = vmatprep.mubr.f32.mxu0 0.0
  %9413 = vmatmul.mubr.f32.gmra.mrb[0].mxu0 %v9256
  %v9414 = vpop.f32.mrb[0].mxu0
  %v9415 = vadd.f32 0.0, %v9414
  %v9416 = vpop.f32.mrb[0].mxu0
  %9417 = vmatprep.mubr.f32.mxu0 0.0
  %9418 = vmatmul.mubr.f32.gmra.mrb[0].mxu0 %v9257
  %v9419 = vpop.f32.mrb[0].mxu0
  %v9420 = vadd.f32 0.0, %v9419
  %v9421 = vpop.f32.mrb[0].mxu0
  %9422 = vmatprep.mubr.f32.mxu0 0.0
  %9423 = vmatmul.mubr.f32.gmra.mrb[0].mxu0 %v9258
  %v9424 = vpop.f32.mrb[0].mxu0
  %v9425 = vadd.f32 0.0, %v9424
  %v9426 = vpop.f32.mrb[0].mxu0
  %9427 = vmatprep.mubr.f32.mxu0 0.0
  %9428 = vmatmul.mubr.f32.gmra.mrb[0].mxu0 %v9259
  %v9429 = vpop.f32.mrb[0].mxu0
  %v9430 = vadd.f32 0.0, %v9429
  %v9431 = vpop.f32.mrb[0].mxu0
  %9432 = vmatprep.mubr.f32.mxu0 0.0
  %9433 = vmatmul.mubr.f32.gmra.mrb[0].mxu0 %v9260
  %v9434 = vpop.f32.mrb[0].mxu0
  %v9435 = vadd.f32 0.0, %v9434
  %v9436 = vpop.f32.mrb[0].mxu0
  %9437 = vmatprep.mubr.f32.mxu0 0.0
  %9438 = vmatmul.mubr.f32.gmra.mrb[0].mxu0 %v9261
  %v9439 = vpop.f32.mrb[0].mxu0
  %v9440 = vadd.f32 0.0, %v9439
  %v9441 = vpop.f32.mrb[0].mxu0
  %9442 = vmatprep.mubr.f32.mxu0 0.0
  %9443 = vmatmul.mubr.f32.gmra.mrb[0].mxu0 %v9262
  %v9444 = vpop.f32.mrb[0].mxu0
  %v9445 = vadd.f32 0.0, %v9444
  %v9446 = vpop.f32.mrb[0].mxu0
  %9447 = vmatprep.mubr.f32.mxu0 0.0
  %9448 = vmatmul.mubr.f32.gmra.mrb[0].mxu0 %v9263
  %v9449 = vpop.f32.mrb[0].mxu0
  %v9450 = vadd.f32 0.0, %v9449
  %v9451 = vpop.f32.mrb[0].mxu0
  %9452 = vmatprep.mubr.f32.mxu0 0.0
  %9453 = vmatmul.mubr.f32.gmra.mrb[0].mxu0 %v9264
  %v9454 = vpop.f32.mrb[0].mxu0
  %v9455 = vadd.f32 0.0, %v9454
  %v9456 = vpop.f32.mrb[0].mxu0
  %9457 = vmatprep.mubr.f32.mxu0 0.0
  %9458 = vmatmul.mubr.f32.gmra.mrb[0].mxu0 %v9265
  %v9459 = vpop.f32.mrb[0].mxu0
  %v9460 = vadd.f32 0.0, %v9459
  %v9461 = vpop.f32.mrb[0].mxu0
  %9462 = vmatprep.mubr.f32.mxu0 0.0
  %9463 = vmatmul.mubr.f32.gmra.mrb[0].mxu0 %v9266
  %v9464 = vpop.f32.mrb[0].mxu0
  %v9465 = vadd.f32 0.0, %v9464
  %v9466 = vpop.f32.mrb[0].mxu0
  %9467 = vmatprep.mubr.f32.mxu0 0.0
  %9468 = vmatmul.mubr.f32.gmra.mrb[0].mxu0 %v9267
  %v9469 = vpop.f32.mrb[0].mxu0
  %v9470 = vadd.f32 0.0, %v9469
  %v9471 = vpop.f32.mrb[0].mxu0
  %9472 = vmatprep.mubr.f32.mxu0 0.0
  %9473 = vmatmul.mubr.f32.gmra.mrb[0].mxu0 %v9268
  %v9474 = vpop.f32.mrb[0].mxu0
  %v9475 = vadd.f32 0.0, %v9474
  %v9476 = vpop.f32.mrb[0].mxu0
  %9477 = vmatprep.mubr.f32.mxu0 0.0
  %9478 = vmatmul.mubr.f32.gmra.mrb[0].mxu0 %v9269
  %v9479 = vpop.f32.mrb[0].mxu0
  %v9480 = vadd.f32 0.0, %v9479
  %v9481 = vpop.f32.mrb[0].mxu0
  %9482 = vmatprep.mubr.f32.mxu0 0.0
  %9483 = vmatmul.mubr.f32.gmra.mrb[0].mxu0 %v9270
  %v9484 = vpop.f32.mrb[0].mxu0
  %v9485 = vadd.f32 0.0, %v9484
  %v9486 = vpop.f32.mrb[0].mxu0
  %9487 = vmatprep.mubr.f32.mxu0 0.0
  %9488 = vmatmul.mubr.f32.gmra.mrb[0].mxu0 %v9271
  %v9489 = vpop.f32.mrb[0].mxu0
  %v9490 = vadd.f32 0.0, %v9489
  %v9491 = vpop.f32.mrb[0].mxu0
  %9492 = vmatprep.mubr.f32.mxu0 0.0
  %9493 = vmatmul.mubr.f32.gmra.mrb[0].mxu0 %v9272
  %v9494 = vpop.f32.mrb[0].mxu0
  %v9495 = vadd.f32 0.0, %v9494
  %v9496 = vpop.f32.mrb[0].mxu0
  %9497 = vmatprep.mubr.f32.mxu0 0.0
  %9498 = vmatmul.mubr.f32.gmra.mrb[0].mxu0 %v9273
  %v9499 = vpop.f32.mrb[0].mxu0
  %v9500 = vadd.f32 0.0, %v9499
  %v9501 = vpop.f32.mrb[0].mxu0
  %9502 = vmatprep.mubr.f32.mxu0 0.0
  %9503 = vmatmul.mubr.f32.gmra.mrb[0].mxu0 %v9274
  %v9504 = vpop.f32.mrb[0].mxu0
  %v9505 = vadd.f32 0.0, %v9504
  %v9506 = vpop.f32.mrb[0].mxu0
  %9507 = vmatprep.mubr.f32.mxu0 0.0
  %9508 = vmatmul.mubr.f32.gmra.mrb[0].mxu0 %v9275
  %v9509 = vpop.f32.mrb[0].mxu0
  %v9510 = vadd.f32 0.0, %v9509
  %v9511 = vpop.f32.mrb[0].mxu0
  %9512 = vmatprep.mubr.f32.mxu0 0.0
  %9513 = vmatmul.mubr.f32.gmra.mrb[0].mxu0 %v9276
  %v9514 = vpop.f32.mrb[0].mxu0
  %v9515 = vadd.f32 0.0, %v9514
  %v9516 = vpop.f32.mrb[0].mxu0
  %9517 = vmatprep.mubr.f32.mxu0 0.0
  %9518 = vmatmul.mubr.f32.gmra.mrb[0].mxu0 %v9277
  %v9519 = vpop.f32.mrb[0].mxu0
  %v9520 = vadd.f32 0.0, %v9519
  %v9521 = vpop.f32.mrb[0].mxu0
  %9522 = vmatprep.mubr.f32.mxu0 0.0
  %9523 = vmatmul.mubr.f32.gmra.mrb[0].mxu0 %v9278
  %v9524 = vpop.f32.mrb[0].mxu0
  %v9525 = vadd.f32 0.0, %v9524
  %v9526 = vpop.f32.mrb[0].mxu0
  %9527 = vmatprep.mubr.f32.mxu0 0.0
  %9528 = vmatmul.mubr.f32.gmra.mrb[0].mxu0 %v9279
  %v9529 = vpop.f32.mrb[0].mxu0
  %v9530 = vadd.f32 0.0, %v9529
  %v9531 = vpop.f32.mrb[0].mxu0
  %9532 = vmatprep.mubr.f32.mxu0 0.0
  %9533 = vmatmul.mubr.f32.gmra.mrb[0].mxu0 %v9280
  %v9534 = vpop.f32.mrb[0].mxu0
  %v9535 = vadd.f32 0.0, %v9534
  %v9536 = vpop.f32.mrb[0].mxu0
  %9537 = vmatprep.mubr.f32.mxu0 0.0
  %9538 = vmatmul.mubr.f32.gmra.mrb[0].mxu0 %v9281
  %v9539 = vpop.f32.mrb[0].mxu0
  %v9540 = vadd.f32 0.0, %v9539
  %v9541 = vpop.f32.mrb[0].mxu0
  %9542 = vmatprep.mubr.f32.mxu0 0.0
  %9543 = vmatmul.mubr.f32.gmra.mrb[0].mxu0 %v9282
  %v9544 = vpop.f32.mrb[0].mxu0
  %v9545 = vadd.f32 0.0, %v9544
  %v9546 = vpop.f32.mrb[0].mxu0
  %9547 = vmatprep.mubr.f32.mxu0 0.0
  %9548 = vmatmul.mubr.f32.gmra.mrb[0].mxu0 %v9283
  %v9549 = vpop.f32.mrb[0].mxu0
  %v9550 = vadd.f32 0.0, %v9549
  %v9551 = vpop.f32.mrb[0].mxu0
  %9552 = vmatprep.mubr.f32.mxu0 0.0
  %9553 = vmatmul.mubr.f32.gmra.mrb[0].mxu0 %v9284
  %v9554 = vpop.f32.mrb[0].mxu0
  %v9555 = vadd.f32 0.0, %v9554
  %v9556 = vpop.f32.mrb[0].mxu0
  %9557 = vmatprep.mubr.f32.mxu0 0.0
  %9558 = vmatmul.mubr.f32.gmra.mrb[0].mxu0 %v9285
  %v9559 = vpop.f32.mrb[0].mxu0
  %v9560 = vadd.f32 0.0, %v9559
  %v9561 = vpop.f32.mrb[0].mxu0
  %9562 = vmatprep.mubr.f32.mxu0 0.0
  %9563 = vmatmul.mubr.f32.gmra.mrb[0].mxu0 %v9286
  %v9564 = vpop.f32.mrb[0].mxu0
  %v9565 = vadd.f32 0.0, %v9564
  %v9566 = vpop.f32.mrb[0].mxu0
  %9567 = vmatprep.mubr.f32.mxu0 0.0
  %9568 = vmatmul.mubr.f32.gmra.mrb[0].mxu0 %v9287
  %v9569 = vpop.f32.mrb[0].mxu0
  %v9570 = vadd.f32 0.0, %v9569
  %v9571 = vpop.f32.mrb[0].mxu0
  %9572 = vmatprep.mubr.f32.mxu0 0.0
  %9573 = vmatmul.mubr.f32.gmra.mrb[0].mxu0 %v9288
  %v9574 = vpop.f32.mrb[0].mxu0
  %v9575 = vadd.f32 0.0, %v9574
  %v9576 = vpop.f32.mrb[0].mxu0
  %9577 = vmatprep.mubr.f32.mxu0 0.0
  %9578 = vmatmul.mubr.f32.gmra.mrb[0].mxu0 %v9289
  %v9579 = vpop.f32.mrb[0].mxu0
  %v9580 = vadd.f32 0.0, %v9579
  %v9581 = vpop.f32.mrb[0].mxu0
  %9582 = vmatprep.mubr.f32.mxu0 0.0
  %9583 = vmatmul.mubr.f32.gmra.mrb[0].mxu0 %v9290
  %v9584 = vpop.f32.mrb[0].mxu0
  %v9585 = vadd.f32 0.0, %v9584
  %v9586 = vpop.f32.mrb[0].mxu0
  %9587 = vmatprep.mubr.f32.mxu0 0.0
  %9588 = vmatmul.mubr.f32.gmra.mrb[0].mxu0 %v9291
  %v9589 = vpop.f32.mrb[0].mxu0
  %v9590 = vadd.f32 0.0, %v9589
  %v9591 = vpop.f32.mrb[0].mxu0
  %9592 = vmatprep.mubr.f32.mxu0 0.0
  %9593 = vmatmul.mubr.f32.gmra.mrb[0].mxu0 %v9292
  %v9594 = vpop.f32.mrb[0].mxu0
  %v9595 = vadd.f32 0.0, %v9594
  %v9596 = vpop.f32.mrb[0].mxu0
  %9597 = vmatprep.mubr.f32.mxu0 0.0
  %9598 = vmatmul.mubr.f32.gmra.mrb[0].mxu0 %v9293
  %v9599 = vpop.f32.mrb[0].mxu0
  %v9600 = vadd.f32 0.0, %v9599
  %v9601 = vpop.f32.mrb[0].mxu0
  %9602 = vmatprep.mubr.f32.mxu0 0.0
  %9603 = vmatmul.mubr.f32.gmra.mrb[0].mxu0 %v9294
  %v9604 = vpop.f32.mrb[0].mxu0
  %v9605 = vadd.f32 0.0, %v9604
  %v9606 = vpop.f32.mrb[0].mxu0
  %9607 = vmatprep.mubr.f32.mxu0 0.0
  %9608 = vmatmul.mubr.f32.gmra.mrb[0].mxu0 %v9295
  %v9609 = vpop.f32.mrb[0].mxu0
  %v9610 = vadd.f32 0.0, %v9609
  %v9611 = vpop.f32.mrb[0].mxu0
  %9612 = vmatprep.mubr.f32.mxu0 0.0
  %9613 = vmatmul.mubr.f32.gmra.mrb[0].mxu0 %v9296
  %v9614 = vpop.f32.mrb[0].mxu0
  %v9615 = vadd.f32 0.0, %v9614
  %v9616 = vpop.f32.mrb[0].mxu0
  %9617 = vmatprep.mubr.f32.mxu0 0.0
  %9618 = vmatmul.mubr.f32.gmra.mrb[0].mxu0 %v9297
  %v9619 = vpop.f32.mrb[0].mxu0
  %v9620 = vadd.f32 0.0, %v9619
  %v9621 = vpop.f32.mrb[0].mxu0
  %9622 = vmatprep.mubr.f32.mxu0 0.0
  %9623 = vmatmul.mubr.f32.gmra.mrb[0].mxu0 %v9298
  %v9624 = vpop.f32.mrb[0].mxu0
  %v9625 = vadd.f32 0.0, %v9624
  %v9626 = vpop.f32.mrb[0].mxu0
  %9627 = vmatprep.mubr.f32.mxu0 0.0
  %9628 = vmatmul.mubr.f32.gmra.mrb[0].mxu0 %v9299
  %v9629 = vpop.f32.mrb[0].mxu0
  %v9630 = vadd.f32 0.0, %v9629
  %v9631 = vpop.f32.mrb[0].mxu0
  %9632 = vmatprep.mubr.f32.mxu0 0.0
  %9633 = vmatmul.mubr.f32.gmra.mrb[0].mxu0 %v9300
  %v9634 = vpop.f32.mrb[0].mxu0
  %v9635 = vadd.f32 0.0, %v9634
  %v9636 = vpop.f32.mrb[0].mxu0
  %9637 = vmatprep.mubr.f32.mxu0 0.0
  %9638 = vmatmul.mubr.f32.gmra.mrb[0].mxu0 %v9301
  %v9639 = vpop.f32.mrb[0].mxu0
  %v9640 = vadd.f32 0.0, %v9639
  %v9641 = vpop.f32.mrb[0].mxu0
  %9642 = vmatprep.mubr.f32.mxu0 0.0
  %9643 = vmatmul.mubr.f32.gmra.mrb[0].mxu0 %v9302
  %v9644 = vpop.f32.mrb[0].mxu0
  %v9645 = vadd.f32 0.0, %v9644
  %v9646 = vpop.f32.mrb[0].mxu0
  %9647 = vmatprep.mubr.f32.mxu0 0.0
  %9648 = vmatmul.mubr.f32.gmra.mrb[0].mxu0 %v9303
  %v9649 = vpop.f32.mrb[0].mxu0
  %v9650 = vadd.f32 0.0, %v9649
  %v9651 = vpop.f32.mrb[0].mxu0
  %9652 = vmatprep.mubr.f32.mxu0 0.0
  %9653 = vmatmul.mubr.f32.gmra.mrb[0].mxu0 %v9304
  %v9654 = vpop.f32.mrb[0].mxu0
  %v9655 = vadd.f32 0.0, %v9654
  %v9656 = vpop.f32.mrb[0].mxu0
  %9657 = vmatprep.mubr.f32.mxu0 0.0
  %9658 = vmatmul.mubr.f32.gmra.mrb[0].mxu0 %v9305
  %v9659 = vpop.f32.mrb[0].mxu0
  %v9660 = vadd.f32 0.0, %v9659
  %v9661 = vpop.f32.mrb[0].mxu0
  %9662 = vmatprep.mubr.f32.mxu0 0.0
  %9663 = vmatmul.mubr.f32.gmra.mrb[0].mxu0 %v9306
  %v9664 = vpop.f32.mrb[0].mxu0
  %v9665 = vadd.f32 0.0, %v9664
  %v9666 = vpop.f32.mrb[0].mxu0
  %9667 = vmatprep.mubr.f32.mxu0 0.0
  %9668 = vmatmul.mubr.f32.gmra.mrb[0].mxu0 %v9307
  %v9669 = vpop.f32.mrb[0].mxu0
  %v9670 = vadd.f32 0.0, %v9669
  %v9671 = vpop.f32.mrb[0].mxu0
  %9672 = vmatprep.mubr.f32.mxu0 0.0
  %9673 = vmatmul.mubr.f32.gmra.mrb[0].mxu0 %v9308
  %v9674 = vpop.f32.mrb[0].mxu0
  %v9675 = vadd.f32 0.0, %v9674
  %v9676 = vpop.f32.mrb[0].mxu0
  %9677 = vmatprep.mubr.f32.mxu0 0.0
  %9678 = vmatmul.mubr.f32.gmra.mrb[0].mxu0 %v9309
  %v9679 = vpop.f32.mrb[0].mxu0
  %v9680 = vadd.f32 0.0, %v9679
  %v9681 = vpop.f32.mrb[0].mxu0
  %9682 = vmatprep.mubr.f32.mxu0 0.0
  %9683 = vmatmul.mubr.f32.gmra.mrb[0].mxu0 %v9310
  %v9684 = vpop.f32.mrb[0].mxu0
  %v9685 = vadd.f32 0.0, %v9684
  %v9686 = vpop.f32.mrb[0].mxu0
  %9687 = vmatprep.mubr.f32.mxu0 0.0
  %9688 = vmatmul.mubr.f32.gmra.mrb[0].mxu0 %v9311
  %v9689 = vpop.f32.mrb[0].mxu0
  %v9690 = vadd.f32 0.0, %v9689
  %v9691 = vpop.f32.mrb[0].mxu0
  %9692 = vmatprep.mubr.f32.mxu0 0.0
  %9693 = vmatmul.mubr.f32.gmra.mrb[0].mxu0 %v9312
  %v9694 = vpop.f32.mrb[0].mxu0
  %v9695 = vadd.f32 0.0, %v9694
  %v9696 = vpop.f32.mrb[0].mxu0
  %9697 = vmatprep.mubr.f32.mxu0 0.0
  %9698 = vmatmul.mubr.f32.gmra.mrb[0].mxu0 %v9313
  %v9699 = vpop.f32.mrb[0].mxu0
  %v9700 = vadd.f32 0.0, %v9699
  %v9701 = vpop.f32.mrb[0].mxu0
  %9702 = vmatprep.mubr.f32.mxu0 0.0
  %9703 = vmatmul.mubr.f32.gmra.mrb[0].mxu0 %v9314
  %v9704 = vpop.f32.mrb[0].mxu0
  %v9705 = vadd.f32 0.0, %v9704
  %v9706 = vpop.f32.mrb[0].mxu0
  %9707 = vmatprep.mubr.f32.mxu0 0.0
  %9708 = vmatmul.mubr.f32.gmra.mrb[0].mxu0 %v9315
  %v9709 = vpop.f32.mrb[0].mxu0
  %v9710 = vadd.f32 0.0, %v9709
  %v9711 = vpop.f32.mrb[0].mxu0
  %9712 = vmatprep.mubr.f32.mxu0 0.0
  %9713 = vmatmul.mubr.f32.gmra.mrb[0].mxu0 %v9316
  %v9714 = vpop.f32.mrb[0].mxu0
  %v9715 = vadd.f32 0.0, %v9714
  %v9716 = vpop.f32.mrb[0].mxu0
  %9717 = vdwg.mxu0
  %v9718 = vadd.f32 %v9189, %v9400
  %v9719 = vadd.f32 %v9190, %v9405
  %v9720 = vadd.f32 %v9191, %v9410
  %v9721 = vadd.f32 %v9192, %v9415
  %v9722 = vadd.f32 %v9193, %v9420
  %v9723 = vadd.f32 %v9194, %v9425
  %v9724 = vadd.f32 %v9195, %v9430
  %v9725 = vadd.f32 %v9196, %v9435
  %v9726 = vadd.f32 %v9197, %v9440
  %v9727 = vadd.f32 %v9198, %v9445
  %v9728 = vadd.f32 %v9199, %v9450
  %v9729 = vadd.f32 %v9200, %v9455
  %v9730 = vadd.f32 %v9201, %v9460
  %v9731 = vadd.f32 %v9202, %v9465
  %v9732 = vadd.f32 %v9203, %v9470
  %v9733 = vadd.f32 %v9204, %v9475
  %v9734 = vadd.f32 %v9205, %v9480
  %v9735 = vadd.f32 %v9206, %v9485
  %v9736 = vadd.f32 %v9207, %v9490
  %v9737 = vadd.f32 %v9208, %v9495
  %v9738 = vadd.f32 %v9209, %v9500
  %v9739 = vadd.f32 %v9210, %v9505
  %v9740 = vadd.f32 %v9211, %v9510
  %v9741 = vadd.f32 %v9212, %v9515
  %v9742 = vadd.f32 %v9213, %v9520
  %v9743 = vadd.f32 %v9214, %v9525
  %v9744 = vadd.f32 %v9215, %v9530
  %v9745 = vadd.f32 %v9216, %v9535
  %v9746 = vadd.f32 %v9217, %v9540
  %v9747 = vadd.f32 %v9218, %v9545
  %v9748 = vadd.f32 %v9219, %v9550
  %v9749 = vadd.f32 %v9220, %v9555
  %v9750 = vadd.f32 %v9221, %v9560
  %v9751 = vadd.f32 %v9222, %v9565
  %v9752 = vadd.f32 %v9223, %v9570
  %v9753 = vadd.f32 %v9224, %v9575
  %v9754 = vadd.f32 %v9225, %v9580
  %v9755 = vadd.f32 %v9226, %v9585
  %v9756 = vadd.f32 %v9227, %v9590
  %v9757 = vadd.f32 %v9228, %v9595
  %v9758 = vadd.f32 %v9229, %v9600
  %v9759 = vadd.f32 %v9230, %v9605
  %v9760 = vadd.f32 %v9231, %v9610
  %v9761 = vadd.f32 %v9232, %v9615
  %v9762 = vadd.f32 %v9233, %v9620
  %v9763 = vadd.f32 %v9234, %v9625
  %v9764 = vadd.f32 %v9235, %v9630
  %v9765 = vadd.f32 %v9236, %v9635
  %v9766 = vadd.f32 %v9237, %v9640
  %v9767 = vadd.f32 %v9238, %v9645
  %v9768 = vadd.f32 %v9239, %v9650
  %v9769 = vadd.f32 %v9240, %v9655
  %v9770 = vadd.f32 %v9241, %v9660
  %v9771 = vadd.f32 %v9242, %v9665
  %v9772 = vadd.f32 %v9243, %v9670
  %v9773 = vadd.f32 %v9244, %v9675
  %v9774 = vadd.f32 %v9245, %v9680
  %v9775 = vadd.f32 %v9246, %v9685
  %v9776 = vadd.f32 %v9247, %v9690
  %v9777 = vadd.f32 %v9248, %v9695
  %v9778 = vadd.f32 %v9249, %v9700
  %v9779 = vadd.f32 %v9250, %v9705
  %v9780 = vadd.f32 %v9251, %v9710
  %v9781 = vadd.f32 %v9252, %v9715
  %v9782 = vld [vmem:[%s3519 + $0x9] sm:$0xff]
  %v9783 = vld [vmem:[%s3519 + $0x11] sm:$0xff]
  %v9784 = vld [vmem:[%s3519 + $0x29] sm:$0xff]
  %v9785 = vld [vmem:[%s3519 + $0x31] sm:$0xff]
  %v9786 = vld [vmem:[%s3519 + $0x49] sm:$0xff]
  %v9787 = vld [vmem:[%s3519 + $0x51] sm:$0xff]
  %v9788 = vld [vmem:[%s3519 + $0x69] sm:$0xff]
  %v9789 = vld [vmem:[%s3519 + $0x71] sm:$0xff]
  %v9790 = vld [vmem:[%s3519 + $0x89] sm:$0xff]
  %v9791 = vld [vmem:[%s3519 + $0x91] sm:$0xff]
  %v9792 = vld [vmem:[%s3519 + $0xa9] sm:$0xff]
  %v9793 = vld [vmem:[%s3519 + $0xb1] sm:$0xff]
  %v9794 = vld [vmem:[%s3519 + $0xc9] sm:$0xff]
  %v9795 = vld [vmem:[%s3519 + $0xd1] sm:$0xff]
  %v9796 = vld [vmem:[%s3519 + $0xe9] sm:$0xff]
  %v9797 = vld [vmem:[%s3519 + $0xf1] sm:$0xff]
  %v9798 = vld [vmem:[%s3519 + $0x109] sm:$0xff]
  %v9799 = vld [vmem:[%s3519 + $0x111] sm:$0xff]
  %v9800 = vld [vmem:[%s3519 + $0x129] sm:$0xff]
  %v9801 = vld [vmem:[%s3519 + $0x131] sm:$0xff]
  %v9802 = vld [vmem:[%s3519 + $0x149] sm:$0xff]
  %v9803 = vld [vmem:[%s3519 + $0x151] sm:$0xff]
  %v9804 = vld [vmem:[%s3519 + $0x169] sm:$0xff]
  %v9805 = vld [vmem:[%s3519 + $0x171] sm:$0xff]
  %v9806 = vld [vmem:[%s3519 + $0x189] sm:$0xff]
  %v9807 = vld [vmem:[%s3519 + $0x191] sm:$0xff]
  %v9808 = vld [vmem:[%s3519 + $0x1a9] sm:$0xff]
  %v9809 = vld [vmem:[%s3519 + $0x1b1] sm:$0xff]
  %v9810 = vld [vmem:[%s3519 + $0x1c9] sm:$0xff]
  %v9811 = vld [vmem:[%s3519 + $0x1d1] sm:$0xff]
  %v9812 = vld [vmem:[%s3519 + $0x1e9] sm:$0xff]
  %v9813 = vld [vmem:[%s3519 + $0x1f1] sm:$0xff]
  %v9814 = vld [vmem:[%s3519 + $0x249] sm:$0xff]
  %v9815 = vld [vmem:[%s3519 + $0x251] sm:$0xff]
  %v9816 = vld [vmem:[%s3519 + $0x269] sm:$0xff]
  %v9817 = vld [vmem:[%s3519 + $0x271] sm:$0xff]
  %v9818 = vld [vmem:[%s3519 + $0x289] sm:$0xff]
  %v9819 = vld [vmem:[%s3519 + $0x291] sm:$0xff]
  %v9820 = vld [vmem:[%s3519 + $0x2a9] sm:$0xff]
  %v9821 = vld [vmem:[%s3519 + $0x2b1] sm:$0xff]
  %v9822 = vld [vmem:[%s3519 + $0x2c9] sm:$0xff]
  %v9823 = vld [vmem:[%s3519 + $0x2d1] sm:$0xff]
  %v9824 = vld [vmem:[%s3519 + $0x2e9] sm:$0xff]
  %v9825 = vld [vmem:[%s3519 + $0x2f1] sm:$0xff]
  %v9826 = vld [vmem:[%s3519 + $0x309] sm:$0xff]
  %v9827 = vld [vmem:[%s3519 + $0x311] sm:$0xff]
  %v9828 = vld [vmem:[%s3519 + $0x329] sm:$0xff]
  %v9829 = vld [vmem:[%s3519 + $0x331] sm:$0xff]
  %v9830 = vld [vmem:[%s3519 + $0x349] sm:$0xff]
  %v9831 = vld [vmem:[%s3519 + $0x351] sm:$0xff]
  %v9832 = vld [vmem:[%s3519 + $0x369] sm:$0xff]
  %v9833 = vld [vmem:[%s3519 + $0x371] sm:$0xff]
  %v9834 = vld [vmem:[%s3519 + $0x389] sm:$0xff]
  %v9835 = vld [vmem:[%s3519 + $0x391] sm:$0xff]
  %v9836 = vld [vmem:[%s3519 + $0x3a9] sm:$0xff]
  %v9837 = vld [vmem:[%s3519 + $0x3b1] sm:$0xff]
  %v9838 = vld [vmem:[%s3519 + $0x3c9] sm:$0xff]
  %v9839 = vld [vmem:[%s3519 + $0x3d1] sm:$0xff]
  %v9840 = vld [vmem:[%s3519 + $0x3e9] sm:$0xff]
  %v9841 = vld [vmem:[%s3519 + $0x3f1] sm:$0xff]
  %v9842 = vld [vmem:[%s3519 + $0x409] sm:$0xff]
  %v9843 = vld [vmem:[%s3519 + $0x411] sm:$0xff]
  %v9844 = vld [vmem:[%s3519 + $0x429] sm:$0xff]
  %v9845 = vld [vmem:[%s3519 + $0x431] sm:$0xff]
  %v9846 = vld [vmem:[#allocation3 + $0x400] sm:$0xff]
  %v9847 = vld [vmem:[#allocation3 + $0x408] sm:$0xff]
  %v9848 = vld [vmem:[#allocation3 + $0x410] sm:$0xff]
  %v9849 = vld [vmem:[#allocation3 + $0x418] sm:$0xff]
  %v9850 = vld [vmem:[#allocation3 + $0x420] sm:$0xff]
  %v9851 = vld [vmem:[#allocation3 + $0x428] sm:$0xff]
  %v9852 = vld [vmem:[#allocation3 + $0x430] sm:$0xff]
  %v9853 = vld [vmem:[#allocation3 + $0x438] sm:$0xff]
  %v9854 = vld [vmem:[#allocation3 + $0x440] sm:$0xff]
  %v9855 = vld [vmem:[#allocation3 + $0x448] sm:$0xff]
  %v9856 = vld [vmem:[#allocation3 + $0x450] sm:$0xff]
  %v9857 = vld [vmem:[#allocation3 + $0x458] sm:$0xff]
  %v9858 = vld [vmem:[#allocation3 + $0x460] sm:$0xff]
  %v9859 = vld [vmem:[#allocation3 + $0x468] sm:$0xff]
  %v9860 = vld [vmem:[#allocation3 + $0x470] sm:$0xff]
  %v9861 = vld [vmem:[#allocation3 + $0x478] sm:$0xff]
  %9862 = vmatprep.subr.mxu0 0.0
  %9863 = vmatpush1.msra.mxu0 %v9846
  %9864 = vmatprep.subr.mxu0 0.0
  %9865 = vmatpush1.msra.mxu0 %v9847
  %9866 = vmatprep.subr.mxu0 0.0
  %9867 = vmatpush1.msra.mxu0 %v9848
  %9868 = vmatprep.subr.mxu0 0.0
  %9869 = vmatpush1.msra.mxu0 %v9849
  %9870 = vmatprep.subr.mxu0 0.0
  %9871 = vmatpush1.msra.mxu0 %v9850
  %9872 = vmatprep.subr.mxu0 0.0
  %9873 = vmatpush1.msra.mxu0 %v9851
  %9874 = vmatprep.subr.mxu0 0.0
  %9875 = vmatpush1.msra.mxu0 %v9852
  %9876 = vmatprep.subr.mxu0 0.0
  %9877 = vmatpush1.msra.mxu0 %v9853
  %9878 = vmatprep.subr.mxu0 0.0
  %9879 = vmatpush1.msra.mxu0 %v9854
  %9880 = vmatprep.subr.mxu0 0.0
  %9881 = vmatpush1.msra.mxu0 %v9855
  %9882 = vmatprep.subr.mxu0 0.0
  %9883 = vmatpush1.msra.mxu0 %v9856
  %9884 = vmatprep.subr.mxu0 0.0
  %9885 = vmatpush1.msra.mxu0 %v9857
  %9886 = vmatprep.subr.mxu0 0.0
  %9887 = vmatpush1.msra.mxu0 %v9858
  %9888 = vmatprep.subr.mxu0 0.0
  %9889 = vmatpush1.msra.mxu0 %v9859
  %9890 = vmatprep.subr.mxu0 0.0
  %9891 = vmatpush1.msra.mxu0 %v9860
  %9892 = vmatprep.subr.mxu0 0.0
  %9893 = vmatpush1.msra.mxu0 %v9861
  %9894 = vmatprep.subr.mxu0 0.0
  %9895 = vmatpush1.msra.mxu0 0.0
  %9896 = vmatprep.subr.mxu0 0.0
  %9897 = vmatpush1.msra.mxu0 0.0
  %9898 = vmatprep.subr.mxu0 0.0
  %9899 = vmatpush1.msra.mxu0 0.0
  %9900 = vmatprep.subr.mxu0 0.0
  %9901 = vmatpush1.msra.mxu0 0.0
  %9902 = vmatprep.subr.mxu0 0.0
  %9903 = vmatpush1.msra.mxu0 0.0
  %9904 = vmatprep.subr.mxu0 0.0
  %9905 = vmatpush1.msra.mxu0 0.0
  %9906 = vmatprep.subr.mxu0 0.0
  %9907 = vmatpush1.msra.mxu0 0.0
  %9908 = vmatprep.subr.mxu0 0.0
  %9909 = vmatpush1.msra.mxu0 0.0
  %9910 = vmatprep.subr.mxu0 0.0
  %9911 = vmatpush1.msra.mxu0 0.0
  %9912 = vmatprep.subr.mxu0 0.0
  %9913 = vmatpush1.msra.mxu0 0.0
  %9914 = vmatprep.subr.mxu0 0.0
  %9915 = vmatpush1.msra.mxu0 0.0
  %9916 = vmatprep.subr.mxu0 0.0
  %9917 = vmatpush1.msra.mxu0 0.0
  %9918 = vmatprep.subr.mxu0 0.0
  %9919 = vmatpush1.msra.mxu0 0.0
  %9920 = vmatprep.subr.mxu0 0.0
  %9921 = vmatpush1.msra.mxu0 0.0
  %9922 = vmatprep.subr.mxu0 0.0
  %9923 = vmatpush1.msra.mxu0 0.0
  %9924 = vmatprep.subr.mxu0 0.0
  %9925 = vmatpush1.msra.mxu0 0.0
  %9926 = vmatprep.mubr.f32.mxu0 0.0
  %9927 = vmatmul.mubr.f32.gmra.mrb[0].mxu0 %v9782
  %v9928 = vpop.f32.mrb[0].mxu0
  %v9929 = vadd.f32 0.0, %v9928
  %v9930 = vpop.f32.mrb[0].mxu0
  %9931 = vmatprep.mubr.f32.mxu0 0.0
  %9932 = vmatmul.mubr.f32.gmra.mrb[0].mxu0 %v9783
  %v9933 = vpop.f32.mrb[0].mxu0
  %v9934 = vadd.f32 0.0, %v9933
  %v9935 = vpop.f32.mrb[0].mxu0
  %9936 = vmatprep.mubr.f32.mxu0 0.0
  %9937 = vmatmul.mubr.f32.gmra.mrb[0].mxu0 %v9784
  %v9938 = vpop.f32.mrb[0].mxu0
  %v9939 = vadd.f32 0.0, %v9938
  %v9940 = vpop.f32.mrb[0].mxu0
  %9941 = vmatprep.mubr.f32.mxu0 0.0
  %9942 = vmatmul.mubr.f32.gmra.mrb[0].mxu0 %v9785
  %v9943 = vpop.f32.mrb[0].mxu0
  %v9944 = vadd.f32 0.0, %v9943
  %v9945 = vpop.f32.mrb[0].mxu0
  %9946 = vmatprep.mubr.f32.mxu0 0.0
  %9947 = vmatmul.mubr.f32.gmra.mrb[0].mxu0 %v9786
  %v9948 = vpop.f32.mrb[0].mxu0
  %v9949 = vadd.f32 0.0, %v9948
  %v9950 = vpop.f32.mrb[0].mxu0
  %9951 = vmatprep.mubr.f32.mxu0 0.0
  %9952 = vmatmul.mubr.f32.gmra.mrb[0].mxu0 %v9787
  %v9953 = vpop.f32.mrb[0].mxu0
  %v9954 = vadd.f32 0.0, %v9953
  %v9955 = vpop.f32.mrb[0].mxu0
  %9956 = vmatprep.mubr.f32.mxu0 0.0
  %9957 = vmatmul.mubr.f32.gmra.mrb[0].mxu0 %v9788
  %v9958 = vpop.f32.mrb[0].mxu0
  %v9959 = vadd.f32 0.0, %v9958
  %v9960 = vpop.f32.mrb[0].mxu0
  %9961 = vmatprep.mubr.f32.mxu0 0.0
  %9962 = vmatmul.mubr.f32.gmra.mrb[0].mxu0 %v9789
  %v9963 = vpop.f32.mrb[0].mxu0
  %v9964 = vadd.f32 0.0, %v9963
  %v9965 = vpop.f32.mrb[0].mxu0
  %9966 = vmatprep.mubr.f32.mxu0 0.0
  %9967 = vmatmul.mubr.f32.gmra.mrb[0].mxu0 %v9790
  %v9968 = vpop.f32.mrb[0].mxu0
  %v9969 = vadd.f32 0.0, %v9968
  %v9970 = vpop.f32.mrb[0].mxu0
  %9971 = vmatprep.mubr.f32.mxu0 0.0
  %9972 = vmatmul.mubr.f32.gmra.mrb[0].mxu0 %v9791
  %v9973 = vpop.f32.mrb[0].mxu0
  %v9974 = vadd.f32 0.0, %v9973
  %v9975 = vpop.f32.mrb[0].mxu0
  %9976 = vmatprep.mubr.f32.mxu0 0.0
  %9977 = vmatmul.mubr.f32.gmra.mrb[0].mxu0 %v9792
  %v9978 = vpop.f32.mrb[0].mxu0
  %v9979 = vadd.f32 0.0, %v9978
  %v9980 = vpop.f32.mrb[0].mxu0
  %9981 = vmatprep.mubr.f32.mxu0 0.0
  %9982 = vmatmul.mubr.f32.gmra.mrb[0].mxu0 %v9793
  %v9983 = vpop.f32.mrb[0].mxu0
  %v9984 = vadd.f32 0.0, %v9983
  %v9985 = vpop.f32.mrb[0].mxu0
  %9986 = vmatprep.mubr.f32.mxu0 0.0
  %9987 = vmatmul.mubr.f32.gmra.mrb[0].mxu0 %v9794
  %v9988 = vpop.f32.mrb[0].mxu0
  %v9989 = vadd.f32 0.0, %v9988
  %v9990 = vpop.f32.mrb[0].mxu0
  %9991 = vmatprep.mubr.f32.mxu0 0.0
  %9992 = vmatmul.mubr.f32.gmra.mrb[0].mxu0 %v9795
  %v9993 = vpop.f32.mrb[0].mxu0
  %v9994 = vadd.f32 0.0, %v9993
  %v9995 = vpop.f32.mrb[0].mxu0
  %9996 = vmatprep.mubr.f32.mxu0 0.0
  %9997 = vmatmul.mubr.f32.gmra.mrb[0].mxu0 %v9796
  %v9998 = vpop.f32.mrb[0].mxu0
  %v9999 = vadd.f32 0.0, %v9998
  %v10000 = vpop.f32.mrb[0].mxu0
  %10001 = vmatprep.mubr.f32.mxu0 0.0
  %10002 = vmatmul.mubr.f32.gmra.mrb[0].mxu0 %v9797
  %v10003 = vpop.f32.mrb[0].mxu0
  %v10004 = vadd.f32 0.0, %v10003
  %v10005 = vpop.f32.mrb[0].mxu0
  %10006 = vmatprep.mubr.f32.mxu0 0.0
  %10007 = vmatmul.mubr.f32.gmra.mrb[0].mxu0 %v9798
  %v10008 = vpop.f32.mrb[0].mxu0
  %v10009 = vadd.f32 0.0, %v10008
  %v10010 = vpop.f32.mrb[0].mxu0
  %10011 = vmatprep.mubr.f32.mxu0 0.0
  %10012 = vmatmul.mubr.f32.gmra.mrb[0].mxu0 %v9799
  %v10013 = vpop.f32.mrb[0].mxu0
  %v10014 = vadd.f32 0.0, %v10013
  %v10015 = vpop.f32.mrb[0].mxu0
  %10016 = vmatprep.mubr.f32.mxu0 0.0
  %10017 = vmatmul.mubr.f32.gmra.mrb[0].mxu0 %v9800
  %v10018 = vpop.f32.mrb[0].mxu0
  %v10019 = vadd.f32 0.0, %v10018
  %v10020 = vpop.f32.mrb[0].mxu0
  %10021 = vmatprep.mubr.f32.mxu0 0.0
  %10022 = vmatmul.mubr.f32.gmra.mrb[0].mxu0 %v9801
  %v10023 = vpop.f32.mrb[0].mxu0
  %v10024 = vadd.f32 0.0, %v10023
  %v10025 = vpop.f32.mrb[0].mxu0
  %10026 = vmatprep.mubr.f32.mxu0 0.0
  %10027 = vmatmul.mubr.f32.gmra.mrb[0].mxu0 %v9802
  %v10028 = vpop.f32.mrb[0].mxu0
  %v10029 = vadd.f32 0.0, %v10028
  %v10030 = vpop.f32.mrb[0].mxu0
  %10031 = vmatprep.mubr.f32.mxu0 0.0
  %10032 = vmatmul.mubr.f32.gmra.mrb[0].mxu0 %v9803
  %v10033 = vpop.f32.mrb[0].mxu0
  %v10034 = vadd.f32 0.0, %v10033
  %v10035 = vpop.f32.mrb[0].mxu0
  %10036 = vmatprep.mubr.f32.mxu0 0.0
  %10037 = vmatmul.mubr.f32.gmra.mrb[0].mxu0 %v9804
  %v10038 = vpop.f32.mrb[0].mxu0
  %v10039 = vadd.f32 0.0, %v10038
  %v10040 = vpop.f32.mrb[0].mxu0
  %10041 = vmatprep.mubr.f32.mxu0 0.0
  %10042 = vmatmul.mubr.f32.gmra.mrb[0].mxu0 %v9805
  %v10043 = vpop.f32.mrb[0].mxu0
  %v10044 = vadd.f32 0.0, %v10043
  %v10045 = vpop.f32.mrb[0].mxu0
  %10046 = vmatprep.mubr.f32.mxu0 0.0
  %10047 = vmatmul.mubr.f32.gmra.mrb[0].mxu0 %v9806
  %v10048 = vpop.f32.mrb[0].mxu0
  %v10049 = vadd.f32 0.0, %v10048
  %v10050 = vpop.f32.mrb[0].mxu0
  %10051 = vmatprep.mubr.f32.mxu0 0.0
  %10052 = vmatmul.mubr.f32.gmra.mrb[0].mxu0 %v9807
  %v10053 = vpop.f32.mrb[0].mxu0
  %v10054 = vadd.f32 0.0, %v10053
  %v10055 = vpop.f32.mrb[0].mxu0
  %10056 = vmatprep.mubr.f32.mxu0 0.0
  %10057 = vmatmul.mubr.f32.gmra.mrb[0].mxu0 %v9808
  %v10058 = vpop.f32.mrb[0].mxu0
  %v10059 = vadd.f32 0.0, %v10058
  %v10060 = vpop.f32.mrb[0].mxu0
  %10061 = vmatprep.mubr.f32.mxu0 0.0
  %10062 = vmatmul.mubr.f32.gmra.mrb[0].mxu0 %v9809
  %v10063 = vpop.f32.mrb[0].mxu0
  %v10064 = vadd.f32 0.0, %v10063
  %v10065 = vpop.f32.mrb[0].mxu0
  %10066 = vmatprep.mubr.f32.mxu0 0.0
  %10067 = vmatmul.mubr.f32.gmra.mrb[0].mxu0 %v9810
  %v10068 = vpop.f32.mrb[0].mxu0
  %v10069 = vadd.f32 0.0, %v10068
  %v10070 = vpop.f32.mrb[0].mxu0
  %10071 = vmatprep.mubr.f32.mxu0 0.0
  %10072 = vmatmul.mubr.f32.gmra.mrb[0].mxu0 %v9811
  %v10073 = vpop.f32.mrb[0].mxu0
  %v10074 = vadd.f32 0.0, %v10073
  %v10075 = vpop.f32.mrb[0].mxu0
  %10076 = vmatprep.mubr.f32.mxu0 0.0
  %10077 = vmatmul.mubr.f32.gmra.mrb[0].mxu0 %v9812
  %v10078 = vpop.f32.mrb[0].mxu0
  %v10079 = vadd.f32 0.0, %v10078
  %v10080 = vpop.f32.mrb[0].mxu0
  %10081 = vmatprep.mubr.f32.mxu0 0.0
  %10082 = vmatmul.mubr.f32.gmra.mrb[0].mxu0 %v9813
  %v10083 = vpop.f32.mrb[0].mxu0
  %v10084 = vadd.f32 0.0, %v10083
  %v10085 = vpop.f32.mrb[0].mxu0
  %10086 = vmatprep.mubr.f32.mxu0 0.0
  %10087 = vmatmul.mubr.f32.gmra.mrb[0].mxu0 %v9814
  %v10088 = vpop.f32.mrb[0].mxu0
  %v10089 = vadd.f32 0.0, %v10088
  %v10090 = vpop.f32.mrb[0].mxu0
  %10091 = vmatprep.mubr.f32.mxu0 0.0
  %10092 = vmatmul.mubr.f32.gmra.mrb[0].mxu0 %v9815
  %v10093 = vpop.f32.mrb[0].mxu0
  %v10094 = vadd.f32 0.0, %v10093
  %v10095 = vpop.f32.mrb[0].mxu0
  %10096 = vmatprep.mubr.f32.mxu0 0.0
  %10097 = vmatmul.mubr.f32.gmra.mrb[0].mxu0 %v9816
  %v10098 = vpop.f32.mrb[0].mxu0
  %v10099 = vadd.f32 0.0, %v10098
  %v10100 = vpop.f32.mrb[0].mxu0
  %10101 = vmatprep.mubr.f32.mxu0 0.0
  %10102 = vmatmul.mubr.f32.gmra.mrb[0].mxu0 %v9817
  %v10103 = vpop.f32.mrb[0].mxu0
  %v10104 = vadd.f32 0.0, %v10103
  %v10105 = vpop.f32.mrb[0].mxu0
  %10106 = vmatprep.mubr.f32.mxu0 0.0
  %10107 = vmatmul.mubr.f32.gmra.mrb[0].mxu0 %v9818
  %v10108 = vpop.f32.mrb[0].mxu0
  %v10109 = vadd.f32 0.0, %v10108
  %v10110 = vpop.f32.mrb[0].mxu0
  %10111 = vmatprep.mubr.f32.mxu0 0.0
  %10112 = vmatmul.mubr.f32.gmra.mrb[0].mxu0 %v9819
  %v10113 = vpop.f32.mrb[0].mxu0
  %v10114 = vadd.f32 0.0, %v10113
  %v10115 = vpop.f32.mrb[0].mxu0
  %10116 = vmatprep.mubr.f32.mxu0 0.0
  %10117 = vmatmul.mubr.f32.gmra.mrb[0].mxu0 %v9820
  %v10118 = vpop.f32.mrb[0].mxu0
  %v10119 = vadd.f32 0.0, %v10118
  %v10120 = vpop.f32.mrb[0].mxu0
  %10121 = vmatprep.mubr.f32.mxu0 0.0
  %10122 = vmatmul.mubr.f32.gmra.mrb[0].mxu0 %v9821
  %v10123 = vpop.f32.mrb[0].mxu0
  %v10124 = vadd.f32 0.0, %v10123
  %v10125 = vpop.f32.mrb[0].mxu0
  %10126 = vmatprep.mubr.f32.mxu0 0.0
  %10127 = vmatmul.mubr.f32.gmra.mrb[0].mxu0 %v9822
  %v10128 = vpop.f32.mrb[0].mxu0
  %v10129 = vadd.f32 0.0, %v10128
  %v10130 = vpop.f32.mrb[0].mxu0
  %10131 = vmatprep.mubr.f32.mxu0 0.0
  %10132 = vmatmul.mubr.f32.gmra.mrb[0].mxu0 %v9823
  %v10133 = vpop.f32.mrb[0].mxu0
  %v10134 = vadd.f32 0.0, %v10133
  %v10135 = vpop.f32.mrb[0].mxu0
  %10136 = vmatprep.mubr.f32.mxu0 0.0
  %10137 = vmatmul.mubr.f32.gmra.mrb[0].mxu0 %v9824
  %v10138 = vpop.f32.mrb[0].mxu0
  %v10139 = vadd.f32 0.0, %v10138
  %v10140 = vpop.f32.mrb[0].mxu0
  %10141 = vmatprep.mubr.f32.mxu0 0.0
  %10142 = vmatmul.mubr.f32.gmra.mrb[0].mxu0 %v9825
  %v10143 = vpop.f32.mrb[0].mxu0
  %v10144 = vadd.f32 0.0, %v10143
  %v10145 = vpop.f32.mrb[0].mxu0
  %10146 = vmatprep.mubr.f32.mxu0 0.0
  %10147 = vmatmul.mubr.f32.gmra.mrb[0].mxu0 %v9826
  %v10148 = vpop.f32.mrb[0].mxu0
  %v10149 = vadd.f32 0.0, %v10148
  %v10150 = vpop.f32.mrb[0].mxu0
  %10151 = vmatprep.mubr.f32.mxu0 0.0
  %10152 = vmatmul.mubr.f32.gmra.mrb[0].mxu0 %v9827
  %v10153 = vpop.f32.mrb[0].mxu0
  %v10154 = vadd.f32 0.0, %v10153
  %v10155 = vpop.f32.mrb[0].mxu0
  %10156 = vmatprep.mubr.f32.mxu0 0.0
  %10157 = vmatmul.mubr.f32.gmra.mrb[0].mxu0 %v9828
  %v10158 = vpop.f32.mrb[0].mxu0
  %v10159 = vadd.f32 0.0, %v10158
  %v10160 = vpop.f32.mrb[0].mxu0
  %10161 = vmatprep.mubr.f32.mxu0 0.0
  %10162 = vmatmul.mubr.f32.gmra.mrb[0].mxu0 %v9829
  %v10163 = vpop.f32.mrb[0].mxu0
  %v10164 = vadd.f32 0.0, %v10163
  %v10165 = vpop.f32.mrb[0].mxu0
  %10166 = vmatprep.mubr.f32.mxu0 0.0
  %10167 = vmatmul.mubr.f32.gmra.mrb[0].mxu0 %v9830
  %v10168 = vpop.f32.mrb[0].mxu0
  %v10169 = vadd.f32 0.0, %v10168
  %v10170 = vpop.f32.mrb[0].mxu0
  %10171 = vmatprep.mubr.f32.mxu0 0.0
  %10172 = vmatmul.mubr.f32.gmra.mrb[0].mxu0 %v9831
  %v10173 = vpop.f32.mrb[0].mxu0
  %v10174 = vadd.f32 0.0, %v10173
  %v10175 = vpop.f32.mrb[0].mxu0
  %10176 = vmatprep.mubr.f32.mxu0 0.0
  %10177 = vmatmul.mubr.f32.gmra.mrb[0].mxu0 %v9832
  %v10178 = vpop.f32.mrb[0].mxu0
  %v10179 = vadd.f32 0.0, %v10178
  %v10180 = vpop.f32.mrb[0].mxu0
  %10181 = vmatprep.mubr.f32.mxu0 0.0
  %10182 = vmatmul.mubr.f32.gmra.mrb[0].mxu0 %v9833
  %v10183 = vpop.f32.mrb[0].mxu0
  %v10184 = vadd.f32 0.0, %v10183
  %v10185 = vpop.f32.mrb[0].mxu0
  %10186 = vmatprep.mubr.f32.mxu0 0.0
  %10187 = vmatmul.mubr.f32.gmra.mrb[0].mxu0 %v9834
  %v10188 = vpop.f32.mrb[0].mxu0
  %v10189 = vadd.f32 0.0, %v10188
  %v10190 = vpop.f32.mrb[0].mxu0
  %10191 = vmatprep.mubr.f32.mxu0 0.0
  %10192 = vmatmul.mubr.f32.gmra.mrb[0].mxu0 %v9835
  %v10193 = vpop.f32.mrb[0].mxu0
  %v10194 = vadd.f32 0.0, %v10193
  %v10195 = vpop.f32.mrb[0].mxu0
  %10196 = vmatprep.mubr.f32.mxu0 0.0
  %10197 = vmatmul.mubr.f32.gmra.mrb[0].mxu0 %v9836
  %v10198 = vpop.f32.mrb[0].mxu0
  %v10199 = vadd.f32 0.0, %v10198
  %v10200 = vpop.f32.mrb[0].mxu0
  %10201 = vmatprep.mubr.f32.mxu0 0.0
  %10202 = vmatmul.mubr.f32.gmra.mrb[0].mxu0 %v9837
  %v10203 = vpop.f32.mrb[0].mxu0
  %v10204 = vadd.f32 0.0, %v10203
  %v10205 = vpop.f32.mrb[0].mxu0
  %10206 = vmatprep.mubr.f32.mxu0 0.0
  %10207 = vmatmul.mubr.f32.gmra.mrb[0].mxu0 %v9838
  %v10208 = vpop.f32.mrb[0].mxu0
  %v10209 = vadd.f32 0.0, %v10208
  %v10210 = vpop.f32.mrb[0].mxu0
  %10211 = vmatprep.mubr.f32.mxu0 0.0
  %10212 = vmatmul.mubr.f32.gmra.mrb[0].mxu0 %v9839
  %v10213 = vpop.f32.mrb[0].mxu0
  %v10214 = vadd.f32 0.0, %v10213
  %v10215 = vpop.f32.mrb[0].mxu0
  %10216 = vmatprep.mubr.f32.mxu0 0.0
  %10217 = vmatmul.mubr.f32.gmra.mrb[0].mxu0 %v9840
  %v10218 = vpop.f32.mrb[0].mxu0
  %v10219 = vadd.f32 0.0, %v10218
  %v10220 = vpop.f32.mrb[0].mxu0
  %10221 = vmatprep.mubr.f32.mxu0 0.0
  %10222 = vmatmul.mubr.f32.gmra.mrb[0].mxu0 %v9841
  %v10223 = vpop.f32.mrb[0].mxu0
  %v10224 = vadd.f32 0.0, %v10223
  %v10225 = vpop.f32.mrb[0].mxu0
  %10226 = vmatprep.mubr.f32.mxu0 0.0
  %10227 = vmatmul.mubr.f32.gmra.mrb[0].mxu0 %v9842
  %v10228 = vpop.f32.mrb[0].mxu0
  %v10229 = vadd.f32 0.0, %v10228
  %v10230 = vpop.f32.mrb[0].mxu0
  %10231 = vmatprep.mubr.f32.mxu0 0.0
  %10232 = vmatmul.mubr.f32.gmra.mrb[0].mxu0 %v9843
  %v10233 = vpop.f32.mrb[0].mxu0
  %v10234 = vadd.f32 0.0, %v10233
  %v10235 = vpop.f32.mrb[0].mxu0
  %10236 = vmatprep.mubr.f32.mxu0 0.0
  %10237 = vmatmul.mubr.f32.gmra.mrb[0].mxu0 %v9844
  %v10238 = vpop.f32.mrb[0].mxu0
  %v10239 = vadd.f32 0.0, %v10238
  %v10240 = vpop.f32.mrb[0].mxu0
  %10241 = vmatprep.mubr.f32.mxu0 0.0
  %10242 = vmatmul.mubr.f32.gmra.mrb[0].mxu0 %v9845
  %v10243 = vpop.f32.mrb[0].mxu0
  %v10244 = vadd.f32 0.0, %v10243
  %v10245 = vpop.f32.mrb[0].mxu0
  %10246 = vdwg.mxu0
  %v10247 = vadd.f32 %v9718, %v9929
  %v10248 = vadd.f32 %v9719, %v9934
  %v10249 = vadd.f32 %v9720, %v9939
  %v10250 = vadd.f32 %v9721, %v9944
  %v10251 = vadd.f32 %v9722, %v9949
  %v10252 = vadd.f32 %v9723, %v9954
  %v10253 = vadd.f32 %v9724, %v9959
  %v10254 = vadd.f32 %v9725, %v9964
  %v10255 = vadd.f32 %v9726, %v9969
  %v10256 = vadd.f32 %v9727, %v9974
  %v10257 = vadd.f32 %v9728, %v9979
  %v10258 = vadd.f32 %v9729, %v9984
  %v10259 = vadd.f32 %v9730, %v9989
  %v10260 = vadd.f32 %v9731, %v9994
  %v10261 = vadd.f32 %v9732, %v9999
  %v10262 = vadd.f32 %v9733, %v10004
  %v10263 = vadd.f32 %v9734, %v10009
  %v10264 = vadd.f32 %v9735, %v10014
  %v10265 = vadd.f32 %v9736, %v10019
  %v10266 = vadd.f32 %v9737, %v10024
  %v10267 = vadd.f32 %v9738, %v10029
  %v10268 = vadd.f32 %v9739, %v10034
  %v10269 = vadd.f32 %v9740, %v10039
  %v10270 = vadd.f32 %v9741, %v10044
  %v10271 = vadd.f32 %v9742, %v10049
  %v10272 = vadd.f32 %v9743, %v10054
  %v10273 = vadd.f32 %v9744, %v10059
  %v10274 = vadd.f32 %v9745, %v10064
  %v10275 = vadd.f32 %v9746, %v10069
  %v10276 = vadd.f32 %v9747, %v10074
  %v10277 = vadd.f32 %v9748, %v10079
  %v10278 = vadd.f32 %v9749, %v10084
  %v10279 = vadd.f32 %v9750, %v10089
  %v10280 = vadd.f32 %v9751, %v10094
  %v10281 = vadd.f32 %v9752, %v10099
  %v10282 = vadd.f32 %v9753, %v10104
  %v10283 = vadd.f32 %v9754, %v10109
  %v10284 = vadd.f32 %v9755, %v10114
  %v10285 = vadd.f32 %v9756, %v10119
  %v10286 = vadd.f32 %v9757, %v10124
  %v10287 = vadd.f32 %v9758, %v10129
  %v10288 = vadd.f32 %v9759, %v10134
  %v10289 = vadd.f32 %v9760, %v10139
  %v10290 = vadd.f32 %v9761, %v10144
  %v10291 = vadd.f32 %v9762, %v10149
  %v10292 = vadd.f32 %v9763, %v10154
  %v10293 = vadd.f32 %v9764, %v10159
  %v10294 = vadd.f32 %v9765, %v10164
  %v10295 = vadd.f32 %v9766, %v10169
  %v10296 = vadd.f32 %v9767, %v10174
  %v10297 = vadd.f32 %v9768, %v10179
  %v10298 = vadd.f32 %v9769, %v10184
  %v10299 = vadd.f32 %v9770, %v10189
  %v10300 = vadd.f32 %v9771, %v10194
  %v10301 = vadd.f32 %v9772, %v10199
  %v10302 = vadd.f32 %v9773, %v10204
  %v10303 = vadd.f32 %v9774, %v10209
  %v10304 = vadd.f32 %v9775, %v10214
  %v10305 = vadd.f32 %v9776, %v10219
  %v10306 = vadd.f32 %v9777, %v10224
  %v10307 = vadd.f32 %v9778, %v10229
  %v10308 = vadd.f32 %v9779, %v10234
  %v10309 = vadd.f32 %v9780, %v10239
  %v10310 = vadd.f32 %v9781, %v10244
  %v10311 = vadd.f32 %v10247, %v10248
  %v10312 = vadd.f32 %v10311, %v10249
  %v10313 = vadd.f32 %v10312, %v10250
  %v10314 = vadd.f32 %v10313, %v10251
  %v10315 = vadd.f32 %v10314, %v10252
  %v10316 = vadd.f32 %v10315, %v10253
  %v10317 = vadd.f32 %v10316, %v10254
  %v10318 = vadd.f32 %v10317, %v10255
  %v10319 = vadd.f32 %v10318, %v10256
  %v10320 = vadd.f32 %v10319, %v10257
  %v10321 = vadd.f32 %v10320, %v10258
  %v10322 = vadd.f32 %v10321, %v10259
  %v10323 = vadd.f32 %v10322, %v10260
  %v10324 = vadd.f32 %v10323, %v10261
  %v10325 = vadd.f32 %v10324, %v10262
  %v10326 = vadd.f32 %v10325, %v10263
  %v10327 = vadd.f32 %v10326, %v10264
  %v10328 = vadd.f32 %v10327, %v10265
  %v10329 = vadd.f32 %v10328, %v10266
  %v10330 = vadd.f32 %v10329, %v10267
  %v10331 = vadd.f32 %v10330, %v10268
  %v10332 = vadd.f32 %v10331, %v10269
  %v10333 = vadd.f32 %v10332, %v10270
  %v10334 = vadd.f32 %v10333, %v10271
  %v10335 = vadd.f32 %v10334, %v10272
  %v10336 = vadd.f32 %v10335, %v10273
  %v10337 = vadd.f32 %v10336, %v10274
  %v10338 = vadd.f32 %v10337, %v10275
  %v10339 = vadd.f32 %v10338, %v10276
  %v10340 = vadd.f32 %v10339, %v10277
  %v10341 = vadd.f32 %v10340, %v10278
  %v10342 = vadd.f32 %v10341, %v10279
  %v10343 = vadd.f32 %v10342, %v10280
  %v10344 = vadd.f32 %v10343, %v10281
  %v10345 = vadd.f32 %v10344, %v10282
  %v10346 = vadd.f32 %v10345, %v10283
  %v10347 = vadd.f32 %v10346, %v10284
  %v10348 = vadd.f32 %v10347, %v10285
  %v10349 = vadd.f32 %v10348, %v10286
  %v10350 = vadd.f32 %v10349, %v10287
  %v10351 = vadd.f32 %v10350, %v10288
  %v10352 = vadd.f32 %v10351, %v10289
  %v10353 = vadd.f32 %v10352, %v10290
  %v10354 = vadd.f32 %v10353, %v10291
  %v10355 = vadd.f32 %v10354, %v10292
  %v10356 = vadd.f32 %v10355, %v10293
  %v10357 = vadd.f32 %v10356, %v10294
  %v10358 = vadd.f32 %v10357, %v10295
  %v10359 = vadd.f32 %v10358, %v10296
  %v10360 = vadd.f32 %v10359, %v10297
  %v10361 = vadd.f32 %v10360, %v10298
  %v10362 = vadd.f32 %v10361, %v10299
  %v10363 = vadd.f32 %v10362, %v10300
  %v10364 = vadd.f32 %v10363, %v10301
  %v10365 = vadd.f32 %v10364, %v10302
  %v10366 = vadd.f32 %v10365, %v10303
  %v10367 = vadd.f32 %v10366, %v10304
  %v10368 = vadd.f32 %v10367, %v10305
  %v10369 = vadd.f32 %v10368, %v10306
  %v10370 = vadd.f32 %v10369, %v10307
  %v10371 = vadd.f32 %v10370, %v10308
  %v10372 = vadd.f32 %v10371, %v10309
  %v10373 = vadd.f32 %v10372, %v10310
  %v10374 = vrot.slane %v10373, 4
  %v10375 = vadd.f32 %v10373, %v10374
  %v10376 = vrot.slane %v10375, 2
  %v10377 = vadd.f32 %v10375, %v10376
  %v10378 = vrot.slane %v10377, 1
  %v10379 = vadd.f32 %v10377, %v10378
  %v10380 = vmul.f32 %v10379, %v5176
  %v10381 = vsub.f32 %v10247, %v10380
  %v10382 = vsub.f32 %v10248, %v10380
  %v10383 = vsub.f32 %v10249, %v10380
  %v10384 = vsub.f32 %v10250, %v10380
  %v10385 = vsub.f32 %v10251, %v10380
  %v10386 = vsub.f32 %v10252, %v10380
  %v10387 = vsub.f32 %v10253, %v10380
  %v10388 = vsub.f32 %v10254, %v10380
  %v10389 = vsub.f32 %v10255, %v10380
  %v10390 = vsub.f32 %v10256, %v10380
  %v10391 = vsub.f32 %v10257, %v10380
  %v10392 = vsub.f32 %v10258, %v10380
  %v10393 = vsub.f32 %v10259, %v10380
  %v10394 = vsub.f32 %v10260, %v10380
  %v10395 = vsub.f32 %v10261, %v10380
  %v10396 = vsub.f32 %v10262, %v10380
  %v10397 = vsub.f32 %v10263, %v10380
  %v10398 = vsub.f32 %v10264, %v10380
  %v10399 = vsub.f32 %v10265, %v10380
  %v10400 = vsub.f32 %v10266, %v10380
  %v10401 = vsub.f32 %v10267, %v10380
  %v10402 = vsub.f32 %v10268, %v10380
  %v10403 = vsub.f32 %v10269, %v10380
  %v10404 = vsub.f32 %v10270, %v10380
  %v10405 = vsub.f32 %v10271, %v10380
  %v10406 = vsub.f32 %v10272, %v10380
  %v10407 = vsub.f32 %v10273, %v10380
  %v10408 = vsub.f32 %v10274, %v10380
  %v10409 = vsub.f32 %v10275, %v10380
  %v10410 = vsub.f32 %v10276, %v10380
  %v10411 = vsub.f32 %v10277, %v10380
  %v10412 = vsub.f32 %v10278, %v10380
  %v10413 = vsub.f32 %v10279, %v10380
  %v10414 = vsub.f32 %v10280, %v10380
  %v10415 = vsub.f32 %v10281, %v10380
  %v10416 = vsub.f32 %v10282, %v10380
  %v10417 = vsub.f32 %v10283, %v10380
  %v10418 = vsub.f32 %v10284, %v10380
  %v10419 = vsub.f32 %v10285, %v10380
  %v10420 = vsub.f32 %v10286, %v10380
  %v10421 = vsub.f32 %v10287, %v10380
  %v10422 = vsub.f32 %v10288, %v10380
  %v10423 = vsub.f32 %v10289, %v10380
  %v10424 = vsub.f32 %v10290, %v10380
  %v10425 = vsub.f32 %v10291, %v10380
  %v10426 = vsub.f32 %v10292, %v10380
  %v10427 = vsub.f32 %v10293, %v10380
  %v10428 = vsub.f32 %v10294, %v10380
  %v10429 = vsub.f32 %v10295, %v10380
  %v10430 = vsub.f32 %v10296, %v10380
  %v10431 = vsub.f32 %v10297, %v10380
  %v10432 = vsub.f32 %v10298, %v10380
  %v10433 = vsub.f32 %v10299, %v10380
  %v10434 = vsub.f32 %v10300, %v10380
  %v10435 = vsub.f32 %v10301, %v10380
  %v10436 = vsub.f32 %v10302, %v10380
  %v10437 = vsub.f32 %v10303, %v10380
  %v10438 = vsub.f32 %v10304, %v10380
  %v10439 = vsub.f32 %v10305, %v10380
  %v10440 = vsub.f32 %v10306, %v10380
  %v10441 = vsub.f32 %v10307, %v10380
  %v10442 = vsub.f32 %v10308, %v10380
  %v10443 = vsub.f32 %v10309, %v10380
  %v10444 = vsub.f32 %v10310, %v10380
  %v10445 = vmul.f32 %v10381, %v10381
  %v10446 = vmul.f32 %v10382, %v10382
  %v10447 = vmul.f32 %v10383, %v10383
  %v10448 = vmul.f32 %v10384, %v10384
  %v10449 = vmul.f32 %v10385, %v10385
  %v10450 = vmul.f32 %v10386, %v10386
  %v10451 = vmul.f32 %v10387, %v10387
  %v10452 = vmul.f32 %v10388, %v10388
  %v10453 = vmul.f32 %v10389, %v10389
  %v10454 = vmul.f32 %v10390, %v10390
  %v10455 = vmul.f32 %v10391, %v10391
  %v10456 = vmul.f32 %v10392, %v10392
  %v10457 = vmul.f32 %v10393, %v10393
  %v10458 = vmul.f32 %v10394, %v10394
  %v10459 = vmul.f32 %v10395, %v10395
  %v10460 = vmul.f32 %v10396, %v10396
  %v10461 = vmul.f32 %v10397, %v10397
  %v10462 = vmul.f32 %v10398, %v10398
  %v10463 = vmul.f32 %v10399, %v10399
  %v10464 = vmul.f32 %v10400, %v10400
  %v10465 = vmul.f32 %v10401, %v10401
  %v10466 = vmul.f32 %v10402, %v10402
  %v10467 = vmul.f32 %v10403, %v10403
  %v10468 = vmul.f32 %v10404, %v10404
  %v10469 = vmul.f32 %v10405, %v10405
  %v10470 = vmul.f32 %v10406, %v10406
  %v10471 = vmul.f32 %v10407, %v10407
  %v10472 = vmul.f32 %v10408, %v10408
  %v10473 = vmul.f32 %v10409, %v10409
  %v10474 = vmul.f32 %v10410, %v10410
  %v10475 = vmul.f32 %v10411, %v10411
  %v10476 = vmul.f32 %v10412, %v10412
  %v10477 = vmul.f32 %v10413, %v10413
  %v10478 = vmul.f32 %v10414, %v10414
  %v10479 = vmul.f32 %v10415, %v10415
  %v10480 = vmul.f32 %v10416, %v10416
  %v10481 = vmul.f32 %v10417, %v10417
  %v10482 = vmul.f32 %v10418, %v10418
  %v10483 = vmul.f32 %v10419, %v10419
  %v10484 = vmul.f32 %v10420, %v10420
  %v10485 = vmul.f32 %v10421, %v10421
  %v10486 = vmul.f32 %v10422, %v10422
  %v10487 = vmul.f32 %v10423, %v10423
  %v10488 = vmul.f32 %v10424, %v10424
  %v10489 = vmul.f32 %v10425, %v10425
  %v10490 = vmul.f32 %v10426, %v10426
  %v10491 = vmul.f32 %v10427, %v10427
  %v10492 = vmul.f32 %v10428, %v10428
  %v10493 = vmul.f32 %v10429, %v10429
  %v10494 = vmul.f32 %v10430, %v10430
  %v10495 = vmul.f32 %v10431, %v10431
  %v10496 = vmul.f32 %v10432, %v10432
  %v10497 = vmul.f32 %v10433, %v10433
  %v10498 = vmul.f32 %v10434, %v10434
  %v10499 = vmul.f32 %v10435, %v10435
  %v10500 = vmul.f32 %v10436, %v10436
  %v10501 = vmul.f32 %v10437, %v10437
  %v10502 = vmul.f32 %v10438, %v10438
  %v10503 = vmul.f32 %v10439, %v10439
  %v10504 = vmul.f32 %v10440, %v10440
  %v10505 = vmul.f32 %v10441, %v10441
  %v10506 = vmul.f32 %v10442, %v10442
  %v10507 = vmul.f32 %v10443, %v10443
  %v10508 = vmul.f32 %v10444, %v10444
  %v10509 = vadd.f32 %v10445, %v10446
  %v10510 = vadd.f32 %v10509, %v10447
  %v10511 = vadd.f32 %v10510, %v10448
  %v10512 = vadd.f32 %v10511, %v10449
  %v10513 = vadd.f32 %v10512, %v10450
  %v10514 = vadd.f32 %v10513, %v10451
  %v10515 = vadd.f32 %v10514, %v10452
  %v10516 = vadd.f32 %v10515, %v10453
  %v10517 = vadd.f32 %v10516, %v10454
  %v10518 = vadd.f32 %v10517, %v10455
  %v10519 = vadd.f32 %v10518, %v10456
  %v10520 = vadd.f32 %v10519, %v10457
  %v10521 = vadd.f32 %v10520, %v10458
  %v10522 = vadd.f32 %v10521, %v10459
  %v10523 = vadd.f32 %v10522, %v10460
  %v10524 = vadd.f32 %v10523, %v10461
  %v10525 = vadd.f32 %v10524, %v10462
  %v10526 = vadd.f32 %v10525, %v10463
  %v10527 = vadd.f32 %v10526, %v10464
  %v10528 = vadd.f32 %v10527, %v10465
  %v10529 = vadd.f32 %v10528, %v10466
  %v10530 = vadd.f32 %v10529, %v10467
  %v10531 = vadd.f32 %v10530, %v10468
  %v10532 = vadd.f32 %v10531, %v10469
  %v10533 = vadd.f32 %v10532, %v10470
  %v10534 = vadd.f32 %v10533, %v10471
  %v10535 = vadd.f32 %v10534, %v10472
  %v10536 = vadd.f32 %v10535, %v10473
  %v10537 = vadd.f32 %v10536, %v10474
  %v10538 = vadd.f32 %v10537, %v10475
  %v10539 = vadd.f32 %v10538, %v10476
  %v10540 = vadd.f32 %v10539, %v10477
  %v10541 = vadd.f32 %v10540, %v10478
  %v10542 = vadd.f32 %v10541, %v10479
  %v10543 = vadd.f32 %v10542, %v10480
  %v10544 = vadd.f32 %v10543, %v10481
  %v10545 = vadd.f32 %v10544, %v10482
  %v10546 = vadd.f32 %v10545, %v10483
  %v10547 = vadd.f32 %v10546, %v10484
  %v10548 = vadd.f32 %v10547, %v10485
  %v10549 = vadd.f32 %v10548, %v10486
  %v10550 = vadd.f32 %v10549, %v10487
  %v10551 = vadd.f32 %v10550, %v10488
  %v10552 = vadd.f32 %v10551, %v10489
  %v10553 = vadd.f32 %v10552, %v10490
  %v10554 = vadd.f32 %v10553, %v10491
  %v10555 = vadd.f32 %v10554, %v10492
  %v10556 = vadd.f32 %v10555, %v10493
  %v10557 = vadd.f32 %v10556, %v10494
  %v10558 = vadd.f32 %v10557, %v10495
  %v10559 = vadd.f32 %v10558, %v10496
  %v10560 = vadd.f32 %v10559, %v10497
  %v10561 = vadd.f32 %v10560, %v10498
  %v10562 = vadd.f32 %v10561, %v10499
  %v10563 = vadd.f32 %v10562, %v10500
  %v10564 = vadd.f32 %v10563, %v10501
  %v10565 = vadd.f32 %v10564, %v10502
  %v10566 = vadd.f32 %v10565, %v10503
  %v10567 = vadd.f32 %v10566, %v10504
  %v10568 = vadd.f32 %v10567, %v10505
  %v10569 = vadd.f32 %v10568, %v10506
  %v10570 = vadd.f32 %v10569, %v10507
  %v10571 = vadd.f32 %v10570, %v10508
  %v10572 = vrot.slane %v10571, 4
  %v10573 = vadd.f32 %v10571, %v10572
  %v10574 = vrot.slane %v10573, 2
  %v10575 = vadd.f32 %v10573, %v10574
  %v10576 = vrot.slane %v10575, 1
  %v10577 = vadd.f32 %v10575, %v10576
  %v10578 = vmul.f32 %v10577, %v5176
  %v10579 = vadd.f32 %v10578, 1e-05
  %v10580 = vrsqrt.pop %v10579
  %v10581 = vmul.f32 %v5676, %v10580
  %v10582 = vmul.f32 %v10380, %v10581
  %v10583 = vsub.f32 %v5677, %v10582
  %v10585 = vlaneseq
  %v10586 = vshrl.u32 %v10585, 7
  %v10587 = vsub.s32 0, %v10586
  %v10588 = vrot.slane %v10581, %v10587
  %v10590 = vmul.f32 %v10247, %v10588
  %v10591 = vmul.f32 %v10248, %v10588
  %v10592 = vmul.f32 %v10249, %v10588
  %v10593 = vmul.f32 %v10250, %v10588
  %v10594 = vmul.f32 %v10251, %v10588
  %v10595 = vmul.f32 %v10252, %v10588
  %v10596 = vmul.f32 %v10253, %v10588
  %v10597 = vmul.f32 %v10254, %v10588
  %v10598 = vmul.f32 %v10255, %v10588
  %v10599 = vmul.f32 %v10256, %v10588
  %v10600 = vmul.f32 %v10257, %v10588
  %v10601 = vmul.f32 %v10258, %v10588
  %v10602 = vmul.f32 %v10259, %v10588
  %v10603 = vmul.f32 %v10260, %v10588
  %v10604 = vmul.f32 %v10261, %v10588
  %v10605 = vmul.f32 %v10262, %v10588
  %v10606 = vmul.f32 %v10263, %v10588
  %v10607 = vmul.f32 %v10264, %v10588
  %v10608 = vmul.f32 %v10265, %v10588
  %v10609 = vmul.f32 %v10266, %v10588
  %v10610 = vmul.f32 %v10267, %v10588
  %v10611 = vmul.f32 %v10268, %v10588
  %v10612 = vmul.f32 %v10269, %v10588
  %v10613 = vmul.f32 %v10270, %v10588
  %v10614 = vmul.f32 %v10271, %v10588
  %v10615 = vmul.f32 %v10272, %v10588
  %v10616 = vmul.f32 %v10273, %v10588
  %v10617 = vmul.f32 %v10274, %v10588
  %v10618 = vmul.f32 %v10275, %v10588
  %v10619 = vmul.f32 %v10276, %v10588
  %v10620 = vmul.f32 %v10277, %v10588
  %v10621 = vmul.f32 %v10278, %v10588
  %v10622 = vmul.f32 %v10279, %v10588
  %v10623 = vmul.f32 %v10280, %v10588
  %v10624 = vmul.f32 %v10281, %v10588
  %v10625 = vmul.f32 %v10282, %v10588
  %v10626 = vmul.f32 %v10283, %v10588
  %v10627 = vmul.f32 %v10284, %v10588
  %v10628 = vmul.f32 %v10285, %v10588
  %v10629 = vmul.f32 %v10286, %v10588
  %v10630 = vmul.f32 %v10287, %v10588
  %v10631 = vmul.f32 %v10288, %v10588
  %v10632 = vmul.f32 %v10289, %v10588
  %v10633 = vmul.f32 %v10290, %v10588
  %v10634 = vmul.f32 %v10291, %v10588
  %v10635 = vmul.f32 %v10292, %v10588
  %v10636 = vmul.f32 %v10293, %v10588
  %v10637 = vmul.f32 %v10294, %v10588
  %v10638 = vmul.f32 %v10295, %v10588
  %v10639 = vmul.f32 %v10296, %v10588
  %v10640 = vmul.f32 %v10297, %v10588
  %v10641 = vmul.f32 %v10298, %v10588
  %v10642 = vmul.f32 %v10299, %v10588
  %v10643 = vmul.f32 %v10300, %v10588
  %v10644 = vmul.f32 %v10301, %v10588
  %v10645 = vmul.f32 %v10302, %v10588
  %v10646 = vmul.f32 %v10303, %v10588
  %v10647 = vmul.f32 %v10304, %v10588
  %v10648 = vmul.f32 %v10305, %v10588
  %v10649 = vmul.f32 %v10306, %v10588
  %v10650 = vmul.f32 %v10307, %v10588
  %v10651 = vmul.f32 %v10308, %v10588
  %v10652 = vmul.f32 %v10309, %v10588
  %v10653 = vmul.f32 %v10310, %v10588
  %v10655 = vlaneseq
  %v10656 = vshrl.u32 %v10655, 7
  %v10657 = vsub.s32 0, %v10656
  %v10658 = vrot.slane %v10583, %v10657
  %v10660 = vadd.f32 %v10590, %v10658
  %v10661 = vadd.f32 %v10591, %v10658
  %v10662 = vadd.f32 %v10592, %v10658
  %v10663 = vadd.f32 %v10593, %v10658
  %v10664 = vadd.f32 %v10594, %v10658
  %v10665 = vadd.f32 %v10595, %v10658
  %v10666 = vadd.f32 %v10596, %v10658
  %v10667 = vadd.f32 %v10597, %v10658
  %v10668 = vadd.f32 %v10598, %v10658
  %v10669 = vadd.f32 %v10599, %v10658
  %v10670 = vadd.f32 %v10600, %v10658
  %v10671 = vadd.f32 %v10601, %v10658
  %v10672 = vadd.f32 %v10602, %v10658
  %v10673 = vadd.f32 %v10603, %v10658
  %v10674 = vadd.f32 %v10604, %v10658
  %v10675 = vadd.f32 %v10605, %v10658
  %v10676 = vadd.f32 %v10606, %v10658
  %v10677 = vadd.f32 %v10607, %v10658
  %v10678 = vadd.f32 %v10608, %v10658
  %v10679 = vadd.f32 %v10609, %v10658
  %v10680 = vadd.f32 %v10610, %v10658
  %v10681 = vadd.f32 %v10611, %v10658
  %v10682 = vadd.f32 %v10612, %v10658
  %v10683 = vadd.f32 %v10613, %v10658
  %v10684 = vadd.f32 %v10614, %v10658
  %v10685 = vadd.f32 %v10615, %v10658
  %v10686 = vadd.f32 %v10616, %v10658
  %v10687 = vadd.f32 %v10617, %v10658
  %v10688 = vadd.f32 %v10618, %v10658
  %v10689 = vadd.f32 %v10619, %v10658
  %v10690 = vadd.f32 %v10620, %v10658
  %v10691 = vadd.f32 %v10621, %v10658
  %v10692 = vadd.f32 %v10622, %v10658
  %v10693 = vadd.f32 %v10623, %v10658
  %v10694 = vadd.f32 %v10624, %v10658
  %v10695 = vadd.f32 %v10625, %v10658
  %v10696 = vadd.f32 %v10626, %v10658
  %v10697 = vadd.f32 %v10627, %v10658
  %v10698 = vadd.f32 %v10628, %v10658
  %v10699 = vadd.f32 %v10629, %v10658
  %v10700 = vadd.f32 %v10630, %v10658
  %v10701 = vadd.f32 %v10631, %v10658
  %v10702 = vadd.f32 %v10632, %v10658
  %v10703 = vadd.f32 %v10633, %v10658
  %v10704 = vadd.f32 %v10634, %v10658
  %v10705 = vadd.f32 %v10635, %v10658
  %v10706 = vadd.f32 %v10636, %v10658
  %v10707 = vadd.f32 %v10637, %v10658
  %v10708 = vadd.f32 %v10638, %v10658
  %v10709 = vadd.f32 %v10639, %v10658
  %v10710 = vadd.f32 %v10640, %v10658
  %v10711 = vadd.f32 %v10641, %v10658
  %v10712 = vadd.f32 %v10642, %v10658
  %v10713 = vadd.f32 %v10643, %v10658
  %v10714 = vadd.f32 %v10644, %v10658
  %v10715 = vadd.f32 %v10645, %v10658
  %v10716 = vadd.f32 %v10646, %v10658
  %v10717 = vadd.f32 %v10647, %v10658
  %v10718 = vadd.f32 %v10648, %v10658
  %v10719 = vadd.f32 %v10649, %v10658
  %v10720 = vadd.f32 %v10650, %v10658
  %v10721 = vadd.f32 %v10651, %v10658
  %v10722 = vadd.f32 %v10652, %v10658
  %v10723 = vadd.f32 %v10653, %v10658
  %v10724 = vmax.f32 %v10660, 0.0
  %v10725 = vmax.f32 %v10661, 0.0
  %v10726 = vmax.f32 %v10662, 0.0
  %v10727 = vmax.f32 %v10663, 0.0
  %v10728 = vmax.f32 %v10664, 0.0
  %v10729 = vmax.f32 %v10665, 0.0
  %v10730 = vmax.f32 %v10666, 0.0
  %v10731 = vmax.f32 %v10667, 0.0
  %v10732 = vmax.f32 %v10668, 0.0
  %v10733 = vmax.f32 %v10669, 0.0
  %v10734 = vmax.f32 %v10670, 0.0
  %v10735 = vmax.f32 %v10671, 0.0
  %v10736 = vmax.f32 %v10672, 0.0
  %v10737 = vmax.f32 %v10673, 0.0
  %v10738 = vmax.f32 %v10674, 0.0
  %v10739 = vmax.f32 %v10675, 0.0
  %v10740 = vmax.f32 %v10676, 0.0
  %v10741 = vmax.f32 %v10677, 0.0
  %v10742 = vmax.f32 %v10678, 0.0
  %v10743 = vmax.f32 %v10679, 0.0
  %v10744 = vmax.f32 %v10680, 0.0
  %v10745 = vmax.f32 %v10681, 0.0
  %v10746 = vmax.f32 %v10682, 0.0
  %v10747 = vmax.f32 %v10683, 0.0
  %v10748 = vmax.f32 %v10684, 0.0
  %v10749 = vmax.f32 %v10685, 0.0
  %v10750 = vmax.f32 %v10686, 0.0
  %v10751 = vmax.f32 %v10687, 0.0
  %v10752 = vmax.f32 %v10688, 0.0
  %v10753 = vmax.f32 %v10689, 0.0
  %v10754 = vmax.f32 %v10690, 0.0
  %v10755 = vmax.f32 %v10691, 0.0
  %v10756 = vmax.f32 %v10692, 0.0
  %v10757 = vmax.f32 %v10693, 0.0
  %v10758 = vmax.f32 %v10694, 0.0
  %v10759 = vmax.f32 %v10695, 0.0
  %v10760 = vmax.f32 %v10696, 0.0
  %v10761 = vmax.f32 %v10697, 0.0
  %v10762 = vmax.f32 %v10698, 0.0
  %v10763 = vmax.f32 %v10699, 0.0
  %v10764 = vmax.f32 %v10700, 0.0
  %v10765 = vmax.f32 %v10701, 0.0
  %v10766 = vmax.f32 %v10702, 0.0
  %v10767 = vmax.f32 %v10703, 0.0
  %v10768 = vmax.f32 %v10704, 0.0
  %v10769 = vmax.f32 %v10705, 0.0
  %v10770 = vmax.f32 %v10706, 0.0
  %v10771 = vmax.f32 %v10707, 0.0
  %v10772 = vmax.f32 %v10708, 0.0
  %v10773 = vmax.f32 %v10709, 0.0
  %v10774 = vmax.f32 %v10710, 0.0
  %v10775 = vmax.f32 %v10711, 0.0
  %v10776 = vmax.f32 %v10712, 0.0
  %v10777 = vmax.f32 %v10713, 0.0
  %v10778 = vmax.f32 %v10714, 0.0
  %v10779 = vmax.f32 %v10715, 0.0
  %v10780 = vmax.f32 %v10716, 0.0
  %v10781 = vmax.f32 %v10717, 0.0
  %v10782 = vmax.f32 %v10718, 0.0
  %v10783 = vmax.f32 %v10719, 0.0
  %v10784 = vmax.f32 %v10720, 0.0
  %v10785 = vmax.f32 %v10721, 0.0
  %v10786 = vmax.f32 %v10722, 0.0
  %v10787 = vmax.f32 %v10723, 0.0
  %10788 = vst [vmem:[%s7] sm:$0xff] %v10724
  %10789 = vst [vmem:[%s7 + $0x8] sm:$0xff] %v10725
  %10790 = vst [vmem:[%s7 + $0x10] sm:$0xff] %v10726
  %10791 = vst [vmem:[%s7 + $0x18] sm:$0xff] %v10727
  %10792 = vst [vmem:[%s7 + $0x20] sm:$0xff] %v10728
  %10793 = vst [vmem:[%s7 + $0x28] sm:$0xff] %v10729
  %10794 = vst [vmem:[%s7 + $0x30] sm:$0xff] %v10730
  %10795 = vst [vmem:[%s7 + $0x38] sm:$0xff] %v10731
  %10796 = vst [vmem:[%s7 + $0x40] sm:$0xff] %v10732
  %10797 = vst [vmem:[%s7 + $0x48] sm:$0xff] %v10733
  %10798 = vst [vmem:[%s7 + $0x50] sm:$0xff] %v10734
  %10799 = vst [vmem:[%s7 + $0x58] sm:$0xff] %v10735
  %10800 = vst [vmem:[%s7 + $0x60] sm:$0xff] %v10736
  %10801 = vst [vmem:[%s7 + $0x68] sm:$0xff] %v10737
  %10802 = vst [vmem:[%s7 + $0x70] sm:$0xff] %v10738
  %10803 = vst [vmem:[%s7 + $0x78] sm:$0xff] %v10739
  %10804 = vst [vmem:[%s7 + $0x80] sm:$0xff] %v10740
  %10805 = vst [vmem:[%s7 + $0x88] sm:$0xff] %v10741
  %10806 = vst [vmem:[%s7 + $0x90] sm:$0xff] %v10742
  %10807 = vst [vmem:[%s7 + $0x98] sm:$0xff] %v10743
  %10808 = vst [vmem:[%s7 + $0xa0] sm:$0xff] %v10744
  %10809 = vst [vmem:[%s7 + $0xa8] sm:$0xff] %v10745
  %10810 = vst [vmem:[%s7 + $0xb0] sm:$0xff] %v10746
  %10811 = vst [vmem:[%s7 + $0xb8] sm:$0xff] %v10747
  %10812 = vst [vmem:[%s7 + $0xc0] sm:$0xff] %v10748
  %10813 = vst [vmem:[%s7 + $0xc8] sm:$0xff] %v10749
  %10814 = vst [vmem:[%s7 + $0xd0] sm:$0xff] %v10750
  %10815 = vst [vmem:[%s7 + $0xd8] sm:$0xff] %v10751
  %10816 = vst [vmem:[%s7 + $0xe0] sm:$0xff] %v10752
  %10817 = vst [vmem:[%s7 + $0xe8] sm:$0xff] %v10753
  %10818 = vst [vmem:[%s7 + $0xf0] sm:$0xff] %v10754
  %10819 = vst [vmem:[%s7 + $0xf8] sm:$0xff] %v10755
  %10820 = vst [vmem:[%s7 + $0x100] sm:$0xff] %v10756
  %10821 = vst [vmem:[%s7 + $0x108] sm:$0xff] %v10757
  %10822 = vst [vmem:[%s7 + $0x110] sm:$0xff] %v10758
  %10823 = vst [vmem:[%s7 + $0x118] sm:$0xff] %v10759
  %10824 = vst [vmem:[%s7 + $0x120] sm:$0xff] %v10760
  %10825 = vst [vmem:[%s7 + $0x128] sm:$0xff] %v10761
  %10826 = vst [vmem:[%s7 + $0x130] sm:$0xff] %v10762
  %10827 = vst [vmem:[%s7 + $0x138] sm:$0xff] %v10763
  %10828 = vst [vmem:[%s7 + $0x140] sm:$0xff] %v10764
  %10829 = vst [vmem:[%s7 + $0x148] sm:$0xff] %v10765
  %10830 = vst [vmem:[%s7 + $0x150] sm:$0xff] %v10766
  %10831 = vst [vmem:[%s7 + $0x158] sm:$0xff] %v10767
  %10832 = vst [vmem:[%s7 + $0x160] sm:$0xff] %v10768
  %10833 = vst [vmem:[%s7 + $0x168] sm:$0xff] %v10769
  %10834 = vst [vmem:[%s7 + $0x170] sm:$0xff] %v10770
  %10835 = vst [vmem:[%s7 + $0x178] sm:$0xff] %v10771
  %10836 = vst [vmem:[%s7 + $0x180] sm:$0xff] %v10772
  %10837 = vst [vmem:[%s7 + $0x188] sm:$0xff] %v10773
  %10838 = vst [vmem:[%s7 + $0x190] sm:$0xff] %v10774
  %10839 = vst [vmem:[%s7 + $0x198] sm:$0xff] %v10775
  %10840 = vst [vmem:[%s7 + $0x1a0] sm:$0xff] %v10776
  %10841 = vst [vmem:[%s7 + $0x1a8] sm:$0xff] %v10777
  %10842 = vst [vmem:[%s7 + $0x1b0] sm:$0xff] %v10778
  %10843 = vst [vmem:[%s7 + $0x1b8] sm:$0xff] %v10779
  %10844 = vst [vmem:[%s7 + $0x1c0] sm:$0xff] %v10780
  %10845 = vst [vmem:[%s7 + $0x1c8] sm:$0xff] %v10781
  %10846 = vst [vmem:[%s7 + $0x1d0] sm:$0xff] %v10782
  %10847 = vst [vmem:[%s7 + $0x1d8] sm:$0xff] %v10783
  %10848 = vst [vmem:[%s7 + $0x1e0] sm:$0xff] %v10784
  %10849 = vst [vmem:[%s7 + $0x1e8] sm:$0xff] %v10785
  %10850 = vst [vmem:[%s7 + $0x1f0] sm:$0xff] %v10786
  %10851 = vst [vmem:[%s7 + $0x1f8] sm:$0xff] %v10787
  // Predicated region
  $region30: #{double_conv.1} parent=0 // pred_check
    _
  $region31: #{double_conv.1} parent=0 // pred_check_branch
    %10853 = sbr.rel (0) target = $region33
  $region32: #{double_conv.1} parent=0 // pred_region
    _
  $region33: #{double_conv.1} parent=0 // pred_fallthru
    _
  // Predicated region
  $region34: #{double_conv.1} parent=0 // pred_check
    _
  $region35: #{double_conv.1} parent=0 // pred_check_branch
    %10855 = sbr.rel (0) target = $region37
  $region36: #{double_conv.1} parent=0 // pred_region
    _
  $region37: #{double_conv.1} parent=0 // pred_fallthru
    _

</llo_original>
